<compile_context>
chip_gen: v5e
topology: v5e:2x2
jax: 0.10.0
libtpu: 0.0.40
codegen_flags: <defaults>
</compile_context>

<pallas_src>
import jax
import jax.numpy as jnp
from jax.experimental import pallas as pl
from jax.experimental.pallas import tpu as pltpu

SEQ_LEN = 5
ONE_HOT_CH = 20
COORD_CH = 531
BN_EPS = 1e-5


def el_kernel(x_ref, coords_ref,
              w1_ref, b1_ref, w2_ref, b2_ref, w3_ref, b3_ref,
              wp1_ref, bp1_ref,
              wm1_ref, bm1_ref, g1_ref, be1_ref,
              wm2_ref, bm2_ref, g2_ref, be2_ref,
              wm3_ref, bm3_ref, g3_ref, be3_ref,
              wp2_ref, bp2_ref, wp3_ref, bp3_ref,
              wo_ref, bo_ref, wo2_ref, bo2_ref,
              out_ref,
              cat96_ref, p1in_ref, cat64_ref):
    f32 = jnp.float32
    bf16 = jnp.bfloat16
    LB = x_ref.shape[0]            # L * B
    B = out_ref.shape[0]
    L = LB // B

    def mm(a, w_ref):
        # bf16 MXU matmul, f32 accumulation. Weights are pre-cast to bf16.
        return jnp.dot(a.astype(bf16), w_ref[...], preferred_element_type=f32)

    def relu(v):
        return jnp.maximum(v, 0.0)

    # ---------------- conv branch (fused across the L positions) ----------------
    # conv1 (k=1) + conv2 (k=1): one matmul each on the (L*B, C) slab.
    h1 = relu(mm(x_ref[...], w1_ref) + b1_ref[...])          # (L*B, 16)
    h2 = relu(mm(h1, w2_ref) + b2_ref[...])                   # (L*B, 32)

    # conv3 (k=3, padding=1): assemble [left | mid | right] neighbor slab in
    # VMEM scratch (zero rows at the sequence borders) -> one K=96 matmul.
    cat96_ref[...] = jnp.zeros_like(cat96_ref)
    cat96_ref[:, 32:64] = h2                                   # tap k=1 (center)
    cat96_ref[B:LB, 0:32] = h2[0:LB - B, :]                    # tap k=0 (l-1)
    cat96_ref[0:LB - B, 64:96] = h2[B:LB, :]                   # tap k=2 (l+1)
    y3 = relu(mm(cat96_ref[...], w3_ref) + b3_ref[...])        # (L*B, 64)

    # penult1: regroup (L*B, 64) -> (B, L*64) and do one (B,320)@(320,32) matmul.
    # wp1 is pre-permuted in the wrapper so column l*64+c matches PyTorch's
    # channel-major flatten index c*L+l.
    for l in range(L):
        p1in_ref[:, l * 64:(l + 1) * 64] = y3[l * B:(l + 1) * B, :]
    seq_out = relu(mm(p1in_ref[...], wp1_ref) + bp1_ref[...])  # (B, 32)

    # ---------------- coordinate MLP branch ----------------
    def bn_train(h, g_ref, be_ref):
        # Training-mode BatchNorm1d: biased batch statistics, f32 math.
        mean = jnp.mean(h, axis=0, keepdims=True)
        var = jnp.mean(jnp.square(h - mean), axis=0, keepdims=True)
        return g_ref[...] * (h - mean) * jax.lax.rsqrt(var + BN_EPS) + be_ref[...]

    c = coords_ref[...]                                                   # (B, 2655)
    m1 = bn_train(relu(mm(c, wm1_ref) + bm1_ref[...]), g1_ref, be1_ref)    # (B, 531)
    m2 = bn_train(relu(mm(m1, wm2_ref) + bm2_ref[...]), g2_ref, be2_ref)   # (B, 256)
    m3 = bn_train(relu(mm(m2, wm3_ref) + bm3_ref[...]), g3_ref, be3_ref)   # (B, 128)
    coord_out = relu(mm(m3, wp2_ref) + bp2_ref[...])                       # (B, 32)

    # ---------------- head ----------------
    cat64_ref[:, 0:32] = seq_out
    cat64_ref[:, 32:64] = coord_out
    o = mm(cat64_ref[...], wp3_ref) + bp3_ref[...]                         # (B, 32)
    o = mm(o, wo_ref) + bo_ref[...]                                        # (B, 16)
    o = mm(o, wo2_ref) + bo2_ref[...]                                      # (B, 2)

    m = jnp.max(o, axis=1, keepdims=True)
    e = jnp.exp(o - m)
    out_ref[...] = e / jnp.sum(e, axis=1, keepdims=True)                   # softmax(dim=1)


def init_params(key, coord_channels=COORD_CH, seq_len=SEQ_LEN,
                one_hot_channels=ONE_HOT_CH):
    keys = iter(jax.random.split(key, 24))

    def w(shape, scale=0.05):
        return jax.random.normal(next(keys), shape, jnp.float32) * scale

    p = {}
    p["conv1_w"] = w((16, one_hot_channels, 1)); p["conv1_b"] = w((16,))
    p["conv2_w"] = w((32, 16, 1));               p["conv2_b"] = w((32,))
    p["conv3_w"] = w((64, 32, 3));               p["conv3_b"] = w((64,))
    p["penult1_w"] = w((32, 64 * seq_len));      p["penult1_b"] = w((32,))
    p["mlp1_w"] = w((coord_channels, coord_channels * seq_len))
    p["mlp1_b"] = w((coord_channels,))
    p["bn1_g"] = jnp.ones((coord_channels,), jnp.float32)
    p["bn1_b"] = jnp.zeros((coord_channels,), jnp.float32)
    p["mlp2_w"] = w((256, coord_channels));      p["mlp2_b"] = w((256,))
    p["bn2_g"] = jnp.ones((256,), jnp.float32);  p["bn2_b"] = jnp.zeros((256,), jnp.float32)
    p["mlp3_w"] = w((128, 256));                 p["mlp3_b"] = w((128,))
    p["bn3_g"] = jnp.ones((128,), jnp.float32);  p["bn3_b"] = jnp.zeros((128,), jnp.float32)
    p["penult2_w"] = w((32, 128));               p["penult2_b"] = w((32,))
    p["penult3_w"] = w((32, 64));                p["penult3_b"] = w((32,))
    p["out_w"] = w((16, 32));                    p["out_b"] = w((16,))
    p["out2_w"] = w((2, 16));                    p["out2_b"] = w((2,))
    return p


def prepare_params(params, seq_len=SEQ_LEN):
    """One-time conversion of PyTorch-layout params into kernel operands:
    pre-transposed to (in, out), fused/reshaped, matmul weights cast to bf16."""
    f32 = jnp.float32
    bf16 = jnp.bfloat16
    row = lambda v: v.reshape(1, -1).astype(f32)
    wt = lambda m: jnp.transpose(m).astype(bf16)
    p = params

    # conv3 (64, 32, 3) -> (96, 64): rows ordered k*32 + c_in, matching the
    # [left | mid | right] slab built in the kernel.
    w3 = jnp.transpose(p["conv3_w"], (2, 1, 0)).reshape(3 * 32, 64).astype(bf16)
    # penult1 (32, 320) with PyTorch channel-major flatten c*L+l folded into a
    # (L*64, 32) weight whose row index is l*64 + c (kernel slab layout).
    wp1 = jnp.transpose(p["penult1_w"].reshape(32, 64, seq_len),
                        (2, 1, 0)).reshape(seq_len * 64, 32).astype(bf16)

    return [
        p["conv1_w"][:, :, 0].T.astype(bf16), row(p["conv1_b"]),
        p["conv2_w"][:, :, 0].T.astype(bf16), row(p["conv2_b"]),
        w3, row(p["conv3_b"]),
        wp1, row(p["penult1_b"]),
        wt(p["mlp1_w"]), row(p["mlp1_b"]), row(p["bn1_g"]), row(p["bn1_b"]),
        wt(p["mlp2_w"]), row(p["mlp2_b"]), row(p["bn2_g"]), row(p["bn2_b"]),
        wt(p["mlp3_w"]), row(p["mlp3_b"]), row(p["bn3_g"]), row(p["bn3_b"]),
        wt(p["penult2_w"]), row(p["penult2_b"]),
        wt(p["penult3_w"]), row(p["penult3_b"]),
        wt(p["out_w"]), row(p["out_b"]),
        wt(p["out2_w"]), row(p["out2_b"]),
    ]


def el_forward(one_hot_motif, coords, kernel_params):
    # layout: one_hot_motif is NCL (B, 20, L); reshape to a (L*B, 20) slab with
    # row index l*B + b so the k=3 conv becomes contiguous sublane-slab shifts.
    B = one_hot_motif.shape[0]
    L = one_hot_motif.shape[2]
    x_slab = jnp.transpose(one_hot_motif.astype(jnp.float32),
                           (2, 0, 1)).reshape(L * B, -1)
    args = [x_slab, coords.astype(jnp.float32)] + list(kernel_params)
    vmem = pl.BlockSpec(memory_space=pltpu.MemorySpace.VMEM)
    return pl.pallas_call(
        el_kernel,
        out_shape=jax.ShapeDtypeStruct((B, 2), jnp.float32),
        in_specs=[vmem] * len(args),
        out_specs=vmem,
        scratch_shapes=[
            pltpu.VMEM((L * B, 96), jnp.float32),   # conv3 neighbor slab
            pltpu.VMEM((B, 64 * L), jnp.float32),   # penult1 input slab
            pltpu.VMEM((B, 64), jnp.float32),       # [seq_out, coord_out] concat
        ],
        compiler_params=pltpu.CompilerParams(vmem_limit_bytes=16 * 1024 * 1024),
    )(*args)


el_forward_jit = jax.jit(el_forward)


if __name__ == "__main__":
    key = jax.random.PRNGKey(0)
    k_param, k_idx, k_coord = jax.random.split(key, 3)
    params = init_params(k_param)
    kernel_params = prepare_params(params)   # one-time weight prep (bf16 etc.)

    B = 4
    motif_idx = jax.random.randint(k_idx, (B, SEQ_LEN), 0, ONE_HOT_CH)
    one_hot_motif = jnp.transpose(
        jax.nn.one_hot(motif_idx, ONE_HOT_CH, dtype=jnp.float32), (0, 2, 1))  # (B, 20, 5) NCL
    coords = jax.random.normal(k_coord, (B, COORD_CH * SEQ_LEN), jnp.float32)  # (B, 2655)

    out = el_forward_jit(one_hot_motif, coords, kernel_params)
    jax.block_until_ready(out)
    assert out.shape == (B, 2)
    assert bool(jnp.all(jnp.isfinite(out)))
    assert bool(jnp.allclose(jnp.sum(out, axis=1), 1.0, atol=1e-3))
    print("KERNEL_OK")
</pallas_src>

<mosaic_0001>
module attributes {stable_mosaic.version = 11 : i64} {
  func.func @el_kernel(%arg0: memref<20x20xf32, #tpu.memory_space<vmem>>, %arg1: memref<4x2655xf32, #tpu.memory_space<vmem>>, %arg2: memref<20x16xbf16, #tpu.memory_space<vmem>>, %arg3: memref<1x16xf32, #tpu.memory_space<vmem>>, %arg4: memref<16x32xbf16, #tpu.memory_space<vmem>>, %arg5: memref<1x32xf32, #tpu.memory_space<vmem>>, %arg6: memref<96x64xbf16, #tpu.memory_space<vmem>>, %arg7: memref<1x64xf32, #tpu.memory_space<vmem>>, %arg8: memref<320x32xbf16, #tpu.memory_space<vmem>>, %arg9: memref<1x32xf32, #tpu.memory_space<vmem>>, %arg10: memref<2655x531xbf16, #tpu.memory_space<vmem>>, %arg11: memref<1x531xf32, #tpu.memory_space<vmem>>, %arg12: memref<1x531xf32, #tpu.memory_space<vmem>>, %arg13: memref<1x531xf32, #tpu.memory_space<vmem>>, %arg14: memref<531x256xbf16, #tpu.memory_space<vmem>>, %arg15: memref<1x256xf32, #tpu.memory_space<vmem>>, %arg16: memref<1x256xf32, #tpu.memory_space<vmem>>, %arg17: memref<1x256xf32, #tpu.memory_space<vmem>>, %arg18: memref<256x128xbf16, #tpu.memory_space<vmem>>, %arg19: memref<1x128xf32, #tpu.memory_space<vmem>>, %arg20: memref<1x128xf32, #tpu.memory_space<vmem>>, %arg21: memref<1x128xf32, #tpu.memory_space<vmem>>, %arg22: memref<128x32xbf16, #tpu.memory_space<vmem>>, %arg23: memref<1x32xf32, #tpu.memory_space<vmem>>, %arg24: memref<64x32xbf16, #tpu.memory_space<vmem>>, %arg25: memref<1x32xf32, #tpu.memory_space<vmem>>, %arg26: memref<32x16xbf16, #tpu.memory_space<vmem>>, %arg27: memref<1x16xf32, #tpu.memory_space<vmem>>, %arg28: memref<16x2xbf16, #tpu.memory_space<vmem>>, %arg29: memref<1x2xf32, #tpu.memory_space<vmem>>, %arg30: memref<4x2xf32, #tpu.memory_space<vmem>>, %arg31: memref<20x96xf32, #tpu.memory_space<vmem>>, %arg32: memref<4x320xf32, #tpu.memory_space<vmem>>, %arg33: memref<4x64xf32, #tpu.memory_space<vmem>>) attributes {dimension_semantics = [], scalar_prefetch = 0 : i64, scratch_operands = 3 : i64, tpu.core_type = #tpu.core_type<tc>} {
    %c0 = arith.constant 0 : index
    %c0_0 = arith.constant 0 : index
    %0 = vector.load %arg0[%c0, %c0_0] : memref<20x20xf32, #tpu.memory_space<vmem>>, vector<20x20xf32>
    %1 = arith.truncf %0 : vector<20x20xf32> to vector<20x20xbf16>
    %c0_1 = arith.constant 0 : index
    %c0_2 = arith.constant 0 : index
    %2 = vector.load %arg2[%c0_1, %c0_2] : memref<20x16xbf16, #tpu.memory_space<vmem>>, vector<20x16xbf16>
    %cst = arith.constant dense<0.000000e+00> : vector<20x16xf32>
    %3 = tpu.matmul %1, %2, %cst {dimension_numbers = #tpu.dot_dimension_numbers<[1], [0], [0], [1], [0, 0, 1, 1], [], []>} : vector<20x20xbf16>, vector<20x16xbf16>, vector<20x16xf32> -> vector<20x16xf32>
    %c0_3 = arith.constant 0 : index
    %c0_4 = arith.constant 0 : index
    %4 = vector.load %arg3[%c0_3, %c0_4] : memref<1x16xf32, #tpu.memory_space<vmem>>, vector<1x16xf32>
    %5 = vector.broadcast %4 : vector<1x16xf32> to vector<20x16xf32>
    %6 = arith.addf %3, %5 : vector<20x16xf32>
    %cst_5 = arith.constant 0.000000e+00 : f32
    %7 = vector.broadcast %cst_5 : f32 to vector<20x16xf32>
    %8 = arith.maximumf %6, %7 : vector<20x16xf32>
    %9 = arith.truncf %8 : vector<20x16xf32> to vector<20x16xbf16>
    %c0_6 = arith.constant 0 : index
    %c0_7 = arith.constant 0 : index
    %10 = vector.load %arg4[%c0_6, %c0_7] : memref<16x32xbf16, #tpu.memory_space<vmem>>, vector<16x32xbf16>
    %cst_8 = arith.constant dense<0.000000e+00> : vector<20x32xf32>
    %11 = tpu.matmul %9, %10, %cst_8 {dimension_numbers = #tpu.dot_dimension_numbers<[1], [0], [0], [1], [0, 0, 1, 1], [], []>} : vector<20x16xbf16>, vector<16x32xbf16>, vector<20x32xf32> -> vector<20x32xf32>
    %c0_9 = arith.constant 0 : index
    %c0_10 = arith.constant 0 : index
    %12 = vector.load %arg5[%c0_9, %c0_10] : memref<1x32xf32, #tpu.memory_space<vmem>>, vector<1x32xf32>
    %13 = vector.broadcast %12 : vector<1x32xf32> to vector<20x32xf32>
    %14 = arith.addf %11, %13 : vector<20x32xf32>
    %cst_11 = arith.constant 0.000000e+00 : f32
    %15 = vector.broadcast %cst_11 : f32 to vector<20x32xf32>
    %16 = arith.maximumf %14, %15 : vector<20x32xf32>
    %cst_12 = arith.constant 0.000000e+00 : f32
    %17 = vector.broadcast %cst_12 : f32 to vector<20x96xf32>
    %c0_13 = arith.constant 0 : index
    %c0_14 = arith.constant 0 : index
    %18 = vector.load %arg31[%c0_13, %c0_14] : memref<20x96xf32, #tpu.memory_space<vmem>>, vector<20x96xf32>
    tpu.vector_store %arg31[%c0_13, %c0_14], %17 {strides = array<i32>} : memref<20x96xf32, #tpu.memory_space<vmem>>, vector<20x96xf32>,
    %c0_15 = arith.constant 0 : index
    %c32 = arith.constant 32 : index
    %19 = vector.load %arg31[%c0_15, %c32] : memref<20x96xf32, #tpu.memory_space<vmem>>, vector<20x32xf32>
    tpu.vector_store %arg31[%c0_15, %c32], %16 {strides = array<i32>} : memref<20x96xf32, #tpu.memory_space<vmem>>, vector<20x32xf32>,
    %20 = vector.extract_strided_slice %16 {offsets = [0, 0], sizes = [16, 32], strides = [1, 1]} : vector<20x32xf32> to vector<16x32xf32>
    %c4 = arith.constant 4 : index
    %c0_16 = arith.constant 0 : index
    %21 = vector.load %arg31[%c4, %c0_16] : memref<20x96xf32, #tpu.memory_space<vmem>>, vector<16x32xf32>
    tpu.vector_store %arg31[%c4, %c0_16], %20 {strides = array<i32>} : memref<20x96xf32, #tpu.memory_space<vmem>>, vector<16x32xf32>,
    %22 = vector.extract_strided_slice %16 {offsets = [4, 0], sizes = [16, 32], strides = [1, 1]} : vector<20x32xf32> to vector<16x32xf32>
    %c0_17 = arith.constant 0 : index
    %c64 = arith.constant 64 : index
    %23 = vector.load %arg31[%c0_17, %c64] : memref<20x96xf32, #tpu.memory_space<vmem>>, vector<16x32xf32>
    tpu.vector_store %arg31[%c0_17, %c64], %22 {strides = array<i32>} : memref<20x96xf32, #tpu.memory_space<vmem>>, vector<16x32xf32>,
    %c0_18 = arith.constant 0 : index
    %c0_19 = arith.constant 0 : index
    %24 = vector.load %arg31[%c0_18, %c0_19] : memref<20x96xf32, #tpu.memory_space<vmem>>, vector<20x96xf32>
    %25 = arith.truncf %24 : vector<20x96xf32> to vector<20x96xbf16>
    %c0_20 = arith.constant 0 : index
    %c0_21 = arith.constant 0 : index
    %26 = vector.load %arg6[%c0_20, %c0_21] : memref<96x64xbf16, #tpu.memory_space<vmem>>, vector<96x64xbf16>
    %cst_22 = arith.constant dense<0.000000e+00> : vector<20x64xf32>
    %27 = tpu.matmul %25, %26, %cst_22 {dimension_numbers = #tpu.dot_dimension_numbers<[1], [0], [0], [1], [0, 0, 1, 1], [], []>} : vector<20x96xbf16>, vector<96x64xbf16>, vector<20x64xf32> -> vector<20x64xf32>
    %c0_23 = arith.constant 0 : index
    %c0_24 = arith.constant 0 : index
    %28 = vector.load %arg7[%c0_23, %c0_24] : memref<1x64xf32, #tpu.memory_space<vmem>>, vector<1x64xf32>
    %29 = vector.broadcast %28 : vector<1x64xf32> to vector<20x64xf32>
    %30 = arith.addf %27, %29 : vector<20x64xf32>
    %cst_25 = arith.constant 0.000000e+00 : f32
    %31 = vector.broadcast %cst_25 : f32 to vector<20x64xf32>
    %32 = arith.maximumf %30, %31 : vector<20x64xf32>
    %33 = vector.extract_strided_slice %32 {offsets = [0, 0], sizes = [4, 64], strides = [1, 1]} : vector<20x64xf32> to vector<4x64xf32>
    %c0_26 = arith.constant 0 : index
    %c0_27 = arith.constant 0 : index
    %34 = vector.load %arg32[%c0_26, %c0_27] : memref<4x320xf32, #tpu.memory_space<vmem>>, vector<4x64xf32>
    tpu.vector_store %arg32[%c0_26, %c0_27], %33 {strides = array<i32>} : memref<4x320xf32, #tpu.memory_space<vmem>>, vector<4x64xf32>,
    %35 = vector.extract_strided_slice %32 {offsets = [4, 0], sizes = [4, 64], strides = [1, 1]} : vector<20x64xf32> to vector<4x64xf32>
    %c0_28 = arith.constant 0 : index
    %c64_29 = arith.constant 64 : index
    %36 = vector.load %arg32[%c0_28, %c64_29] : memref<4x320xf32, #tpu.memory_space<vmem>>, vector<4x64xf32>
    tpu.vector_store %arg32[%c0_28, %c64_29], %35 {strides = array<i32>} : memref<4x320xf32, #tpu.memory_space<vmem>>, vector<4x64xf32>,
    %37 = vector.extract_strided_slice %32 {offsets = [8, 0], sizes = [4, 64], strides = [1, 1]} : vector<20x64xf32> to vector<4x64xf32>
    %c0_30 = arith.constant 0 : index
    %c128 = arith.constant 128 : index
    %38 = vector.load %arg32[%c0_30, %c128] : memref<4x320xf32, #tpu.memory_space<vmem>>, vector<4x64xf32>
    tpu.vector_store %arg32[%c0_30, %c128], %37 {strides = array<i32>} : memref<4x320xf32, #tpu.memory_space<vmem>>, vector<4x64xf32>,
    %39 = vector.extract_strided_slice %32 {offsets = [12, 0], sizes = [4, 64], strides = [1, 1]} : vector<20x64xf32> to vector<4x64xf32>
    %c0_31 = arith.constant 0 : index
    %c192 = arith.constant 192 : index
    %40 = vector.load %arg32[%c0_31, %c192] : memref<4x320xf32, #tpu.memory_space<vmem>>, vector<4x64xf32>
    tpu.vector_store %arg32[%c0_31, %c192], %39 {strides = array<i32>} : memref<4x320xf32, #tpu.memory_space<vmem>>, vector<4x64xf32>,
    %41 = vector.extract_strided_slice %32 {offsets = [16, 0], sizes = [4, 64], strides = [1, 1]} : vector<20x64xf32> to vector<4x64xf32>
    %c0_32 = arith.constant 0 : index
    %c256 = arith.constant 256 : index
    %42 = vector.load %arg32[%c0_32, %c256] : memref<4x320xf32, #tpu.memory_space<vmem>>, vector<4x64xf32>
    tpu.vector_store %arg32[%c0_32, %c256], %41 {strides = array<i32>} : memref<4x320xf32, #tpu.memory_space<vmem>>, vector<4x64xf32>,
    %c0_33 = arith.constant 0 : index
    %c0_34 = arith.constant 0 : index
    %43 = vector.load %arg32[%c0_33, %c0_34] : memref<4x320xf32, #tpu.memory_space<vmem>>, vector<4x320xf32>
    %44 = arith.truncf %43 : vector<4x320xf32> to vector<4x320xbf16>
    %c0_35 = arith.constant 0 : index
    %c0_36 = arith.constant 0 : index
    %45 = vector.load %arg8[%c0_35, %c0_36] : memref<320x32xbf16, #tpu.memory_space<vmem>>, vector<320x32xbf16>
    %cst_37 = arith.constant dense<0.000000e+00> : vector<4x32xf32>
    %46 = tpu.matmul %44, %45, %cst_37 {dimension_numbers = #tpu.dot_dimension_numbers<[1], [0], [0], [1], [0, 0, 1, 1], [], []>} : vector<4x320xbf16>, vector<320x32xbf16>, vector<4x32xf32> -> vector<4x32xf32>
    %c0_38 = arith.constant 0 : index
    %c0_39 = arith.constant 0 : index
    %47 = vector.load %arg9[%c0_38, %c0_39] : memref<1x32xf32, #tpu.memory_space<vmem>>, vector<1x32xf32>
    %48 = vector.broadcast %47 : vector<1x32xf32> to vector<4x32xf32>
    %49 = arith.addf %46, %48 : vector<4x32xf32>
    %cst_40 = arith.constant 0.000000e+00 : f32
    %50 = vector.broadcast %cst_40 : f32 to vector<4x32xf32>
    %51 = arith.maximumf %49, %50 : vector<4x32xf32>
    %c0_41 = arith.constant 0 : index
    %c0_42 = arith.constant 0 : index
    %52 = vector.load %arg1[%c0_41, %c0_42] : memref<4x2655xf32, #tpu.memory_space<vmem>>, vector<4x2655xf32>
    %53 = arith.truncf %52 : vector<4x2655xf32> to vector<4x2655xbf16>
    %c0_43 = arith.constant 0 : index
    %c0_44 = arith.constant 0 : index
    %54 = vector.load %arg10[%c0_43, %c0_44] : memref<2655x531xbf16, #tpu.memory_space<vmem>>, vector<2655x531xbf16>
    %cst_45 = arith.constant dense<0.000000e+00> : vector<4x531xf32>
    %55 = tpu.matmul %53, %54, %cst_45 {dimension_numbers = #tpu.dot_dimension_numbers<[1], [0], [0], [1], [0, 0, 1, 1], [], []>} : vector<4x2655xbf16>, vector<2655x531xbf16>, vector<4x531xf32> -> vector<4x531xf32>
    %c0_46 = arith.constant 0 : index
    %c0_47 = arith.constant 0 : index
    %56 = vector.load %arg11[%c0_46, %c0_47] : memref<1x531xf32, #tpu.memory_space<vmem>>, vector<1x531xf32>
    %57 = vector.broadcast %56 : vector<1x531xf32> to vector<4x531xf32>
    %58 = arith.addf %55, %57 : vector<4x531xf32>
    %cst_48 = arith.constant 0.000000e+00 : f32
    %59 = vector.broadcast %cst_48 : f32 to vector<4x531xf32>
    %60 = arith.maximumf %58, %59 : vector<4x531xf32>
    %cst_49 = arith.constant dense<0.000000e+00> : vector<531xf32>
    %61 = vector.multi_reduction <add>, %60, %cst_49 [0] : vector<4x531xf32> to vector<531xf32>
    %62 = vector.shape_cast %61 : vector<531xf32> to vector<1x531xf32>
    %cst_50 = arith.constant 4.000000e+00 : f32
    %63 = vector.broadcast %cst_50 : f32 to vector<1x531xf32>
    %64 = arith.divf %62, %63 : vector<1x531xf32>
    %65 = vector.broadcast %64 : vector<1x531xf32> to vector<4x531xf32>
    %66 = arith.subf %60, %65 : vector<4x531xf32>
    %67 = arith.mulf %66, %66 : vector<4x531xf32>
    %cst_51 = arith.constant dense<0.000000e+00> : vector<531xf32>
    %68 = vector.multi_reduction <add>, %67, %cst_51 [0] : vector<4x531xf32> to vector<531xf32>
    %69 = vector.shape_cast %68 : vector<531xf32> to vector<1x531xf32>
    %cst_52 = arith.constant 4.000000e+00 : f32
    %70 = vector.broadcast %cst_52 : f32 to vector<1x531xf32>
    %71 = arith.divf %69, %70 : vector<1x531xf32>
    %c0_53 = arith.constant 0 : index
    %c0_54 = arith.constant 0 : index
    %72 = vector.load %arg12[%c0_53, %c0_54] : memref<1x531xf32, #tpu.memory_space<vmem>>, vector<1x531xf32>
    %73 = vector.broadcast %64 : vector<1x531xf32> to vector<4x531xf32>
    %74 = arith.subf %60, %73 : vector<4x531xf32>
    %75 = vector.broadcast %72 : vector<1x531xf32> to vector<4x531xf32>
    %76 = arith.mulf %75, %74 : vector<4x531xf32>
    %cst_55 = arith.constant 9.99999974E-6 : f32
    %77 = vector.broadcast %cst_55 : f32 to vector<1x531xf32>
    %78 = arith.addf %71, %77 : vector<1x531xf32>
    %79 = math.rsqrt %78 : vector<1x531xf32>
    %80 = vector.broadcast %79 : vector<1x531xf32> to vector<4x531xf32>
    %81 = arith.mulf %76, %80 : vector<4x531xf32>
    %c0_56 = arith.constant 0 : index
    %c0_57 = arith.constant 0 : index
    %82 = vector.load %arg13[%c0_56, %c0_57] : memref<1x531xf32, #tpu.memory_space<vmem>>, vector<1x531xf32>
    %83 = vector.broadcast %82 : vector<1x531xf32> to vector<4x531xf32>
    %84 = arith.addf %81, %83 : vector<4x531xf32>
    %85 = arith.truncf %84 : vector<4x531xf32> to vector<4x531xbf16>
    %c0_58 = arith.constant 0 : index
    %c0_59 = arith.constant 0 : index
    %86 = vector.load %arg14[%c0_58, %c0_59] : memref<531x256xbf16, #tpu.memory_space<vmem>>, vector<531x256xbf16>
    %cst_60 = arith.constant dense<0.000000e+00> : vector<4x256xf32>
    %87 = tpu.matmul %85, %86, %cst_60 {dimension_numbers = #tpu.dot_dimension_numbers<[1], [0], [0], [1], [0, 0, 1, 1], [], []>} : vector<4x531xbf16>, vector<531x256xbf16>, vector<4x256xf32> -> vector<4x256xf32>
    %c0_61 = arith.constant 0 : index
    %c0_62 = arith.constant 0 : index
    %88 = vector.load %arg15[%c0_61, %c0_62] : memref<1x256xf32, #tpu.memory_space<vmem>>, vector<1x256xf32>
    %89 = vector.broadcast %88 : vector<1x256xf32> to vector<4x256xf32>
    %90 = arith.addf %87, %89 : vector<4x256xf32>
    %cst_63 = arith.constant 0.000000e+00 : f32
    %91 = vector.broadcast %cst_63 : f32 to vector<4x256xf32>
    %92 = arith.maximumf %90, %91 : vector<4x256xf32>
    %cst_64 = arith.constant dense<0.000000e+00> : vector<256xf32>
    %93 = vector.multi_reduction <add>, %92, %cst_64 [0] : vector<4x256xf32> to vector<256xf32>
    %94 = vector.shape_cast %93 : vector<256xf32> to vector<1x256xf32>
    %cst_65 = arith.constant 4.000000e+00 : f32
    %95 = vector.broadcast %cst_65 : f32 to vector<1x256xf32>
    %96 = arith.divf %94, %95 : vector<1x256xf32>
    %97 = vector.broadcast %96 : vector<1x256xf32> to vector<4x256xf32>
    %98 = arith.subf %92, %97 : vector<4x256xf32>
    %99 = arith.mulf %98, %98 : vector<4x256xf32>
    %cst_66 = arith.constant dense<0.000000e+00> : vector<256xf32>
    %100 = vector.multi_reduction <add>, %99, %cst_66 [0] : vector<4x256xf32> to vector<256xf32>
    %101 = vector.shape_cast %100 : vector<256xf32> to vector<1x256xf32>
    %cst_67 = arith.constant 4.000000e+00 : f32
    %102 = vector.broadcast %cst_67 : f32 to vector<1x256xf32>
    %103 = arith.divf %101, %102 : vector<1x256xf32>
    %c0_68 = arith.constant 0 : index
    %c0_69 = arith.constant 0 : index
    %104 = vector.load %arg16[%c0_68, %c0_69] : memref<1x256xf32, #tpu.memory_space<vmem>>, vector<1x256xf32>
    %105 = vector.broadcast %96 : vector<1x256xf32> to vector<4x256xf32>
    %106 = arith.subf %92, %105 : vector<4x256xf32>
    %107 = vector.broadcast %104 : vector<1x256xf32> to vector<4x256xf32>
    %108 = arith.mulf %107, %106 : vector<4x256xf32>
    %cst_70 = arith.constant 9.99999974E-6 : f32
    %109 = vector.broadcast %cst_70 : f32 to vector<1x256xf32>
    %110 = arith.addf %103, %109 : vector<1x256xf32>
    %111 = math.rsqrt %110 : vector<1x256xf32>
    %112 = vector.broadcast %111 : vector<1x256xf32> to vector<4x256xf32>
    %113 = arith.mulf %108, %112 : vector<4x256xf32>
    %c0_71 = arith.constant 0 : index
    %c0_72 = arith.constant 0 : index
    %114 = vector.load %arg17[%c0_71, %c0_72] : memref<1x256xf32, #tpu.memory_space<vmem>>, vector<1x256xf32>
    %115 = vector.broadcast %114 : vector<1x256xf32> to vector<4x256xf32>
    %116 = arith.addf %113, %115 : vector<4x256xf32>
    %117 = arith.truncf %116 : vector<4x256xf32> to vector<4x256xbf16>
    %c0_73 = arith.constant 0 : index
    %c0_74 = arith.constant 0 : index
    %118 = vector.load %arg18[%c0_73, %c0_74] : memref<256x128xbf16, #tpu.memory_space<vmem>>, vector<256x128xbf16>
    %cst_75 = arith.constant dense<0.000000e+00> : vector<4x128xf32>
    %119 = tpu.matmul %117, %118, %cst_75 {dimension_numbers = #tpu.dot_dimension_numbers<[1], [0], [0], [1], [0, 0, 1, 1], [], []>} : vector<4x256xbf16>, vector<256x128xbf16>, vector<4x128xf32> -> vector<4x128xf32>
    %c0_76 = arith.constant 0 : index
    %c0_77 = arith.constant 0 : index
    %120 = vector.load %arg19[%c0_76, %c0_77] : memref<1x128xf32, #tpu.memory_space<vmem>>, vector<1x128xf32>
    %121 = vector.broadcast %120 : vector<1x128xf32> to vector<4x128xf32>
    %122 = arith.addf %119, %121 : vector<4x128xf32>
    %cst_78 = arith.constant 0.000000e+00 : f32
    %123 = vector.broadcast %cst_78 : f32 to vector<4x128xf32>
    %124 = arith.maximumf %122, %123 : vector<4x128xf32>
    %cst_79 = arith.constant dense<0.000000e+00> : vector<128xf32>
    %125 = vector.multi_reduction <add>, %124, %cst_79 [0] : vector<4x128xf32> to vector<128xf32>
    %126 = vector.shape_cast %125 : vector<128xf32> to vector<1x128xf32>
    %cst_80 = arith.constant 4.000000e+00 : f32
    %127 = vector.broadcast %cst_80 : f32 to vector<1x128xf32>
    %128 = arith.divf %126, %127 : vector<1x128xf32>
    %129 = vector.broadcast %128 : vector<1x128xf32> to vector<4x128xf32>
    %130 = arith.subf %124, %129 : vector<4x128xf32>
    %131 = arith.mulf %130, %130 : vector<4x128xf32>
    %cst_81 = arith.constant dense<0.000000e+00> : vector<128xf32>
    %132 = vector.multi_reduction <add>, %131, %cst_81 [0] : vector<4x128xf32> to vector<128xf32>
    %133 = vector.shape_cast %132 : vector<128xf32> to vector<1x128xf32>
    %cst_82 = arith.constant 4.000000e+00 : f32
    %134 = vector.broadcast %cst_82 : f32 to vector<1x128xf32>
    %135 = arith.divf %133, %134 : vector<1x128xf32>
    %c0_83 = arith.constant 0 : index
    %c0_84 = arith.constant 0 : index
    %136 = vector.load %arg20[%c0_83, %c0_84] : memref<1x128xf32, #tpu.memory_space<vmem>>, vector<1x128xf32>
    %137 = vector.broadcast %128 : vector<1x128xf32> to vector<4x128xf32>
    %138 = arith.subf %124, %137 : vector<4x128xf32>
    %139 = vector.broadcast %136 : vector<1x128xf32> to vector<4x128xf32>
    %140 = arith.mulf %139, %138 : vector<4x128xf32>
    %cst_85 = arith.constant 9.99999974E-6 : f32
    %141 = vector.broadcast %cst_85 : f32 to vector<1x128xf32>
    %142 = arith.addf %135, %141 : vector<1x128xf32>
    %143 = math.rsqrt %142 : vector<1x128xf32>
    %144 = vector.broadcast %143 : vector<1x128xf32> to vector<4x128xf32>
    %145 = arith.mulf %140, %144 : vector<4x128xf32>
    %c0_86 = arith.constant 0 : index
    %c0_87 = arith.constant 0 : index
    %146 = vector.load %arg21[%c0_86, %c0_87] : memref<1x128xf32, #tpu.memory_space<vmem>>, vector<1x128xf32>
    %147 = vector.broadcast %146 : vector<1x128xf32> to vector<4x128xf32>
    %148 = arith.addf %145, %147 : vector<4x128xf32>
    %149 = arith.truncf %148 : vector<4x128xf32> to vector<4x128xbf16>
    %c0_88 = arith.constant 0 : index
    %c0_89 = arith.constant 0 : index
    %150 = vector.load %arg22[%c0_88, %c0_89] : memref<128x32xbf16, #tpu.memory_space<vmem>>, vector<128x32xbf16>
    %cst_90 = arith.constant dense<0.000000e+00> : vector<4x32xf32>
    %151 = tpu.matmul %149, %150, %cst_90 {dimension_numbers = #tpu.dot_dimension_numbers<[1], [0], [0], [1], [0, 0, 1, 1], [], []>} : vector<4x128xbf16>, vector<128x32xbf16>, vector<4x32xf32> -> vector<4x32xf32>
    %c0_91 = arith.constant 0 : index
    %c0_92 = arith.constant 0 : index
    %152 = vector.load %arg23[%c0_91, %c0_92] : memref<1x32xf32, #tpu.memory_space<vmem>>, vector<1x32xf32>
    %153 = vector.broadcast %152 : vector<1x32xf32> to vector<4x32xf32>
    %154 = arith.addf %151, %153 : vector<4x32xf32>
    %cst_93 = arith.constant 0.000000e+00 : f32
    %155 = vector.broadcast %cst_93 : f32 to vector<4x32xf32>
    %156 = arith.maximumf %154, %155 : vector<4x32xf32>
    %c0_94 = arith.constant 0 : index
    %c0_95 = arith.constant 0 : index
    %157 = vector.load %arg33[%c0_94, %c0_95] : memref<4x64xf32, #tpu.memory_space<vmem>>, vector<4x32xf32>
    tpu.vector_store %arg33[%c0_94, %c0_95], %51 {strides = array<i32>} : memref<4x64xf32, #tpu.memory_space<vmem>>, vector<4x32xf32>,
    %c0_96 = arith.constant 0 : index
    %c32_97 = arith.constant 32 : index
    %158 = vector.load %arg33[%c0_96, %c32_97] : memref<4x64xf32, #tpu.memory_space<vmem>>, vector<4x32xf32>
    tpu.vector_store %arg33[%c0_96, %c32_97], %156 {strides = array<i32>} : memref<4x64xf32, #tpu.memory_space<vmem>>, vector<4x32xf32>,
    %c0_98 = arith.constant 0 : index
    %c0_99 = arith.constant 0 : index
    %159 = vector.load %arg33[%c0_98, %c0_99] : memref<4x64xf32, #tpu.memory_space<vmem>>, vector<4x64xf32>
    %160 = arith.truncf %159 : vector<4x64xf32> to vector<4x64xbf16>
    %c0_100 = arith.constant 0 : index
    %c0_101 = arith.constant 0 : index
    %161 = vector.load %arg24[%c0_100, %c0_101] : memref<64x32xbf16, #tpu.memory_space<vmem>>, vector<64x32xbf16>
    %cst_102 = arith.constant dense<0.000000e+00> : vector<4x32xf32>
    %162 = tpu.matmul %160, %161, %cst_102 {dimension_numbers = #tpu.dot_dimension_numbers<[1], [0], [0], [1], [0, 0, 1, 1], [], []>} : vector<4x64xbf16>, vector<64x32xbf16>, vector<4x32xf32> -> vector<4x32xf32>
    %c0_103 = arith.constant 0 : index
    %c0_104 = arith.constant 0 : index
    %163 = vector.load %arg25[%c0_103, %c0_104] : memref<1x32xf32, #tpu.memory_space<vmem>>, vector<1x32xf32>
    %164 = vector.broadcast %163 : vector<1x32xf32> to vector<4x32xf32>
    %165 = arith.addf %162, %164 : vector<4x32xf32>
    %166 = arith.truncf %165 : vector<4x32xf32> to vector<4x32xbf16>
    %c0_105 = arith.constant 0 : index
    %c0_106 = arith.constant 0 : index
    %167 = vector.load %arg26[%c0_105, %c0_106] : memref<32x16xbf16, #tpu.memory_space<vmem>>, vector<32x16xbf16>
    %cst_107 = arith.constant dense<0.000000e+00> : vector<4x16xf32>
    %168 = tpu.matmul %166, %167, %cst_107 {dimension_numbers = #tpu.dot_dimension_numbers<[1], [0], [0], [1], [0, 0, 1, 1], [], []>} : vector<4x32xbf16>, vector<32x16xbf16>, vector<4x16xf32> -> vector<4x16xf32>
    %c0_108 = arith.constant 0 : index
    %c0_109 = arith.constant 0 : index
    %169 = vector.load %arg27[%c0_108, %c0_109] : memref<1x16xf32, #tpu.memory_space<vmem>>, vector<1x16xf32>
    %170 = vector.broadcast %169 : vector<1x16xf32> to vector<4x16xf32>
    %171 = arith.addf %168, %170 : vector<4x16xf32>
    %172 = arith.truncf %171 : vector<4x16xf32> to vector<4x16xbf16>
    %c0_110 = arith.constant 0 : index
    %c0_111 = arith.constant 0 : index
    %173 = vector.load %arg28[%c0_110, %c0_111] : memref<16x2xbf16, #tpu.memory_space<vmem>>, vector<16x2xbf16>
    %cst_112 = arith.constant dense<0.000000e+00> : vector<4x2xf32>
    %174 = tpu.matmul %172, %173, %cst_112 {dimension_numbers = #tpu.dot_dimension_numbers<[1], [0], [0], [1], [0, 0, 1, 1], [], []>} : vector<4x16xbf16>, vector<16x2xbf16>, vector<4x2xf32> -> vector<4x2xf32>
    %c0_113 = arith.constant 0 : index
    %c0_114 = arith.constant 0 : index
    %175 = vector.load %arg29[%c0_113, %c0_114] : memref<1x2xf32, #tpu.memory_space<vmem>>, vector<1x2xf32>
    %176 = vector.broadcast %175 : vector<1x2xf32> to vector<4x2xf32>
    %177 = arith.addf %174, %176 : vector<4x2xf32>
    %cst_115 = arith.constant dense<0xFF800000> : vector<4xf32>
    %178 = vector.multi_reduction <maximumf>, %177, %cst_115 [1] : vector<4x2xf32> to vector<4xf32>
    %179 = vector.shape_cast %178 : vector<4xf32> to vector<4x1xf32>
    %180 = vector.broadcast %179 : vector<4x1xf32> to vector<4x2xf32>
    %181 = arith.subf %177, %180 : vector<4x2xf32>
    %182 = math.exp %181 : vector<4x2xf32>
    %cst_116 = arith.constant dense<0.000000e+00> : vector<4xf32>
    %183 = vector.multi_reduction <add>, %182, %cst_116 [1] : vector<4x2xf32> to vector<4xf32>
    %184 = vector.shape_cast %183 : vector<4xf32> to vector<4x1xf32>
    %185 = vector.broadcast %184 : vector<4x1xf32> to vector<4x2xf32>
    %186 = arith.divf %182, %185 : vector<4x2xf32>
    %c0_117 = arith.constant 0 : index
    %c0_118 = arith.constant 0 : index
    %187 = vector.load %arg30[%c0_117, %c0_118] : memref<4x2xf32, #tpu.memory_space<vmem>>, vector<4x2xf32>
    tpu.vector_store %arg30[%c0_117, %c0_118], %186 {strides = array<i32>} : memref<4x2xf32, #tpu.memory_space<vmem>>, vector<4x2xf32>,
    return
  }
}

</mosaic_0001>

<llo_original>
// kernel: el_forward.1
$region0: #{el_forward.1}
  #allocation0 [shape = 'u32[]', space=smem, size = 0x4, offset = 0x4, fixed_abs, tag = 'smem constant byte address 0x4 - core index']
  #allocation1 [shape = 'u32[72,128]{1,0:T(1,128)}', space=vmem, size = 0x9000, scoped, tag = 'internal scratch']
  #allocation2 [shape = 'f32[20,96]{1,0:T(8,128)}', space=vmem, size = 0x3000, scoped, tag = 'scratch operand']
  #allocation3 [shape = 'f32[4,320]{1,0:T(4,128)}', space=vmem, size = 0x1800, scoped, tag = 'scratch operand']
  #allocation4 [shape = 'f32[4,64]{1,0:T(4,128)}', space=vmem, size = 0x800, scoped, tag = 'scratch operand']
  %s0 = inlined_call_operand.smem [shape: u32[31], index: -1, kind: input, shape index: {}]
  %s1 = sld [smem:[%s0]]
  %s2 = scalar_lea.smem %s0, 1
  %s3 = sld [smem:[%s2]]
  %s4 = scalar_lea.smem %s0, 2
  %s5 = sld [smem:[%s4]]
  %s6 = scalar_lea.smem %s0, 3
  %s7 = sld [smem:[%s6]]
  %s8 = scalar_lea.smem %s0, 4
  %s9 = sld [smem:[%s8]]
  %s10 = scalar_lea.smem %s0, 5
  %s11 = sld [smem:[%s10]]
  %s12 = scalar_lea.smem %s0, 6
  %s13 = sld [smem:[%s12]]
  %s14 = scalar_lea.smem %s0, 7
  %s15 = sld [smem:[%s14]]
  %s16 = scalar_lea.smem %s0, 8
  %s17 = sld [smem:[%s16]]
  %s18 = scalar_lea.smem %s0, 9
  %s19 = sld [smem:[%s18]]
  %s20 = scalar_lea.smem %s0, 10
  %s21 = sld [smem:[%s20]]
  %s22 = scalar_lea.smem %s0, 11
  %s23 = sld [smem:[%s22]]
  %s24 = scalar_lea.smem %s0, 12
  %s25 = sld [smem:[%s24]]
  %s26 = scalar_lea.smem %s0, 13
  %s27 = sld [smem:[%s26]]
  %s28 = scalar_lea.smem %s0, 14
  %s29 = sld [smem:[%s28]]
  %s30 = scalar_lea.smem %s0, 15
  %s31 = sld [smem:[%s30]]
  %s32 = scalar_lea.smem %s0, 16
  %s33 = sld [smem:[%s32]]
  %s34 = scalar_lea.smem %s0, 17
  %s35 = sld [smem:[%s34]]
  %s36 = scalar_lea.smem %s0, 18
  %s37 = sld [smem:[%s36]]
  %s38 = scalar_lea.smem %s0, 19
  %s39 = sld [smem:[%s38]]
  %s40 = scalar_lea.smem %s0, 20
  %s41 = sld [smem:[%s40]]
  %s42 = scalar_lea.smem %s0, 21
  %s43 = sld [smem:[%s42]]
  %s44 = scalar_lea.smem %s0, 22
  %s45 = sld [smem:[%s44]]
  %s46 = scalar_lea.smem %s0, 23
  %s47 = sld [smem:[%s46]]
  %s48 = scalar_lea.smem %s0, 24
  %s49 = sld [smem:[%s48]]
  %s50 = scalar_lea.smem %s0, 25
  %s51 = sld [smem:[%s50]]
  %s52 = scalar_lea.smem %s0, 26
  %s53 = sld [smem:[%s52]]
  %s54 = scalar_lea.smem %s0, 27
  %s55 = sld [smem:[%s54]]
  %s56 = scalar_lea.smem %s0, 28
  %s57 = sld [smem:[%s56]]
  %s58 = scalar_lea.smem %s0, 29
  %s59 = sld [smem:[%s58]]
  %s60 = scalar_lea.smem %s0, 30
  %s61 = sld [smem:[%s60]]
  %s62 = sld [smem:[#allocation0]]
  $region130: #{el_forward.1} parent=0
    _
  %s64 = ssub.s32 1, %s62
  %s65 = scalar_select 0, %s64, %s62
  // Predicated region
  $region2: #{el_forward.1} parent=0 // pred_check
    _
  $region3: #{el_forward.1} parent=0 // pred_check_branch
    %67 = sbr.rel (0) target = $region5
  $region4: #{el_forward.1} parent=0 // pred_region
    _
  $region5: #{el_forward.1} parent=0 // pred_fallthru
    _
  // Predicated region
  $region6: #{el_forward.1} parent=0 // pred_check
    _
  $region7: #{el_forward.1} parent=0 // pred_check_branch
    %69 = sbr.rel (0) target = $region9
  $region8: #{el_forward.1} parent=0 // pred_region
    _
  $region9: #{el_forward.1} parent=0 // pred_fallthru
    _
  // Predicated region
  $region10: #{el_forward.1} parent=0 // pred_check
    _
  $region11: #{el_forward.1} parent=0 // pred_check_branch
    %71 = sbr.rel (0) target = $region13
  $region12: #{el_forward.1} parent=0 // pred_region
    _
  $region13: #{el_forward.1} parent=0 // pred_fallthru
    _
  // Predicated region
  $region14: #{el_forward.1} parent=0 // pred_check
    _
  $region15: #{el_forward.1} parent=0 // pred_check_branch
    %73 = sbr.rel (0) target = $region17
  $region16: #{el_forward.1} parent=0 // pred_region
    _
  $region17: #{el_forward.1} parent=0 // pred_fallthru
    _
  // Predicated region
  $region18: #{el_forward.1} parent=0 // pred_check
    _
  $region19: #{el_forward.1} parent=0 // pred_check_branch
    %75 = sbr.rel (0) target = $region21
  $region20: #{el_forward.1} parent=0 // pred_region
    _
  $region21: #{el_forward.1} parent=0 // pred_fallthru
    _
  // Predicated region
  $region22: #{el_forward.1} parent=0 // pred_check
    _
  $region23: #{el_forward.1} parent=0 // pred_check_branch
    %77 = sbr.rel (0) target = $region25
  $region24: #{el_forward.1} parent=0 // pred_region
    _
  $region25: #{el_forward.1} parent=0 // pred_fallthru
    _
  // Predicated region
  $region26: #{el_forward.1} parent=0 // pred_check
    _
  $region27: #{el_forward.1} parent=0 // pred_check_branch
    %79 = sbr.rel (0) target = $region29
  $region28: #{el_forward.1} parent=0 // pred_region
    _
  $region29: #{el_forward.1} parent=0 // pred_fallthru
    _
  // Predicated region
  $region30: #{el_forward.1} parent=0 // pred_check
    _
  $region31: #{el_forward.1} parent=0 // pred_check_branch
    %81 = sbr.rel (0) target = $region33
  $region32: #{el_forward.1} parent=0 // pred_region
    _
  $region33: #{el_forward.1} parent=0 // pred_fallthru
    _
  // Predicated region
  $region34: #{el_forward.1} parent=0 // pred_check
    _
  $region35: #{el_forward.1} parent=0 // pred_check_branch
    %83 = sbr.rel (0) target = $region37
  $region36: #{el_forward.1} parent=0 // pred_region
    _
  $region37: #{el_forward.1} parent=0 // pred_fallthru
    _
  // Predicated region
  $region38: #{el_forward.1} parent=0 // pred_check
    _
  $region39: #{el_forward.1} parent=0 // pred_check_branch
    %85 = sbr.rel (0) target = $region41
  $region40: #{el_forward.1} parent=0 // pred_region
    _
  $region41: #{el_forward.1} parent=0 // pred_fallthru
    _
  // Predicated region
  $region42: #{el_forward.1} parent=0 // pred_check
    _
  $region43: #{el_forward.1} parent=0 // pred_check_branch
    %87 = sbr.rel (0) target = $region45
  $region44: #{el_forward.1} parent=0 // pred_region
    _
  $region45: #{el_forward.1} parent=0 // pred_fallthru
    _
  // Predicated region
  $region46: #{el_forward.1} parent=0 // pred_check
    _
  $region47: #{el_forward.1} parent=0 // pred_check_branch
    %89 = sbr.rel (0) target = $region49
  $region48: #{el_forward.1} parent=0 // pred_region
    _
  $region49: #{el_forward.1} parent=0 // pred_fallthru
    _
  // Predicated region
  $region50: #{el_forward.1} parent=0 // pred_check
    _
  $region51: #{el_forward.1} parent=0 // pred_check_branch
    %91 = sbr.rel (0) target = $region53
  $region52: #{el_forward.1} parent=0 // pred_region
    _
  $region53: #{el_forward.1} parent=0 // pred_fallthru
    _
  // Predicated region
  $region54: #{el_forward.1} parent=0 // pred_check
    _
  $region55: #{el_forward.1} parent=0 // pred_check_branch
    %93 = sbr.rel (0) target = $region57
  $region56: #{el_forward.1} parent=0 // pred_region
    _
  $region57: #{el_forward.1} parent=0 // pred_fallthru
    _
  // Predicated region
  $region58: #{el_forward.1} parent=0 // pred_check
    _
  $region59: #{el_forward.1} parent=0 // pred_check_branch
    %95 = sbr.rel (0) target = $region61
  $region60: #{el_forward.1} parent=0 // pred_region
    _
  $region61: #{el_forward.1} parent=0 // pred_fallthru
    _
  // Predicated region
  $region62: #{el_forward.1} parent=0 // pred_check
    _
  $region63: #{el_forward.1} parent=0 // pred_check_branch
    %97 = sbr.rel (0) target = $region65
  $region64: #{el_forward.1} parent=0 // pred_region
    _
  $region65: #{el_forward.1} parent=0 // pred_fallthru
    _
  // Predicated region
  $region66: #{el_forward.1} parent=0 // pred_check
    _
  $region67: #{el_forward.1} parent=0 // pred_check_branch
    %99 = sbr.rel (0) target = $region69
  $region68: #{el_forward.1} parent=0 // pred_region
    _
  $region69: #{el_forward.1} parent=0 // pred_fallthru
    _
  // Predicated region
  $region70: #{el_forward.1} parent=0 // pred_check
    _
  $region71: #{el_forward.1} parent=0 // pred_check_branch
    %101 = sbr.rel (0) target = $region73
  $region72: #{el_forward.1} parent=0 // pred_region
    _
  $region73: #{el_forward.1} parent=0 // pred_fallthru
    _
  // Predicated region
  $region74: #{el_forward.1} parent=0 // pred_check
    _
  $region75: #{el_forward.1} parent=0 // pred_check_branch
    %103 = sbr.rel (0) target = $region77
  $region76: #{el_forward.1} parent=0 // pred_region
    _
  $region77: #{el_forward.1} parent=0 // pred_fallthru
    _
  // Predicated region
  $region78: #{el_forward.1} parent=0 // pred_check
    _
  $region79: #{el_forward.1} parent=0 // pred_check_branch
    %105 = sbr.rel (0) target = $region81
  $region80: #{el_forward.1} parent=0 // pred_region
    _
  $region81: #{el_forward.1} parent=0 // pred_fallthru
    _
  // Predicated region
  $region82: #{el_forward.1} parent=0 // pred_check
    _
  $region83: #{el_forward.1} parent=0 // pred_check_branch
    %107 = sbr.rel (0) target = $region85
  $region84: #{el_forward.1} parent=0 // pred_region
    _
  $region85: #{el_forward.1} parent=0 // pred_fallthru
    _
  // Predicated region
  $region86: #{el_forward.1} parent=0 // pred_check
    _
  $region87: #{el_forward.1} parent=0 // pred_check_branch
    %109 = sbr.rel (0) target = $region89
  $region88: #{el_forward.1} parent=0 // pred_region
    _
  $region89: #{el_forward.1} parent=0 // pred_fallthru
    _
  // Predicated region
  $region90: #{el_forward.1} parent=0 // pred_check
    _
  $region91: #{el_forward.1} parent=0 // pred_check_branch
    %111 = sbr.rel (0) target = $region93
  $region92: #{el_forward.1} parent=0 // pred_region
    _
  $region93: #{el_forward.1} parent=0 // pred_fallthru
    _
  // Predicated region
  $region94: #{el_forward.1} parent=0 // pred_check
    _
  $region95: #{el_forward.1} parent=0 // pred_check_branch
    %113 = sbr.rel (0) target = $region97
  $region96: #{el_forward.1} parent=0 // pred_region
    _
  $region97: #{el_forward.1} parent=0 // pred_fallthru
    _
  // Predicated region
  $region98: #{el_forward.1} parent=0 // pred_check
    _
  $region99: #{el_forward.1} parent=0 // pred_check_branch
    %115 = sbr.rel (0) target = $region101
  $region100: #{el_forward.1} parent=0 // pred_region
    _
  $region101: #{el_forward.1} parent=0 // pred_fallthru
    _
  // Predicated region
  $region102: #{el_forward.1} parent=0 // pred_check
    _
  $region103: #{el_forward.1} parent=0 // pred_check_branch
    %117 = sbr.rel (0) target = $region105
  $region104: #{el_forward.1} parent=0 // pred_region
    _
  $region105: #{el_forward.1} parent=0 // pred_fallthru
    _
  // Predicated region
  $region106: #{el_forward.1} parent=0 // pred_check
    _
  $region107: #{el_forward.1} parent=0 // pred_check_branch
    %119 = sbr.rel (0) target = $region109
  $region108: #{el_forward.1} parent=0 // pred_region
    _
  $region109: #{el_forward.1} parent=0 // pred_fallthru
    _
  // Predicated region
  $region110: #{el_forward.1} parent=0 // pred_check
    _
  $region111: #{el_forward.1} parent=0 // pred_check_branch
    %121 = sbr.rel (0) target = $region113
  $region112: #{el_forward.1} parent=0 // pred_region
    _
  $region113: #{el_forward.1} parent=0 // pred_fallthru
    _
  // Predicated region
  $region114: #{el_forward.1} parent=0 // pred_check
    _
  $region115: #{el_forward.1} parent=0 // pred_check_branch
    %123 = sbr.rel (0) target = $region117
  $region116: #{el_forward.1} parent=0 // pred_region
    _
  $region117: #{el_forward.1} parent=0 // pred_fallthru
    _
  // Predicated region
  $region118: #{el_forward.1} parent=0 // pred_check
    _
  $region119: #{el_forward.1} parent=0 // pred_check_branch
    %125 = sbr.rel (0) target = $region121
  $region120: #{el_forward.1} parent=0 // pred_region
    _
  $region121: #{el_forward.1} parent=0 // pred_fallthru
    _
  %v127 = vld [vmem:[%s1] sm:$0xff]
  %v128 = vld [vmem:[%s1 + $0x8] sm:$0xff]
  %v129 = vld [vmem:[%s1 + $0x10] sm:$0xf]
  %v130 = vpack.c.bf16 %v128, %v127
  %v131 = vpack.c.bf16 %v129, %v129
  %v132 = vld [vmem:[%s5] sm:$0xf]
  %v133 = vld [vmem:[%s5 + $0x4] sm:$0xf]
  %v134 = vld [vmem:[%s5 + $0x8] sm:$0x3]
  %v135 = vld [vmem:[%s7] sm:$0x1]
  %v137 = vperm.slane %v135, 0
  %v142 = vunpack.c.l.b16 %v132
  %v143 = vunpack.c.l.b16 %v133
  %v144 = vunpack.c.l.b16 %v134
  %v145 = vpack.c.b16 %v143, %v142
  %v146 = vpack.c.b16 %v144, %v144
  %vm148 = vcmask 162816
  %v150 = vsel %vm148, %v130, 0
  %v153 = vsel %vm148, %v131, 0
  %vm155 = vcmask 1041408
  %v157 = vsel %vm155, %v146, 0
  %159 = vmatpush.bf16.msra.mxu0 0
  %160 = vmatpush.bf16.msra.mxu0 0
  %161 = vmatpush.bf16.msra.mxu0 0
  %162 = vmatpush.bf16.msra.mxu0 0
  %163 = vmatpush.bf16.msra.mxu0 0
  %164 = vmatpush.bf16.msra.mxu0 0
  %165 = vmatpush.bf16.msra.mxu0 %v157
  %166 = vmatpush.bf16.msra.mxu0 %v145
  %167 = vmatmul.bf16.gmra.mxu0 %v150
  %v168 = vpop.f32.mrf.mxu0
  %v169 = vadd.f32 %v137, %v168
  %v170 = vpop.f32.mrf.mxu0
  %v171 = vadd.f32 %v137, %v170
  %172 = vmatmul.bf16.gmra.mxu0 %v153
  %v173 = vpop.f32.mrf.mxu0
  %v174 = vadd.f32 %v137, %v173
  %v175 = vpop.f32.mrf.mxu0
  %176 = vdwg.mxu0
  %v177 = vmax.f32 %v169, 0.0
  %v178 = vmax.f32 %v171, 0.0
  %v179 = vmax.f32 %v174, 0.0
  %v180 = vpack.c.bf16 %v178, %v177
  %v181 = vpack.c.bf16 %v179, %v179
  %v182 = vld [vmem:[%s9] sm:$0xf]
  %v183 = vld [vmem:[%s9 + $0x4] sm:$0xf]
  %v184 = vld [vmem:[%s11] sm:$0x1]
  %v186 = vperm.slane %v184, 0
  %v190 = vunpack.c.l.b16 %v182
  %v191 = vunpack.c.l.b16 %v183
  %v192 = vpack.c.b16 %v191, %v190
  %vm194 = vcmask 130048
  %v196 = vsel %vm194, %v180, 0
  %v199 = vsel %vm194, %v181, 0
  %201 = vmatpush.bf16.msra.mxu0 0
  %202 = vmatpush.bf16.msra.mxu0 0
  %203 = vmatpush.bf16.msra.mxu0 0
  %204 = vmatpush.bf16.msra.mxu0 0
  %205 = vmatpush.bf16.msra.mxu0 0
  %206 = vmatpush.bf16.msra.mxu0 0
  %207 = vmatpush.bf16.msra.mxu0 0
  %208 = vmatpush.bf16.msra.mxu0 %v192
  %209 = vmatmul.bf16.gmra.mxu0 %v196
  %v210 = vpop.f32.mrf.mxu0
  %v211 = vadd.f32 %v186, %v210
  %v212 = vpop.f32.mrf.mxu0
  %v213 = vadd.f32 %v186, %v212
  %214 = vmatmul.bf16.gmra.mxu0 %v199
  %v215 = vpop.f32.mrf.mxu0
  %v216 = vadd.f32 %v186, %v215
  %v217 = vpop.f32.mrf.mxu0
  %218 = vdwg.mxu0
  %v219 = vmax.f32 %v211, 0.0
  %v220 = vmax.f32 %v213, 0.0
  %v221 = vmax.f32 %v216, 0.0
  %vm222 = vcmask 785408
  %223 = vst.msk [vmem:[#allocation2] sm:$0xff] %vm222, 0.0
  %224 = vst.msk [vmem:[#allocation2 + $0x8] sm:$0xff] %vm222, 0.0
  %vm225 = vcmask 781312
  %226 = vst.msk [vmem:[#allocation2 + $0x10] sm:$0xf] %vm225, 0.0
  %230 = vrot.lane.b32.xlu0 %v219, 32
  %v231 = vpop.permute.xlu0 %230
  %232 = vrot.lane.b32.xlu0 %v220, 32
  %v233 = vpop.permute.xlu0 %232
  %234 = vrot.lane.b32.xlu0 %v221, 32
  %v235 = vpop.permute.xlu0 %234
  %vm239 = vcmask 523520
  %240 = vst.msk [vmem:[#allocation2] sm:$0xff] %vm239, %v231
  %241 = vst.msk [vmem:[#allocation2 + $0x8] sm:$0xff] %vm239, %v233
  %vm242 = vcmask 519424
  %243 = vst.msk [vmem:[#allocation2 + $0x10] sm:$0xf] %vm242, %v235
  %vm244 = vcmask 261120
  %245 = vst.msk [vmem:[#allocation2 + $0x4] sm:$0xff] %vm244, %v219
  %246 = vst.msk [vmem:[#allocation2 + $0xc] sm:$0xff] %vm244, %v220
  %247 = vrot.lane.b32.xlu0 %v219, 64
  %v248 = vpop.permute.xlu0 %247
  %249 = vrot.lane.b32.xlu0 %v220, 64
  %v250 = vpop.permute.xlu0 %249
  %251 = vrot.lane.b32.xlu0 %v221, 64
  %v252 = vpop.permute.xlu0 %251
  %vm256 = vcmask 785924
  %257 = vst.msk [vmem:[#allocation2 - $0x4] sm:$0xf0] %vm256, %v248
  %vm258 = vcmask 785920
  %259 = vst.msk [vmem:[#allocation2 + $0x4] sm:$0xff] %vm258, %v250
  %vm260 = vcmask 781824
  %261 = vst.msk [vmem:[#allocation2 + $0xc] sm:$0xf] %vm260, %v252
  %v262 = vld [vmem:[#allocation2] sm:$0xff]
  %v263 = vld [vmem:[#allocation2 + $0x8] sm:$0xff]
  %v264 = vld [vmem:[#allocation2 + $0x10] sm:$0xf]
  %v265 = vpack.c.bf16 %v263, %v262
  %v266 = vpack.c.bf16 %v264, %v264
  %v267 = vld [vmem:[%s13] sm:$0xf]
  %v268 = vld [vmem:[%s13 + $0x4] sm:$0xf]
  %v269 = vld [vmem:[%s13 + $0x8] sm:$0xf]
  %v270 = vld [vmem:[%s13 + $0xc] sm:$0xf]
  %v271 = vld [vmem:[%s13 + $0x10] sm:$0xf]
  %v272 = vld [vmem:[%s13 + $0x14] sm:$0xf]
  %v273 = vld [vmem:[%s13 + $0x18] sm:$0xf]
  %v274 = vld [vmem:[%s13 + $0x1c] sm:$0xf]
  %v275 = vld [vmem:[%s13 + $0x20] sm:$0xf]
  %v276 = vld [vmem:[%s13 + $0x24] sm:$0xf]
  %v277 = vld [vmem:[%s13 + $0x28] sm:$0xf]
  %v278 = vld [vmem:[%s13 + $0x2c] sm:$0xf]
  %v279 = vld [vmem:[%s15] sm:$0x1]
  %v281 = vperm.slane %v279, 0
  %v295 = vunpack.c.l.b16 %v267
  %v296 = vunpack.c.l.b16 %v268
  %v297 = vunpack.c.l.b16 %v269
  %v298 = vunpack.c.l.b16 %v270
  %v299 = vunpack.c.l.b16 %v271
  %v300 = vunpack.c.l.b16 %v272
  %v301 = vunpack.c.l.b16 %v273
  %v302 = vunpack.c.l.b16 %v274
  %v303 = vunpack.c.l.b16 %v275
  %v304 = vunpack.c.l.b16 %v276
  %v305 = vunpack.c.l.b16 %v277
  %v306 = vunpack.c.l.b16 %v278
  %v307 = vpack.c.b16 %v296, %v295
  %v308 = vpack.c.b16 %v298, %v297
  %v309 = vpack.c.b16 %v300, %v299
  %v310 = vpack.c.b16 %v302, %v301
  %v311 = vpack.c.b16 %v304, %v303
  %v312 = vpack.c.b16 %v306, %v305
  %v320 = vsel %vm222, %v265, 0
  %v323 = vsel %vm222, %v266, 0
  %325 = vmatpush.bf16.msra.mxu0 0
  %326 = vmatpush.bf16.msra.mxu0 0
  %327 = vmatpush.bf16.msra.mxu0 %v312
  %328 = vmatpush.bf16.msra.mxu0 %v311
  %329 = vmatpush.bf16.msra.mxu0 %v310
  %330 = vmatpush.bf16.msra.mxu0 %v309
  %331 = vmatpush.bf16.msra.mxu0 %v308
  %332 = vmatpush.bf16.msra.mxu0 %v307
  %333 = vmatmul.bf16.gmra.mxu0 %v320
  %v334 = vpop.f32.mrf.mxu0
  %v335 = vadd.f32 %v281, %v334
  %v336 = vpop.f32.mrf.mxu0
  %v337 = vadd.f32 %v281, %v336
  %338 = vmatmul.bf16.gmra.mxu0 %v323
  %v339 = vpop.f32.mrf.mxu0
  %v340 = vadd.f32 %v281, %v339
  %v341 = vpop.f32.mrf.mxu0
  %342 = vdwg.mxu0
  %v343 = vmax.f32 %v335, 0.0
  %v344 = vmax.f32 %v337, 0.0
  %v345 = vmax.f32 %v340, 0.0
  %vm346 = vcmask 519168
  %347 = vst.msk [vmem:[#allocation3] sm:$0xf] %vm346, %v343
  %349 = vst.sshfl [vmem:[#allocation1] sm:$0xff pattern:$0x75316420] %v343
  %s350 = scalar_lea.vmem [#allocation1], 1
  %v351 = vld [vmem:[%s350] ss:$2 sm:$0xff]
  %352 = vrot.lane.b32.xlu0 %v351, 64
  %v353 = vpop.permute.xlu0 %352
  %vm355 = vcmask 1043968
  %356 = vst.msk [vmem:[#allocation3] sm:$0xf] %vm355, %v353
  %357 = vst.msk [vmem:[#allocation3 + $0x4] sm:$0xf] %vm346, %v344
  %359 = vst.sshfl [vmem:[#allocation1] sm:$0xff pattern:$0x75316420] %v344
  %s360 = scalar_lea.vmem [#allocation1], 1
  %v361 = vld [vmem:[%s360] ss:$2 sm:$0xff]
  %362 = vrot.lane.b32.xlu0 %v361, 64
  %v363 = vpop.permute.xlu0 %362
  %365 = vst.msk [vmem:[#allocation3 + $0x4] sm:$0xf] %vm355, %v363
  %366 = vst.msk [vmem:[#allocation3 + $0x8] sm:$0xf] %vm346, %v345
  %v367 = vld [vmem:[#allocation3] sm:$0xff]
  %v368 = vld [vmem:[#allocation3 + $0x8] sm:$0xf]
  %371 = vst [vmem:[#allocation1] ss:$2 sm:$0xff] %v367
  %s372 = scalar_lea.vmem [#allocation1], 16
  %373 = vst [vmem:[%s372] ss:$2 sm:$0xff] %v368
  %v374 = vld.sshfl [vmem:[#allocation1] sm:$0xff pattern:$0x75316420]
  %v375 = vld.sshfl [vmem:[#allocation1 + $0x8] sm:$0xff pattern:$0x75316420]
  %v376 = vld.sshfl [vmem:[#allocation1 + $0x10] sm:$0xff pattern:$0x75316420]
  %v380 = vpack.c.bf16 %v374, %v374
  %v381 = vpack.c.bf16 %v375, %v375
  %v382 = vpack.c.bf16 %v376, %v376
  %v383 = vld [vmem:[%s17] sm:$0xf]
  %v384 = vld [vmem:[%s17 + $0x4] sm:$0xf]
  %v385 = vld [vmem:[%s17 + $0x8] sm:$0xf]
  %v386 = vld [vmem:[%s17 + $0xc] sm:$0xf]
  %v387 = vld [vmem:[%s17 + $0x10] sm:$0xf]
  %v388 = vld [vmem:[%s17 + $0x14] sm:$0xf]
  %v389 = vld [vmem:[%s17 + $0x18] sm:$0xf]
  %v390 = vld [vmem:[%s17 + $0x1c] sm:$0xf]
  %v391 = vld [vmem:[%s17 + $0x20] sm:$0xf]
  %v392 = vld [vmem:[%s17 + $0x24] sm:$0xf]
  %v393 = vld [vmem:[%s17 + $0x28] sm:$0xf]
  %v394 = vld [vmem:[%s17 + $0x2c] sm:$0xf]
  %v395 = vld [vmem:[%s17 + $0x30] sm:$0xf]
  %v396 = vld [vmem:[%s17 + $0x34] sm:$0xf]
  %v397 = vld [vmem:[%s17 + $0x38] sm:$0xf]
  %v398 = vld [vmem:[%s17 + $0x3c] sm:$0xf]
  %v399 = vld [vmem:[%s17 + $0x40] sm:$0xf]
  %v400 = vld [vmem:[%s17 + $0x44] sm:$0xf]
  %v401 = vld [vmem:[%s17 + $0x48] sm:$0xf]
  %v402 = vld [vmem:[%s17 + $0x4c] sm:$0xf]
  %v403 = vld [vmem:[%s17 + $0x50] sm:$0xf]
  %v404 = vld [vmem:[%s17 + $0x54] sm:$0xf]
  %v405 = vld [vmem:[%s17 + $0x58] sm:$0xf]
  %v406 = vld [vmem:[%s17 + $0x5c] sm:$0xf]
  %v407 = vld [vmem:[%s17 + $0x60] sm:$0xf]
  %v408 = vld [vmem:[%s17 + $0x64] sm:$0xf]
  %v409 = vld [vmem:[%s17 + $0x68] sm:$0xf]
  %v410 = vld [vmem:[%s17 + $0x6c] sm:$0xf]
  %v411 = vld [vmem:[%s17 + $0x70] sm:$0xf]
  %v412 = vld [vmem:[%s17 + $0x74] sm:$0xf]
  %v413 = vld [vmem:[%s17 + $0x78] sm:$0xf]
  %v414 = vld [vmem:[%s17 + $0x7c] sm:$0xf]
  %v415 = vld [vmem:[%s17 + $0x80] sm:$0xf]
  %v416 = vld [vmem:[%s17 + $0x84] sm:$0xf]
  %v417 = vld [vmem:[%s17 + $0x88] sm:$0xf]
  %v418 = vld [vmem:[%s17 + $0x8c] sm:$0xf]
  %v419 = vld [vmem:[%s17 + $0x90] sm:$0xf]
  %v420 = vld [vmem:[%s17 + $0x94] sm:$0xf]
  %v421 = vld [vmem:[%s17 + $0x98] sm:$0xf]
  %v422 = vld [vmem:[%s17 + $0x9c] sm:$0xf]
  %v423 = vld [vmem:[%s19] sm:$0x1]
  %v425 = vperm.slane %v423, 0
  %v467 = vunpack.c.l.b16 %v383
  %v468 = vunpack.c.l.b16 %v384
  %v469 = vunpack.c.l.b16 %v385
  %v470 = vunpack.c.l.b16 %v386
  %v471 = vunpack.c.l.b16 %v387
  %v472 = vunpack.c.l.b16 %v388
  %v473 = vunpack.c.l.b16 %v389
  %v474 = vunpack.c.l.b16 %v390
  %v475 = vunpack.c.l.b16 %v391
  %v476 = vunpack.c.l.b16 %v392
  %v477 = vunpack.c.l.b16 %v393
  %v478 = vunpack.c.l.b16 %v394
  %v479 = vunpack.c.l.b16 %v395
  %v480 = vunpack.c.l.b16 %v396
  %v481 = vunpack.c.l.b16 %v397
  %v482 = vunpack.c.l.b16 %v398
  %v483 = vunpack.c.l.b16 %v399
  %v484 = vunpack.c.l.b16 %v400
  %v485 = vunpack.c.l.b16 %v401
  %v486 = vunpack.c.l.b16 %v402
  %v487 = vunpack.c.l.b16 %v403
  %v488 = vunpack.c.l.b16 %v404
  %v489 = vunpack.c.l.b16 %v405
  %v490 = vunpack.c.l.b16 %v406
  %v491 = vunpack.c.l.b16 %v407
  %v492 = vunpack.c.l.b16 %v408
  %v493 = vunpack.c.l.b16 %v409
  %v494 = vunpack.c.l.b16 %v410
  %v495 = vunpack.c.l.b16 %v411
  %v496 = vunpack.c.l.b16 %v412
  %v497 = vunpack.c.l.b16 %v413
  %v498 = vunpack.c.l.b16 %v414
  %v499 = vunpack.c.l.b16 %v415
  %v500 = vunpack.c.l.b16 %v416
  %v501 = vunpack.c.l.b16 %v417
  %v502 = vunpack.c.l.b16 %v418
  %v503 = vunpack.c.l.b16 %v419
  %v504 = vunpack.c.l.b16 %v420
  %v505 = vunpack.c.l.b16 %v421
  %v506 = vunpack.c.l.b16 %v422
  %v507 = vpack.c.b16 %v468, %v467
  %v508 = vpack.c.b16 %v470, %v469
  %v509 = vpack.c.b16 %v472, %v471
  %v510 = vpack.c.b16 %v474, %v473
  %v511 = vpack.c.b16 %v476, %v475
  %v512 = vpack.c.b16 %v478, %v477
  %v513 = vpack.c.b16 %v480, %v479
  %v514 = vpack.c.b16 %v482, %v481
  %v515 = vpack.c.b16 %v484, %v483
  %v516 = vpack.c.b16 %v486, %v485
  %v517 = vpack.c.b16 %v488, %v487
  %v518 = vpack.c.b16 %v490, %v489
  %v519 = vpack.c.b16 %v492, %v491
  %v520 = vpack.c.b16 %v494, %v493
  %v521 = vpack.c.b16 %v496, %v495
  %v522 = vpack.c.b16 %v498, %v497
  %v523 = vpack.c.b16 %v500, %v499
  %v524 = vpack.c.b16 %v502, %v501
  %v525 = vpack.c.b16 %v504, %v503
  %v526 = vpack.c.b16 %v506, %v505
  %vm547 = vcmask 523264
  %v549 = vsel %vm547, %v382, 0
  %551 = vmatpush.bf16.msra.mxu0 %v514
  %552 = vmatpush.bf16.msra.mxu0 %v513
  %553 = vmatpush.bf16.msra.mxu0 %v512
  %554 = vmatpush.bf16.msra.mxu0 %v511
  %555 = vmatpush.bf16.msra.mxu0 %v510
  %556 = vmatpush.bf16.msra.mxu0 %v509
  %557 = vmatpush.bf16.msra.mxu0 %v508
  %558 = vmatpush.bf16.msra.mxu0 %v507
  %559 = vmatmul.bf16.gmra.mxu0 %v380
  %v560 = vpop.f32.mrf.mxu0
  %v561 = vadd.f32 %v425, %v560
  %v562 = vpop.f32.mrf.mxu0
  %563 = vdwg.mxu0
  %564 = vmatpush.bf16.msra.mxu0 %v522
  %565 = vmatpush.bf16.msra.mxu0 %v521
  %566 = vmatpush.bf16.msra.mxu0 %v520
  %567 = vmatpush.bf16.msra.mxu0 %v519
  %568 = vmatpush.bf16.msra.mxu0 %v518
  %569 = vmatpush.bf16.msra.mxu0 %v517
  %570 = vmatpush.bf16.msra.mxu0 %v516
  %571 = vmatpush.bf16.msra.mxu0 %v515
  %572 = vmatmul.bf16.gmra.mxu0 %v381
  %v573 = vpop.f32.mrf.mxu0
  %v574 = vadd.f32 %v561, %v573
  %v575 = vpop.f32.mrf.mxu0
  %576 = vdwg.mxu0
  %577 = vmatpush.bf16.msra.mxu0 0
  %578 = vmatpush.bf16.msra.mxu0 0
  %579 = vmatpush.bf16.msra.mxu0 0
  %580 = vmatpush.bf16.msra.mxu0 0
  %581 = vmatpush.bf16.msra.mxu0 %v526
  %582 = vmatpush.bf16.msra.mxu0 %v525
  %583 = vmatpush.bf16.msra.mxu0 %v524
  %584 = vmatpush.bf16.msra.mxu0 %v523
  %585 = vmatmul.bf16.gmra.mxu0 %v549
  %v586 = vpop.f32.mrf.mxu0
  %v587 = vadd.f32 %v574, %v586
  %v588 = vpop.f32.mrf.mxu0
  %589 = vdwg.mxu0
  %v590 = vmax.f32 %v587, 0.0
  %v591 = vld [vmem:[%s3] sm:$0xff]
  %v592 = vld [vmem:[%s3 + $0x8] sm:$0xff]
  %v593 = vld [vmem:[%s3 + $0x10] sm:$0xff]
  %v594 = vld [vmem:[%s3 + $0x18] sm:$0xff]
  %v595 = vld [vmem:[%s3 + $0x20] sm:$0xff]
  %v596 = vld [vmem:[%s3 + $0x28] sm:$0xff]
  %v597 = vld [vmem:[%s3 + $0x30] sm:$0xff]
  %v598 = vld [vmem:[%s3 + $0x38] sm:$0xff]
  %v599 = vld [vmem:[%s3 + $0x40] sm:$0xff]
  %v600 = vld [vmem:[%s3 + $0x48] sm:$0xff]
  %v601 = vld [vmem:[%s3 + $0x50] sm:$0xf]
  %613 = vst [vmem:[#allocation1] ss:$2 sm:$0xff] %v591
  %s614 = scalar_lea.vmem [#allocation1], 16
  %615 = vst [vmem:[%s614] ss:$2 sm:$0xff] %v592
  %s616 = scalar_lea.vmem [#allocation1], 32
  %617 = vst [vmem:[%s616] ss:$2 sm:$0xff] %v593
  %s618 = scalar_lea.vmem [#allocation1], 48
  %619 = vst [vmem:[%s618] ss:$2 sm:$0xff] %v594
  %v620 = vld.sshfl [vmem:[#allocation1] sm:$0xff pattern:$0x75316420]
  %v621 = vld.sshfl [vmem:[#allocation1 + $0x8] sm:$0xff pattern:$0x75316420]
  %v622 = vld.sshfl [vmem:[#allocation1 + $0x10] sm:$0xff pattern:$0x75316420]
  %v623 = vld.sshfl [vmem:[#allocation1 + $0x18] sm:$0xff pattern:$0x75316420]
  %v624 = vld.sshfl [vmem:[#allocation1 + $0x20] sm:$0xff pattern:$0x75316420]
  %v625 = vld.sshfl [vmem:[#allocation1 + $0x28] sm:$0xff pattern:$0x75316420]
  %v626 = vld.sshfl [vmem:[#allocation1 + $0x30] sm:$0xff pattern:$0x75316420]
  %v627 = vld.sshfl [vmem:[#allocation1 + $0x38] sm:$0xff pattern:$0x75316420]
  %628 = vst [vmem:[#allocation1] ss:$2 sm:$0xff] %v595
  %629 = vst [vmem:[%s614] ss:$2 sm:$0xff] %v596
  %630 = vst [vmem:[%s616] ss:$2 sm:$0xff] %v597
  %631 = vst [vmem:[%s618] ss:$2 sm:$0xff] %v598
  %v632 = vld.sshfl [vmem:[#allocation1] sm:$0xff pattern:$0x75316420]
  %v633 = vld.sshfl [vmem:[#allocation1 + $0x8] sm:$0xff pattern:$0x75316420]
  %v634 = vld.sshfl [vmem:[#allocation1 + $0x10] sm:$0xff pattern:$0x75316420]
  %v635 = vld.sshfl [vmem:[#allocation1 + $0x18] sm:$0xff pattern:$0x75316420]
  %v636 = vld.sshfl [vmem:[#allocation1 + $0x20] sm:$0xff pattern:$0x75316420]
  %v637 = vld.sshfl [vmem:[#allocation1 + $0x28] sm:$0xff pattern:$0x75316420]
  %v638 = vld.sshfl [vmem:[#allocation1 + $0x30] sm:$0xff pattern:$0x75316420]
  %v639 = vld.sshfl [vmem:[#allocation1 + $0x38] sm:$0xff pattern:$0x75316420]
  %640 = vst [vmem:[#allocation1] ss:$2 sm:$0xff] %v599
  %641 = vst [vmem:[%s614] ss:$2 sm:$0xff] %v600
  %642 = vst [vmem:[%s616] ss:$2 sm:$0xff] %v601
  %v643 = vld.sshfl [vmem:[#allocation1] sm:$0xff pattern:$0x75316420]
  %v644 = vld.sshfl [vmem:[#allocation1 + $0x8] sm:$0xff pattern:$0x75316420]
  %v645 = vld.sshfl [vmem:[#allocation1 + $0x10] sm:$0xff pattern:$0x75316420]
  %v646 = vld.sshfl [vmem:[#allocation1 + $0x18] sm:$0xff pattern:$0x75316420]
  %v647 = vld.sshfl [vmem:[#allocation1 + $0x20] sm:$0xff pattern:$0x75316420]
  %v669 = vpack.c.bf16 %v620, %v620
  %v670 = vpack.c.bf16 %v621, %v621
  %v671 = vpack.c.bf16 %v622, %v622
  %v672 = vpack.c.bf16 %v623, %v623
  %v673 = vpack.c.bf16 %v624, %v624
  %v674 = vpack.c.bf16 %v625, %v625
  %v675 = vpack.c.bf16 %v626, %v626
  %v676 = vpack.c.bf16 %v627, %v627
  %v677 = vpack.c.bf16 %v632, %v632
  %v678 = vpack.c.bf16 %v633, %v633
  %v679 = vpack.c.bf16 %v634, %v634
  %v680 = vpack.c.bf16 %v635, %v635
  %v681 = vpack.c.bf16 %v636, %v636
  %v682 = vpack.c.bf16 %v637, %v637
  %v683 = vpack.c.bf16 %v638, %v638
  %v684 = vpack.c.bf16 %v639, %v639
  %v685 = vpack.c.bf16 %v643, %v643
  %v686 = vpack.c.bf16 %v644, %v644
  %v687 = vpack.c.bf16 %v645, %v645
  %v688 = vpack.c.bf16 %v646, %v646
  %v689 = vpack.c.bf16 %v647, %v647
  %v690 = vld [vmem:[%s21] sm:$0xff]
  %v691 = vld [vmem:[%s21 + $0x8] sm:$0xff]
  %v692 = vld [vmem:[%s21 + $0x10] sm:$0xf]
  %v693 = vld [vmem:[%s21 + $0x14] sm:$0xff]
  %v694 = vld [vmem:[%s21 + $0x1c] sm:$0xff]
  %v695 = vld [vmem:[%s21 + $0x24] sm:$0xf]
  %v696 = vld [vmem:[%s21 + $0x28] sm:$0xff]
  %v697 = vld [vmem:[%s21 + $0x30] sm:$0xff]
  %v698 = vld [vmem:[%s21 + $0x38] sm:$0xf]
  %v699 = vld [vmem:[%s21 + $0x3c] sm:$0xff]
  %v700 = vld [vmem:[%s21 + $0x44] sm:$0xff]
  %v701 = vld [vmem:[%s21 + $0x4c] sm:$0xf]
  %v702 = vld [vmem:[%s21 + $0x50] sm:$0xff]
  %v703 = vld [vmem:[%s21 + $0x58] sm:$0xff]
  %v704 = vld [vmem:[%s21 + $0x60] sm:$0xf]
  %v705 = vld [vmem:[%s21 + $0x64] sm:$0xff]
  %v706 = vld [vmem:[%s21 + $0x6c] sm:$0xff]
  %v707 = vld [vmem:[%s21 + $0x74] sm:$0xf]
  %v708 = vld [vmem:[%s21 + $0x78] sm:$0xff]
  %v709 = vld [vmem:[%s21 + $0x80] sm:$0xff]
  %v710 = vld [vmem:[%s21 + $0x88] sm:$0xf]
  %v711 = vld [vmem:[%s21 + $0x8c] sm:$0xff]
  %v712 = vld [vmem:[%s21 + $0x94] sm:$0xff]
  %v713 = vld [vmem:[%s21 + $0x9c] sm:$0xf]
  %v714 = vld [vmem:[%s21 + $0xa0] sm:$0xff]
  %v715 = vld [vmem:[%s21 + $0xa8] sm:$0xff]
  %v716 = vld [vmem:[%s21 + $0xb0] sm:$0xf]
  %v717 = vld [vmem:[%s21 + $0xb4] sm:$0xff]
  %v718 = vld [vmem:[%s21 + $0xbc] sm:$0xff]
  %v719 = vld [vmem:[%s21 + $0xc4] sm:$0xf]
  %v720 = vld [vmem:[%s21 + $0xc8] sm:$0xff]
  %v721 = vld [vmem:[%s21 + $0xd0] sm:$0xff]
  %v722 = vld [vmem:[%s21 + $0xd8] sm:$0xf]
  %v723 = vld [vmem:[%s21 + $0xdc] sm:$0xff]
  %v724 = vld [vmem:[%s21 + $0xe4] sm:$0xff]
  %v725 = vld [vmem:[%s21 + $0xec] sm:$0xf]
  %v726 = vld [vmem:[%s21 + $0xf0] sm:$0xff]
  %v727 = vld [vmem:[%s21 + $0xf8] sm:$0xff]
  %v728 = vld [vmem:[%s21 + $0x100] sm:$0xf]
  %v729 = vld [vmem:[%s21 + $0x104] sm:$0xff]
  %v730 = vld [vmem:[%s21 + $0x10c] sm:$0xff]
  %v731 = vld [vmem:[%s21 + $0x114] sm:$0xf]
  %v732 = vld [vmem:[%s21 + $0x118] sm:$0xff]
  %v733 = vld [vmem:[%s21 + $0x120] sm:$0xff]
  %v734 = vld [vmem:[%s21 + $0x128] sm:$0xf]
  %v735 = vld [vmem:[%s21 + $0x12c] sm:$0xff]
  %v736 = vld [vmem:[%s21 + $0x134] sm:$0xff]
  %v737 = vld [vmem:[%s21 + $0x13c] sm:$0xf]
  %v738 = vld [vmem:[%s21 + $0x140] sm:$0xff]
  %v739 = vld [vmem:[%s21 + $0x148] sm:$0xff]
  %v740 = vld [vmem:[%s21 + $0x150] sm:$0xf]
  %v741 = vld [vmem:[%s21 + $0x154] sm:$0xff]
  %v742 = vld [vmem:[%s21 + $0x15c] sm:$0xff]
  %v743 = vld [vmem:[%s21 + $0x164] sm:$0xf]
  %v744 = vld [vmem:[%s21 + $0x168] sm:$0xff]
  %v745 = vld [vmem:[%s21 + $0x170] sm:$0xff]
  %v746 = vld [vmem:[%s21 + $0x178] sm:$0xf]
  %v747 = vld [vmem:[%s21 + $0x17c] sm:$0xff]
  %v748 = vld [vmem:[%s21 + $0x184] sm:$0xff]
  %v749 = vld [vmem:[%s21 + $0x18c] sm:$0xf]
  %v750 = vld [vmem:[%s21 + $0x190] sm:$0xff]
  %v751 = vld [vmem:[%s21 + $0x198] sm:$0xff]
  %v752 = vld [vmem:[%s21 + $0x1a0] sm:$0xf]
  %v753 = vld [vmem:[%s21 + $0x1a4] sm:$0xff]
  %v754 = vld [vmem:[%s21 + $0x1ac] sm:$0xff]
  %v755 = vld [vmem:[%s21 + $0x1b4] sm:$0xf]
  %v756 = vld [vmem:[%s21 + $0x1b8] sm:$0xff]
  %v757 = vld [vmem:[%s21 + $0x1c0] sm:$0xff]
  %v758 = vld [vmem:[%s21 + $0x1c8] sm:$0xf]
  %v759 = vld [vmem:[%s21 + $0x1cc] sm:$0xff]
  %v760 = vld [vmem:[%s21 + $0x1d4] sm:$0xff]
  %v761 = vld [vmem:[%s21 + $0x1dc] sm:$0xf]
  %v762 = vld [vmem:[%s21 + $0x1e0] sm:$0xff]
  %v763 = vld [vmem:[%s21 + $0x1e8] sm:$0xff]
  %v764 = vld [vmem:[%s21 + $0x1f0] sm:$0xf]
  %v765 = vld [vmem:[%s21 + $0x1f4] sm:$0xff]
  %v766 = vld [vmem:[%s21 + $0x1fc] sm:$0xff]
  %v767 = vld [vmem:[%s21 + $0x204] sm:$0xf]
  %v768 = vld [vmem:[%s21 + $0x208] sm:$0xff]
  %v769 = vld [vmem:[%s21 + $0x210] sm:$0xff]
  %v770 = vld [vmem:[%s21 + $0x218] sm:$0xf]
  %v771 = vld [vmem:[%s21 + $0x21c] sm:$0xff]
  %v772 = vld [vmem:[%s21 + $0x224] sm:$0xff]
  %v773 = vld [vmem:[%s21 + $0x22c] sm:$0xf]
  %v774 = vld [vmem:[%s21 + $0x230] sm:$0xff]
  %v775 = vld [vmem:[%s21 + $0x238] sm:$0xff]
  %v776 = vld [vmem:[%s21 + $0x240] sm:$0xf]
  %v777 = vld [vmem:[%s21 + $0x244] sm:$0xff]
  %v778 = vld [vmem:[%s21 + $0x24c] sm:$0xff]
  %v779 = vld [vmem:[%s21 + $0x254] sm:$0xf]
  %v780 = vld [vmem:[%s21 + $0x258] sm:$0xff]
  %v781 = vld [vmem:[%s21 + $0x260] sm:$0xff]
  %v782 = vld [vmem:[%s21 + $0x268] sm:$0xf]
  %v783 = vld [vmem:[%s21 + $0x26c] sm:$0xff]
  %v784 = vld [vmem:[%s21 + $0x274] sm:$0xff]
  %v785 = vld [vmem:[%s21 + $0x27c] sm:$0xf]
  %v786 = vld [vmem:[%s21 + $0x280] sm:$0xff]
  %v787 = vld [vmem:[%s21 + $0x288] sm:$0xff]
  %v788 = vld [vmem:[%s21 + $0x290] sm:$0xf]
  %v789 = vld [vmem:[%s21 + $0x294] sm:$0xff]
  %v790 = vld [vmem:[%s21 + $0x29c] sm:$0xff]
  %v791 = vld [vmem:[%s21 + $0x2a4] sm:$0xf]
  %v792 = vld [vmem:[%s21 + $0x2a8] sm:$0xff]
  %v793 = vld [vmem:[%s21 + $0x2b0] sm:$0xff]
  %v794 = vld [vmem:[%s21 + $0x2b8] sm:$0xf]
  %v795 = vld [vmem:[%s21 + $0x2bc] sm:$0xff]
  %v796 = vld [vmem:[%s21 + $0x2c4] sm:$0xff]
  %v797 = vld [vmem:[%s21 + $0x2cc] sm:$0xf]
  %v798 = vld [vmem:[%s21 + $0x2d0] sm:$0xff]
  %v799 = vld [vmem:[%s21 + $0x2d8] sm:$0xff]
  %v800 = vld [vmem:[%s21 + $0x2e0] sm:$0xf]
  %v801 = vld [vmem:[%s21 + $0x2e4] sm:$0xff]
  %v802 = vld [vmem:[%s21 + $0x2ec] sm:$0xff]
  %v803 = vld [vmem:[%s21 + $0x2f4] sm:$0xf]
  %v804 = vld [vmem:[%s21 + $0x2f8] sm:$0xff]
  %v805 = vld [vmem:[%s21 + $0x300] sm:$0xff]
  %v806 = vld [vmem:[%s21 + $0x308] sm:$0xf]
  %v807 = vld [vmem:[%s21 + $0x30c] sm:$0xff]
  %v808 = vld [vmem:[%s21 + $0x314] sm:$0xff]
  %v809 = vld [vmem:[%s21 + $0x31c] sm:$0xf]
  %v810 = vld [vmem:[%s21 + $0x320] sm:$0xff]
  %v811 = vld [vmem:[%s21 + $0x328] sm:$0xff]
  %v812 = vld [vmem:[%s21 + $0x330] sm:$0xf]
  %v813 = vld [vmem:[%s21 + $0x334] sm:$0xff]
  %v814 = vld [vmem:[%s21 + $0x33c] sm:$0xff]
  %v815 = vld [vmem:[%s21 + $0x344] sm:$0xf]
  %v816 = vld [vmem:[%s21 + $0x348] sm:$0xff]
  %v817 = vld [vmem:[%s21 + $0x350] sm:$0xff]
  %v818 = vld [vmem:[%s21 + $0x358] sm:$0xf]
  %v819 = vld [vmem:[%s21 + $0x35c] sm:$0xff]
  %v820 = vld [vmem:[%s21 + $0x364] sm:$0xff]
  %v821 = vld [vmem:[%s21 + $0x36c] sm:$0xf]
  %v822 = vld [vmem:[%s21 + $0x370] sm:$0xff]
  %v823 = vld [vmem:[%s21 + $0x378] sm:$0xff]
  %v824 = vld [vmem:[%s21 + $0x380] sm:$0xf]
  %v825 = vld [vmem:[%s21 + $0x384] sm:$0xff]
  %v826 = vld [vmem:[%s21 + $0x38c] sm:$0xff]
  %v827 = vld [vmem:[%s21 + $0x394] sm:$0xf]
  %v828 = vld [vmem:[%s21 + $0x398] sm:$0xff]
  %v829 = vld [vmem:[%s21 + $0x3a0] sm:$0xff]
  %v830 = vld [vmem:[%s21 + $0x3a8] sm:$0xf]
  %v831 = vld [vmem:[%s21 + $0x3ac] sm:$0xff]
  %v832 = vld [vmem:[%s21 + $0x3b4] sm:$0xff]
  %v833 = vld [vmem:[%s21 + $0x3bc] sm:$0xf]
  %v834 = vld [vmem:[%s21 + $0x3c0] sm:$0xff]
  %v835 = vld [vmem:[%s21 + $0x3c8] sm:$0xff]
  %v836 = vld [vmem:[%s21 + $0x3d0] sm:$0xf]
  %v837 = vld [vmem:[%s21 + $0x3d4] sm:$0xff]
  %v838 = vld [vmem:[%s21 + $0x3dc] sm:$0xff]
  %v839 = vld [vmem:[%s21 + $0x3e4] sm:$0xf]
  %v840 = vld [vmem:[%s21 + $0x3e8] sm:$0xff]
  %v841 = vld [vmem:[%s21 + $0x3f0] sm:$0xff]
  %v842 = vld [vmem:[%s21 + $0x3f8] sm:$0xf]
  %v843 = vld [vmem:[%s21 + $0x3fc] sm:$0xff]
  %v844 = vld [vmem:[%s21 + $0x404] sm:$0xff]
  %v845 = vld [vmem:[%s21 + $0x40c] sm:$0xf]
  %v846 = vld [vmem:[%s21 + $0x410] sm:$0xff]
  %v847 = vld [vmem:[%s21 + $0x418] sm:$0xff]
  %v848 = vld [vmem:[%s21 + $0x420] sm:$0xf]
  %v849 = vld [vmem:[%s21 + $0x424] sm:$0xff]
  %v850 = vld [vmem:[%s21 + $0x42c] sm:$0xff]
  %v851 = vld [vmem:[%s21 + $0x434] sm:$0xf]
  %v852 = vld [vmem:[%s21 + $0x438] sm:$0xff]
  %v853 = vld [vmem:[%s21 + $0x440] sm:$0xff]
  %v854 = vld [vmem:[%s21 + $0x448] sm:$0xf]
  %v855 = vld [vmem:[%s21 + $0x44c] sm:$0xff]
  %v856 = vld [vmem:[%s21 + $0x454] sm:$0xff]
  %v857 = vld [vmem:[%s21 + $0x45c] sm:$0xf]
  %v858 = vld [vmem:[%s21 + $0x460] sm:$0xff]
  %v859 = vld [vmem:[%s21 + $0x468] sm:$0xff]
  %v860 = vld [vmem:[%s21 + $0x470] sm:$0xf]
  %v861 = vld [vmem:[%s21 + $0x474] sm:$0xff]
  %v862 = vld [vmem:[%s21 + $0x47c] sm:$0xff]
  %v863 = vld [vmem:[%s21 + $0x484] sm:$0xf]
  %v864 = vld [vmem:[%s21 + $0x488] sm:$0xff]
  %v865 = vld [vmem:[%s21 + $0x490] sm:$0xff]
  %v866 = vld [vmem:[%s21 + $0x498] sm:$0xf]
  %v867 = vld [vmem:[%s21 + $0x49c] sm:$0xff]
  %v868 = vld [vmem:[%s21 + $0x4a4] sm:$0xff]
  %v869 = vld [vmem:[%s21 + $0x4ac] sm:$0xf]
  %v870 = vld [vmem:[%s21 + $0x4b0] sm:$0xff]
  %v871 = vld [vmem:[%s21 + $0x4b8] sm:$0xff]
  %v872 = vld [vmem:[%s21 + $0x4c0] sm:$0xf]
  %v873 = vld [vmem:[%s21 + $0x4c4] sm:$0xff]
  %v874 = vld [vmem:[%s21 + $0x4cc] sm:$0xff]
  %v875 = vld [vmem:[%s21 + $0x4d4] sm:$0xf]
  %v876 = vld [vmem:[%s21 + $0x4d8] sm:$0xff]
  %v877 = vld [vmem:[%s21 + $0x4e0] sm:$0xff]
  %v878 = vld [vmem:[%s21 + $0x4e8] sm:$0xf]
  %v879 = vld [vmem:[%s21 + $0x4ec] sm:$0xff]
  %v880 = vld [vmem:[%s21 + $0x4f4] sm:$0xff]
  %v881 = vld [vmem:[%s21 + $0x4fc] sm:$0xf]
  %v882 = vld [vmem:[%s21 + $0x500] sm:$0xff]
  %v883 = vld [vmem:[%s21 + $0x508] sm:$0xff]
  %v884 = vld [vmem:[%s21 + $0x510] sm:$0xf]
  %v885 = vld [vmem:[%s21 + $0x514] sm:$0xff]
  %v886 = vld [vmem:[%s21 + $0x51c] sm:$0xff]
  %v887 = vld [vmem:[%s21 + $0x524] sm:$0xf]
  %v888 = vld [vmem:[%s21 + $0x528] sm:$0xff]
  %v889 = vld [vmem:[%s21 + $0x530] sm:$0xff]
  %v890 = vld [vmem:[%s21 + $0x538] sm:$0xf]
  %v891 = vld [vmem:[%s21 + $0x53c] sm:$0xff]
  %v892 = vld [vmem:[%s21 + $0x544] sm:$0xff]
  %v893 = vld [vmem:[%s21 + $0x54c] sm:$0xf]
  %v894 = vld [vmem:[%s21 + $0x550] sm:$0xff]
  %v895 = vld [vmem:[%s21 + $0x558] sm:$0xff]
  %v896 = vld [vmem:[%s21 + $0x560] sm:$0xf]
  %v897 = vld [vmem:[%s21 + $0x564] sm:$0xff]
  %v898 = vld [vmem:[%s21 + $0x56c] sm:$0xff]
  %v899 = vld [vmem:[%s21 + $0x574] sm:$0xf]
  %v900 = vld [vmem:[%s21 + $0x578] sm:$0xff]
  %v901 = vld [vmem:[%s21 + $0x580] sm:$0xff]
  %v902 = vld [vmem:[%s21 + $0x588] sm:$0xf]
  %v903 = vld [vmem:[%s21 + $0x58c] sm:$0xff]
  %v904 = vld [vmem:[%s21 + $0x594] sm:$0xff]
  %v905 = vld [vmem:[%s21 + $0x59c] sm:$0xf]
  %v906 = vld [vmem:[%s21 + $0x5a0] sm:$0xff]
  %v907 = vld [vmem:[%s21 + $0x5a8] sm:$0xff]
  %v908 = vld [vmem:[%s21 + $0x5b0] sm:$0xf]
  %v909 = vld [vmem:[%s21 + $0x5b4] sm:$0xff]
  %v910 = vld [vmem:[%s21 + $0x5bc] sm:$0xff]
  %v911 = vld [vmem:[%s21 + $0x5c4] sm:$0xf]
  %v912 = vld [vmem:[%s21 + $0x5c8] sm:$0xff]
  %v913 = vld [vmem:[%s21 + $0x5d0] sm:$0xff]
  %v914 = vld [vmem:[%s21 + $0x5d8] sm:$0xf]
  %v915 = vld [vmem:[%s21 + $0x5dc] sm:$0xff]
  %v916 = vld [vmem:[%s21 + $0x5e4] sm:$0xff]
  %v917 = vld [vmem:[%s21 + $0x5ec] sm:$0xf]
  %v918 = vld [vmem:[%s21 + $0x5f0] sm:$0xff]
  %v919 = vld [vmem:[%s21 + $0x5f8] sm:$0xff]
  %v920 = vld [vmem:[%s21 + $0x600] sm:$0xf]
  %v921 = vld [vmem:[%s21 + $0x604] sm:$0xff]
  %v922 = vld [vmem:[%s21 + $0x60c] sm:$0xff]
  %v923 = vld [vmem:[%s21 + $0x614] sm:$0xf]
  %v924 = vld [vmem:[%s21 + $0x618] sm:$0xff]
  %v925 = vld [vmem:[%s21 + $0x620] sm:$0xff]
  %v926 = vld [vmem:[%s21 + $0x628] sm:$0xf]
  %v927 = vld [vmem:[%s21 + $0x62c] sm:$0xff]
  %v928 = vld [vmem:[%s21 + $0x634] sm:$0xff]
  %v929 = vld [vmem:[%s21 + $0x63c] sm:$0xf]
  %v930 = vld [vmem:[%s21 + $0x640] sm:$0xff]
  %v931 = vld [vmem:[%s21 + $0x648] sm:$0xff]
  %v932 = vld [vmem:[%s21 + $0x650] sm:$0xf]
  %v933 = vld [vmem:[%s21 + $0x654] sm:$0xff]
  %v934 = vld [vmem:[%s21 + $0x65c] sm:$0xff]
  %v935 = vld [vmem:[%s21 + $0x664] sm:$0xf]
  %v936 = vld [vmem:[%s21 + $0x668] sm:$0xff]
  %v937 = vld [vmem:[%s21 + $0x670] sm:$0xff]
  %v938 = vld [vmem:[%s21 + $0x678] sm:$0xf]
  %v939 = vld [vmem:[%s21 + $0x67c] sm:$0xff]
  %v940 = vld [vmem:[%s21 + $0x684] sm:$0xff]
  %v941 = vld [vmem:[%s21 + $0x68c] sm:$0xf]
  %v942 = vld [vmem:[%s21 + $0x690] sm:$0xff]
  %v943 = vld [vmem:[%s21 + $0x698] sm:$0xff]
  %v944 = vld [vmem:[%s21 + $0x6a0] sm:$0xf]
  %v945 = vld [vmem:[%s21 + $0x6a4] sm:$0xff]
  %v946 = vld [vmem:[%s21 + $0x6ac] sm:$0xff]
  %v947 = vld [vmem:[%s21 + $0x6b4] sm:$0xf]
  %v948 = vld [vmem:[%s21 + $0x6b8] sm:$0xff]
  %v949 = vld [vmem:[%s21 + $0x6c0] sm:$0xff]
  %v950 = vld [vmem:[%s21 + $0x6c8] sm:$0xf]
  %v951 = vld [vmem:[%s21 + $0x6cc] sm:$0xff]
  %v952 = vld [vmem:[%s21 + $0x6d4] sm:$0xff]
  %v953 = vld [vmem:[%s21 + $0x6dc] sm:$0xf]
  %v954 = vld [vmem:[%s21 + $0x6e0] sm:$0xff]
  %v955 = vld [vmem:[%s21 + $0x6e8] sm:$0xff]
  %v956 = vld [vmem:[%s21 + $0x6f0] sm:$0xf]
  %v957 = vld [vmem:[%s21 + $0x6f4] sm:$0xff]
  %v958 = vld [vmem:[%s21 + $0x6fc] sm:$0xff]
  %v959 = vld [vmem:[%s21 + $0x704] sm:$0xf]
  %v960 = vld [vmem:[%s21 + $0x708] sm:$0xff]
  %v961 = vld [vmem:[%s21 + $0x710] sm:$0xff]
  %v962 = vld [vmem:[%s21 + $0x718] sm:$0xf]
  %v963 = vld [vmem:[%s21 + $0x71c] sm:$0xff]
  %v964 = vld [vmem:[%s21 + $0x724] sm:$0xff]
  %v965 = vld [vmem:[%s21 + $0x72c] sm:$0xf]
  %v966 = vld [vmem:[%s21 + $0x730] sm:$0xff]
  %v967 = vld [vmem:[%s21 + $0x738] sm:$0xff]
  %v968 = vld [vmem:[%s21 + $0x740] sm:$0xf]
  %v969 = vld [vmem:[%s21 + $0x744] sm:$0xff]
  %v970 = vld [vmem:[%s21 + $0x74c] sm:$0xff]
  %v971 = vld [vmem:[%s21 + $0x754] sm:$0xf]
  %v972 = vld [vmem:[%s21 + $0x758] sm:$0xff]
  %v973 = vld [vmem:[%s21 + $0x760] sm:$0xff]
  %v974 = vld [vmem:[%s21 + $0x768] sm:$0xf]
  %v975 = vld [vmem:[%s21 + $0x76c] sm:$0xff]
  %v976 = vld [vmem:[%s21 + $0x774] sm:$0xff]
  %v977 = vld [vmem:[%s21 + $0x77c] sm:$0xf]
  %v978 = vld [vmem:[%s21 + $0x780] sm:$0xff]
  %v979 = vld [vmem:[%s21 + $0x788] sm:$0xff]
  %v980 = vld [vmem:[%s21 + $0x790] sm:$0xf]
  %v981 = vld [vmem:[%s21 + $0x794] sm:$0xff]
  %v982 = vld [vmem:[%s21 + $0x79c] sm:$0xff]
  %v983 = vld [vmem:[%s21 + $0x7a4] sm:$0xf]
  %v984 = vld [vmem:[%s21 + $0x7a8] sm:$0xff]
  %v985 = vld [vmem:[%s21 + $0x7b0] sm:$0xff]
  %v986 = vld [vmem:[%s21 + $0x7b8] sm:$0xf]
  %v987 = vld [vmem:[%s21 + $0x7bc] sm:$0xff]
  %v988 = vld [vmem:[%s21 + $0x7c4] sm:$0xff]
  %v989 = vld [vmem:[%s21 + $0x7cc] sm:$0xf]
  %v990 = vld [vmem:[%s21 + $0x7d0] sm:$0xff]
  %v991 = vld [vmem:[%s21 + $0x7d8] sm:$0xff]
  %v992 = vld [vmem:[%s21 + $0x7e0] sm:$0xf]
  %v993 = vld [vmem:[%s21 + $0x7e4] sm:$0xff]
  %v994 = vld [vmem:[%s21 + $0x7ec] sm:$0xff]
  %v995 = vld [vmem:[%s21 + $0x7f4] sm:$0xf]
  %v996 = vld [vmem:[%s21 + $0x7f8] sm:$0xff]
  %v997 = vld [vmem:[%s21 + $0x800] sm:$0xff]
  %v998 = vld [vmem:[%s21 + $0x808] sm:$0xf]
  %v999 = vld [vmem:[%s21 + $0x80c] sm:$0xff]
  %v1000 = vld [vmem:[%s21 + $0x814] sm:$0xff]
  %v1001 = vld [vmem:[%s21 + $0x81c] sm:$0xf]
  %v1002 = vld [vmem:[%s21 + $0x820] sm:$0xff]
  %v1003 = vld [vmem:[%s21 + $0x828] sm:$0xff]
  %v1004 = vld [vmem:[%s21 + $0x830] sm:$0xf]
  %v1005 = vld [vmem:[%s21 + $0x834] sm:$0xff]
  %v1006 = vld [vmem:[%s21 + $0x83c] sm:$0xff]
  %v1007 = vld [vmem:[%s21 + $0x844] sm:$0xf]
  %v1008 = vld [vmem:[%s21 + $0x848] sm:$0xff]
  %v1009 = vld [vmem:[%s21 + $0x850] sm:$0xff]
  %v1010 = vld [vmem:[%s21 + $0x858] sm:$0xf]
  %v1011 = vld [vmem:[%s21 + $0x85c] sm:$0xff]
  %v1012 = vld [vmem:[%s21 + $0x864] sm:$0xff]
  %v1013 = vld [vmem:[%s21 + $0x86c] sm:$0xf]
  %v1014 = vld [vmem:[%s21 + $0x870] sm:$0xff]
  %v1015 = vld [vmem:[%s21 + $0x878] sm:$0xff]
  %v1016 = vld [vmem:[%s21 + $0x880] sm:$0xf]
  %v1017 = vld [vmem:[%s21 + $0x884] sm:$0xff]
  %v1018 = vld [vmem:[%s21 + $0x88c] sm:$0xff]
  %v1019 = vld [vmem:[%s21 + $0x894] sm:$0xf]
  %v1020 = vld [vmem:[%s21 + $0x898] sm:$0xff]
  %v1021 = vld [vmem:[%s21 + $0x8a0] sm:$0xff]
  %v1022 = vld [vmem:[%s21 + $0x8a8] sm:$0xf]
  %v1023 = vld [vmem:[%s21 + $0x8ac] sm:$0xff]
  %v1024 = vld [vmem:[%s21 + $0x8b4] sm:$0xff]
  %v1025 = vld [vmem:[%s21 + $0x8bc] sm:$0xf]
  %v1026 = vld [vmem:[%s21 + $0x8c0] sm:$0xff]
  %v1027 = vld [vmem:[%s21 + $0x8c8] sm:$0xff]
  %v1028 = vld [vmem:[%s21 + $0x8d0] sm:$0xf]
  %v1029 = vld [vmem:[%s21 + $0x8d4] sm:$0xff]
  %v1030 = vld [vmem:[%s21 + $0x8dc] sm:$0xff]
  %v1031 = vld [vmem:[%s21 + $0x8e4] sm:$0xf]
  %v1032 = vld [vmem:[%s21 + $0x8e8] sm:$0xff]
  %v1033 = vld [vmem:[%s21 + $0x8f0] sm:$0xff]
  %v1034 = vld [vmem:[%s21 + $0x8f8] sm:$0xf]
  %v1035 = vld [vmem:[%s21 + $0x8fc] sm:$0xff]
  %v1036 = vld [vmem:[%s21 + $0x904] sm:$0xff]
  %v1037 = vld [vmem:[%s21 + $0x90c] sm:$0xf]
  %v1038 = vld [vmem:[%s21 + $0x910] sm:$0xff]
  %v1039 = vld [vmem:[%s21 + $0x918] sm:$0xff]
  %v1040 = vld [vmem:[%s21 + $0x920] sm:$0xf]
  %v1041 = vld [vmem:[%s21 + $0x924] sm:$0xff]
  %v1042 = vld [vmem:[%s21 + $0x92c] sm:$0xff]
  %v1043 = vld [vmem:[%s21 + $0x934] sm:$0xf]
  %v1044 = vld [vmem:[%s21 + $0x938] sm:$0xff]
  %v1045 = vld [vmem:[%s21 + $0x940] sm:$0xff]
  %v1046 = vld [vmem:[%s21 + $0x948] sm:$0xf]
  %v1047 = vld [vmem:[%s21 + $0x94c] sm:$0xff]
  %v1048 = vld [vmem:[%s21 + $0x954] sm:$0xff]
  %v1049 = vld [vmem:[%s21 + $0x95c] sm:$0xf]
  %v1050 = vld [vmem:[%s21 + $0x960] sm:$0xff]
  %v1051 = vld [vmem:[%s21 + $0x968] sm:$0xff]
  %v1052 = vld [vmem:[%s21 + $0x970] sm:$0xf]
  %v1053 = vld [vmem:[%s21 + $0x974] sm:$0xff]
  %v1054 = vld [vmem:[%s21 + $0x97c] sm:$0xff]
  %v1055 = vld [vmem:[%s21 + $0x984] sm:$0xf]
  %v1056 = vld [vmem:[%s21 + $0x988] sm:$0xff]
  %v1057 = vld [vmem:[%s21 + $0x990] sm:$0xff]
  %v1058 = vld [vmem:[%s21 + $0x998] sm:$0xf]
  %v1059 = vld [vmem:[%s21 + $0x99c] sm:$0xff]
  %v1060 = vld [vmem:[%s21 + $0x9a4] sm:$0xff]
  %v1061 = vld [vmem:[%s21 + $0x9ac] sm:$0xf]
  %v1062 = vld [vmem:[%s21 + $0x9b0] sm:$0xff]
  %v1063 = vld [vmem:[%s21 + $0x9b8] sm:$0xff]
  %v1064 = vld [vmem:[%s21 + $0x9c0] sm:$0xf]
  %v1065 = vld [vmem:[%s21 + $0x9c4] sm:$0xff]
  %v1066 = vld [vmem:[%s21 + $0x9cc] sm:$0xff]
  %v1067 = vld [vmem:[%s21 + $0x9d4] sm:$0xf]
  %v1068 = vld [vmem:[%s21 + $0x9d8] sm:$0xff]
  %v1069 = vld [vmem:[%s21 + $0x9e0] sm:$0xff]
  %v1070 = vld [vmem:[%s21 + $0x9e8] sm:$0xf]
  %v1071 = vld [vmem:[%s21 + $0x9ec] sm:$0xff]
  %v1072 = vld [vmem:[%s21 + $0x9f4] sm:$0xff]
  %v1073 = vld [vmem:[%s21 + $0x9fc] sm:$0xf]
  %v1074 = vld [vmem:[%s21 + $0xa00] sm:$0xff]
  %v1075 = vld [vmem:[%s21 + $0xa08] sm:$0xff]
  %v1076 = vld [vmem:[%s21 + $0xa10] sm:$0xf]
  %v1077 = vld [vmem:[%s21 + $0xa14] sm:$0xff]
  %v1078 = vld [vmem:[%s21 + $0xa1c] sm:$0xff]
  %v1079 = vld [vmem:[%s21 + $0xa24] sm:$0xf]
  %v1080 = vld [vmem:[%s21 + $0xa28] sm:$0xff]
  %v1081 = vld [vmem:[%s21 + $0xa30] sm:$0xff]
  %v1082 = vld [vmem:[%s21 + $0xa38] sm:$0xf]
  %v1083 = vld [vmem:[%s21 + $0xa3c] sm:$0xff]
  %v1084 = vld [vmem:[%s21 + $0xa44] sm:$0xff]
  %v1085 = vld [vmem:[%s21 + $0xa4c] sm:$0xf]
  %v1086 = vld [vmem:[%s21 + $0xa50] sm:$0xff]
  %v1087 = vld [vmem:[%s21 + $0xa58] sm:$0xff]
  %v1088 = vld [vmem:[%s21 + $0xa60] sm:$0xf]
  %v1089 = vld [vmem:[%s21 + $0xa64] sm:$0xff]
  %v1090 = vld [vmem:[%s21 + $0xa6c] sm:$0xff]
  %v1091 = vld [vmem:[%s21 + $0xa74] sm:$0xf]
  %v1092 = vld [vmem:[%s21 + $0xa78] sm:$0xff]
  %v1093 = vld [vmem:[%s21 + $0xa80] sm:$0xff]
  %v1094 = vld [vmem:[%s21 + $0xa88] sm:$0xf]
  %v1095 = vld [vmem:[%s21 + $0xa8c] sm:$0xff]
  %v1096 = vld [vmem:[%s21 + $0xa94] sm:$0xff]
  %v1097 = vld [vmem:[%s21 + $0xa9c] sm:$0xf]
  %v1098 = vld [vmem:[%s21 + $0xaa0] sm:$0xff]
  %v1099 = vld [vmem:[%s21 + $0xaa8] sm:$0xff]
  %v1100 = vld [vmem:[%s21 + $0xab0] sm:$0xf]
  %v1101 = vld [vmem:[%s21 + $0xab4] sm:$0xff]
  %v1102 = vld [vmem:[%s21 + $0xabc] sm:$0xff]
  %v1103 = vld [vmem:[%s21 + $0xac4] sm:$0xf]
  %v1104 = vld [vmem:[%s21 + $0xac8] sm:$0xff]
  %v1105 = vld [vmem:[%s21 + $0xad0] sm:$0xff]
  %v1106 = vld [vmem:[%s21 + $0xad8] sm:$0xf]
  %v1107 = vld [vmem:[%s21 + $0xadc] sm:$0xff]
  %v1108 = vld [vmem:[%s21 + $0xae4] sm:$0xff]
  %v1109 = vld [vmem:[%s21 + $0xaec] sm:$0xf]
  %v1110 = vld [vmem:[%s21 + $0xaf0] sm:$0xff]
  %v1111 = vld [vmem:[%s21 + $0xaf8] sm:$0xff]
  %v1112 = vld [vmem:[%s21 + $0xb00] sm:$0xf]
  %v1113 = vld [vmem:[%s21 + $0xb04] sm:$0xff]
  %v1114 = vld [vmem:[%s21 + $0xb0c] sm:$0xff]
  %v1115 = vld [vmem:[%s21 + $0xb14] sm:$0xf]
  %v1116 = vld [vmem:[%s21 + $0xb18] sm:$0xff]
  %v1117 = vld [vmem:[%s21 + $0xb20] sm:$0xff]
  %v1118 = vld [vmem:[%s21 + $0xb28] sm:$0xf]
  %v1119 = vld [vmem:[%s21 + $0xb2c] sm:$0xff]
  %v1120 = vld [vmem:[%s21 + $0xb34] sm:$0xff]
  %v1121 = vld [vmem:[%s21 + $0xb3c] sm:$0xf]
  %v1122 = vld [vmem:[%s21 + $0xb40] sm:$0xff]
  %v1123 = vld [vmem:[%s21 + $0xb48] sm:$0xff]
  %v1124 = vld [vmem:[%s21 + $0xb50] sm:$0xf]
  %v1125 = vld [vmem:[%s21 + $0xb54] sm:$0xff]
  %v1126 = vld [vmem:[%s21 + $0xb5c] sm:$0xff]
  %v1127 = vld [vmem:[%s21 + $0xb64] sm:$0xf]
  %v1128 = vld [vmem:[%s21 + $0xb68] sm:$0xff]
  %v1129 = vld [vmem:[%s21 + $0xb70] sm:$0xff]
  %v1130 = vld [vmem:[%s21 + $0xb78] sm:$0xf]
  %v1131 = vld [vmem:[%s21 + $0xb7c] sm:$0xff]
  %v1132 = vld [vmem:[%s21 + $0xb84] sm:$0xff]
  %v1133 = vld [vmem:[%s21 + $0xb8c] sm:$0xf]
  %v1134 = vld [vmem:[%s21 + $0xb90] sm:$0xff]
  %v1135 = vld [vmem:[%s21 + $0xb98] sm:$0xff]
  %v1136 = vld [vmem:[%s21 + $0xba0] sm:$0xf]
  %v1137 = vld [vmem:[%s21 + $0xba4] sm:$0xff]
  %v1138 = vld [vmem:[%s21 + $0xbac] sm:$0xff]
  %v1139 = vld [vmem:[%s21 + $0xbb4] sm:$0xf]
  %v1140 = vld [vmem:[%s21 + $0xbb8] sm:$0xff]
  %v1141 = vld [vmem:[%s21 + $0xbc0] sm:$0xff]
  %v1142 = vld [vmem:[%s21 + $0xbc8] sm:$0xf]
  %v1143 = vld [vmem:[%s21 + $0xbcc] sm:$0xff]
  %v1144 = vld [vmem:[%s21 + $0xbd4] sm:$0xff]
  %v1145 = vld [vmem:[%s21 + $0xbdc] sm:$0xf]
  %v1146 = vld [vmem:[%s21 + $0xbe0] sm:$0xff]
  %v1147 = vld [vmem:[%s21 + $0xbe8] sm:$0xff]
  %v1148 = vld [vmem:[%s21 + $0xbf0] sm:$0xf]
  %v1149 = vld [vmem:[%s21 + $0xbf4] sm:$0xff]
  %v1150 = vld [vmem:[%s21 + $0xbfc] sm:$0xff]
  %v1151 = vld [vmem:[%s21 + $0xc04] sm:$0xf]
  %v1152 = vld [vmem:[%s21 + $0xc08] sm:$0xff]
  %v1153 = vld [vmem:[%s21 + $0xc10] sm:$0xff]
  %v1154 = vld [vmem:[%s21 + $0xc18] sm:$0xf]
  %v1155 = vld [vmem:[%s21 + $0xc1c] sm:$0xff]
  %v1156 = vld [vmem:[%s21 + $0xc24] sm:$0xff]
  %v1157 = vld [vmem:[%s21 + $0xc2c] sm:$0xf]
  %v1158 = vld [vmem:[%s21 + $0xc30] sm:$0xff]
  %v1159 = vld [vmem:[%s21 + $0xc38] sm:$0xff]
  %v1160 = vld [vmem:[%s21 + $0xc40] sm:$0xf]
  %v1161 = vld [vmem:[%s21 + $0xc44] sm:$0xff]
  %v1162 = vld [vmem:[%s21 + $0xc4c] sm:$0xff]
  %v1163 = vld [vmem:[%s21 + $0xc54] sm:$0xf]
  %v1164 = vld [vmem:[%s21 + $0xc58] sm:$0xff]
  %v1165 = vld [vmem:[%s21 + $0xc60] sm:$0xff]
  %v1166 = vld [vmem:[%s21 + $0xc68] sm:$0xf]
  %v1167 = vld [vmem:[%s21 + $0xc6c] sm:$0xff]
  %v1168 = vld [vmem:[%s21 + $0xc74] sm:$0xff]
  %v1169 = vld [vmem:[%s21 + $0xc7c] sm:$0xf]
  %v1170 = vld [vmem:[%s21 + $0xc80] sm:$0xff]
  %v1171 = vld [vmem:[%s21 + $0xc88] sm:$0xff]
  %v1172 = vld [vmem:[%s21 + $0xc90] sm:$0xf]
  %v1173 = vld [vmem:[%s21 + $0xc94] sm:$0xff]
  %v1174 = vld [vmem:[%s21 + $0xc9c] sm:$0xff]
  %v1175 = vld [vmem:[%s21 + $0xca4] sm:$0xf]
  %v1176 = vld [vmem:[%s21 + $0xca8] sm:$0xff]
  %v1177 = vld [vmem:[%s21 + $0xcb0] sm:$0xff]
  %v1178 = vld [vmem:[%s21 + $0xcb8] sm:$0xf]
  %v1179 = vld [vmem:[%s21 + $0xcbc] sm:$0xff]
  %v1180 = vld [vmem:[%s21 + $0xcc4] sm:$0xff]
  %v1181 = vld [vmem:[%s21 + $0xccc] sm:$0xf]
  %v1182 = vld [vmem:[%s21 + $0xcd0] sm:$0xff]
  %v1183 = vld [vmem:[%s21 + $0xcd8] sm:$0xff]
  %v1184 = vld [vmem:[%s21 + $0xce0] sm:$0xf]
  %v1185 = vld [vmem:[%s21 + $0xce4] sm:$0xff]
  %v1186 = vld [vmem:[%s21 + $0xcec] sm:$0xff]
  %v1187 = vld [vmem:[%s21 + $0xcf4] sm:$0xf]
  %v1188 = vld [vmem:[%s21 + $0xcf8] sm:$0xff]
  %v1189 = vld [vmem:[%s21 + $0xd00] sm:$0xff]
  %v1190 = vld [vmem:[%s21 + $0xd08] sm:$0xf]
  %v1191 = vld [vmem:[%s21 + $0xd0c] sm:$0xff]
  %v1192 = vld [vmem:[%s21 + $0xd14] sm:$0xff]
  %v1193 = vld [vmem:[%s21 + $0xd1c] sm:$0xf]
  %v1194 = vld [vmem:[%s21 + $0xd20] sm:$0xff]
  %v1195 = vld [vmem:[%s21 + $0xd28] sm:$0xff]
  %v1196 = vld [vmem:[%s21 + $0xd30] sm:$0xf]
  %v1197 = vld [vmem:[%s21 + $0xd34] sm:$0xff]
  %v1198 = vld [vmem:[%s21 + $0xd3c] sm:$0xff]
  %v1199 = vld [vmem:[%s21 + $0xd44] sm:$0xf]
  %v1200 = vld [vmem:[%s21 + $0xd48] sm:$0xff]
  %v1201 = vld [vmem:[%s21 + $0xd50] sm:$0xff]
  %v1202 = vld [vmem:[%s21 + $0xd58] sm:$0xf]
  %v1203 = vld [vmem:[%s21 + $0xd5c] sm:$0xff]
  %v1204 = vld [vmem:[%s21 + $0xd64] sm:$0xff]
  %v1205 = vld [vmem:[%s21 + $0xd6c] sm:$0xf]
  %v1206 = vld [vmem:[%s21 + $0xd70] sm:$0xff]
  %v1207 = vld [vmem:[%s21 + $0xd78] sm:$0xff]
  %v1208 = vld [vmem:[%s21 + $0xd80] sm:$0xf]
  %v1209 = vld [vmem:[%s21 + $0xd84] sm:$0xff]
  %v1210 = vld [vmem:[%s21 + $0xd8c] sm:$0xff]
  %v1211 = vld [vmem:[%s21 + $0xd94] sm:$0xf]
  %v1212 = vld [vmem:[%s21 + $0xd98] sm:$0xff]
  %v1213 = vld [vmem:[%s21 + $0xda0] sm:$0xff]
  %v1214 = vld [vmem:[%s21 + $0xda8] sm:$0xf]
  %v1215 = vld [vmem:[%s21 + $0xdac] sm:$0xff]
  %v1216 = vld [vmem:[%s21 + $0xdb4] sm:$0xff]
  %v1217 = vld [vmem:[%s21 + $0xdbc] sm:$0xf]
  %v1218 = vld [vmem:[%s21 + $0xdc0] sm:$0xff]
  %v1219 = vld [vmem:[%s21 + $0xdc8] sm:$0xff]
  %v1220 = vld [vmem:[%s21 + $0xdd0] sm:$0xf]
  %v1221 = vld [vmem:[%s21 + $0xdd4] sm:$0xff]
  %v1222 = vld [vmem:[%s21 + $0xddc] sm:$0xff]
  %v1223 = vld [vmem:[%s21 + $0xde4] sm:$0xf]
  %v1224 = vld [vmem:[%s21 + $0xde8] sm:$0xff]
  %v1225 = vld [vmem:[%s21 + $0xdf0] sm:$0xff]
  %v1226 = vld [vmem:[%s21 + $0xdf8] sm:$0xf]
  %v1227 = vld [vmem:[%s21 + $0xdfc] sm:$0xff]
  %v1228 = vld [vmem:[%s21 + $0xe04] sm:$0xff]
  %v1229 = vld [vmem:[%s21 + $0xe0c] sm:$0xf]
  %v1230 = vld [vmem:[%s21 + $0xe10] sm:$0xff]
  %v1231 = vld [vmem:[%s21 + $0xe18] sm:$0xff]
  %v1232 = vld [vmem:[%s21 + $0xe20] sm:$0xf]
  %v1233 = vld [vmem:[%s21 + $0xe24] sm:$0xff]
  %v1234 = vld [vmem:[%s21 + $0xe2c] sm:$0xff]
  %v1235 = vld [vmem:[%s21 + $0xe34] sm:$0xf]
  %v1236 = vld [vmem:[%s21 + $0xe38] sm:$0xff]
  %v1237 = vld [vmem:[%s21 + $0xe40] sm:$0xff]
  %v1238 = vld [vmem:[%s21 + $0xe48] sm:$0xf]
  %v1239 = vld [vmem:[%s21 + $0xe4c] sm:$0xff]
  %v1240 = vld [vmem:[%s21 + $0xe54] sm:$0xff]
  %v1241 = vld [vmem:[%s21 + $0xe5c] sm:$0xf]
  %v1242 = vld [vmem:[%s21 + $0xe60] sm:$0xff]
  %v1243 = vld [vmem:[%s21 + $0xe68] sm:$0xff]
  %v1244 = vld [vmem:[%s21 + $0xe70] sm:$0xf]
  %v1245 = vld [vmem:[%s21 + $0xe74] sm:$0xff]
  %v1246 = vld [vmem:[%s21 + $0xe7c] sm:$0xff]
  %v1247 = vld [vmem:[%s21 + $0xe84] sm:$0xf]
  %v1248 = vld [vmem:[%s21 + $0xe88] sm:$0xff]
  %v1249 = vld [vmem:[%s21 + $0xe90] sm:$0xff]
  %v1250 = vld [vmem:[%s21 + $0xe98] sm:$0xf]
  %v1251 = vld [vmem:[%s21 + $0xe9c] sm:$0xff]
  %v1252 = vld [vmem:[%s21 + $0xea4] sm:$0xff]
  %v1253 = vld [vmem:[%s21 + $0xeac] sm:$0xf]
  %v1254 = vld [vmem:[%s21 + $0xeb0] sm:$0xff]
  %v1255 = vld [vmem:[%s21 + $0xeb8] sm:$0xff]
  %v1256 = vld [vmem:[%s21 + $0xec0] sm:$0xf]
  %v1257 = vld [vmem:[%s21 + $0xec4] sm:$0xff]
  %v1258 = vld [vmem:[%s21 + $0xecc] sm:$0xff]
  %v1259 = vld [vmem:[%s21 + $0xed4] sm:$0xf]
  %v1260 = vld [vmem:[%s21 + $0xed8] sm:$0xff]
  %v1261 = vld [vmem:[%s21 + $0xee0] sm:$0xff]
  %v1262 = vld [vmem:[%s21 + $0xee8] sm:$0xf]
  %v1263 = vld [vmem:[%s21 + $0xeec] sm:$0xff]
  %v1264 = vld [vmem:[%s21 + $0xef4] sm:$0xff]
  %v1265 = vld [vmem:[%s21 + $0xefc] sm:$0xf]
  %v1266 = vld [vmem:[%s21 + $0xf00] sm:$0xff]
  %v1267 = vld [vmem:[%s21 + $0xf08] sm:$0xff]
  %v1268 = vld [vmem:[%s21 + $0xf10] sm:$0xf]
  %v1269 = vld [vmem:[%s21 + $0xf14] sm:$0xff]
  %v1270 = vld [vmem:[%s21 + $0xf1c] sm:$0xff]
  %v1271 = vld [vmem:[%s21 + $0xf24] sm:$0xf]
  %v1272 = vld [vmem:[%s21 + $0xf28] sm:$0xff]
  %v1273 = vld [vmem:[%s21 + $0xf30] sm:$0xff]
  %v1274 = vld [vmem:[%s21 + $0xf38] sm:$0xf]
  %v1275 = vld [vmem:[%s21 + $0xf3c] sm:$0xff]
  %v1276 = vld [vmem:[%s21 + $0xf44] sm:$0xff]
  %v1277 = vld [vmem:[%s21 + $0xf4c] sm:$0xf]
  %v1278 = vld [vmem:[%s21 + $0xf50] sm:$0xff]
  %v1279 = vld [vmem:[%s21 + $0xf58] sm:$0xff]
  %v1280 = vld [vmem:[%s21 + $0xf60] sm:$0xf]
  %v1281 = vld [vmem:[%s21 + $0xf64] sm:$0xff]
  %v1282 = vld [vmem:[%s21 + $0xf6c] sm:$0xff]
  %v1283 = vld [vmem:[%s21 + $0xf74] sm:$0xf]
  %v1284 = vld [vmem:[%s21 + $0xf78] sm:$0xff]
  %v1285 = vld [vmem:[%s21 + $0xf80] sm:$0xff]
  %v1286 = vld [vmem:[%s21 + $0xf88] sm:$0xf]
  %v1287 = vld [vmem:[%s21 + $0xf8c] sm:$0xff]
  %v1288 = vld [vmem:[%s21 + $0xf94] sm:$0xff]
  %v1289 = vld [vmem:[%s21 + $0xf9c] sm:$0xf]
  %v1290 = vld [vmem:[%s21 + $0xfa0] sm:$0xff]
  %v1291 = vld [vmem:[%s21 + $0xfa8] sm:$0xff]
  %v1292 = vld [vmem:[%s21 + $0xfb0] sm:$0xf]
  %v1293 = vld [vmem:[%s21 + $0xfb4] sm:$0xff]
  %v1294 = vld [vmem:[%s21 + $0xfbc] sm:$0xff]
  %v1295 = vld [vmem:[%s21 + $0xfc4] sm:$0xf]
  %v1296 = vld [vmem:[%s21 + $0xfc8] sm:$0xff]
  %v1297 = vld [vmem:[%s21 + $0xfd0] sm:$0xff]
  %v1298 = vld [vmem:[%s21 + $0xfd8] sm:$0xf]
  %v1299 = vld [vmem:[%s21 + $0xfdc] sm:$0xff]
  %v1300 = vld [vmem:[%s21 + $0xfe4] sm:$0xff]
  %v1301 = vld [vmem:[%s21 + $0xfec] sm:$0xf]
  %v1302 = vld [vmem:[%s21 + $0xff0] sm:$0xff]
  %v1303 = vld [vmem:[%s21 + $0xff8] sm:$0xff]
  %v1304 = vld [vmem:[%s21 + $0x1000] sm:$0xf]
  %v1305 = vld [vmem:[%s21 + $0x1004] sm:$0xff]
  %v1306 = vld [vmem:[%s21 + $0x100c] sm:$0xff]
  %v1307 = vld [vmem:[%s21 + $0x1014] sm:$0xf]
  %v1308 = vld [vmem:[%s21 + $0x1018] sm:$0xff]
  %v1309 = vld [vmem:[%s21 + $0x1020] sm:$0xff]
  %v1310 = vld [vmem:[%s21 + $0x1028] sm:$0xf]
  %v1311 = vld [vmem:[%s21 + $0x102c] sm:$0xff]
  %v1312 = vld [vmem:[%s21 + $0x1034] sm:$0xff]
  %v1313 = vld [vmem:[%s21 + $0x103c] sm:$0xf]
  %v1314 = vld [vmem:[%s21 + $0x1040] sm:$0xff]
  %v1315 = vld [vmem:[%s21 + $0x1048] sm:$0xff]
  %v1316 = vld [vmem:[%s21 + $0x1050] sm:$0xf]
  %v1317 = vld [vmem:[%s21 + $0x1054] sm:$0xff]
  %v1318 = vld [vmem:[%s21 + $0x105c] sm:$0xff]
  %v1319 = vld [vmem:[%s21 + $0x1064] sm:$0xf]
  %v1320 = vld [vmem:[%s21 + $0x1068] sm:$0xff]
  %v1321 = vld [vmem:[%s21 + $0x1070] sm:$0xff]
  %v1322 = vld [vmem:[%s21 + $0x1078] sm:$0xf]
  %v1323 = vld [vmem:[%s21 + $0x107c] sm:$0xff]
  %v1324 = vld [vmem:[%s21 + $0x1084] sm:$0xff]
  %v1325 = vld [vmem:[%s21 + $0x108c] sm:$0xf]
  %v1326 = vld [vmem:[%s21 + $0x1090] sm:$0xff]
  %v1327 = vld [vmem:[%s21 + $0x1098] sm:$0xff]
  %v1328 = vld [vmem:[%s21 + $0x10a0] sm:$0xf]
  %v1329 = vld [vmem:[%s21 + $0x10a4] sm:$0xff]
  %v1330 = vld [vmem:[%s21 + $0x10ac] sm:$0xff]
  %v1331 = vld [vmem:[%s21 + $0x10b4] sm:$0xf]
  %v1332 = vld [vmem:[%s21 + $0x10b8] sm:$0xff]
  %v1333 = vld [vmem:[%s21 + $0x10c0] sm:$0xff]
  %v1334 = vld [vmem:[%s21 + $0x10c8] sm:$0xf]
  %v1335 = vld [vmem:[%s21 + $0x10cc] sm:$0xff]
  %v1336 = vld [vmem:[%s21 + $0x10d4] sm:$0xff]
  %v1337 = vld [vmem:[%s21 + $0x10dc] sm:$0xf]
  %v1338 = vld [vmem:[%s21 + $0x10e0] sm:$0xff]
  %v1339 = vld [vmem:[%s21 + $0x10e8] sm:$0xff]
  %v1340 = vld [vmem:[%s21 + $0x10f0] sm:$0xf]
  %v1341 = vld [vmem:[%s21 + $0x10f4] sm:$0xff]
  %v1342 = vld [vmem:[%s21 + $0x10fc] sm:$0xff]
  %v1343 = vld [vmem:[%s21 + $0x1104] sm:$0xf]
  %v1344 = vld [vmem:[%s21 + $0x1108] sm:$0xff]
  %v1345 = vld [vmem:[%s21 + $0x1110] sm:$0xff]
  %v1346 = vld [vmem:[%s21 + $0x1118] sm:$0xf]
  %v1347 = vld [vmem:[%s21 + $0x111c] sm:$0xff]
  %v1348 = vld [vmem:[%s21 + $0x1124] sm:$0xff]
  %v1349 = vld [vmem:[%s21 + $0x112c] sm:$0xf]
  %v1350 = vld [vmem:[%s21 + $0x1130] sm:$0xff]
  %v1351 = vld [vmem:[%s21 + $0x1138] sm:$0xff]
  %v1352 = vld [vmem:[%s21 + $0x1140] sm:$0xf]
  %v1353 = vld [vmem:[%s21 + $0x1144] sm:$0xff]
  %v1354 = vld [vmem:[%s21 + $0x114c] sm:$0xff]
  %v1355 = vld [vmem:[%s21 + $0x1154] sm:$0xf]
  %v1356 = vld [vmem:[%s21 + $0x1158] sm:$0xff]
  %v1357 = vld [vmem:[%s21 + $0x1160] sm:$0xff]
  %v1358 = vld [vmem:[%s21 + $0x1168] sm:$0xf]
  %v1359 = vld [vmem:[%s21 + $0x116c] sm:$0xff]
  %v1360 = vld [vmem:[%s21 + $0x1174] sm:$0xff]
  %v1361 = vld [vmem:[%s21 + $0x117c] sm:$0xf]
  %v1362 = vld [vmem:[%s21 + $0x1180] sm:$0xff]
  %v1363 = vld [vmem:[%s21 + $0x1188] sm:$0xff]
  %v1364 = vld [vmem:[%s21 + $0x1190] sm:$0xf]
  %v1365 = vld [vmem:[%s21 + $0x1194] sm:$0xff]
  %v1366 = vld [vmem:[%s21 + $0x119c] sm:$0xff]
  %v1367 = vld [vmem:[%s21 + $0x11a4] sm:$0xf]
  %v1368 = vld [vmem:[%s21 + $0x11a8] sm:$0xff]
  %v1369 = vld [vmem:[%s21 + $0x11b0] sm:$0xff]
  %v1370 = vld [vmem:[%s21 + $0x11b8] sm:$0xf]
  %v1371 = vld [vmem:[%s21 + $0x11bc] sm:$0xff]
  %v1372 = vld [vmem:[%s21 + $0x11c4] sm:$0xff]
  %v1373 = vld [vmem:[%s21 + $0x11cc] sm:$0xf]
  %v1374 = vld [vmem:[%s21 + $0x11d0] sm:$0xff]
  %v1375 = vld [vmem:[%s21 + $0x11d8] sm:$0xff]
  %v1376 = vld [vmem:[%s21 + $0x11e0] sm:$0xf]
  %v1377 = vld [vmem:[%s21 + $0x11e4] sm:$0xff]
  %v1378 = vld [vmem:[%s21 + $0x11ec] sm:$0xff]
  %v1379 = vld [vmem:[%s21 + $0x11f4] sm:$0xf]
  %v1380 = vld [vmem:[%s21 + $0x11f8] sm:$0xff]
  %v1381 = vld [vmem:[%s21 + $0x1200] sm:$0xff]
  %v1382 = vld [vmem:[%s21 + $0x1208] sm:$0xf]
  %v1383 = vld [vmem:[%s21 + $0x120c] sm:$0xff]
  %v1384 = vld [vmem:[%s21 + $0x1214] sm:$0xff]
  %v1385 = vld [vmem:[%s21 + $0x121c] sm:$0xf]
  %v1386 = vld [vmem:[%s21 + $0x1220] sm:$0xff]
  %v1387 = vld [vmem:[%s21 + $0x1228] sm:$0xff]
  %v1388 = vld [vmem:[%s21 + $0x1230] sm:$0xf]
  %v1389 = vld [vmem:[%s21 + $0x1234] sm:$0xff]
  %v1390 = vld [vmem:[%s21 + $0x123c] sm:$0xff]
  %v1391 = vld [vmem:[%s21 + $0x1244] sm:$0xf]
  %v1392 = vld [vmem:[%s21 + $0x1248] sm:$0xff]
  %v1393 = vld [vmem:[%s21 + $0x1250] sm:$0xff]
  %v1394 = vld [vmem:[%s21 + $0x1258] sm:$0xf]
  %v1395 = vld [vmem:[%s21 + $0x125c] sm:$0xff]
  %v1396 = vld [vmem:[%s21 + $0x1264] sm:$0xff]
  %v1397 = vld [vmem:[%s21 + $0x126c] sm:$0xf]
  %v1398 = vld [vmem:[%s21 + $0x1270] sm:$0xff]
  %v1399 = vld [vmem:[%s21 + $0x1278] sm:$0xff]
  %v1400 = vld [vmem:[%s21 + $0x1280] sm:$0xf]
  %v1401 = vld [vmem:[%s21 + $0x1284] sm:$0xff]
  %v1402 = vld [vmem:[%s21 + $0x128c] sm:$0xff]
  %v1403 = vld [vmem:[%s21 + $0x1294] sm:$0xf]
  %v1404 = vld [vmem:[%s21 + $0x1298] sm:$0xff]
  %v1405 = vld [vmem:[%s21 + $0x12a0] sm:$0xff]
  %v1406 = vld [vmem:[%s21 + $0x12a8] sm:$0xf]
  %v1407 = vld [vmem:[%s21 + $0x12ac] sm:$0xff]
  %v1408 = vld [vmem:[%s21 + $0x12b4] sm:$0xff]
  %v1409 = vld [vmem:[%s21 + $0x12bc] sm:$0xf]
  %v1410 = vld [vmem:[%s21 + $0x12c0] sm:$0xff]
  %v1411 = vld [vmem:[%s21 + $0x12c8] sm:$0xff]
  %v1412 = vld [vmem:[%s21 + $0x12d0] sm:$0xf]
  %v1413 = vld [vmem:[%s21 + $0x12d4] sm:$0xff]
  %v1414 = vld [vmem:[%s21 + $0x12dc] sm:$0xff]
  %v1415 = vld [vmem:[%s21 + $0x12e4] sm:$0xf]
  %v1416 = vld [vmem:[%s21 + $0x12e8] sm:$0xff]
  %v1417 = vld [vmem:[%s21 + $0x12f0] sm:$0xff]
  %v1418 = vld [vmem:[%s21 + $0x12f8] sm:$0xf]
  %v1419 = vld [vmem:[%s21 + $0x12fc] sm:$0xff]
  %v1420 = vld [vmem:[%s21 + $0x1304] sm:$0xff]
  %v1421 = vld [vmem:[%s21 + $0x130c] sm:$0xf]
  %v1422 = vld [vmem:[%s21 + $0x1310] sm:$0xff]
  %v1423 = vld [vmem:[%s21 + $0x1318] sm:$0xff]
  %v1424 = vld [vmem:[%s21 + $0x1320] sm:$0xf]
  %v1425 = vld [vmem:[%s21 + $0x1324] sm:$0xff]
  %v1426 = vld [vmem:[%s21 + $0x132c] sm:$0xff]
  %v1427 = vld [vmem:[%s21 + $0x1334] sm:$0xf]
  %v1428 = vld [vmem:[%s21 + $0x1338] sm:$0xff]
  %v1429 = vld [vmem:[%s21 + $0x1340] sm:$0xff]
  %v1430 = vld [vmem:[%s21 + $0x1348] sm:$0xf]
  %v1431 = vld [vmem:[%s21 + $0x134c] sm:$0xff]
  %v1432 = vld [vmem:[%s21 + $0x1354] sm:$0xff]
  %v1433 = vld [vmem:[%s21 + $0x135c] sm:$0xf]
  %v1434 = vld [vmem:[%s21 + $0x1360] sm:$0xff]
  %v1435 = vld [vmem:[%s21 + $0x1368] sm:$0xff]
  %v1436 = vld [vmem:[%s21 + $0x1370] sm:$0xf]
  %v1437 = vld [vmem:[%s21 + $0x1374] sm:$0xff]
  %v1438 = vld [vmem:[%s21 + $0x137c] sm:$0xff]
  %v1439 = vld [vmem:[%s21 + $0x1384] sm:$0xf]
  %v1440 = vld [vmem:[%s21 + $0x1388] sm:$0xff]
  %v1441 = vld [vmem:[%s21 + $0x1390] sm:$0xff]
  %v1442 = vld [vmem:[%s21 + $0x1398] sm:$0xf]
  %v1443 = vld [vmem:[%s21 + $0x139c] sm:$0xff]
  %v1444 = vld [vmem:[%s21 + $0x13a4] sm:$0xff]
  %v1445 = vld [vmem:[%s21 + $0x13ac] sm:$0xf]
  %v1446 = vld [vmem:[%s21 + $0x13b0] sm:$0xff]
  %v1447 = vld [vmem:[%s21 + $0x13b8] sm:$0xff]
  %v1448 = vld [vmem:[%s21 + $0x13c0] sm:$0xf]
  %v1449 = vld [vmem:[%s21 + $0x13c4] sm:$0xff]
  %v1450 = vld [vmem:[%s21 + $0x13cc] sm:$0xff]
  %v1451 = vld [vmem:[%s21 + $0x13d4] sm:$0xf]
  %v1452 = vld [vmem:[%s21 + $0x13d8] sm:$0xff]
  %v1453 = vld [vmem:[%s21 + $0x13e0] sm:$0xff]
  %v1454 = vld [vmem:[%s21 + $0x13e8] sm:$0xf]
  %v1455 = vld [vmem:[%s21 + $0x13ec] sm:$0xff]
  %v1456 = vld [vmem:[%s21 + $0x13f4] sm:$0xff]
  %v1457 = vld [vmem:[%s21 + $0x13fc] sm:$0xf]
  %v1458 = vld [vmem:[%s21 + $0x1400] sm:$0xff]
  %v1459 = vld [vmem:[%s21 + $0x1408] sm:$0xff]
  %v1460 = vld [vmem:[%s21 + $0x1410] sm:$0xf]
  %v1461 = vld [vmem:[%s21 + $0x1414] sm:$0xff]
  %v1462 = vld [vmem:[%s21 + $0x141c] sm:$0xff]
  %v1463 = vld [vmem:[%s21 + $0x1424] sm:$0xf]
  %v1464 = vld [vmem:[%s21 + $0x1428] sm:$0xff]
  %v1465 = vld [vmem:[%s21 + $0x1430] sm:$0xff]
  %v1466 = vld [vmem:[%s21 + $0x1438] sm:$0xf]
  %v1467 = vld [vmem:[%s21 + $0x143c] sm:$0xff]
  %v1468 = vld [vmem:[%s21 + $0x1444] sm:$0xff]
  %v1469 = vld [vmem:[%s21 + $0x144c] sm:$0xf]
  %v1470 = vld [vmem:[%s21 + $0x1450] sm:$0xff]
  %v1471 = vld [vmem:[%s21 + $0x1458] sm:$0xff]
  %v1472 = vld [vmem:[%s21 + $0x1460] sm:$0xf]
  %v1473 = vld [vmem:[%s21 + $0x1464] sm:$0xff]
  %v1474 = vld [vmem:[%s21 + $0x146c] sm:$0xff]
  %v1475 = vld [vmem:[%s21 + $0x1474] sm:$0xf]
  %v1476 = vld [vmem:[%s21 + $0x1478] sm:$0xff]
  %v1477 = vld [vmem:[%s21 + $0x1480] sm:$0xff]
  %v1478 = vld [vmem:[%s21 + $0x1488] sm:$0xf]
  %v1479 = vld [vmem:[%s21 + $0x148c] sm:$0xff]
  %v1480 = vld [vmem:[%s21 + $0x1494] sm:$0xff]
  %v1481 = vld [vmem:[%s21 + $0x149c] sm:$0xf]
  %v1482 = vld [vmem:[%s21 + $0x14a0] sm:$0xff]
  %v1483 = vld [vmem:[%s21 + $0x14a8] sm:$0xff]
  %v1484 = vld [vmem:[%s21 + $0x14b0] sm:$0xf]
  %v1485 = vld [vmem:[%s21 + $0x14b4] sm:$0xff]
  %v1486 = vld [vmem:[%s21 + $0x14bc] sm:$0xff]
  %v1487 = vld [vmem:[%s21 + $0x14c4] sm:$0xf]
  %v1488 = vld [vmem:[%s21 + $0x14c8] sm:$0xff]
  %v1489 = vld [vmem:[%s21 + $0x14d0] sm:$0xff]
  %v1490 = vld [vmem:[%s21 + $0x14d8] sm:$0xf]
  %v1491 = vld [vmem:[%s21 + $0x14dc] sm:$0xff]
  %v1492 = vld [vmem:[%s21 + $0x14e4] sm:$0xff]
  %v1493 = vld [vmem:[%s21 + $0x14ec] sm:$0xf]
  %v1494 = vld [vmem:[%s21 + $0x14f0] sm:$0xff]
  %v1495 = vld [vmem:[%s21 + $0x14f8] sm:$0xff]
  %v1496 = vld [vmem:[%s21 + $0x1500] sm:$0xf]
  %v1497 = vld [vmem:[%s21 + $0x1504] sm:$0xff]
  %v1498 = vld [vmem:[%s21 + $0x150c] sm:$0xff]
  %v1499 = vld [vmem:[%s21 + $0x1514] sm:$0xf]
  %v1500 = vld [vmem:[%s21 + $0x1518] sm:$0xff]
  %v1501 = vld [vmem:[%s21 + $0x1520] sm:$0xff]
  %v1502 = vld [vmem:[%s21 + $0x1528] sm:$0xf]
  %v1503 = vld [vmem:[%s21 + $0x152c] sm:$0xff]
  %v1504 = vld [vmem:[%s21 + $0x1534] sm:$0xff]
  %v1505 = vld [vmem:[%s21 + $0x153c] sm:$0xf]
  %v1506 = vld [vmem:[%s21 + $0x1540] sm:$0xff]
  %v1507 = vld [vmem:[%s21 + $0x1548] sm:$0xff]
  %v1508 = vld [vmem:[%s21 + $0x1550] sm:$0xf]
  %v1509 = vld [vmem:[%s21 + $0x1554] sm:$0xff]
  %v1510 = vld [vmem:[%s21 + $0x155c] sm:$0xff]
  %v1511 = vld [vmem:[%s21 + $0x1564] sm:$0xf]
  %v1512 = vld [vmem:[%s21 + $0x1568] sm:$0xff]
  %v1513 = vld [vmem:[%s21 + $0x1570] sm:$0xff]
  %v1514 = vld [vmem:[%s21 + $0x1578] sm:$0xf]
  %v1515 = vld [vmem:[%s21 + $0x157c] sm:$0xff]
  %v1516 = vld [vmem:[%s21 + $0x1584] sm:$0xff]
  %v1517 = vld [vmem:[%s21 + $0x158c] sm:$0xf]
  %v1518 = vld [vmem:[%s21 + $0x1590] sm:$0xff]
  %v1519 = vld [vmem:[%s21 + $0x1598] sm:$0xff]
  %v1520 = vld [vmem:[%s21 + $0x15a0] sm:$0xf]
  %v1521 = vld [vmem:[%s21 + $0x15a4] sm:$0xff]
  %v1522 = vld [vmem:[%s21 + $0x15ac] sm:$0xff]
  %v1523 = vld [vmem:[%s21 + $0x15b4] sm:$0xf]
  %v1524 = vld [vmem:[%s21 + $0x15b8] sm:$0xff]
  %v1525 = vld [vmem:[%s21 + $0x15c0] sm:$0xff]
  %v1526 = vld [vmem:[%s21 + $0x15c8] sm:$0xf]
  %v1527 = vld [vmem:[%s21 + $0x15cc] sm:$0xff]
  %v1528 = vld [vmem:[%s21 + $0x15d4] sm:$0xff]
  %v1529 = vld [vmem:[%s21 + $0x15dc] sm:$0xf]
  %v1530 = vld [vmem:[%s21 + $0x15e0] sm:$0xff]
  %v1531 = vld [vmem:[%s21 + $0x15e8] sm:$0xff]
  %v1532 = vld [vmem:[%s21 + $0x15f0] sm:$0xf]
  %v1533 = vld [vmem:[%s21 + $0x15f4] sm:$0xff]
  %v1534 = vld [vmem:[%s21 + $0x15fc] sm:$0xff]
  %v1535 = vld [vmem:[%s21 + $0x1604] sm:$0xf]
  %v1536 = vld [vmem:[%s21 + $0x1608] sm:$0xff]
  %v1537 = vld [vmem:[%s21 + $0x1610] sm:$0xff]
  %v1538 = vld [vmem:[%s21 + $0x1618] sm:$0xf]
  %v1539 = vld [vmem:[%s21 + $0x161c] sm:$0xff]
  %v1540 = vld [vmem:[%s21 + $0x1624] sm:$0xff]
  %v1541 = vld [vmem:[%s21 + $0x162c] sm:$0xf]
  %v1542 = vld [vmem:[%s21 + $0x1630] sm:$0xff]
  %v1543 = vld [vmem:[%s21 + $0x1638] sm:$0xff]
  %v1544 = vld [vmem:[%s21 + $0x1640] sm:$0xf]
  %v1545 = vld [vmem:[%s21 + $0x1644] sm:$0xff]
  %v1546 = vld [vmem:[%s21 + $0x164c] sm:$0xff]
  %v1547 = vld [vmem:[%s21 + $0x1654] sm:$0xf]
  %v1548 = vld [vmem:[%s21 + $0x1658] sm:$0xff]
  %v1549 = vld [vmem:[%s21 + $0x1660] sm:$0xff]
  %v1550 = vld [vmem:[%s21 + $0x1668] sm:$0xf]
  %v1551 = vld [vmem:[%s21 + $0x166c] sm:$0xff]
  %v1552 = vld [vmem:[%s21 + $0x1674] sm:$0xff]
  %v1553 = vld [vmem:[%s21 + $0x167c] sm:$0xf]
  %v1554 = vld [vmem:[%s21 + $0x1680] sm:$0xff]
  %v1555 = vld [vmem:[%s21 + $0x1688] sm:$0xff]
  %v1556 = vld [vmem:[%s21 + $0x1690] sm:$0xf]
  %v1557 = vld [vmem:[%s21 + $0x1694] sm:$0xff]
  %v1558 = vld [vmem:[%s21 + $0x169c] sm:$0xff]
  %v1559 = vld [vmem:[%s21 + $0x16a4] sm:$0xf]
  %v1560 = vld [vmem:[%s21 + $0x16a8] sm:$0xff]
  %v1561 = vld [vmem:[%s21 + $0x16b0] sm:$0xff]
  %v1562 = vld [vmem:[%s21 + $0x16b8] sm:$0xf]
  %v1563 = vld [vmem:[%s21 + $0x16bc] sm:$0xff]
  %v1564 = vld [vmem:[%s21 + $0x16c4] sm:$0xff]
  %v1565 = vld [vmem:[%s21 + $0x16cc] sm:$0xf]
  %v1566 = vld [vmem:[%s21 + $0x16d0] sm:$0xff]
  %v1567 = vld [vmem:[%s21 + $0x16d8] sm:$0xff]
  %v1568 = vld [vmem:[%s21 + $0x16e0] sm:$0xf]
  %v1569 = vld [vmem:[%s21 + $0x16e4] sm:$0xff]
  %v1570 = vld [vmem:[%s21 + $0x16ec] sm:$0xff]
  %v1571 = vld [vmem:[%s21 + $0x16f4] sm:$0xf]
  %v1572 = vld [vmem:[%s21 + $0x16f8] sm:$0xff]
  %v1573 = vld [vmem:[%s21 + $0x1700] sm:$0xff]
  %v1574 = vld [vmem:[%s21 + $0x1708] sm:$0xf]
  %v1575 = vld [vmem:[%s21 + $0x170c] sm:$0xff]
  %v1576 = vld [vmem:[%s21 + $0x1714] sm:$0xff]
  %v1577 = vld [vmem:[%s21 + $0x171c] sm:$0xf]
  %v1578 = vld [vmem:[%s21 + $0x1720] sm:$0xff]
  %v1579 = vld [vmem:[%s21 + $0x1728] sm:$0xff]
  %v1580 = vld [vmem:[%s21 + $0x1730] sm:$0xf]
  %v1581 = vld [vmem:[%s21 + $0x1734] sm:$0xff]
  %v1582 = vld [vmem:[%s21 + $0x173c] sm:$0xff]
  %v1583 = vld [vmem:[%s21 + $0x1744] sm:$0xf]
  %v1584 = vld [vmem:[%s21 + $0x1748] sm:$0xff]
  %v1585 = vld [vmem:[%s21 + $0x1750] sm:$0xff]
  %v1586 = vld [vmem:[%s21 + $0x1758] sm:$0xf]
  %v1587 = vld [vmem:[%s21 + $0x175c] sm:$0xff]
  %v1588 = vld [vmem:[%s21 + $0x1764] sm:$0xff]
  %v1589 = vld [vmem:[%s21 + $0x176c] sm:$0xf]
  %v1590 = vld [vmem:[%s21 + $0x1770] sm:$0xff]
  %v1591 = vld [vmem:[%s21 + $0x1778] sm:$0xff]
  %v1592 = vld [vmem:[%s21 + $0x1780] sm:$0xf]
  %v1593 = vld [vmem:[%s21 + $0x1784] sm:$0xff]
  %v1594 = vld [vmem:[%s21 + $0x178c] sm:$0xff]
  %v1595 = vld [vmem:[%s21 + $0x1794] sm:$0xf]
  %v1596 = vld [vmem:[%s21 + $0x1798] sm:$0xff]
  %v1597 = vld [vmem:[%s21 + $0x17a0] sm:$0xff]
  %v1598 = vld [vmem:[%s21 + $0x17a8] sm:$0xf]
  %v1599 = vld [vmem:[%s21 + $0x17ac] sm:$0xff]
  %v1600 = vld [vmem:[%s21 + $0x17b4] sm:$0xff]
  %v1601 = vld [vmem:[%s21 + $0x17bc] sm:$0xf]
  %v1602 = vld [vmem:[%s21 + $0x17c0] sm:$0xff]
  %v1603 = vld [vmem:[%s21 + $0x17c8] sm:$0xff]
  %v1604 = vld [vmem:[%s21 + $0x17d0] sm:$0xf]
  %v1605 = vld [vmem:[%s21 + $0x17d4] sm:$0xff]
  %v1606 = vld [vmem:[%s21 + $0x17dc] sm:$0xff]
  %v1607 = vld [vmem:[%s21 + $0x17e4] sm:$0xf]
  %v1608 = vld [vmem:[%s21 + $0x17e8] sm:$0xff]
  %v1609 = vld [vmem:[%s21 + $0x17f0] sm:$0xff]
  %v1610 = vld [vmem:[%s21 + $0x17f8] sm:$0xf]
  %v1611 = vld [vmem:[%s21 + $0x17fc] sm:$0xff]
  %v1612 = vld [vmem:[%s21 + $0x1804] sm:$0xff]
  %v1613 = vld [vmem:[%s21 + $0x180c] sm:$0xf]
  %v1614 = vld [vmem:[%s21 + $0x1810] sm:$0xff]
  %v1615 = vld [vmem:[%s21 + $0x1818] sm:$0xff]
  %v1616 = vld [vmem:[%s21 + $0x1820] sm:$0xf]
  %v1617 = vld [vmem:[%s21 + $0x1824] sm:$0xff]
  %v1618 = vld [vmem:[%s21 + $0x182c] sm:$0xff]
  %v1619 = vld [vmem:[%s21 + $0x1834] sm:$0xf]
  %v1620 = vld [vmem:[%s21 + $0x1838] sm:$0xff]
  %v1621 = vld [vmem:[%s21 + $0x1840] sm:$0xff]
  %v1622 = vld [vmem:[%s21 + $0x1848] sm:$0xf]
  %v1623 = vld [vmem:[%s21 + $0x184c] sm:$0xff]
  %v1624 = vld [vmem:[%s21 + $0x1854] sm:$0xff]
  %v1625 = vld [vmem:[%s21 + $0x185c] sm:$0xf]
  %v1626 = vld [vmem:[%s21 + $0x1860] sm:$0xff]
  %v1627 = vld [vmem:[%s21 + $0x1868] sm:$0xff]
  %v1628 = vld [vmem:[%s21 + $0x1870] sm:$0xf]
  %v1629 = vld [vmem:[%s21 + $0x1874] sm:$0xff]
  %v1630 = vld [vmem:[%s21 + $0x187c] sm:$0xff]
  %v1631 = vld [vmem:[%s21 + $0x1884] sm:$0xf]
  %v1632 = vld [vmem:[%s21 + $0x1888] sm:$0xff]
  %v1633 = vld [vmem:[%s21 + $0x1890] sm:$0xff]
  %v1634 = vld [vmem:[%s21 + $0x1898] sm:$0xf]
  %v1635 = vld [vmem:[%s21 + $0x189c] sm:$0xff]
  %v1636 = vld [vmem:[%s21 + $0x18a4] sm:$0xff]
  %v1637 = vld [vmem:[%s21 + $0x18ac] sm:$0xf]
  %v1638 = vld [vmem:[%s21 + $0x18b0] sm:$0xff]
  %v1639 = vld [vmem:[%s21 + $0x18b8] sm:$0xff]
  %v1640 = vld [vmem:[%s21 + $0x18c0] sm:$0xf]
  %v1641 = vld [vmem:[%s21 + $0x18c4] sm:$0xff]
  %v1642 = vld [vmem:[%s21 + $0x18cc] sm:$0xff]
  %v1643 = vld [vmem:[%s21 + $0x18d4] sm:$0xf]
  %v1644 = vld [vmem:[%s21 + $0x18d8] sm:$0xff]
  %v1645 = vld [vmem:[%s21 + $0x18e0] sm:$0xff]
  %v1646 = vld [vmem:[%s21 + $0x18e8] sm:$0xf]
  %v1647 = vld [vmem:[%s21 + $0x18ec] sm:$0xff]
  %v1648 = vld [vmem:[%s21 + $0x18f4] sm:$0xff]
  %v1649 = vld [vmem:[%s21 + $0x18fc] sm:$0xf]
  %v1650 = vld [vmem:[%s21 + $0x1900] sm:$0xff]
  %v1651 = vld [vmem:[%s21 + $0x1908] sm:$0xff]
  %v1652 = vld [vmem:[%s21 + $0x1910] sm:$0xf]
  %v1653 = vld [vmem:[%s21 + $0x1914] sm:$0xff]
  %v1654 = vld [vmem:[%s21 + $0x191c] sm:$0xff]
  %v1655 = vld [vmem:[%s21 + $0x1924] sm:$0xf]
  %v1656 = vld [vmem:[%s21 + $0x1928] sm:$0xff]
  %v1657 = vld [vmem:[%s21 + $0x1930] sm:$0xff]
  %v1658 = vld [vmem:[%s21 + $0x1938] sm:$0xf]
  %v1659 = vld [vmem:[%s21 + $0x193c] sm:$0xff]
  %v1660 = vld [vmem:[%s21 + $0x1944] sm:$0xff]
  %v1661 = vld [vmem:[%s21 + $0x194c] sm:$0xf]
  %v1662 = vld [vmem:[%s21 + $0x1950] sm:$0xff]
  %v1663 = vld [vmem:[%s21 + $0x1958] sm:$0xff]
  %v1664 = vld [vmem:[%s21 + $0x1960] sm:$0xf]
  %v1665 = vld [vmem:[%s21 + $0x1964] sm:$0xff]
  %v1666 = vld [vmem:[%s21 + $0x196c] sm:$0xff]
  %v1667 = vld [vmem:[%s21 + $0x1974] sm:$0xf]
  %v1668 = vld [vmem:[%s21 + $0x1978] sm:$0xff]
  %v1669 = vld [vmem:[%s21 + $0x1980] sm:$0xff]
  %v1670 = vld [vmem:[%s21 + $0x1988] sm:$0xf]
  %v1671 = vld [vmem:[%s21 + $0x198c] sm:$0xff]
  %v1672 = vld [vmem:[%s21 + $0x1994] sm:$0xff]
  %v1673 = vld [vmem:[%s21 + $0x199c] sm:$0xf]
  %v1674 = vld [vmem:[%s21 + $0x19a0] sm:$0xff]
  %v1675 = vld [vmem:[%s21 + $0x19a8] sm:$0xff]
  %v1676 = vld [vmem:[%s21 + $0x19b0] sm:$0xf]
  %v1677 = vld [vmem:[%s21 + $0x19b4] sm:$0xff]
  %v1678 = vld [vmem:[%s21 + $0x19bc] sm:$0xff]
  %v1679 = vld [vmem:[%s21 + $0x19c4] sm:$0xf]
  %v1680 = vld [vmem:[%s21 + $0x19c8] sm:$0xff]
  %v1681 = vld [vmem:[%s21 + $0x19d0] sm:$0xff]
  %v1682 = vld [vmem:[%s21 + $0x19d8] sm:$0xf]
  %v1683 = vld [vmem:[%s21 + $0x19dc] sm:$0xff]
  %v1684 = vld [vmem:[%s21 + $0x19e4] sm:$0xff]
  %v1685 = vld [vmem:[%s21 + $0x19ec] sm:$0xf]
  %v1686 = vld [vmem:[%s23] sm:$0x1f]
  %v1688 = vperm.slane %v1686, 0
  %v1689 = vperm.slane %v1686, 1
  %v1690 = vperm.slane %v1686, 2
  %v1691 = vperm.slane %v1686, 3
  %v1692 = vperm.slane %v1686, 4
  %v2694 = vunpack.c.l.b16 %v690
  %v2695 = vunpack.c.h.b16 %v690
  %v2696 = vunpack.c.l.b16 %v691
  %v2697 = vunpack.c.h.b16 %v691
  %v2698 = vunpack.c.l.b16 %v692
  %v2699 = vunpack.c.l.b16 %v693
  %v2700 = vunpack.c.h.b16 %v693
  %v2701 = vunpack.c.l.b16 %v694
  %v2702 = vunpack.c.h.b16 %v694
  %v2703 = vunpack.c.l.b16 %v695
  %v2704 = vunpack.c.l.b16 %v696
  %v2705 = vunpack.c.h.b16 %v696
  %v2706 = vunpack.c.l.b16 %v697
  %v2707 = vunpack.c.h.b16 %v697
  %v2708 = vunpack.c.l.b16 %v698
  %v2709 = vunpack.c.l.b16 %v699
  %v2710 = vunpack.c.h.b16 %v699
  %v2711 = vunpack.c.l.b16 %v700
  %v2712 = vunpack.c.h.b16 %v700
  %v2713 = vunpack.c.l.b16 %v701
  %v2714 = vunpack.c.l.b16 %v702
  %v2715 = vunpack.c.h.b16 %v702
  %v2716 = vunpack.c.l.b16 %v703
  %v2717 = vunpack.c.h.b16 %v703
  %v2718 = vunpack.c.l.b16 %v704
  %v2719 = vunpack.c.l.b16 %v705
  %v2720 = vunpack.c.h.b16 %v705
  %v2721 = vunpack.c.l.b16 %v706
  %v2722 = vunpack.c.h.b16 %v706
  %v2723 = vunpack.c.l.b16 %v707
  %v2724 = vunpack.c.l.b16 %v708
  %v2725 = vunpack.c.h.b16 %v708
  %v2726 = vunpack.c.l.b16 %v709
  %v2727 = vunpack.c.h.b16 %v709
  %v2728 = vunpack.c.l.b16 %v710
  %v2729 = vunpack.c.l.b16 %v711
  %v2730 = vunpack.c.h.b16 %v711
  %v2731 = vunpack.c.l.b16 %v712
  %v2732 = vunpack.c.h.b16 %v712
  %v2733 = vunpack.c.l.b16 %v713
  %v2734 = vunpack.c.l.b16 %v714
  %v2735 = vunpack.c.h.b16 %v714
  %v2736 = vunpack.c.l.b16 %v715
  %v2737 = vunpack.c.h.b16 %v715
  %v2738 = vunpack.c.l.b16 %v716
  %v2739 = vunpack.c.l.b16 %v717
  %v2740 = vunpack.c.h.b16 %v717
  %v2741 = vunpack.c.l.b16 %v718
  %v2742 = vunpack.c.h.b16 %v718
  %v2743 = vunpack.c.l.b16 %v719
  %v2744 = vunpack.c.l.b16 %v720
  %v2745 = vunpack.c.h.b16 %v720
  %v2746 = vunpack.c.l.b16 %v721
  %v2747 = vunpack.c.h.b16 %v721
  %v2748 = vunpack.c.l.b16 %v722
  %v2749 = vunpack.c.l.b16 %v723
  %v2750 = vunpack.c.h.b16 %v723
  %v2751 = vunpack.c.l.b16 %v724
  %v2752 = vunpack.c.h.b16 %v724
  %v2753 = vunpack.c.l.b16 %v725
  %v2754 = vunpack.c.l.b16 %v726
  %v2755 = vunpack.c.h.b16 %v726
  %v2756 = vunpack.c.l.b16 %v727
  %v2757 = vunpack.c.h.b16 %v727
  %v2758 = vunpack.c.l.b16 %v728
  %v2759 = vunpack.c.l.b16 %v729
  %v2760 = vunpack.c.h.b16 %v729
  %v2761 = vunpack.c.l.b16 %v730
  %v2762 = vunpack.c.h.b16 %v730
  %v2763 = vunpack.c.l.b16 %v731
  %v2764 = vunpack.c.l.b16 %v732
  %v2765 = vunpack.c.h.b16 %v732
  %v2766 = vunpack.c.l.b16 %v733
  %v2767 = vunpack.c.h.b16 %v733
  %v2768 = vunpack.c.l.b16 %v734
  %v2769 = vunpack.c.l.b16 %v735
  %v2770 = vunpack.c.h.b16 %v735
  %v2771 = vunpack.c.l.b16 %v736
  %v2772 = vunpack.c.h.b16 %v736
  %v2773 = vunpack.c.l.b16 %v737
  %v2774 = vunpack.c.l.b16 %v738
  %v2775 = vunpack.c.h.b16 %v738
  %v2776 = vunpack.c.l.b16 %v739
  %v2777 = vunpack.c.h.b16 %v739
  %v2778 = vunpack.c.l.b16 %v740
  %v2779 = vunpack.c.l.b16 %v741
  %v2780 = vunpack.c.h.b16 %v741
  %v2781 = vunpack.c.l.b16 %v742
  %v2782 = vunpack.c.h.b16 %v742
  %v2783 = vunpack.c.l.b16 %v743
  %v2784 = vunpack.c.l.b16 %v744
  %v2785 = vunpack.c.h.b16 %v744
  %v2786 = vunpack.c.l.b16 %v745
  %v2787 = vunpack.c.h.b16 %v745
  %v2788 = vunpack.c.l.b16 %v746
  %v2789 = vunpack.c.l.b16 %v747
  %v2790 = vunpack.c.h.b16 %v747
  %v2791 = vunpack.c.l.b16 %v748
  %v2792 = vunpack.c.h.b16 %v748
  %v2793 = vunpack.c.l.b16 %v749
  %v2794 = vunpack.c.l.b16 %v750
  %v2795 = vunpack.c.h.b16 %v750
  %v2796 = vunpack.c.l.b16 %v751
  %v2797 = vunpack.c.h.b16 %v751
  %v2798 = vunpack.c.l.b16 %v752
  %v2799 = vunpack.c.l.b16 %v753
  %v2800 = vunpack.c.h.b16 %v753
  %v2801 = vunpack.c.l.b16 %v754
  %v2802 = vunpack.c.h.b16 %v754
  %v2803 = vunpack.c.l.b16 %v755
  %v2804 = vunpack.c.l.b16 %v756
  %v2805 = vunpack.c.h.b16 %v756
  %v2806 = vunpack.c.l.b16 %v757
  %v2807 = vunpack.c.h.b16 %v757
  %v2808 = vunpack.c.l.b16 %v758
  %v2809 = vunpack.c.l.b16 %v759
  %v2810 = vunpack.c.h.b16 %v759
  %v2811 = vunpack.c.l.b16 %v760
  %v2812 = vunpack.c.h.b16 %v760
  %v2813 = vunpack.c.l.b16 %v761
  %v2814 = vunpack.c.l.b16 %v762
  %v2815 = vunpack.c.h.b16 %v762
  %v2816 = vunpack.c.l.b16 %v763
  %v2817 = vunpack.c.h.b16 %v763
  %v2818 = vunpack.c.l.b16 %v764
  %v2819 = vunpack.c.l.b16 %v765
  %v2820 = vunpack.c.h.b16 %v765
  %v2821 = vunpack.c.l.b16 %v766
  %v2822 = vunpack.c.h.b16 %v766
  %v2823 = vunpack.c.l.b16 %v767
  %v2824 = vunpack.c.l.b16 %v768
  %v2825 = vunpack.c.h.b16 %v768
  %v2826 = vunpack.c.l.b16 %v769
  %v2827 = vunpack.c.h.b16 %v769
  %v2828 = vunpack.c.l.b16 %v770
  %v2829 = vunpack.c.l.b16 %v771
  %v2830 = vunpack.c.h.b16 %v771
  %v2831 = vunpack.c.l.b16 %v772
  %v2832 = vunpack.c.h.b16 %v772
  %v2833 = vunpack.c.l.b16 %v773
  %v2834 = vunpack.c.l.b16 %v774
  %v2835 = vunpack.c.h.b16 %v774
  %v2836 = vunpack.c.l.b16 %v775
  %v2837 = vunpack.c.h.b16 %v775
  %v2838 = vunpack.c.l.b16 %v776
  %v2839 = vunpack.c.l.b16 %v777
  %v2840 = vunpack.c.h.b16 %v777
  %v2841 = vunpack.c.l.b16 %v778
  %v2842 = vunpack.c.h.b16 %v778
  %v2843 = vunpack.c.l.b16 %v779
  %v2844 = vunpack.c.l.b16 %v780
  %v2845 = vunpack.c.h.b16 %v780
  %v2846 = vunpack.c.l.b16 %v781
  %v2847 = vunpack.c.h.b16 %v781
  %v2848 = vunpack.c.l.b16 %v782
  %v2849 = vunpack.c.l.b16 %v783
  %v2850 = vunpack.c.h.b16 %v783
  %v2851 = vunpack.c.l.b16 %v784
  %v2852 = vunpack.c.h.b16 %v784
  %v2853 = vunpack.c.l.b16 %v785
  %v2854 = vunpack.c.l.b16 %v786
  %v2855 = vunpack.c.h.b16 %v786
  %v2856 = vunpack.c.l.b16 %v787
  %v2857 = vunpack.c.h.b16 %v787
  %v2858 = vunpack.c.l.b16 %v788
  %v2859 = vunpack.c.l.b16 %v789
  %v2860 = vunpack.c.h.b16 %v789
  %v2861 = vunpack.c.l.b16 %v790
  %v2862 = vunpack.c.h.b16 %v790
  %v2863 = vunpack.c.l.b16 %v791
  %v2864 = vunpack.c.l.b16 %v792
  %v2865 = vunpack.c.h.b16 %v792
  %v2866 = vunpack.c.l.b16 %v793
  %v2867 = vunpack.c.h.b16 %v793
  %v2868 = vunpack.c.l.b16 %v794
  %v2869 = vunpack.c.l.b16 %v795
  %v2870 = vunpack.c.h.b16 %v795
  %v2871 = vunpack.c.l.b16 %v796
  %v2872 = vunpack.c.h.b16 %v796
  %v2873 = vunpack.c.l.b16 %v797
  %v2874 = vunpack.c.l.b16 %v798
  %v2875 = vunpack.c.h.b16 %v798
  %v2876 = vunpack.c.l.b16 %v799
  %v2877 = vunpack.c.h.b16 %v799
  %v2878 = vunpack.c.l.b16 %v800
  %v2879 = vunpack.c.l.b16 %v801
  %v2880 = vunpack.c.h.b16 %v801
  %v2881 = vunpack.c.l.b16 %v802
  %v2882 = vunpack.c.h.b16 %v802
  %v2883 = vunpack.c.l.b16 %v803
  %v2884 = vunpack.c.l.b16 %v804
  %v2885 = vunpack.c.h.b16 %v804
  %v2886 = vunpack.c.l.b16 %v805
  %v2887 = vunpack.c.h.b16 %v805
  %v2888 = vunpack.c.l.b16 %v806
  %v2889 = vunpack.c.l.b16 %v807
  %v2890 = vunpack.c.h.b16 %v807
  %v2891 = vunpack.c.l.b16 %v808
  %v2892 = vunpack.c.h.b16 %v808
  %v2893 = vunpack.c.l.b16 %v809
  %v2894 = vunpack.c.l.b16 %v810
  %v2895 = vunpack.c.h.b16 %v810
  %v2896 = vunpack.c.l.b16 %v811
  %v2897 = vunpack.c.h.b16 %v811
  %v2898 = vunpack.c.l.b16 %v812
  %v2899 = vunpack.c.l.b16 %v813
  %v2900 = vunpack.c.h.b16 %v813
  %v2901 = vunpack.c.l.b16 %v814
  %v2902 = vunpack.c.h.b16 %v814
  %v2903 = vunpack.c.l.b16 %v815
  %v2904 = vunpack.c.l.b16 %v816
  %v2905 = vunpack.c.h.b16 %v816
  %v2906 = vunpack.c.l.b16 %v817
  %v2907 = vunpack.c.h.b16 %v817
  %v2908 = vunpack.c.l.b16 %v818
  %v2909 = vunpack.c.l.b16 %v819
  %v2910 = vunpack.c.h.b16 %v819
  %v2911 = vunpack.c.l.b16 %v820
  %v2912 = vunpack.c.h.b16 %v820
  %v2913 = vunpack.c.l.b16 %v821
  %v2914 = vunpack.c.l.b16 %v822
  %v2915 = vunpack.c.h.b16 %v822
  %v2916 = vunpack.c.l.b16 %v823
  %v2917 = vunpack.c.h.b16 %v823
  %v2918 = vunpack.c.l.b16 %v824
  %v2919 = vunpack.c.l.b16 %v825
  %v2920 = vunpack.c.h.b16 %v825
  %v2921 = vunpack.c.l.b16 %v826
  %v2922 = vunpack.c.h.b16 %v826
  %v2923 = vunpack.c.l.b16 %v827
  %v2924 = vunpack.c.l.b16 %v828
  %v2925 = vunpack.c.h.b16 %v828
  %v2926 = vunpack.c.l.b16 %v829
  %v2927 = vunpack.c.h.b16 %v829
  %v2928 = vunpack.c.l.b16 %v830
  %v2929 = vunpack.c.l.b16 %v831
  %v2930 = vunpack.c.h.b16 %v831
  %v2931 = vunpack.c.l.b16 %v832
  %v2932 = vunpack.c.h.b16 %v832
  %v2933 = vunpack.c.l.b16 %v833
  %v2934 = vunpack.c.l.b16 %v834
  %v2935 = vunpack.c.h.b16 %v834
  %v2936 = vunpack.c.l.b16 %v835
  %v2937 = vunpack.c.h.b16 %v835
  %v2938 = vunpack.c.l.b16 %v836
  %v2939 = vunpack.c.l.b16 %v837
  %v2940 = vunpack.c.h.b16 %v837
  %v2941 = vunpack.c.l.b16 %v838
  %v2942 = vunpack.c.h.b16 %v838
  %v2943 = vunpack.c.l.b16 %v839
  %v2944 = vunpack.c.l.b16 %v840
  %v2945 = vunpack.c.h.b16 %v840
  %v2946 = vunpack.c.l.b16 %v841
  %v2947 = vunpack.c.h.b16 %v841
  %v2948 = vunpack.c.l.b16 %v842
  %v2949 = vunpack.c.l.b16 %v843
  %v2950 = vunpack.c.h.b16 %v843
  %v2951 = vunpack.c.l.b16 %v844
  %v2952 = vunpack.c.h.b16 %v844
  %v2953 = vunpack.c.l.b16 %v845
  %v2954 = vunpack.c.l.b16 %v846
  %v2955 = vunpack.c.h.b16 %v846
  %v2956 = vunpack.c.l.b16 %v847
  %v2957 = vunpack.c.h.b16 %v847
  %v2958 = vunpack.c.l.b16 %v848
  %v2959 = vunpack.c.l.b16 %v849
  %v2960 = vunpack.c.h.b16 %v849
  %v2961 = vunpack.c.l.b16 %v850
  %v2962 = vunpack.c.h.b16 %v850
  %v2963 = vunpack.c.l.b16 %v851
  %v2964 = vunpack.c.l.b16 %v852
  %v2965 = vunpack.c.h.b16 %v852
  %v2966 = vunpack.c.l.b16 %v853
  %v2967 = vunpack.c.h.b16 %v853
  %v2968 = vunpack.c.l.b16 %v854
  %v2969 = vunpack.c.l.b16 %v855
  %v2970 = vunpack.c.h.b16 %v855
  %v2971 = vunpack.c.l.b16 %v856
  %v2972 = vunpack.c.h.b16 %v856
  %v2973 = vunpack.c.l.b16 %v857
  %v2974 = vunpack.c.l.b16 %v858
  %v2975 = vunpack.c.h.b16 %v858
  %v2976 = vunpack.c.l.b16 %v859
  %v2977 = vunpack.c.h.b16 %v859
  %v2978 = vunpack.c.l.b16 %v860
  %v2979 = vunpack.c.l.b16 %v861
  %v2980 = vunpack.c.h.b16 %v861
  %v2981 = vunpack.c.l.b16 %v862
  %v2982 = vunpack.c.h.b16 %v862
  %v2983 = vunpack.c.l.b16 %v863
  %v2984 = vunpack.c.l.b16 %v864
  %v2985 = vunpack.c.h.b16 %v864
  %v2986 = vunpack.c.l.b16 %v865
  %v2987 = vunpack.c.h.b16 %v865
  %v2988 = vunpack.c.l.b16 %v866
  %v2989 = vunpack.c.l.b16 %v867
  %v2990 = vunpack.c.h.b16 %v867
  %v2991 = vunpack.c.l.b16 %v868
  %v2992 = vunpack.c.h.b16 %v868
  %v2993 = vunpack.c.l.b16 %v869
  %v2994 = vunpack.c.l.b16 %v870
  %v2995 = vunpack.c.h.b16 %v870
  %v2996 = vunpack.c.l.b16 %v871
  %v2997 = vunpack.c.h.b16 %v871
  %v2998 = vunpack.c.l.b16 %v872
  %v2999 = vunpack.c.l.b16 %v873
  %v3000 = vunpack.c.h.b16 %v873
  %v3001 = vunpack.c.l.b16 %v874
  %v3002 = vunpack.c.h.b16 %v874
  %v3003 = vunpack.c.l.b16 %v875
  %v3004 = vunpack.c.l.b16 %v876
  %v3005 = vunpack.c.h.b16 %v876
  %v3006 = vunpack.c.l.b16 %v877
  %v3007 = vunpack.c.h.b16 %v877
  %v3008 = vunpack.c.l.b16 %v878
  %v3009 = vunpack.c.l.b16 %v879
  %v3010 = vunpack.c.h.b16 %v879
  %v3011 = vunpack.c.l.b16 %v880
  %v3012 = vunpack.c.h.b16 %v880
  %v3013 = vunpack.c.l.b16 %v881
  %v3014 = vunpack.c.l.b16 %v882
  %v3015 = vunpack.c.h.b16 %v882
  %v3016 = vunpack.c.l.b16 %v883
  %v3017 = vunpack.c.h.b16 %v883
  %v3018 = vunpack.c.l.b16 %v884
  %v3019 = vunpack.c.l.b16 %v885
  %v3020 = vunpack.c.h.b16 %v885
  %v3021 = vunpack.c.l.b16 %v886
  %v3022 = vunpack.c.h.b16 %v886
  %v3023 = vunpack.c.l.b16 %v887
  %v3024 = vunpack.c.l.b16 %v888
  %v3025 = vunpack.c.h.b16 %v888
  %v3026 = vunpack.c.l.b16 %v889
  %v3027 = vunpack.c.h.b16 %v889
  %v3028 = vunpack.c.l.b16 %v890
  %v3029 = vunpack.c.l.b16 %v891
  %v3030 = vunpack.c.h.b16 %v891
  %v3031 = vunpack.c.l.b16 %v892
  %v3032 = vunpack.c.h.b16 %v892
  %v3033 = vunpack.c.l.b16 %v893
  %v3034 = vunpack.c.l.b16 %v894
  %v3035 = vunpack.c.h.b16 %v894
  %v3036 = vunpack.c.l.b16 %v895
  %v3037 = vunpack.c.h.b16 %v895
  %v3038 = vunpack.c.l.b16 %v896
  %v3039 = vunpack.c.l.b16 %v897
  %v3040 = vunpack.c.h.b16 %v897
  %v3041 = vunpack.c.l.b16 %v898
  %v3042 = vunpack.c.h.b16 %v898
  %v3043 = vunpack.c.l.b16 %v899
  %v3044 = vunpack.c.l.b16 %v900
  %v3045 = vunpack.c.h.b16 %v900
  %v3046 = vunpack.c.l.b16 %v901
  %v3047 = vunpack.c.h.b16 %v901
  %v3048 = vunpack.c.l.b16 %v902
  %v3049 = vunpack.c.l.b16 %v903
  %v3050 = vunpack.c.h.b16 %v903
  %v3051 = vunpack.c.l.b16 %v904
  %v3052 = vunpack.c.h.b16 %v904
  %v3053 = vunpack.c.l.b16 %v905
  %v3054 = vunpack.c.l.b16 %v906
  %v3055 = vunpack.c.h.b16 %v906
  %v3056 = vunpack.c.l.b16 %v907
  %v3057 = vunpack.c.h.b16 %v907
  %v3058 = vunpack.c.l.b16 %v908
  %v3059 = vunpack.c.l.b16 %v909
  %v3060 = vunpack.c.h.b16 %v909
  %v3061 = vunpack.c.l.b16 %v910
  %v3062 = vunpack.c.h.b16 %v910
  %v3063 = vunpack.c.l.b16 %v911
  %v3064 = vunpack.c.l.b16 %v912
  %v3065 = vunpack.c.h.b16 %v912
  %v3066 = vunpack.c.l.b16 %v913
  %v3067 = vunpack.c.h.b16 %v913
  %v3068 = vunpack.c.l.b16 %v914
  %v3069 = vunpack.c.l.b16 %v915
  %v3070 = vunpack.c.h.b16 %v915
  %v3071 = vunpack.c.l.b16 %v916
  %v3072 = vunpack.c.h.b16 %v916
  %v3073 = vunpack.c.l.b16 %v917
  %v3074 = vunpack.c.l.b16 %v918
  %v3075 = vunpack.c.h.b16 %v918
  %v3076 = vunpack.c.l.b16 %v919
  %v3077 = vunpack.c.h.b16 %v919
  %v3078 = vunpack.c.l.b16 %v920
  %v3079 = vunpack.c.l.b16 %v921
  %v3080 = vunpack.c.h.b16 %v921
  %v3081 = vunpack.c.l.b16 %v922
  %v3082 = vunpack.c.h.b16 %v922
  %v3083 = vunpack.c.l.b16 %v923
  %v3084 = vunpack.c.l.b16 %v924
  %v3085 = vunpack.c.h.b16 %v924
  %v3086 = vunpack.c.l.b16 %v925
  %v3087 = vunpack.c.h.b16 %v925
  %v3088 = vunpack.c.l.b16 %v926
  %v3089 = vunpack.c.l.b16 %v927
  %v3090 = vunpack.c.h.b16 %v927
  %v3091 = vunpack.c.l.b16 %v928
  %v3092 = vunpack.c.h.b16 %v928
  %v3093 = vunpack.c.l.b16 %v929
  %v3094 = vunpack.c.l.b16 %v930
  %v3095 = vunpack.c.h.b16 %v930
  %v3096 = vunpack.c.l.b16 %v931
  %v3097 = vunpack.c.h.b16 %v931
  %v3098 = vunpack.c.l.b16 %v932
  %v3099 = vunpack.c.l.b16 %v933
  %v3100 = vunpack.c.h.b16 %v933
  %v3101 = vunpack.c.l.b16 %v934
  %v3102 = vunpack.c.h.b16 %v934
  %v3103 = vunpack.c.l.b16 %v935
  %v3104 = vunpack.c.l.b16 %v936
  %v3105 = vunpack.c.h.b16 %v936
  %v3106 = vunpack.c.l.b16 %v937
  %v3107 = vunpack.c.h.b16 %v937
  %v3108 = vunpack.c.l.b16 %v938
  %v3109 = vunpack.c.l.b16 %v939
  %v3110 = vunpack.c.h.b16 %v939
  %v3111 = vunpack.c.l.b16 %v940
  %v3112 = vunpack.c.h.b16 %v940
  %v3113 = vunpack.c.l.b16 %v941
  %v3114 = vunpack.c.l.b16 %v942
  %v3115 = vunpack.c.h.b16 %v942
  %v3116 = vunpack.c.l.b16 %v943
  %v3117 = vunpack.c.h.b16 %v943
  %v3118 = vunpack.c.l.b16 %v944
  %v3119 = vunpack.c.l.b16 %v945
  %v3120 = vunpack.c.h.b16 %v945
  %v3121 = vunpack.c.l.b16 %v946
  %v3122 = vunpack.c.h.b16 %v946
  %v3123 = vunpack.c.l.b16 %v947
  %v3124 = vunpack.c.l.b16 %v948
  %v3125 = vunpack.c.h.b16 %v948
  %v3126 = vunpack.c.l.b16 %v949
  %v3127 = vunpack.c.h.b16 %v949
  %v3128 = vunpack.c.l.b16 %v950
  %v3129 = vunpack.c.l.b16 %v951
  %v3130 = vunpack.c.h.b16 %v951
  %v3131 = vunpack.c.l.b16 %v952
  %v3132 = vunpack.c.h.b16 %v952
  %v3133 = vunpack.c.l.b16 %v953
  %v3134 = vunpack.c.l.b16 %v954
  %v3135 = vunpack.c.h.b16 %v954
  %v3136 = vunpack.c.l.b16 %v955
  %v3137 = vunpack.c.h.b16 %v955
  %v3138 = vunpack.c.l.b16 %v956
  %v3139 = vunpack.c.l.b16 %v957
  %v3140 = vunpack.c.h.b16 %v957
  %v3141 = vunpack.c.l.b16 %v958
  %v3142 = vunpack.c.h.b16 %v958
  %v3143 = vunpack.c.l.b16 %v959
  %v3144 = vunpack.c.l.b16 %v960
  %v3145 = vunpack.c.h.b16 %v960
  %v3146 = vunpack.c.l.b16 %v961
  %v3147 = vunpack.c.h.b16 %v961
  %v3148 = vunpack.c.l.b16 %v962
  %v3149 = vunpack.c.l.b16 %v963
  %v3150 = vunpack.c.h.b16 %v963
  %v3151 = vunpack.c.l.b16 %v964
  %v3152 = vunpack.c.h.b16 %v964
  %v3153 = vunpack.c.l.b16 %v965
  %v3154 = vunpack.c.l.b16 %v966
  %v3155 = vunpack.c.h.b16 %v966
  %v3156 = vunpack.c.l.b16 %v967
  %v3157 = vunpack.c.h.b16 %v967
  %v3158 = vunpack.c.l.b16 %v968
  %v3159 = vunpack.c.l.b16 %v969
  %v3160 = vunpack.c.h.b16 %v969
  %v3161 = vunpack.c.l.b16 %v970
  %v3162 = vunpack.c.h.b16 %v970
  %v3163 = vunpack.c.l.b16 %v971
  %v3164 = vunpack.c.l.b16 %v972
  %v3165 = vunpack.c.h.b16 %v972
  %v3166 = vunpack.c.l.b16 %v973
  %v3167 = vunpack.c.h.b16 %v973
  %v3168 = vunpack.c.l.b16 %v974
  %v3169 = vunpack.c.l.b16 %v975
  %v3170 = vunpack.c.h.b16 %v975
  %v3171 = vunpack.c.l.b16 %v976
  %v3172 = vunpack.c.h.b16 %v976
  %v3173 = vunpack.c.l.b16 %v977
  %v3174 = vunpack.c.l.b16 %v978
  %v3175 = vunpack.c.h.b16 %v978
  %v3176 = vunpack.c.l.b16 %v979
  %v3177 = vunpack.c.h.b16 %v979
  %v3178 = vunpack.c.l.b16 %v980
  %v3179 = vunpack.c.l.b16 %v981
  %v3180 = vunpack.c.h.b16 %v981
  %v3181 = vunpack.c.l.b16 %v982
  %v3182 = vunpack.c.h.b16 %v982
  %v3183 = vunpack.c.l.b16 %v983
  %v3184 = vunpack.c.l.b16 %v984
  %v3185 = vunpack.c.h.b16 %v984
  %v3186 = vunpack.c.l.b16 %v985
  %v3187 = vunpack.c.h.b16 %v985
  %v3188 = vunpack.c.l.b16 %v986
  %v3189 = vunpack.c.l.b16 %v987
  %v3190 = vunpack.c.h.b16 %v987
  %v3191 = vunpack.c.l.b16 %v988
  %v3192 = vunpack.c.h.b16 %v988
  %v3193 = vunpack.c.l.b16 %v989
  %v3194 = vunpack.c.l.b16 %v990
  %v3195 = vunpack.c.h.b16 %v990
  %v3196 = vunpack.c.l.b16 %v991
  %v3197 = vunpack.c.h.b16 %v991
  %v3198 = vunpack.c.l.b16 %v992
  %v3199 = vunpack.c.l.b16 %v993
  %v3200 = vunpack.c.h.b16 %v993
  %v3201 = vunpack.c.l.b16 %v994
  %v3202 = vunpack.c.h.b16 %v994
  %v3203 = vunpack.c.l.b16 %v995
  %v3204 = vunpack.c.l.b16 %v996
  %v3205 = vunpack.c.h.b16 %v996
  %v3206 = vunpack.c.l.b16 %v997
  %v3207 = vunpack.c.h.b16 %v997
  %v3208 = vunpack.c.l.b16 %v998
  %v3209 = vunpack.c.l.b16 %v999
  %v3210 = vunpack.c.h.b16 %v999
  %v3211 = vunpack.c.l.b16 %v1000
  %v3212 = vunpack.c.h.b16 %v1000
  %v3213 = vunpack.c.l.b16 %v1001
  %v3214 = vunpack.c.l.b16 %v1002
  %v3215 = vunpack.c.h.b16 %v1002
  %v3216 = vunpack.c.l.b16 %v1003
  %v3217 = vunpack.c.h.b16 %v1003
  %v3218 = vunpack.c.l.b16 %v1004
  %v3219 = vunpack.c.l.b16 %v1005
  %v3220 = vunpack.c.h.b16 %v1005
  %v3221 = vunpack.c.l.b16 %v1006
  %v3222 = vunpack.c.h.b16 %v1006
  %v3223 = vunpack.c.l.b16 %v1007
  %v3224 = vunpack.c.l.b16 %v1008
  %v3225 = vunpack.c.h.b16 %v1008
  %v3226 = vunpack.c.l.b16 %v1009
  %v3227 = vunpack.c.h.b16 %v1009
  %v3228 = vunpack.c.l.b16 %v1010
  %v3229 = vunpack.c.l.b16 %v1011
  %v3230 = vunpack.c.h.b16 %v1011
  %v3231 = vunpack.c.l.b16 %v1012
  %v3232 = vunpack.c.h.b16 %v1012
  %v3233 = vunpack.c.l.b16 %v1013
  %v3234 = vunpack.c.l.b16 %v1014
  %v3235 = vunpack.c.h.b16 %v1014
  %v3236 = vunpack.c.l.b16 %v1015
  %v3237 = vunpack.c.h.b16 %v1015
  %v3238 = vunpack.c.l.b16 %v1016
  %v3239 = vunpack.c.l.b16 %v1017
  %v3240 = vunpack.c.h.b16 %v1017
  %v3241 = vunpack.c.l.b16 %v1018
  %v3242 = vunpack.c.h.b16 %v1018
  %v3243 = vunpack.c.l.b16 %v1019
  %v3244 = vunpack.c.l.b16 %v1020
  %v3245 = vunpack.c.h.b16 %v1020
  %v3246 = vunpack.c.l.b16 %v1021
  %v3247 = vunpack.c.h.b16 %v1021
  %v3248 = vunpack.c.l.b16 %v1022
  %v3249 = vunpack.c.l.b16 %v1023
  %v3250 = vunpack.c.h.b16 %v1023
  %v3251 = vunpack.c.l.b16 %v1024
  %v3252 = vunpack.c.h.b16 %v1024
  %v3253 = vunpack.c.l.b16 %v1025
  %v3254 = vunpack.c.l.b16 %v1026
  %v3255 = vunpack.c.h.b16 %v1026
  %v3256 = vunpack.c.l.b16 %v1027
  %v3257 = vunpack.c.h.b16 %v1027
  %v3258 = vunpack.c.l.b16 %v1028
  %v3259 = vunpack.c.l.b16 %v1029
  %v3260 = vunpack.c.h.b16 %v1029
  %v3261 = vunpack.c.l.b16 %v1030
  %v3262 = vunpack.c.h.b16 %v1030
  %v3263 = vunpack.c.l.b16 %v1031
  %v3264 = vunpack.c.l.b16 %v1032
  %v3265 = vunpack.c.h.b16 %v1032
  %v3266 = vunpack.c.l.b16 %v1033
  %v3267 = vunpack.c.h.b16 %v1033
  %v3268 = vunpack.c.l.b16 %v1034
  %v3269 = vunpack.c.l.b16 %v1035
  %v3270 = vunpack.c.h.b16 %v1035
  %v3271 = vunpack.c.l.b16 %v1036
  %v3272 = vunpack.c.h.b16 %v1036
  %v3273 = vunpack.c.l.b16 %v1037
  %v3274 = vunpack.c.l.b16 %v1038
  %v3275 = vunpack.c.h.b16 %v1038
  %v3276 = vunpack.c.l.b16 %v1039
  %v3277 = vunpack.c.h.b16 %v1039
  %v3278 = vunpack.c.l.b16 %v1040
  %v3279 = vunpack.c.l.b16 %v1041
  %v3280 = vunpack.c.h.b16 %v1041
  %v3281 = vunpack.c.l.b16 %v1042
  %v3282 = vunpack.c.h.b16 %v1042
  %v3283 = vunpack.c.l.b16 %v1043
  %v3284 = vunpack.c.l.b16 %v1044
  %v3285 = vunpack.c.h.b16 %v1044
  %v3286 = vunpack.c.l.b16 %v1045
  %v3287 = vunpack.c.h.b16 %v1045
  %v3288 = vunpack.c.l.b16 %v1046
  %v3289 = vunpack.c.l.b16 %v1047
  %v3290 = vunpack.c.h.b16 %v1047
  %v3291 = vunpack.c.l.b16 %v1048
  %v3292 = vunpack.c.h.b16 %v1048
  %v3293 = vunpack.c.l.b16 %v1049
  %v3294 = vunpack.c.l.b16 %v1050
  %v3295 = vunpack.c.h.b16 %v1050
  %v3296 = vunpack.c.l.b16 %v1051
  %v3297 = vunpack.c.h.b16 %v1051
  %v3298 = vunpack.c.l.b16 %v1052
  %v3299 = vunpack.c.l.b16 %v1053
  %v3300 = vunpack.c.h.b16 %v1053
  %v3301 = vunpack.c.l.b16 %v1054
  %v3302 = vunpack.c.h.b16 %v1054
  %v3303 = vunpack.c.l.b16 %v1055
  %v3304 = vunpack.c.l.b16 %v1056
  %v3305 = vunpack.c.h.b16 %v1056
  %v3306 = vunpack.c.l.b16 %v1057
  %v3307 = vunpack.c.h.b16 %v1057
  %v3308 = vunpack.c.l.b16 %v1058
  %v3309 = vunpack.c.l.b16 %v1059
  %v3310 = vunpack.c.h.b16 %v1059
  %v3311 = vunpack.c.l.b16 %v1060
  %v3312 = vunpack.c.h.b16 %v1060
  %v3313 = vunpack.c.l.b16 %v1061
  %v3314 = vunpack.c.l.b16 %v1062
  %v3315 = vunpack.c.h.b16 %v1062
  %v3316 = vunpack.c.l.b16 %v1063
  %v3317 = vunpack.c.h.b16 %v1063
  %v3318 = vunpack.c.l.b16 %v1064
  %v3319 = vunpack.c.l.b16 %v1065
  %v3320 = vunpack.c.h.b16 %v1065
  %v3321 = vunpack.c.l.b16 %v1066
  %v3322 = vunpack.c.h.b16 %v1066
  %v3323 = vunpack.c.l.b16 %v1067
  %v3324 = vunpack.c.l.b16 %v1068
  %v3325 = vunpack.c.h.b16 %v1068
  %v3326 = vunpack.c.l.b16 %v1069
  %v3327 = vunpack.c.h.b16 %v1069
  %v3328 = vunpack.c.l.b16 %v1070
  %v3329 = vunpack.c.l.b16 %v1071
  %v3330 = vunpack.c.h.b16 %v1071
  %v3331 = vunpack.c.l.b16 %v1072
  %v3332 = vunpack.c.h.b16 %v1072
  %v3333 = vunpack.c.l.b16 %v1073
  %v3334 = vunpack.c.l.b16 %v1074
  %v3335 = vunpack.c.h.b16 %v1074
  %v3336 = vunpack.c.l.b16 %v1075
  %v3337 = vunpack.c.h.b16 %v1075
  %v3338 = vunpack.c.l.b16 %v1076
  %v3339 = vunpack.c.l.b16 %v1077
  %v3340 = vunpack.c.h.b16 %v1077
  %v3341 = vunpack.c.l.b16 %v1078
  %v3342 = vunpack.c.h.b16 %v1078
  %v3343 = vunpack.c.l.b16 %v1079
  %v3344 = vunpack.c.l.b16 %v1080
  %v3345 = vunpack.c.h.b16 %v1080
  %v3346 = vunpack.c.l.b16 %v1081
  %v3347 = vunpack.c.h.b16 %v1081
  %v3348 = vunpack.c.l.b16 %v1082
  %v3349 = vunpack.c.l.b16 %v1083
  %v3350 = vunpack.c.h.b16 %v1083
  %v3351 = vunpack.c.l.b16 %v1084
  %v3352 = vunpack.c.h.b16 %v1084
  %v3353 = vunpack.c.l.b16 %v1085
  %v3354 = vunpack.c.l.b16 %v1086
  %v3355 = vunpack.c.h.b16 %v1086
  %v3356 = vunpack.c.l.b16 %v1087
  %v3357 = vunpack.c.h.b16 %v1087
  %v3358 = vunpack.c.l.b16 %v1088
  %v3359 = vunpack.c.l.b16 %v1089
  %v3360 = vunpack.c.h.b16 %v1089
  %v3361 = vunpack.c.l.b16 %v1090
  %v3362 = vunpack.c.h.b16 %v1090
  %v3363 = vunpack.c.l.b16 %v1091
  %v3364 = vunpack.c.l.b16 %v1092
  %v3365 = vunpack.c.h.b16 %v1092
  %v3366 = vunpack.c.l.b16 %v1093
  %v3367 = vunpack.c.h.b16 %v1093
  %v3368 = vunpack.c.l.b16 %v1094
  %v3369 = vunpack.c.l.b16 %v1095
  %v3370 = vunpack.c.h.b16 %v1095
  %v3371 = vunpack.c.l.b16 %v1096
  %v3372 = vunpack.c.h.b16 %v1096
  %v3373 = vunpack.c.l.b16 %v1097
  %v3374 = vunpack.c.l.b16 %v1098
  %v3375 = vunpack.c.h.b16 %v1098
  %v3376 = vunpack.c.l.b16 %v1099
  %v3377 = vunpack.c.h.b16 %v1099
  %v3378 = vunpack.c.l.b16 %v1100
  %v3379 = vunpack.c.l.b16 %v1101
  %v3380 = vunpack.c.h.b16 %v1101
  %v3381 = vunpack.c.l.b16 %v1102
  %v3382 = vunpack.c.h.b16 %v1102
  %v3383 = vunpack.c.l.b16 %v1103
  %v3384 = vunpack.c.l.b16 %v1104
  %v3385 = vunpack.c.h.b16 %v1104
  %v3386 = vunpack.c.l.b16 %v1105
  %v3387 = vunpack.c.h.b16 %v1105
  %v3388 = vunpack.c.l.b16 %v1106
  %v3389 = vunpack.c.l.b16 %v1107
  %v3390 = vunpack.c.h.b16 %v1107
  %v3391 = vunpack.c.l.b16 %v1108
  %v3392 = vunpack.c.h.b16 %v1108
  %v3393 = vunpack.c.l.b16 %v1109
  %v3394 = vunpack.c.l.b16 %v1110
  %v3395 = vunpack.c.h.b16 %v1110
  %v3396 = vunpack.c.l.b16 %v1111
  %v3397 = vunpack.c.h.b16 %v1111
  %v3398 = vunpack.c.l.b16 %v1112
  %v3399 = vunpack.c.l.b16 %v1113
  %v3400 = vunpack.c.h.b16 %v1113
  %v3401 = vunpack.c.l.b16 %v1114
  %v3402 = vunpack.c.h.b16 %v1114
  %v3403 = vunpack.c.l.b16 %v1115
  %v3404 = vunpack.c.l.b16 %v1116
  %v3405 = vunpack.c.h.b16 %v1116
  %v3406 = vunpack.c.l.b16 %v1117
  %v3407 = vunpack.c.h.b16 %v1117
  %v3408 = vunpack.c.l.b16 %v1118
  %v3409 = vunpack.c.l.b16 %v1119
  %v3410 = vunpack.c.h.b16 %v1119
  %v3411 = vunpack.c.l.b16 %v1120
  %v3412 = vunpack.c.h.b16 %v1120
  %v3413 = vunpack.c.l.b16 %v1121
  %v3414 = vunpack.c.l.b16 %v1122
  %v3415 = vunpack.c.h.b16 %v1122
  %v3416 = vunpack.c.l.b16 %v1123
  %v3417 = vunpack.c.h.b16 %v1123
  %v3418 = vunpack.c.l.b16 %v1124
  %v3419 = vunpack.c.l.b16 %v1125
  %v3420 = vunpack.c.h.b16 %v1125
  %v3421 = vunpack.c.l.b16 %v1126
  %v3422 = vunpack.c.h.b16 %v1126
  %v3423 = vunpack.c.l.b16 %v1127
  %v3424 = vunpack.c.l.b16 %v1128
  %v3425 = vunpack.c.h.b16 %v1128
  %v3426 = vunpack.c.l.b16 %v1129
  %v3427 = vunpack.c.h.b16 %v1129
  %v3428 = vunpack.c.l.b16 %v1130
  %v3429 = vunpack.c.l.b16 %v1131
  %v3430 = vunpack.c.h.b16 %v1131
  %v3431 = vunpack.c.l.b16 %v1132
  %v3432 = vunpack.c.h.b16 %v1132
  %v3433 = vunpack.c.l.b16 %v1133
  %v3434 = vunpack.c.l.b16 %v1134
  %v3435 = vunpack.c.h.b16 %v1134
  %v3436 = vunpack.c.l.b16 %v1135
  %v3437 = vunpack.c.h.b16 %v1135
  %v3438 = vunpack.c.l.b16 %v1136
  %v3439 = vunpack.c.l.b16 %v1137
  %v3440 = vunpack.c.h.b16 %v1137
  %v3441 = vunpack.c.l.b16 %v1138
  %v3442 = vunpack.c.h.b16 %v1138
  %v3443 = vunpack.c.l.b16 %v1139
  %v3444 = vunpack.c.l.b16 %v1140
  %v3445 = vunpack.c.h.b16 %v1140
  %v3446 = vunpack.c.l.b16 %v1141
  %v3447 = vunpack.c.h.b16 %v1141
  %v3448 = vunpack.c.l.b16 %v1142
  %v3449 = vunpack.c.l.b16 %v1143
  %v3450 = vunpack.c.h.b16 %v1143
  %v3451 = vunpack.c.l.b16 %v1144
  %v3452 = vunpack.c.h.b16 %v1144
  %v3453 = vunpack.c.l.b16 %v1145
  %v3454 = vunpack.c.l.b16 %v1146
  %v3455 = vunpack.c.h.b16 %v1146
  %v3456 = vunpack.c.l.b16 %v1147
  %v3457 = vunpack.c.h.b16 %v1147
  %v3458 = vunpack.c.l.b16 %v1148
  %v3459 = vunpack.c.l.b16 %v1149
  %v3460 = vunpack.c.h.b16 %v1149
  %v3461 = vunpack.c.l.b16 %v1150
  %v3462 = vunpack.c.h.b16 %v1150
  %v3463 = vunpack.c.l.b16 %v1151
  %v3464 = vunpack.c.l.b16 %v1152
  %v3465 = vunpack.c.h.b16 %v1152
  %v3466 = vunpack.c.l.b16 %v1153
  %v3467 = vunpack.c.h.b16 %v1153
  %v3468 = vunpack.c.l.b16 %v1154
  %v3469 = vunpack.c.l.b16 %v1155
  %v3470 = vunpack.c.h.b16 %v1155
  %v3471 = vunpack.c.l.b16 %v1156
  %v3472 = vunpack.c.h.b16 %v1156
  %v3473 = vunpack.c.l.b16 %v1157
  %v3474 = vunpack.c.l.b16 %v1158
  %v3475 = vunpack.c.h.b16 %v1158
  %v3476 = vunpack.c.l.b16 %v1159
  %v3477 = vunpack.c.h.b16 %v1159
  %v3478 = vunpack.c.l.b16 %v1160
  %v3479 = vunpack.c.l.b16 %v1161
  %v3480 = vunpack.c.h.b16 %v1161
  %v3481 = vunpack.c.l.b16 %v1162
  %v3482 = vunpack.c.h.b16 %v1162
  %v3483 = vunpack.c.l.b16 %v1163
  %v3484 = vunpack.c.l.b16 %v1164
  %v3485 = vunpack.c.h.b16 %v1164
  %v3486 = vunpack.c.l.b16 %v1165
  %v3487 = vunpack.c.h.b16 %v1165
  %v3488 = vunpack.c.l.b16 %v1166
  %v3489 = vunpack.c.l.b16 %v1167
  %v3490 = vunpack.c.h.b16 %v1167
  %v3491 = vunpack.c.l.b16 %v1168
  %v3492 = vunpack.c.h.b16 %v1168
  %v3493 = vunpack.c.l.b16 %v1169
  %v3494 = vunpack.c.l.b16 %v1170
  %v3495 = vunpack.c.h.b16 %v1170
  %v3496 = vunpack.c.l.b16 %v1171
  %v3497 = vunpack.c.h.b16 %v1171
  %v3498 = vunpack.c.l.b16 %v1172
  %v3499 = vunpack.c.l.b16 %v1173
  %v3500 = vunpack.c.h.b16 %v1173
  %v3501 = vunpack.c.l.b16 %v1174
  %v3502 = vunpack.c.h.b16 %v1174
  %v3503 = vunpack.c.l.b16 %v1175
  %v3504 = vunpack.c.l.b16 %v1176
  %v3505 = vunpack.c.h.b16 %v1176
  %v3506 = vunpack.c.l.b16 %v1177
  %v3507 = vunpack.c.h.b16 %v1177
  %v3508 = vunpack.c.l.b16 %v1178
  %v3509 = vunpack.c.l.b16 %v1179
  %v3510 = vunpack.c.h.b16 %v1179
  %v3511 = vunpack.c.l.b16 %v1180
  %v3512 = vunpack.c.h.b16 %v1180
  %v3513 = vunpack.c.l.b16 %v1181
  %v3514 = vunpack.c.l.b16 %v1182
  %v3515 = vunpack.c.h.b16 %v1182
  %v3516 = vunpack.c.l.b16 %v1183
  %v3517 = vunpack.c.h.b16 %v1183
  %v3518 = vunpack.c.l.b16 %v1184
  %v3519 = vunpack.c.l.b16 %v1185
  %v3520 = vunpack.c.h.b16 %v1185
  %v3521 = vunpack.c.l.b16 %v1186
  %v3522 = vunpack.c.h.b16 %v1186
  %v3523 = vunpack.c.l.b16 %v1187
  %v3524 = vunpack.c.l.b16 %v1188
  %v3525 = vunpack.c.h.b16 %v1188
  %v3526 = vunpack.c.l.b16 %v1189
  %v3527 = vunpack.c.h.b16 %v1189
  %v3528 = vunpack.c.l.b16 %v1190
  %v3529 = vunpack.c.l.b16 %v1191
  %v3530 = vunpack.c.h.b16 %v1191
  %v3531 = vunpack.c.l.b16 %v1192
  %v3532 = vunpack.c.h.b16 %v1192
  %v3533 = vunpack.c.l.b16 %v1193
  %v3534 = vunpack.c.l.b16 %v1194
  %v3535 = vunpack.c.h.b16 %v1194
  %v3536 = vunpack.c.l.b16 %v1195
  %v3537 = vunpack.c.h.b16 %v1195
  %v3538 = vunpack.c.l.b16 %v1196
  %v3539 = vunpack.c.l.b16 %v1197
  %v3540 = vunpack.c.h.b16 %v1197
  %v3541 = vunpack.c.l.b16 %v1198
  %v3542 = vunpack.c.h.b16 %v1198
  %v3543 = vunpack.c.l.b16 %v1199
  %v3544 = vunpack.c.l.b16 %v1200
  %v3545 = vunpack.c.h.b16 %v1200
  %v3546 = vunpack.c.l.b16 %v1201
  %v3547 = vunpack.c.h.b16 %v1201
  %v3548 = vunpack.c.l.b16 %v1202
  %v3549 = vunpack.c.l.b16 %v1203
  %v3550 = vunpack.c.h.b16 %v1203
  %v3551 = vunpack.c.l.b16 %v1204
  %v3552 = vunpack.c.h.b16 %v1204
  %v3553 = vunpack.c.l.b16 %v1205
  %v3554 = vunpack.c.l.b16 %v1206
  %v3555 = vunpack.c.h.b16 %v1206
  %v3556 = vunpack.c.l.b16 %v1207
  %v3557 = vunpack.c.h.b16 %v1207
  %v3558 = vunpack.c.l.b16 %v1208
  %v3559 = vunpack.c.l.b16 %v1209
  %v3560 = vunpack.c.h.b16 %v1209
  %v3561 = vunpack.c.l.b16 %v1210
  %v3562 = vunpack.c.h.b16 %v1210
  %v3563 = vunpack.c.l.b16 %v1211
  %v3564 = vunpack.c.l.b16 %v1212
  %v3565 = vunpack.c.h.b16 %v1212
  %v3566 = vunpack.c.l.b16 %v1213
  %v3567 = vunpack.c.h.b16 %v1213
  %v3568 = vunpack.c.l.b16 %v1214
  %v3569 = vunpack.c.l.b16 %v1215
  %v3570 = vunpack.c.h.b16 %v1215
  %v3571 = vunpack.c.l.b16 %v1216
  %v3572 = vunpack.c.h.b16 %v1216
  %v3573 = vunpack.c.l.b16 %v1217
  %v3574 = vunpack.c.l.b16 %v1218
  %v3575 = vunpack.c.h.b16 %v1218
  %v3576 = vunpack.c.l.b16 %v1219
  %v3577 = vunpack.c.h.b16 %v1219
  %v3578 = vunpack.c.l.b16 %v1220
  %v3579 = vunpack.c.l.b16 %v1221
  %v3580 = vunpack.c.h.b16 %v1221
  %v3581 = vunpack.c.l.b16 %v1222
  %v3582 = vunpack.c.h.b16 %v1222
  %v3583 = vunpack.c.l.b16 %v1223
  %v3584 = vunpack.c.l.b16 %v1224
  %v3585 = vunpack.c.h.b16 %v1224
  %v3586 = vunpack.c.l.b16 %v1225
  %v3587 = vunpack.c.h.b16 %v1225
  %v3588 = vunpack.c.l.b16 %v1226
  %v3589 = vunpack.c.l.b16 %v1227
  %v3590 = vunpack.c.h.b16 %v1227
  %v3591 = vunpack.c.l.b16 %v1228
  %v3592 = vunpack.c.h.b16 %v1228
  %v3593 = vunpack.c.l.b16 %v1229
  %v3594 = vunpack.c.l.b16 %v1230
  %v3595 = vunpack.c.h.b16 %v1230
  %v3596 = vunpack.c.l.b16 %v1231
  %v3597 = vunpack.c.h.b16 %v1231
  %v3598 = vunpack.c.l.b16 %v1232
  %v3599 = vunpack.c.l.b16 %v1233
  %v3600 = vunpack.c.h.b16 %v1233
  %v3601 = vunpack.c.l.b16 %v1234
  %v3602 = vunpack.c.h.b16 %v1234
  %v3603 = vunpack.c.l.b16 %v1235
  %v3604 = vunpack.c.l.b16 %v1236
  %v3605 = vunpack.c.h.b16 %v1236
  %v3606 = vunpack.c.l.b16 %v1237
  %v3607 = vunpack.c.h.b16 %v1237
  %v3608 = vunpack.c.l.b16 %v1238
  %v3609 = vunpack.c.l.b16 %v1239
  %v3610 = vunpack.c.h.b16 %v1239
  %v3611 = vunpack.c.l.b16 %v1240
  %v3612 = vunpack.c.h.b16 %v1240
  %v3613 = vunpack.c.l.b16 %v1241
  %v3614 = vunpack.c.l.b16 %v1242
  %v3615 = vunpack.c.h.b16 %v1242
  %v3616 = vunpack.c.l.b16 %v1243
  %v3617 = vunpack.c.h.b16 %v1243
  %v3618 = vunpack.c.l.b16 %v1244
  %v3619 = vunpack.c.l.b16 %v1245
  %v3620 = vunpack.c.h.b16 %v1245
  %v3621 = vunpack.c.l.b16 %v1246
  %v3622 = vunpack.c.h.b16 %v1246
  %v3623 = vunpack.c.l.b16 %v1247
  %v3624 = vunpack.c.l.b16 %v1248
  %v3625 = vunpack.c.h.b16 %v1248
  %v3626 = vunpack.c.l.b16 %v1249
  %v3627 = vunpack.c.h.b16 %v1249
  %v3628 = vunpack.c.l.b16 %v1250
  %v3629 = vunpack.c.l.b16 %v1251
  %v3630 = vunpack.c.h.b16 %v1251
  %v3631 = vunpack.c.l.b16 %v1252
  %v3632 = vunpack.c.h.b16 %v1252
  %v3633 = vunpack.c.l.b16 %v1253
  %v3634 = vunpack.c.l.b16 %v1254
  %v3635 = vunpack.c.h.b16 %v1254
  %v3636 = vunpack.c.l.b16 %v1255
  %v3637 = vunpack.c.h.b16 %v1255
  %v3638 = vunpack.c.l.b16 %v1256
  %v3639 = vunpack.c.l.b16 %v1257
  %v3640 = vunpack.c.h.b16 %v1257
  %v3641 = vunpack.c.l.b16 %v1258
  %v3642 = vunpack.c.h.b16 %v1258
  %v3643 = vunpack.c.l.b16 %v1259
  %v3644 = vunpack.c.l.b16 %v1260
  %v3645 = vunpack.c.h.b16 %v1260
  %v3646 = vunpack.c.l.b16 %v1261
  %v3647 = vunpack.c.h.b16 %v1261
  %v3648 = vunpack.c.l.b16 %v1262
  %v3649 = vunpack.c.l.b16 %v1263
  %v3650 = vunpack.c.h.b16 %v1263
  %v3651 = vunpack.c.l.b16 %v1264
  %v3652 = vunpack.c.h.b16 %v1264
  %v3653 = vunpack.c.l.b16 %v1265
  %v3654 = vunpack.c.l.b16 %v1266
  %v3655 = vunpack.c.h.b16 %v1266
  %v3656 = vunpack.c.l.b16 %v1267
  %v3657 = vunpack.c.h.b16 %v1267
  %v3658 = vunpack.c.l.b16 %v1268
  %v3659 = vunpack.c.l.b16 %v1269
  %v3660 = vunpack.c.h.b16 %v1269
  %v3661 = vunpack.c.l.b16 %v1270
  %v3662 = vunpack.c.h.b16 %v1270
  %v3663 = vunpack.c.l.b16 %v1271
  %v3664 = vunpack.c.l.b16 %v1272
  %v3665 = vunpack.c.h.b16 %v1272
  %v3666 = vunpack.c.l.b16 %v1273
  %v3667 = vunpack.c.h.b16 %v1273
  %v3668 = vunpack.c.l.b16 %v1274
  %v3669 = vunpack.c.l.b16 %v1275
  %v3670 = vunpack.c.h.b16 %v1275
  %v3671 = vunpack.c.l.b16 %v1276
  %v3672 = vunpack.c.h.b16 %v1276
  %v3673 = vunpack.c.l.b16 %v1277
  %v3674 = vunpack.c.l.b16 %v1278
  %v3675 = vunpack.c.h.b16 %v1278
  %v3676 = vunpack.c.l.b16 %v1279
  %v3677 = vunpack.c.h.b16 %v1279
  %v3678 = vunpack.c.l.b16 %v1280
  %v3679 = vunpack.c.l.b16 %v1281
  %v3680 = vunpack.c.h.b16 %v1281
  %v3681 = vunpack.c.l.b16 %v1282
  %v3682 = vunpack.c.h.b16 %v1282
  %v3683 = vunpack.c.l.b16 %v1283
  %v3684 = vunpack.c.l.b16 %v1284
  %v3685 = vunpack.c.h.b16 %v1284
  %v3686 = vunpack.c.l.b16 %v1285
  %v3687 = vunpack.c.h.b16 %v1285
  %v3688 = vunpack.c.l.b16 %v1286
  %v3689 = vunpack.c.l.b16 %v1287
  %v3690 = vunpack.c.h.b16 %v1287
  %v3691 = vunpack.c.l.b16 %v1288
  %v3692 = vunpack.c.h.b16 %v1288
  %v3693 = vunpack.c.l.b16 %v1289
  %v3694 = vunpack.c.l.b16 %v1290
  %v3695 = vunpack.c.h.b16 %v1290
  %v3696 = vunpack.c.l.b16 %v1291
  %v3697 = vunpack.c.h.b16 %v1291
  %v3698 = vunpack.c.l.b16 %v1292
  %v3699 = vunpack.c.l.b16 %v1293
  %v3700 = vunpack.c.h.b16 %v1293
  %v3701 = vunpack.c.l.b16 %v1294
  %v3702 = vunpack.c.h.b16 %v1294
  %v3703 = vunpack.c.l.b16 %v1295
  %v3704 = vunpack.c.l.b16 %v1296
  %v3705 = vunpack.c.h.b16 %v1296
  %v3706 = vunpack.c.l.b16 %v1297
  %v3707 = vunpack.c.h.b16 %v1297
  %v3708 = vunpack.c.l.b16 %v1298
  %v3709 = vunpack.c.l.b16 %v1299
  %v3710 = vunpack.c.h.b16 %v1299
  %v3711 = vunpack.c.l.b16 %v1300
  %v3712 = vunpack.c.h.b16 %v1300
  %v3713 = vunpack.c.l.b16 %v1301
  %v3714 = vunpack.c.l.b16 %v1302
  %v3715 = vunpack.c.h.b16 %v1302
  %v3716 = vunpack.c.l.b16 %v1303
  %v3717 = vunpack.c.h.b16 %v1303
  %v3718 = vunpack.c.l.b16 %v1304
  %v3719 = vunpack.c.l.b16 %v1305
  %v3720 = vunpack.c.h.b16 %v1305
  %v3721 = vunpack.c.l.b16 %v1306
  %v3722 = vunpack.c.h.b16 %v1306
  %v3723 = vunpack.c.l.b16 %v1307
  %v3724 = vunpack.c.l.b16 %v1308
  %v3725 = vunpack.c.h.b16 %v1308
  %v3726 = vunpack.c.l.b16 %v1309
  %v3727 = vunpack.c.h.b16 %v1309
  %v3728 = vunpack.c.l.b16 %v1310
  %v3729 = vunpack.c.l.b16 %v1311
  %v3730 = vunpack.c.h.b16 %v1311
  %v3731 = vunpack.c.l.b16 %v1312
  %v3732 = vunpack.c.h.b16 %v1312
  %v3733 = vunpack.c.l.b16 %v1313
  %v3734 = vunpack.c.l.b16 %v1314
  %v3735 = vunpack.c.h.b16 %v1314
  %v3736 = vunpack.c.l.b16 %v1315
  %v3737 = vunpack.c.h.b16 %v1315
  %v3738 = vunpack.c.l.b16 %v1316
  %v3739 = vunpack.c.l.b16 %v1317
  %v3740 = vunpack.c.h.b16 %v1317
  %v3741 = vunpack.c.l.b16 %v1318
  %v3742 = vunpack.c.h.b16 %v1318
  %v3743 = vunpack.c.l.b16 %v1319
  %v3744 = vunpack.c.l.b16 %v1320
  %v3745 = vunpack.c.h.b16 %v1320
  %v3746 = vunpack.c.l.b16 %v1321
  %v3747 = vunpack.c.h.b16 %v1321
  %v3748 = vunpack.c.l.b16 %v1322
  %v3749 = vunpack.c.l.b16 %v1323
  %v3750 = vunpack.c.h.b16 %v1323
  %v3751 = vunpack.c.l.b16 %v1324
  %v3752 = vunpack.c.h.b16 %v1324
  %v3753 = vunpack.c.l.b16 %v1325
  %v3754 = vunpack.c.l.b16 %v1326
  %v3755 = vunpack.c.h.b16 %v1326
  %v3756 = vunpack.c.l.b16 %v1327
  %v3757 = vunpack.c.h.b16 %v1327
  %v3758 = vunpack.c.l.b16 %v1328
  %v3759 = vunpack.c.l.b16 %v1329
  %v3760 = vunpack.c.h.b16 %v1329
  %v3761 = vunpack.c.l.b16 %v1330
  %v3762 = vunpack.c.h.b16 %v1330
  %v3763 = vunpack.c.l.b16 %v1331
  %v3764 = vunpack.c.l.b16 %v1332
  %v3765 = vunpack.c.h.b16 %v1332
  %v3766 = vunpack.c.l.b16 %v1333
  %v3767 = vunpack.c.h.b16 %v1333
  %v3768 = vunpack.c.l.b16 %v1334
  %v3769 = vunpack.c.l.b16 %v1335
  %v3770 = vunpack.c.h.b16 %v1335
  %v3771 = vunpack.c.l.b16 %v1336
  %v3772 = vunpack.c.h.b16 %v1336
  %v3773 = vunpack.c.l.b16 %v1337
  %v3774 = vunpack.c.l.b16 %v1338
  %v3775 = vunpack.c.h.b16 %v1338
  %v3776 = vunpack.c.l.b16 %v1339
  %v3777 = vunpack.c.h.b16 %v1339
  %v3778 = vunpack.c.l.b16 %v1340
  %v3779 = vunpack.c.l.b16 %v1341
  %v3780 = vunpack.c.h.b16 %v1341
  %v3781 = vunpack.c.l.b16 %v1342
  %v3782 = vunpack.c.h.b16 %v1342
  %v3783 = vunpack.c.l.b16 %v1343
  %v3784 = vunpack.c.l.b16 %v1344
  %v3785 = vunpack.c.h.b16 %v1344
  %v3786 = vunpack.c.l.b16 %v1345
  %v3787 = vunpack.c.h.b16 %v1345
  %v3788 = vunpack.c.l.b16 %v1346
  %v3789 = vunpack.c.l.b16 %v1347
  %v3790 = vunpack.c.h.b16 %v1347
  %v3791 = vunpack.c.l.b16 %v1348
  %v3792 = vunpack.c.h.b16 %v1348
  %v3793 = vunpack.c.l.b16 %v1349
  %v3794 = vunpack.c.l.b16 %v1350
  %v3795 = vunpack.c.h.b16 %v1350
  %v3796 = vunpack.c.l.b16 %v1351
  %v3797 = vunpack.c.h.b16 %v1351
  %v3798 = vunpack.c.l.b16 %v1352
  %v3799 = vunpack.c.l.b16 %v1353
  %v3800 = vunpack.c.h.b16 %v1353
  %v3801 = vunpack.c.l.b16 %v1354
  %v3802 = vunpack.c.h.b16 %v1354
  %v3803 = vunpack.c.l.b16 %v1355
  %v3804 = vunpack.c.l.b16 %v1356
  %v3805 = vunpack.c.h.b16 %v1356
  %v3806 = vunpack.c.l.b16 %v1357
  %v3807 = vunpack.c.h.b16 %v1357
  %v3808 = vunpack.c.l.b16 %v1358
  %v3809 = vunpack.c.l.b16 %v1359
  %v3810 = vunpack.c.h.b16 %v1359
  %v3811 = vunpack.c.l.b16 %v1360
  %v3812 = vunpack.c.h.b16 %v1360
  %v3813 = vunpack.c.l.b16 %v1361
  %v3814 = vunpack.c.l.b16 %v1362
  %v3815 = vunpack.c.h.b16 %v1362
  %v3816 = vunpack.c.l.b16 %v1363
  %v3817 = vunpack.c.h.b16 %v1363
  %v3818 = vunpack.c.l.b16 %v1364
  %v3819 = vunpack.c.l.b16 %v1365
  %v3820 = vunpack.c.h.b16 %v1365
  %v3821 = vunpack.c.l.b16 %v1366
  %v3822 = vunpack.c.h.b16 %v1366
  %v3823 = vunpack.c.l.b16 %v1367
  %v3824 = vunpack.c.l.b16 %v1368
  %v3825 = vunpack.c.h.b16 %v1368
  %v3826 = vunpack.c.l.b16 %v1369
  %v3827 = vunpack.c.h.b16 %v1369
  %v3828 = vunpack.c.l.b16 %v1370
  %v3829 = vunpack.c.l.b16 %v1371
  %v3830 = vunpack.c.h.b16 %v1371
  %v3831 = vunpack.c.l.b16 %v1372
  %v3832 = vunpack.c.h.b16 %v1372
  %v3833 = vunpack.c.l.b16 %v1373
  %v3834 = vunpack.c.l.b16 %v1374
  %v3835 = vunpack.c.h.b16 %v1374
  %v3836 = vunpack.c.l.b16 %v1375
  %v3837 = vunpack.c.h.b16 %v1375
  %v3838 = vunpack.c.l.b16 %v1376
  %v3839 = vunpack.c.l.b16 %v1377
  %v3840 = vunpack.c.h.b16 %v1377
  %v3841 = vunpack.c.l.b16 %v1378
  %v3842 = vunpack.c.h.b16 %v1378
  %v3843 = vunpack.c.l.b16 %v1379
  %v3844 = vunpack.c.l.b16 %v1380
  %v3845 = vunpack.c.h.b16 %v1380
  %v3846 = vunpack.c.l.b16 %v1381
  %v3847 = vunpack.c.h.b16 %v1381
  %v3848 = vunpack.c.l.b16 %v1382
  %v3849 = vunpack.c.l.b16 %v1383
  %v3850 = vunpack.c.h.b16 %v1383
  %v3851 = vunpack.c.l.b16 %v1384
  %v3852 = vunpack.c.h.b16 %v1384
  %v3853 = vunpack.c.l.b16 %v1385
  %v3854 = vunpack.c.l.b16 %v1386
  %v3855 = vunpack.c.h.b16 %v1386
  %v3856 = vunpack.c.l.b16 %v1387
  %v3857 = vunpack.c.h.b16 %v1387
  %v3858 = vunpack.c.l.b16 %v1388
  %v3859 = vunpack.c.l.b16 %v1389
  %v3860 = vunpack.c.h.b16 %v1389
  %v3861 = vunpack.c.l.b16 %v1390
  %v3862 = vunpack.c.h.b16 %v1390
  %v3863 = vunpack.c.l.b16 %v1391
  %v3864 = vunpack.c.l.b16 %v1392
  %v3865 = vunpack.c.h.b16 %v1392
  %v3866 = vunpack.c.l.b16 %v1393
  %v3867 = vunpack.c.h.b16 %v1393
  %v3868 = vunpack.c.l.b16 %v1394
  %v3869 = vunpack.c.l.b16 %v1395
  %v3870 = vunpack.c.h.b16 %v1395
  %v3871 = vunpack.c.l.b16 %v1396
  %v3872 = vunpack.c.h.b16 %v1396
  %v3873 = vunpack.c.l.b16 %v1397
  %v3874 = vunpack.c.l.b16 %v1398
  %v3875 = vunpack.c.h.b16 %v1398
  %v3876 = vunpack.c.l.b16 %v1399
  %v3877 = vunpack.c.h.b16 %v1399
  %v3878 = vunpack.c.l.b16 %v1400
  %v3879 = vunpack.c.l.b16 %v1401
  %v3880 = vunpack.c.h.b16 %v1401
  %v3881 = vunpack.c.l.b16 %v1402
  %v3882 = vunpack.c.h.b16 %v1402
  %v3883 = vunpack.c.l.b16 %v1403
  %v3884 = vunpack.c.l.b16 %v1404
  %v3885 = vunpack.c.h.b16 %v1404
  %v3886 = vunpack.c.l.b16 %v1405
  %v3887 = vunpack.c.h.b16 %v1405
  %v3888 = vunpack.c.l.b16 %v1406
  %v3889 = vunpack.c.l.b16 %v1407
  %v3890 = vunpack.c.h.b16 %v1407
  %v3891 = vunpack.c.l.b16 %v1408
  %v3892 = vunpack.c.h.b16 %v1408
  %v3893 = vunpack.c.l.b16 %v1409
  %v3894 = vunpack.c.l.b16 %v1410
  %v3895 = vunpack.c.h.b16 %v1410
  %v3896 = vunpack.c.l.b16 %v1411
  %v3897 = vunpack.c.h.b16 %v1411
  %v3898 = vunpack.c.l.b16 %v1412
  %v3899 = vunpack.c.l.b16 %v1413
  %v3900 = vunpack.c.h.b16 %v1413
  %v3901 = vunpack.c.l.b16 %v1414
  %v3902 = vunpack.c.h.b16 %v1414
  %v3903 = vunpack.c.l.b16 %v1415
  %v3904 = vunpack.c.l.b16 %v1416
  %v3905 = vunpack.c.h.b16 %v1416
  %v3906 = vunpack.c.l.b16 %v1417
  %v3907 = vunpack.c.h.b16 %v1417
  %v3908 = vunpack.c.l.b16 %v1418
  %v3909 = vunpack.c.l.b16 %v1419
  %v3910 = vunpack.c.h.b16 %v1419
  %v3911 = vunpack.c.l.b16 %v1420
  %v3912 = vunpack.c.h.b16 %v1420
  %v3913 = vunpack.c.l.b16 %v1421
  %v3914 = vunpack.c.l.b16 %v1422
  %v3915 = vunpack.c.h.b16 %v1422
  %v3916 = vunpack.c.l.b16 %v1423
  %v3917 = vunpack.c.h.b16 %v1423
  %v3918 = vunpack.c.l.b16 %v1424
  %v3919 = vunpack.c.l.b16 %v1425
  %v3920 = vunpack.c.h.b16 %v1425
  %v3921 = vunpack.c.l.b16 %v1426
  %v3922 = vunpack.c.h.b16 %v1426
  %v3923 = vunpack.c.l.b16 %v1427
  %v3924 = vunpack.c.l.b16 %v1428
  %v3925 = vunpack.c.h.b16 %v1428
  %v3926 = vunpack.c.l.b16 %v1429
  %v3927 = vunpack.c.h.b16 %v1429
  %v3928 = vunpack.c.l.b16 %v1430
  %v3929 = vunpack.c.l.b16 %v1431
  %v3930 = vunpack.c.h.b16 %v1431
  %v3931 = vunpack.c.l.b16 %v1432
  %v3932 = vunpack.c.h.b16 %v1432
  %v3933 = vunpack.c.l.b16 %v1433
  %v3934 = vunpack.c.l.b16 %v1434
  %v3935 = vunpack.c.h.b16 %v1434
  %v3936 = vunpack.c.l.b16 %v1435
  %v3937 = vunpack.c.h.b16 %v1435
  %v3938 = vunpack.c.l.b16 %v1436
  %v3939 = vunpack.c.l.b16 %v1437
  %v3940 = vunpack.c.h.b16 %v1437
  %v3941 = vunpack.c.l.b16 %v1438
  %v3942 = vunpack.c.h.b16 %v1438
  %v3943 = vunpack.c.l.b16 %v1439
  %v3944 = vunpack.c.l.b16 %v1440
  %v3945 = vunpack.c.h.b16 %v1440
  %v3946 = vunpack.c.l.b16 %v1441
  %v3947 = vunpack.c.h.b16 %v1441
  %v3948 = vunpack.c.l.b16 %v1442
  %v3949 = vunpack.c.l.b16 %v1443
  %v3950 = vunpack.c.h.b16 %v1443
  %v3951 = vunpack.c.l.b16 %v1444
  %v3952 = vunpack.c.h.b16 %v1444
  %v3953 = vunpack.c.l.b16 %v1445
  %v3954 = vunpack.c.l.b16 %v1446
  %v3955 = vunpack.c.h.b16 %v1446
  %v3956 = vunpack.c.l.b16 %v1447
  %v3957 = vunpack.c.h.b16 %v1447
  %v3958 = vunpack.c.l.b16 %v1448
  %v3959 = vunpack.c.l.b16 %v1449
  %v3960 = vunpack.c.h.b16 %v1449
  %v3961 = vunpack.c.l.b16 %v1450
  %v3962 = vunpack.c.h.b16 %v1450
  %v3963 = vunpack.c.l.b16 %v1451
  %v3964 = vunpack.c.l.b16 %v1452
  %v3965 = vunpack.c.h.b16 %v1452
  %v3966 = vunpack.c.l.b16 %v1453
  %v3967 = vunpack.c.h.b16 %v1453
  %v3968 = vunpack.c.l.b16 %v1454
  %v3969 = vunpack.c.l.b16 %v1455
  %v3970 = vunpack.c.h.b16 %v1455
  %v3971 = vunpack.c.l.b16 %v1456
  %v3972 = vunpack.c.h.b16 %v1456
  %v3973 = vunpack.c.l.b16 %v1457
  %v3974 = vunpack.c.l.b16 %v1458
  %v3975 = vunpack.c.h.b16 %v1458
  %v3976 = vunpack.c.l.b16 %v1459
  %v3977 = vunpack.c.h.b16 %v1459
  %v3978 = vunpack.c.l.b16 %v1460
  %v3979 = vunpack.c.l.b16 %v1461
  %v3980 = vunpack.c.h.b16 %v1461
  %v3981 = vunpack.c.l.b16 %v1462
  %v3982 = vunpack.c.h.b16 %v1462
  %v3983 = vunpack.c.l.b16 %v1463
  %v3984 = vunpack.c.l.b16 %v1464
  %v3985 = vunpack.c.h.b16 %v1464
  %v3986 = vunpack.c.l.b16 %v1465
  %v3987 = vunpack.c.h.b16 %v1465
  %v3988 = vunpack.c.l.b16 %v1466
  %v3989 = vunpack.c.l.b16 %v1467
  %v3990 = vunpack.c.h.b16 %v1467
  %v3991 = vunpack.c.l.b16 %v1468
  %v3992 = vunpack.c.h.b16 %v1468
  %v3993 = vunpack.c.l.b16 %v1469
  %v3994 = vunpack.c.l.b16 %v1470
  %v3995 = vunpack.c.h.b16 %v1470
  %v3996 = vunpack.c.l.b16 %v1471
  %v3997 = vunpack.c.h.b16 %v1471
  %v3998 = vunpack.c.l.b16 %v1472
  %v3999 = vunpack.c.l.b16 %v1473
  %v4000 = vunpack.c.h.b16 %v1473
  %v4001 = vunpack.c.l.b16 %v1474
  %v4002 = vunpack.c.h.b16 %v1474
  %v4003 = vunpack.c.l.b16 %v1475
  %v4004 = vunpack.c.l.b16 %v1476
  %v4005 = vunpack.c.h.b16 %v1476
  %v4006 = vunpack.c.l.b16 %v1477
  %v4007 = vunpack.c.h.b16 %v1477
  %v4008 = vunpack.c.l.b16 %v1478
  %v4009 = vunpack.c.l.b16 %v1479
  %v4010 = vunpack.c.h.b16 %v1479
  %v4011 = vunpack.c.l.b16 %v1480
  %v4012 = vunpack.c.h.b16 %v1480
  %v4013 = vunpack.c.l.b16 %v1481
  %v4014 = vunpack.c.l.b16 %v1482
  %v4015 = vunpack.c.h.b16 %v1482
  %v4016 = vunpack.c.l.b16 %v1483
  %v4017 = vunpack.c.h.b16 %v1483
  %v4018 = vunpack.c.l.b16 %v1484
  %v4019 = vunpack.c.l.b16 %v1485
  %v4020 = vunpack.c.h.b16 %v1485
  %v4021 = vunpack.c.l.b16 %v1486
  %v4022 = vunpack.c.h.b16 %v1486
  %v4023 = vunpack.c.l.b16 %v1487
  %v4024 = vunpack.c.l.b16 %v1488
  %v4025 = vunpack.c.h.b16 %v1488
  %v4026 = vunpack.c.l.b16 %v1489
  %v4027 = vunpack.c.h.b16 %v1489
  %v4028 = vunpack.c.l.b16 %v1490
  %v4029 = vunpack.c.l.b16 %v1491
  %v4030 = vunpack.c.h.b16 %v1491
  %v4031 = vunpack.c.l.b16 %v1492
  %v4032 = vunpack.c.h.b16 %v1492
  %v4033 = vunpack.c.l.b16 %v1493
  %v4034 = vunpack.c.l.b16 %v1494
  %v4035 = vunpack.c.h.b16 %v1494
  %v4036 = vunpack.c.l.b16 %v1495
  %v4037 = vunpack.c.h.b16 %v1495
  %v4038 = vunpack.c.l.b16 %v1496
  %v4039 = vunpack.c.l.b16 %v1497
  %v4040 = vunpack.c.h.b16 %v1497
  %v4041 = vunpack.c.l.b16 %v1498
  %v4042 = vunpack.c.h.b16 %v1498
  %v4043 = vunpack.c.l.b16 %v1499
  %v4044 = vunpack.c.l.b16 %v1500
  %v4045 = vunpack.c.h.b16 %v1500
  %v4046 = vunpack.c.l.b16 %v1501
  %v4047 = vunpack.c.h.b16 %v1501
  %v4048 = vunpack.c.l.b16 %v1502
  %v4049 = vunpack.c.l.b16 %v1503
  %v4050 = vunpack.c.h.b16 %v1503
  %v4051 = vunpack.c.l.b16 %v1504
  %v4052 = vunpack.c.h.b16 %v1504
  %v4053 = vunpack.c.l.b16 %v1505
  %v4054 = vunpack.c.l.b16 %v1506
  %v4055 = vunpack.c.h.b16 %v1506
  %v4056 = vunpack.c.l.b16 %v1507
  %v4057 = vunpack.c.h.b16 %v1507
  %v4058 = vunpack.c.l.b16 %v1508
  %v4059 = vunpack.c.l.b16 %v1509
  %v4060 = vunpack.c.h.b16 %v1509
  %v4061 = vunpack.c.l.b16 %v1510
  %v4062 = vunpack.c.h.b16 %v1510
  %v4063 = vunpack.c.l.b16 %v1511
  %v4064 = vunpack.c.l.b16 %v1512
  %v4065 = vunpack.c.h.b16 %v1512
  %v4066 = vunpack.c.l.b16 %v1513
  %v4067 = vunpack.c.h.b16 %v1513
  %v4068 = vunpack.c.l.b16 %v1514
  %v4069 = vunpack.c.l.b16 %v1515
  %v4070 = vunpack.c.h.b16 %v1515
  %v4071 = vunpack.c.l.b16 %v1516
  %v4072 = vunpack.c.h.b16 %v1516
  %v4073 = vunpack.c.l.b16 %v1517
  %v4074 = vunpack.c.l.b16 %v1518
  %v4075 = vunpack.c.h.b16 %v1518
  %v4076 = vunpack.c.l.b16 %v1519
  %v4077 = vunpack.c.h.b16 %v1519
  %v4078 = vunpack.c.l.b16 %v1520
  %v4079 = vunpack.c.l.b16 %v1521
  %v4080 = vunpack.c.h.b16 %v1521
  %v4081 = vunpack.c.l.b16 %v1522
  %v4082 = vunpack.c.h.b16 %v1522
  %v4083 = vunpack.c.l.b16 %v1523
  %v4084 = vunpack.c.l.b16 %v1524
  %v4085 = vunpack.c.h.b16 %v1524
  %v4086 = vunpack.c.l.b16 %v1525
  %v4087 = vunpack.c.h.b16 %v1525
  %v4088 = vunpack.c.l.b16 %v1526
  %v4089 = vunpack.c.l.b16 %v1527
  %v4090 = vunpack.c.h.b16 %v1527
  %v4091 = vunpack.c.l.b16 %v1528
  %v4092 = vunpack.c.h.b16 %v1528
  %v4093 = vunpack.c.l.b16 %v1529
  %v4094 = vunpack.c.l.b16 %v1530
  %v4095 = vunpack.c.h.b16 %v1530
  %v4096 = vunpack.c.l.b16 %v1531
  %v4097 = vunpack.c.h.b16 %v1531
  %v4098 = vunpack.c.l.b16 %v1532
  %v4099 = vunpack.c.l.b16 %v1533
  %v4100 = vunpack.c.h.b16 %v1533
  %v4101 = vunpack.c.l.b16 %v1534
  %v4102 = vunpack.c.h.b16 %v1534
  %v4103 = vunpack.c.l.b16 %v1535
  %v4104 = vunpack.c.l.b16 %v1536
  %v4105 = vunpack.c.h.b16 %v1536
  %v4106 = vunpack.c.l.b16 %v1537
  %v4107 = vunpack.c.h.b16 %v1537
  %v4108 = vunpack.c.l.b16 %v1538
  %v4109 = vunpack.c.l.b16 %v1539
  %v4110 = vunpack.c.h.b16 %v1539
  %v4111 = vunpack.c.l.b16 %v1540
  %v4112 = vunpack.c.h.b16 %v1540
  %v4113 = vunpack.c.l.b16 %v1541
  %v4114 = vunpack.c.l.b16 %v1542
  %v4115 = vunpack.c.h.b16 %v1542
  %v4116 = vunpack.c.l.b16 %v1543
  %v4117 = vunpack.c.h.b16 %v1543
  %v4118 = vunpack.c.l.b16 %v1544
  %v4119 = vunpack.c.l.b16 %v1545
  %v4120 = vunpack.c.h.b16 %v1545
  %v4121 = vunpack.c.l.b16 %v1546
  %v4122 = vunpack.c.h.b16 %v1546
  %v4123 = vunpack.c.l.b16 %v1547
  %v4124 = vunpack.c.l.b16 %v1548
  %v4125 = vunpack.c.h.b16 %v1548
  %v4126 = vunpack.c.l.b16 %v1549
  %v4127 = vunpack.c.h.b16 %v1549
  %v4128 = vunpack.c.l.b16 %v1550
  %v4129 = vunpack.c.l.b16 %v1551
  %v4130 = vunpack.c.h.b16 %v1551
  %v4131 = vunpack.c.l.b16 %v1552
  %v4132 = vunpack.c.h.b16 %v1552
  %v4133 = vunpack.c.l.b16 %v1553
  %v4134 = vunpack.c.l.b16 %v1554
  %v4135 = vunpack.c.h.b16 %v1554
  %v4136 = vunpack.c.l.b16 %v1555
  %v4137 = vunpack.c.h.b16 %v1555
  %v4138 = vunpack.c.l.b16 %v1556
  %v4139 = vunpack.c.l.b16 %v1557
  %v4140 = vunpack.c.h.b16 %v1557
  %v4141 = vunpack.c.l.b16 %v1558
  %v4142 = vunpack.c.h.b16 %v1558
  %v4143 = vunpack.c.l.b16 %v1559
  %v4144 = vunpack.c.l.b16 %v1560
  %v4145 = vunpack.c.h.b16 %v1560
  %v4146 = vunpack.c.l.b16 %v1561
  %v4147 = vunpack.c.h.b16 %v1561
  %v4148 = vunpack.c.l.b16 %v1562
  %v4149 = vunpack.c.l.b16 %v1563
  %v4150 = vunpack.c.h.b16 %v1563
  %v4151 = vunpack.c.l.b16 %v1564
  %v4152 = vunpack.c.h.b16 %v1564
  %v4153 = vunpack.c.l.b16 %v1565
  %v4154 = vunpack.c.l.b16 %v1566
  %v4155 = vunpack.c.h.b16 %v1566
  %v4156 = vunpack.c.l.b16 %v1567
  %v4157 = vunpack.c.h.b16 %v1567
  %v4158 = vunpack.c.l.b16 %v1568
  %v4159 = vunpack.c.l.b16 %v1569
  %v4160 = vunpack.c.h.b16 %v1569
  %v4161 = vunpack.c.l.b16 %v1570
  %v4162 = vunpack.c.h.b16 %v1570
  %v4163 = vunpack.c.l.b16 %v1571
  %v4164 = vunpack.c.l.b16 %v1572
  %v4165 = vunpack.c.h.b16 %v1572
  %v4166 = vunpack.c.l.b16 %v1573
  %v4167 = vunpack.c.h.b16 %v1573
  %v4168 = vunpack.c.l.b16 %v1574
  %v4169 = vunpack.c.l.b16 %v1575
  %v4170 = vunpack.c.h.b16 %v1575
  %v4171 = vunpack.c.l.b16 %v1576
  %v4172 = vunpack.c.h.b16 %v1576
  %v4173 = vunpack.c.l.b16 %v1577
  %v4174 = vunpack.c.l.b16 %v1578
  %v4175 = vunpack.c.h.b16 %v1578
  %v4176 = vunpack.c.l.b16 %v1579
  %v4177 = vunpack.c.h.b16 %v1579
  %v4178 = vunpack.c.l.b16 %v1580
  %v4179 = vunpack.c.l.b16 %v1581
  %v4180 = vunpack.c.h.b16 %v1581
  %v4181 = vunpack.c.l.b16 %v1582
  %v4182 = vunpack.c.h.b16 %v1582
  %v4183 = vunpack.c.l.b16 %v1583
  %v4184 = vunpack.c.l.b16 %v1584
  %v4185 = vunpack.c.h.b16 %v1584
  %v4186 = vunpack.c.l.b16 %v1585
  %v4187 = vunpack.c.h.b16 %v1585
  %v4188 = vunpack.c.l.b16 %v1586
  %v4189 = vunpack.c.l.b16 %v1587
  %v4190 = vunpack.c.h.b16 %v1587
  %v4191 = vunpack.c.l.b16 %v1588
  %v4192 = vunpack.c.h.b16 %v1588
  %v4193 = vunpack.c.l.b16 %v1589
  %v4194 = vunpack.c.l.b16 %v1590
  %v4195 = vunpack.c.h.b16 %v1590
  %v4196 = vunpack.c.l.b16 %v1591
  %v4197 = vunpack.c.h.b16 %v1591
  %v4198 = vunpack.c.l.b16 %v1592
  %v4199 = vunpack.c.l.b16 %v1593
  %v4200 = vunpack.c.h.b16 %v1593
  %v4201 = vunpack.c.l.b16 %v1594
  %v4202 = vunpack.c.h.b16 %v1594
  %v4203 = vunpack.c.l.b16 %v1595
  %v4204 = vunpack.c.l.b16 %v1596
  %v4205 = vunpack.c.h.b16 %v1596
  %v4206 = vunpack.c.l.b16 %v1597
  %v4207 = vunpack.c.h.b16 %v1597
  %v4208 = vunpack.c.l.b16 %v1598
  %v4209 = vunpack.c.l.b16 %v1599
  %v4210 = vunpack.c.h.b16 %v1599
  %v4211 = vunpack.c.l.b16 %v1600
  %v4212 = vunpack.c.h.b16 %v1600
  %v4213 = vunpack.c.l.b16 %v1601
  %v4214 = vunpack.c.l.b16 %v1602
  %v4215 = vunpack.c.h.b16 %v1602
  %v4216 = vunpack.c.l.b16 %v1603
  %v4217 = vunpack.c.h.b16 %v1603
  %v4218 = vunpack.c.l.b16 %v1604
  %v4219 = vunpack.c.l.b16 %v1605
  %v4220 = vunpack.c.h.b16 %v1605
  %v4221 = vunpack.c.l.b16 %v1606
  %v4222 = vunpack.c.h.b16 %v1606
  %v4223 = vunpack.c.l.b16 %v1607
  %v4224 = vunpack.c.l.b16 %v1608
  %v4225 = vunpack.c.h.b16 %v1608
  %v4226 = vunpack.c.l.b16 %v1609
  %v4227 = vunpack.c.h.b16 %v1609
  %v4228 = vunpack.c.l.b16 %v1610
  %v4229 = vunpack.c.l.b16 %v1611
  %v4230 = vunpack.c.h.b16 %v1611
  %v4231 = vunpack.c.l.b16 %v1612
  %v4232 = vunpack.c.h.b16 %v1612
  %v4233 = vunpack.c.l.b16 %v1613
  %v4234 = vunpack.c.l.b16 %v1614
  %v4235 = vunpack.c.h.b16 %v1614
  %v4236 = vunpack.c.l.b16 %v1615
  %v4237 = vunpack.c.h.b16 %v1615
  %v4238 = vunpack.c.l.b16 %v1616
  %v4239 = vunpack.c.l.b16 %v1617
  %v4240 = vunpack.c.h.b16 %v1617
  %v4241 = vunpack.c.l.b16 %v1618
  %v4242 = vunpack.c.h.b16 %v1618
  %v4243 = vunpack.c.l.b16 %v1619
  %v4244 = vunpack.c.l.b16 %v1620
  %v4245 = vunpack.c.h.b16 %v1620
  %v4246 = vunpack.c.l.b16 %v1621
  %v4247 = vunpack.c.h.b16 %v1621
  %v4248 = vunpack.c.l.b16 %v1622
  %v4249 = vunpack.c.l.b16 %v1623
  %v4250 = vunpack.c.h.b16 %v1623
  %v4251 = vunpack.c.l.b16 %v1624
  %v4252 = vunpack.c.h.b16 %v1624
  %v4253 = vunpack.c.l.b16 %v1625
  %v4254 = vunpack.c.l.b16 %v1626
  %v4255 = vunpack.c.h.b16 %v1626
  %v4256 = vunpack.c.l.b16 %v1627
  %v4257 = vunpack.c.h.b16 %v1627
  %v4258 = vunpack.c.l.b16 %v1628
  %v4259 = vunpack.c.l.b16 %v1629
  %v4260 = vunpack.c.h.b16 %v1629
  %v4261 = vunpack.c.l.b16 %v1630
  %v4262 = vunpack.c.h.b16 %v1630
  %v4263 = vunpack.c.l.b16 %v1631
  %v4264 = vunpack.c.l.b16 %v1632
  %v4265 = vunpack.c.h.b16 %v1632
  %v4266 = vunpack.c.l.b16 %v1633
  %v4267 = vunpack.c.h.b16 %v1633
  %v4268 = vunpack.c.l.b16 %v1634
  %v4269 = vunpack.c.l.b16 %v1635
  %v4270 = vunpack.c.h.b16 %v1635
  %v4271 = vunpack.c.l.b16 %v1636
  %v4272 = vunpack.c.h.b16 %v1636
  %v4273 = vunpack.c.l.b16 %v1637
  %v4274 = vunpack.c.l.b16 %v1638
  %v4275 = vunpack.c.h.b16 %v1638
  %v4276 = vunpack.c.l.b16 %v1639
  %v4277 = vunpack.c.h.b16 %v1639
  %v4278 = vunpack.c.l.b16 %v1640
  %v4279 = vunpack.c.l.b16 %v1641
  %v4280 = vunpack.c.h.b16 %v1641
  %v4281 = vunpack.c.l.b16 %v1642
  %v4282 = vunpack.c.h.b16 %v1642
  %v4283 = vunpack.c.l.b16 %v1643
  %v4284 = vunpack.c.l.b16 %v1644
  %v4285 = vunpack.c.h.b16 %v1644
  %v4286 = vunpack.c.l.b16 %v1645
  %v4287 = vunpack.c.h.b16 %v1645
  %v4288 = vunpack.c.l.b16 %v1646
  %v4289 = vunpack.c.l.b16 %v1647
  %v4290 = vunpack.c.h.b16 %v1647
  %v4291 = vunpack.c.l.b16 %v1648
  %v4292 = vunpack.c.h.b16 %v1648
  %v4293 = vunpack.c.l.b16 %v1649
  %v4294 = vunpack.c.l.b16 %v1650
  %v4295 = vunpack.c.h.b16 %v1650
  %v4296 = vunpack.c.l.b16 %v1651
  %v4297 = vunpack.c.h.b16 %v1651
  %v4298 = vunpack.c.l.b16 %v1652
  %v4299 = vunpack.c.l.b16 %v1653
  %v4300 = vunpack.c.h.b16 %v1653
  %v4301 = vunpack.c.l.b16 %v1654
  %v4302 = vunpack.c.h.b16 %v1654
  %v4303 = vunpack.c.l.b16 %v1655
  %v4304 = vunpack.c.l.b16 %v1656
  %v4305 = vunpack.c.h.b16 %v1656
  %v4306 = vunpack.c.l.b16 %v1657
  %v4307 = vunpack.c.h.b16 %v1657
  %v4308 = vunpack.c.l.b16 %v1658
  %v4309 = vunpack.c.l.b16 %v1659
  %v4310 = vunpack.c.h.b16 %v1659
  %v4311 = vunpack.c.l.b16 %v1660
  %v4312 = vunpack.c.h.b16 %v1660
  %v4313 = vunpack.c.l.b16 %v1661
  %v4314 = vunpack.c.l.b16 %v1662
  %v4315 = vunpack.c.h.b16 %v1662
  %v4316 = vunpack.c.l.b16 %v1663
  %v4317 = vunpack.c.h.b16 %v1663
  %v4318 = vunpack.c.l.b16 %v1664
  %v4319 = vunpack.c.l.b16 %v1665
  %v4320 = vunpack.c.h.b16 %v1665
  %v4321 = vunpack.c.l.b16 %v1666
  %v4322 = vunpack.c.h.b16 %v1666
  %v4323 = vunpack.c.l.b16 %v1667
  %v4324 = vunpack.c.l.b16 %v1668
  %v4325 = vunpack.c.h.b16 %v1668
  %v4326 = vunpack.c.l.b16 %v1669
  %v4327 = vunpack.c.h.b16 %v1669
  %v4328 = vunpack.c.l.b16 %v1670
  %v4329 = vunpack.c.l.b16 %v1671
  %v4330 = vunpack.c.h.b16 %v1671
  %v4331 = vunpack.c.l.b16 %v1672
  %v4332 = vunpack.c.h.b16 %v1672
  %v4333 = vunpack.c.l.b16 %v1673
  %v4334 = vunpack.c.l.b16 %v1674
  %v4335 = vunpack.c.h.b16 %v1674
  %v4336 = vunpack.c.l.b16 %v1675
  %v4337 = vunpack.c.h.b16 %v1675
  %v4338 = vunpack.c.l.b16 %v1676
  %v4339 = vunpack.c.l.b16 %v1677
  %v4340 = vunpack.c.h.b16 %v1677
  %v4341 = vunpack.c.l.b16 %v1678
  %v4342 = vunpack.c.h.b16 %v1678
  %v4343 = vunpack.c.l.b16 %v1679
  %v4344 = vunpack.c.l.b16 %v1680
  %v4345 = vunpack.c.h.b16 %v1680
  %v4346 = vunpack.c.l.b16 %v1681
  %v4347 = vunpack.c.h.b16 %v1681
  %v4348 = vunpack.c.l.b16 %v1682
  %v4349 = vunpack.c.l.b16 %v1683
  %v4350 = vunpack.c.h.b16 %v1683
  %v4351 = vunpack.c.l.b16 %v1684
  %v4352 = vunpack.c.h.b16 %v1684
  %v4353 = vunpack.c.l.b16 %v1685
  %v4354 = vpack.c.b16 %v2699, %v2694
  %v4355 = vpack.c.b16 %v2700, %v2695
  %v4356 = vpack.c.b16 %v2701, %v2696
  %v4357 = vpack.c.b16 %v2702, %v2697
  %v4358 = vpack.c.b16 %v2703, %v2698
  %v4359 = vpack.c.b16 %v2709, %v2704
  %v4360 = vpack.c.b16 %v2710, %v2705
  %v4361 = vpack.c.b16 %v2711, %v2706
  %v4362 = vpack.c.b16 %v2712, %v2707
  %v4363 = vpack.c.b16 %v2713, %v2708
  %v4364 = vpack.c.b16 %v2719, %v2714
  %v4365 = vpack.c.b16 %v2720, %v2715
  %v4366 = vpack.c.b16 %v2721, %v2716
  %v4367 = vpack.c.b16 %v2722, %v2717
  %v4368 = vpack.c.b16 %v2723, %v2718
  %v4369 = vpack.c.b16 %v2729, %v2724
  %v4370 = vpack.c.b16 %v2730, %v2725
  %v4371 = vpack.c.b16 %v2731, %v2726
  %v4372 = vpack.c.b16 %v2732, %v2727
  %v4373 = vpack.c.b16 %v2733, %v2728
  %v4374 = vpack.c.b16 %v2739, %v2734
  %v4375 = vpack.c.b16 %v2740, %v2735
  %v4376 = vpack.c.b16 %v2741, %v2736
  %v4377 = vpack.c.b16 %v2742, %v2737
  %v4378 = vpack.c.b16 %v2743, %v2738
  %v4379 = vpack.c.b16 %v2749, %v2744
  %v4380 = vpack.c.b16 %v2750, %v2745
  %v4381 = vpack.c.b16 %v2751, %v2746
  %v4382 = vpack.c.b16 %v2752, %v2747
  %v4383 = vpack.c.b16 %v2753, %v2748
  %v4384 = vpack.c.b16 %v2759, %v2754
  %v4385 = vpack.c.b16 %v2760, %v2755
  %v4386 = vpack.c.b16 %v2761, %v2756
  %v4387 = vpack.c.b16 %v2762, %v2757
  %v4388 = vpack.c.b16 %v2763, %v2758
  %v4389 = vpack.c.b16 %v2769, %v2764
  %v4390 = vpack.c.b16 %v2770, %v2765
  %v4391 = vpack.c.b16 %v2771, %v2766
  %v4392 = vpack.c.b16 %v2772, %v2767
  %v4393 = vpack.c.b16 %v2773, %v2768
  %v4394 = vpack.c.b16 %v2779, %v2774
  %v4395 = vpack.c.b16 %v2780, %v2775
  %v4396 = vpack.c.b16 %v2781, %v2776
  %v4397 = vpack.c.b16 %v2782, %v2777
  %v4398 = vpack.c.b16 %v2783, %v2778
  %v4399 = vpack.c.b16 %v2789, %v2784
  %v4400 = vpack.c.b16 %v2790, %v2785
  %v4401 = vpack.c.b16 %v2791, %v2786
  %v4402 = vpack.c.b16 %v2792, %v2787
  %v4403 = vpack.c.b16 %v2793, %v2788
  %v4404 = vpack.c.b16 %v2799, %v2794
  %v4405 = vpack.c.b16 %v2800, %v2795
  %v4406 = vpack.c.b16 %v2801, %v2796
  %v4407 = vpack.c.b16 %v2802, %v2797
  %v4408 = vpack.c.b16 %v2803, %v2798
  %v4409 = vpack.c.b16 %v2809, %v2804
  %v4410 = vpack.c.b16 %v2810, %v2805
  %v4411 = vpack.c.b16 %v2811, %v2806
  %v4412 = vpack.c.b16 %v2812, %v2807
  %v4413 = vpack.c.b16 %v2813, %v2808
  %v4414 = vpack.c.b16 %v2819, %v2814
  %v4415 = vpack.c.b16 %v2820, %v2815
  %v4416 = vpack.c.b16 %v2821, %v2816
  %v4417 = vpack.c.b16 %v2822, %v2817
  %v4418 = vpack.c.b16 %v2823, %v2818
  %v4419 = vpack.c.b16 %v2829, %v2824
  %v4420 = vpack.c.b16 %v2830, %v2825
  %v4421 = vpack.c.b16 %v2831, %v2826
  %v4422 = vpack.c.b16 %v2832, %v2827
  %v4423 = vpack.c.b16 %v2833, %v2828
  %v4424 = vpack.c.b16 %v2839, %v2834
  %v4425 = vpack.c.b16 %v2840, %v2835
  %v4426 = vpack.c.b16 %v2841, %v2836
  %v4427 = vpack.c.b16 %v2842, %v2837
  %v4428 = vpack.c.b16 %v2843, %v2838
  %v4429 = vpack.c.b16 %v2849, %v2844
  %v4430 = vpack.c.b16 %v2850, %v2845
  %v4431 = vpack.c.b16 %v2851, %v2846
  %v4432 = vpack.c.b16 %v2852, %v2847
  %v4433 = vpack.c.b16 %v2853, %v2848
  %v4434 = vpack.c.b16 %v2859, %v2854
  %v4435 = vpack.c.b16 %v2860, %v2855
  %v4436 = vpack.c.b16 %v2861, %v2856
  %v4437 = vpack.c.b16 %v2862, %v2857
  %v4438 = vpack.c.b16 %v2863, %v2858
  %v4439 = vpack.c.b16 %v2869, %v2864
  %v4440 = vpack.c.b16 %v2870, %v2865
  %v4441 = vpack.c.b16 %v2871, %v2866
  %v4442 = vpack.c.b16 %v2872, %v2867
  %v4443 = vpack.c.b16 %v2873, %v2868
  %v4444 = vpack.c.b16 %v2879, %v2874
  %v4445 = vpack.c.b16 %v2880, %v2875
  %v4446 = vpack.c.b16 %v2881, %v2876
  %v4447 = vpack.c.b16 %v2882, %v2877
  %v4448 = vpack.c.b16 %v2883, %v2878
  %v4449 = vpack.c.b16 %v2889, %v2884
  %v4450 = vpack.c.b16 %v2890, %v2885
  %v4451 = vpack.c.b16 %v2891, %v2886
  %v4452 = vpack.c.b16 %v2892, %v2887
  %v4453 = vpack.c.b16 %v2893, %v2888
  %v4454 = vpack.c.b16 %v2899, %v2894
  %v4455 = vpack.c.b16 %v2900, %v2895
  %v4456 = vpack.c.b16 %v2901, %v2896
  %v4457 = vpack.c.b16 %v2902, %v2897
  %v4458 = vpack.c.b16 %v2903, %v2898
  %v4459 = vpack.c.b16 %v2909, %v2904
  %v4460 = vpack.c.b16 %v2910, %v2905
  %v4461 = vpack.c.b16 %v2911, %v2906
  %v4462 = vpack.c.b16 %v2912, %v2907
  %v4463 = vpack.c.b16 %v2913, %v2908
  %v4464 = vpack.c.b16 %v2919, %v2914
  %v4465 = vpack.c.b16 %v2920, %v2915
  %v4466 = vpack.c.b16 %v2921, %v2916
  %v4467 = vpack.c.b16 %v2922, %v2917
  %v4468 = vpack.c.b16 %v2923, %v2918
  %v4469 = vpack.c.b16 %v2929, %v2924
  %v4470 = vpack.c.b16 %v2930, %v2925
  %v4471 = vpack.c.b16 %v2931, %v2926
  %v4472 = vpack.c.b16 %v2932, %v2927
  %v4473 = vpack.c.b16 %v2933, %v2928
  %v4474 = vpack.c.b16 %v2939, %v2934
  %v4475 = vpack.c.b16 %v2940, %v2935
  %v4476 = vpack.c.b16 %v2941, %v2936
  %v4477 = vpack.c.b16 %v2942, %v2937
  %v4478 = vpack.c.b16 %v2943, %v2938
  %v4479 = vpack.c.b16 %v2949, %v2944
  %v4480 = vpack.c.b16 %v2950, %v2945
  %v4481 = vpack.c.b16 %v2951, %v2946
  %v4482 = vpack.c.b16 %v2952, %v2947
  %v4483 = vpack.c.b16 %v2953, %v2948
  %v4484 = vpack.c.b16 %v2959, %v2954
  %v4485 = vpack.c.b16 %v2960, %v2955
  %v4486 = vpack.c.b16 %v2961, %v2956
  %v4487 = vpack.c.b16 %v2962, %v2957
  %v4488 = vpack.c.b16 %v2963, %v2958
  %v4489 = vpack.c.b16 %v2969, %v2964
  %v4490 = vpack.c.b16 %v2970, %v2965
  %v4491 = vpack.c.b16 %v2971, %v2966
  %v4492 = vpack.c.b16 %v2972, %v2967
  %v4493 = vpack.c.b16 %v2973, %v2968
  %v4494 = vpack.c.b16 %v2979, %v2974
  %v4495 = vpack.c.b16 %v2980, %v2975
  %v4496 = vpack.c.b16 %v2981, %v2976
  %v4497 = vpack.c.b16 %v2982, %v2977
  %v4498 = vpack.c.b16 %v2983, %v2978
  %v4499 = vpack.c.b16 %v2989, %v2984
  %v4500 = vpack.c.b16 %v2990, %v2985
  %v4501 = vpack.c.b16 %v2991, %v2986
  %v4502 = vpack.c.b16 %v2992, %v2987
  %v4503 = vpack.c.b16 %v2993, %v2988
  %v4504 = vpack.c.b16 %v2999, %v2994
  %v4505 = vpack.c.b16 %v3000, %v2995
  %v4506 = vpack.c.b16 %v3001, %v2996
  %v4507 = vpack.c.b16 %v3002, %v2997
  %v4508 = vpack.c.b16 %v3003, %v2998
  %v4509 = vpack.c.b16 %v3009, %v3004
  %v4510 = vpack.c.b16 %v3010, %v3005
  %v4511 = vpack.c.b16 %v3011, %v3006
  %v4512 = vpack.c.b16 %v3012, %v3007
  %v4513 = vpack.c.b16 %v3013, %v3008
  %v4514 = vpack.c.b16 %v3019, %v3014
  %v4515 = vpack.c.b16 %v3020, %v3015
  %v4516 = vpack.c.b16 %v3021, %v3016
  %v4517 = vpack.c.b16 %v3022, %v3017
  %v4518 = vpack.c.b16 %v3023, %v3018
  %v4519 = vpack.c.b16 %v3029, %v3024
  %v4520 = vpack.c.b16 %v3030, %v3025
  %v4521 = vpack.c.b16 %v3031, %v3026
  %v4522 = vpack.c.b16 %v3032, %v3027
  %v4523 = vpack.c.b16 %v3033, %v3028
  %v4524 = vpack.c.b16 %v3039, %v3034
  %v4525 = vpack.c.b16 %v3040, %v3035
  %v4526 = vpack.c.b16 %v3041, %v3036
  %v4527 = vpack.c.b16 %v3042, %v3037
  %v4528 = vpack.c.b16 %v3043, %v3038
  %v4529 = vpack.c.b16 %v3049, %v3044
  %v4530 = vpack.c.b16 %v3050, %v3045
  %v4531 = vpack.c.b16 %v3051, %v3046
  %v4532 = vpack.c.b16 %v3052, %v3047
  %v4533 = vpack.c.b16 %v3053, %v3048
  %v4534 = vpack.c.b16 %v3059, %v3054
  %v4535 = vpack.c.b16 %v3060, %v3055
  %v4536 = vpack.c.b16 %v3061, %v3056
  %v4537 = vpack.c.b16 %v3062, %v3057
  %v4538 = vpack.c.b16 %v3063, %v3058
  %v4539 = vpack.c.b16 %v3069, %v3064
  %v4540 = vpack.c.b16 %v3070, %v3065
  %v4541 = vpack.c.b16 %v3071, %v3066
  %v4542 = vpack.c.b16 %v3072, %v3067
  %v4543 = vpack.c.b16 %v3073, %v3068
  %v4544 = vpack.c.b16 %v3079, %v3074
  %v4545 = vpack.c.b16 %v3080, %v3075
  %v4546 = vpack.c.b16 %v3081, %v3076
  %v4547 = vpack.c.b16 %v3082, %v3077
  %v4548 = vpack.c.b16 %v3083, %v3078
  %v4549 = vpack.c.b16 %v3089, %v3084
  %v4550 = vpack.c.b16 %v3090, %v3085
  %v4551 = vpack.c.b16 %v3091, %v3086
  %v4552 = vpack.c.b16 %v3092, %v3087
  %v4553 = vpack.c.b16 %v3093, %v3088
  %v4554 = vpack.c.b16 %v3099, %v3094
  %v4555 = vpack.c.b16 %v3100, %v3095
  %v4556 = vpack.c.b16 %v3101, %v3096
  %v4557 = vpack.c.b16 %v3102, %v3097
  %v4558 = vpack.c.b16 %v3103, %v3098
  %v4559 = vpack.c.b16 %v3109, %v3104
  %v4560 = vpack.c.b16 %v3110, %v3105
  %v4561 = vpack.c.b16 %v3111, %v3106
  %v4562 = vpack.c.b16 %v3112, %v3107
  %v4563 = vpack.c.b16 %v3113, %v3108
  %v4564 = vpack.c.b16 %v3119, %v3114
  %v4565 = vpack.c.b16 %v3120, %v3115
  %v4566 = vpack.c.b16 %v3121, %v3116
  %v4567 = vpack.c.b16 %v3122, %v3117
  %v4568 = vpack.c.b16 %v3123, %v3118
  %v4569 = vpack.c.b16 %v3129, %v3124
  %v4570 = vpack.c.b16 %v3130, %v3125
  %v4571 = vpack.c.b16 %v3131, %v3126
  %v4572 = vpack.c.b16 %v3132, %v3127
  %v4573 = vpack.c.b16 %v3133, %v3128
  %v4574 = vpack.c.b16 %v3139, %v3134
  %v4575 = vpack.c.b16 %v3140, %v3135
  %v4576 = vpack.c.b16 %v3141, %v3136
  %v4577 = vpack.c.b16 %v3142, %v3137
  %v4578 = vpack.c.b16 %v3143, %v3138
  %v4579 = vpack.c.b16 %v3149, %v3144
  %v4580 = vpack.c.b16 %v3150, %v3145
  %v4581 = vpack.c.b16 %v3151, %v3146
  %v4582 = vpack.c.b16 %v3152, %v3147
  %v4583 = vpack.c.b16 %v3153, %v3148
  %v4584 = vpack.c.b16 %v3159, %v3154
  %v4585 = vpack.c.b16 %v3160, %v3155
  %v4586 = vpack.c.b16 %v3161, %v3156
  %v4587 = vpack.c.b16 %v3162, %v3157
  %v4588 = vpack.c.b16 %v3163, %v3158
  %v4589 = vpack.c.b16 %v3169, %v3164
  %v4590 = vpack.c.b16 %v3170, %v3165
  %v4591 = vpack.c.b16 %v3171, %v3166
  %v4592 = vpack.c.b16 %v3172, %v3167
  %v4593 = vpack.c.b16 %v3173, %v3168
  %v4594 = vpack.c.b16 %v3179, %v3174
  %v4595 = vpack.c.b16 %v3180, %v3175
  %v4596 = vpack.c.b16 %v3181, %v3176
  %v4597 = vpack.c.b16 %v3182, %v3177
  %v4598 = vpack.c.b16 %v3183, %v3178
  %v4599 = vpack.c.b16 %v3189, %v3184
  %v4600 = vpack.c.b16 %v3190, %v3185
  %v4601 = vpack.c.b16 %v3191, %v3186
  %v4602 = vpack.c.b16 %v3192, %v3187
  %v4603 = vpack.c.b16 %v3193, %v3188
  %v4604 = vpack.c.b16 %v3199, %v3194
  %v4605 = vpack.c.b16 %v3200, %v3195
  %v4606 = vpack.c.b16 %v3201, %v3196
  %v4607 = vpack.c.b16 %v3202, %v3197
  %v4608 = vpack.c.b16 %v3203, %v3198
  %v4609 = vpack.c.b16 %v3209, %v3204
  %v4610 = vpack.c.b16 %v3210, %v3205
  %v4611 = vpack.c.b16 %v3211, %v3206
  %v4612 = vpack.c.b16 %v3212, %v3207
  %v4613 = vpack.c.b16 %v3213, %v3208
  %v4614 = vpack.c.b16 %v3219, %v3214
  %v4615 = vpack.c.b16 %v3220, %v3215
  %v4616 = vpack.c.b16 %v3221, %v3216
  %v4617 = vpack.c.b16 %v3222, %v3217
  %v4618 = vpack.c.b16 %v3223, %v3218
  %v4619 = vpack.c.b16 %v3229, %v3224
  %v4620 = vpack.c.b16 %v3230, %v3225
  %v4621 = vpack.c.b16 %v3231, %v3226
  %v4622 = vpack.c.b16 %v3232, %v3227
  %v4623 = vpack.c.b16 %v3233, %v3228
  %v4624 = vpack.c.b16 %v3239, %v3234
  %v4625 = vpack.c.b16 %v3240, %v3235
  %v4626 = vpack.c.b16 %v3241, %v3236
  %v4627 = vpack.c.b16 %v3242, %v3237
  %v4628 = vpack.c.b16 %v3243, %v3238
  %v4629 = vpack.c.b16 %v3249, %v3244
  %v4630 = vpack.c.b16 %v3250, %v3245
  %v4631 = vpack.c.b16 %v3251, %v3246
  %v4632 = vpack.c.b16 %v3252, %v3247
  %v4633 = vpack.c.b16 %v3253, %v3248
  %v4634 = vpack.c.b16 %v3259, %v3254
  %v4635 = vpack.c.b16 %v3260, %v3255
  %v4636 = vpack.c.b16 %v3261, %v3256
  %v4637 = vpack.c.b16 %v3262, %v3257
  %v4638 = vpack.c.b16 %v3263, %v3258
  %v4639 = vpack.c.b16 %v3269, %v3264
  %v4640 = vpack.c.b16 %v3270, %v3265
  %v4641 = vpack.c.b16 %v3271, %v3266
  %v4642 = vpack.c.b16 %v3272, %v3267
  %v4643 = vpack.c.b16 %v3273, %v3268
  %v4644 = vpack.c.b16 %v3279, %v3274
  %v4645 = vpack.c.b16 %v3280, %v3275
  %v4646 = vpack.c.b16 %v3281, %v3276
  %v4647 = vpack.c.b16 %v3282, %v3277
  %v4648 = vpack.c.b16 %v3283, %v3278
  %v4649 = vpack.c.b16 %v3289, %v3284
  %v4650 = vpack.c.b16 %v3290, %v3285
  %v4651 = vpack.c.b16 %v3291, %v3286
  %v4652 = vpack.c.b16 %v3292, %v3287
  %v4653 = vpack.c.b16 %v3293, %v3288
  %v4654 = vpack.c.b16 %v3299, %v3294
  %v4655 = vpack.c.b16 %v3300, %v3295
  %v4656 = vpack.c.b16 %v3301, %v3296
  %v4657 = vpack.c.b16 %v3302, %v3297
  %v4658 = vpack.c.b16 %v3303, %v3298
  %v4659 = vpack.c.b16 %v3309, %v3304
  %v4660 = vpack.c.b16 %v3310, %v3305
  %v4661 = vpack.c.b16 %v3311, %v3306
  %v4662 = vpack.c.b16 %v3312, %v3307
  %v4663 = vpack.c.b16 %v3313, %v3308
  %v4664 = vpack.c.b16 %v3319, %v3314
  %v4665 = vpack.c.b16 %v3320, %v3315
  %v4666 = vpack.c.b16 %v3321, %v3316
  %v4667 = vpack.c.b16 %v3322, %v3317
  %v4668 = vpack.c.b16 %v3323, %v3318
  %v4669 = vpack.c.b16 %v3329, %v3324
  %v4670 = vpack.c.b16 %v3330, %v3325
  %v4671 = vpack.c.b16 %v3331, %v3326
  %v4672 = vpack.c.b16 %v3332, %v3327
  %v4673 = vpack.c.b16 %v3333, %v3328
  %v4674 = vpack.c.b16 %v3339, %v3334
  %v4675 = vpack.c.b16 %v3340, %v3335
  %v4676 = vpack.c.b16 %v3341, %v3336
  %v4677 = vpack.c.b16 %v3342, %v3337
  %v4678 = vpack.c.b16 %v3343, %v3338
  %v4679 = vpack.c.b16 %v3349, %v3344
  %v4680 = vpack.c.b16 %v3350, %v3345
  %v4681 = vpack.c.b16 %v3351, %v3346
  %v4682 = vpack.c.b16 %v3352, %v3347
  %v4683 = vpack.c.b16 %v3353, %v3348
  %v4684 = vpack.c.b16 %v3359, %v3354
  %v4685 = vpack.c.b16 %v3360, %v3355
  %v4686 = vpack.c.b16 %v3361, %v3356
  %v4687 = vpack.c.b16 %v3362, %v3357
  %v4688 = vpack.c.b16 %v3363, %v3358
  %v4689 = vpack.c.b16 %v3369, %v3364
  %v4690 = vpack.c.b16 %v3370, %v3365
  %v4691 = vpack.c.b16 %v3371, %v3366
  %v4692 = vpack.c.b16 %v3372, %v3367
  %v4693 = vpack.c.b16 %v3373, %v3368
  %v4694 = vpack.c.b16 %v3379, %v3374
  %v4695 = vpack.c.b16 %v3380, %v3375
  %v4696 = vpack.c.b16 %v3381, %v3376
  %v4697 = vpack.c.b16 %v3382, %v3377
  %v4698 = vpack.c.b16 %v3383, %v3378
  %v4699 = vpack.c.b16 %v3389, %v3384
  %v4700 = vpack.c.b16 %v3390, %v3385
  %v4701 = vpack.c.b16 %v3391, %v3386
  %v4702 = vpack.c.b16 %v3392, %v3387
  %v4703 = vpack.c.b16 %v3393, %v3388
  %v4704 = vpack.c.b16 %v3399, %v3394
  %v4705 = vpack.c.b16 %v3400, %v3395
  %v4706 = vpack.c.b16 %v3401, %v3396
  %v4707 = vpack.c.b16 %v3402, %v3397
  %v4708 = vpack.c.b16 %v3403, %v3398
  %v4709 = vpack.c.b16 %v3409, %v3404
  %v4710 = vpack.c.b16 %v3410, %v3405
  %v4711 = vpack.c.b16 %v3411, %v3406
  %v4712 = vpack.c.b16 %v3412, %v3407
  %v4713 = vpack.c.b16 %v3413, %v3408
  %v4714 = vpack.c.b16 %v3419, %v3414
  %v4715 = vpack.c.b16 %v3420, %v3415
  %v4716 = vpack.c.b16 %v3421, %v3416
  %v4717 = vpack.c.b16 %v3422, %v3417
  %v4718 = vpack.c.b16 %v3423, %v3418
  %v4719 = vpack.c.b16 %v3429, %v3424
  %v4720 = vpack.c.b16 %v3430, %v3425
  %v4721 = vpack.c.b16 %v3431, %v3426
  %v4722 = vpack.c.b16 %v3432, %v3427
  %v4723 = vpack.c.b16 %v3433, %v3428
  %v4724 = vpack.c.b16 %v3439, %v3434
  %v4725 = vpack.c.b16 %v3440, %v3435
  %v4726 = vpack.c.b16 %v3441, %v3436
  %v4727 = vpack.c.b16 %v3442, %v3437
  %v4728 = vpack.c.b16 %v3443, %v3438
  %v4729 = vpack.c.b16 %v3449, %v3444
  %v4730 = vpack.c.b16 %v3450, %v3445
  %v4731 = vpack.c.b16 %v3451, %v3446
  %v4732 = vpack.c.b16 %v3452, %v3447
  %v4733 = vpack.c.b16 %v3453, %v3448
  %v4734 = vpack.c.b16 %v3459, %v3454
  %v4735 = vpack.c.b16 %v3460, %v3455
  %v4736 = vpack.c.b16 %v3461, %v3456
  %v4737 = vpack.c.b16 %v3462, %v3457
  %v4738 = vpack.c.b16 %v3463, %v3458
  %v4739 = vpack.c.b16 %v3469, %v3464
  %v4740 = vpack.c.b16 %v3470, %v3465
  %v4741 = vpack.c.b16 %v3471, %v3466
  %v4742 = vpack.c.b16 %v3472, %v3467
  %v4743 = vpack.c.b16 %v3473, %v3468
  %v4744 = vpack.c.b16 %v3479, %v3474
  %v4745 = vpack.c.b16 %v3480, %v3475
  %v4746 = vpack.c.b16 %v3481, %v3476
  %v4747 = vpack.c.b16 %v3482, %v3477
  %v4748 = vpack.c.b16 %v3483, %v3478
  %v4749 = vpack.c.b16 %v3489, %v3484
  %v4750 = vpack.c.b16 %v3490, %v3485
  %v4751 = vpack.c.b16 %v3491, %v3486
  %v4752 = vpack.c.b16 %v3492, %v3487
  %v4753 = vpack.c.b16 %v3493, %v3488
  %v4754 = vpack.c.b16 %v3499, %v3494
  %v4755 = vpack.c.b16 %v3500, %v3495
  %v4756 = vpack.c.b16 %v3501, %v3496
  %v4757 = vpack.c.b16 %v3502, %v3497
  %v4758 = vpack.c.b16 %v3503, %v3498
  %v4759 = vpack.c.b16 %v3509, %v3504
  %v4760 = vpack.c.b16 %v3510, %v3505
  %v4761 = vpack.c.b16 %v3511, %v3506
  %v4762 = vpack.c.b16 %v3512, %v3507
  %v4763 = vpack.c.b16 %v3513, %v3508
  %v4764 = vpack.c.b16 %v3519, %v3514
  %v4765 = vpack.c.b16 %v3520, %v3515
  %v4766 = vpack.c.b16 %v3521, %v3516
  %v4767 = vpack.c.b16 %v3522, %v3517
  %v4768 = vpack.c.b16 %v3523, %v3518
  %v4769 = vpack.c.b16 %v3529, %v3524
  %v4770 = vpack.c.b16 %v3530, %v3525
  %v4771 = vpack.c.b16 %v3531, %v3526
  %v4772 = vpack.c.b16 %v3532, %v3527
  %v4773 = vpack.c.b16 %v3533, %v3528
  %v4774 = vpack.c.b16 %v3539, %v3534
  %v4775 = vpack.c.b16 %v3540, %v3535
  %v4776 = vpack.c.b16 %v3541, %v3536
  %v4777 = vpack.c.b16 %v3542, %v3537
  %v4778 = vpack.c.b16 %v3543, %v3538
  %v4779 = vpack.c.b16 %v3549, %v3544
  %v4780 = vpack.c.b16 %v3550, %v3545
  %v4781 = vpack.c.b16 %v3551, %v3546
  %v4782 = vpack.c.b16 %v3552, %v3547
  %v4783 = vpack.c.b16 %v3553, %v3548
  %v4784 = vpack.c.b16 %v3559, %v3554
  %v4785 = vpack.c.b16 %v3560, %v3555
  %v4786 = vpack.c.b16 %v3561, %v3556
  %v4787 = vpack.c.b16 %v3562, %v3557
  %v4788 = vpack.c.b16 %v3563, %v3558
  %v4789 = vpack.c.b16 %v3569, %v3564
  %v4790 = vpack.c.b16 %v3570, %v3565
  %v4791 = vpack.c.b16 %v3571, %v3566
  %v4792 = vpack.c.b16 %v3572, %v3567
  %v4793 = vpack.c.b16 %v3573, %v3568
  %v4794 = vpack.c.b16 %v3579, %v3574
  %v4795 = vpack.c.b16 %v3580, %v3575
  %v4796 = vpack.c.b16 %v3581, %v3576
  %v4797 = vpack.c.b16 %v3582, %v3577
  %v4798 = vpack.c.b16 %v3583, %v3578
  %v4799 = vpack.c.b16 %v3589, %v3584
  %v4800 = vpack.c.b16 %v3590, %v3585
  %v4801 = vpack.c.b16 %v3591, %v3586
  %v4802 = vpack.c.b16 %v3592, %v3587
  %v4803 = vpack.c.b16 %v3593, %v3588
  %v4804 = vpack.c.b16 %v3599, %v3594
  %v4805 = vpack.c.b16 %v3600, %v3595
  %v4806 = vpack.c.b16 %v3601, %v3596
  %v4807 = vpack.c.b16 %v3602, %v3597
  %v4808 = vpack.c.b16 %v3603, %v3598
  %v4809 = vpack.c.b16 %v3609, %v3604
  %v4810 = vpack.c.b16 %v3610, %v3605
  %v4811 = vpack.c.b16 %v3611, %v3606
  %v4812 = vpack.c.b16 %v3612, %v3607
  %v4813 = vpack.c.b16 %v3613, %v3608
  %v4814 = vpack.c.b16 %v3619, %v3614
  %v4815 = vpack.c.b16 %v3620, %v3615
  %v4816 = vpack.c.b16 %v3621, %v3616
  %v4817 = vpack.c.b16 %v3622, %v3617
  %v4818 = vpack.c.b16 %v3623, %v3618
  %v4819 = vpack.c.b16 %v3629, %v3624
  %v4820 = vpack.c.b16 %v3630, %v3625
  %v4821 = vpack.c.b16 %v3631, %v3626
  %v4822 = vpack.c.b16 %v3632, %v3627
  %v4823 = vpack.c.b16 %v3633, %v3628
  %v4824 = vpack.c.b16 %v3639, %v3634
  %v4825 = vpack.c.b16 %v3640, %v3635
  %v4826 = vpack.c.b16 %v3641, %v3636
  %v4827 = vpack.c.b16 %v3642, %v3637
  %v4828 = vpack.c.b16 %v3643, %v3638
  %v4829 = vpack.c.b16 %v3649, %v3644
  %v4830 = vpack.c.b16 %v3650, %v3645
  %v4831 = vpack.c.b16 %v3651, %v3646
  %v4832 = vpack.c.b16 %v3652, %v3647
  %v4833 = vpack.c.b16 %v3653, %v3648
  %v4834 = vpack.c.b16 %v3659, %v3654
  %v4835 = vpack.c.b16 %v3660, %v3655
  %v4836 = vpack.c.b16 %v3661, %v3656
  %v4837 = vpack.c.b16 %v3662, %v3657
  %v4838 = vpack.c.b16 %v3663, %v3658
  %v4839 = vpack.c.b16 %v3669, %v3664
  %v4840 = vpack.c.b16 %v3670, %v3665
  %v4841 = vpack.c.b16 %v3671, %v3666
  %v4842 = vpack.c.b16 %v3672, %v3667
  %v4843 = vpack.c.b16 %v3673, %v3668
  %v4844 = vpack.c.b16 %v3679, %v3674
  %v4845 = vpack.c.b16 %v3680, %v3675
  %v4846 = vpack.c.b16 %v3681, %v3676
  %v4847 = vpack.c.b16 %v3682, %v3677
  %v4848 = vpack.c.b16 %v3683, %v3678
  %v4849 = vpack.c.b16 %v3689, %v3684
  %v4850 = vpack.c.b16 %v3690, %v3685
  %v4851 = vpack.c.b16 %v3691, %v3686
  %v4852 = vpack.c.b16 %v3692, %v3687
  %v4853 = vpack.c.b16 %v3693, %v3688
  %v4854 = vpack.c.b16 %v3699, %v3694
  %v4855 = vpack.c.b16 %v3700, %v3695
  %v4856 = vpack.c.b16 %v3701, %v3696
  %v4857 = vpack.c.b16 %v3702, %v3697
  %v4858 = vpack.c.b16 %v3703, %v3698
  %v4859 = vpack.c.b16 %v3709, %v3704
  %v4860 = vpack.c.b16 %v3710, %v3705
  %v4861 = vpack.c.b16 %v3711, %v3706
  %v4862 = vpack.c.b16 %v3712, %v3707
  %v4863 = vpack.c.b16 %v3713, %v3708
  %v4864 = vpack.c.b16 %v3719, %v3714
  %v4865 = vpack.c.b16 %v3720, %v3715
  %v4866 = vpack.c.b16 %v3721, %v3716
  %v4867 = vpack.c.b16 %v3722, %v3717
  %v4868 = vpack.c.b16 %v3723, %v3718
  %v4869 = vpack.c.b16 %v3729, %v3724
  %v4870 = vpack.c.b16 %v3730, %v3725
  %v4871 = vpack.c.b16 %v3731, %v3726
  %v4872 = vpack.c.b16 %v3732, %v3727
  %v4873 = vpack.c.b16 %v3733, %v3728
  %v4874 = vpack.c.b16 %v3739, %v3734
  %v4875 = vpack.c.b16 %v3740, %v3735
  %v4876 = vpack.c.b16 %v3741, %v3736
  %v4877 = vpack.c.b16 %v3742, %v3737
  %v4878 = vpack.c.b16 %v3743, %v3738
  %v4879 = vpack.c.b16 %v3749, %v3744
  %v4880 = vpack.c.b16 %v3750, %v3745
  %v4881 = vpack.c.b16 %v3751, %v3746
  %v4882 = vpack.c.b16 %v3752, %v3747
  %v4883 = vpack.c.b16 %v3753, %v3748
  %v4884 = vpack.c.b16 %v3759, %v3754
  %v4885 = vpack.c.b16 %v3760, %v3755
  %v4886 = vpack.c.b16 %v3761, %v3756
  %v4887 = vpack.c.b16 %v3762, %v3757
  %v4888 = vpack.c.b16 %v3763, %v3758
  %v4889 = vpack.c.b16 %v3769, %v3764
  %v4890 = vpack.c.b16 %v3770, %v3765
  %v4891 = vpack.c.b16 %v3771, %v3766
  %v4892 = vpack.c.b16 %v3772, %v3767
  %v4893 = vpack.c.b16 %v3773, %v3768
  %v4894 = vpack.c.b16 %v3779, %v3774
  %v4895 = vpack.c.b16 %v3780, %v3775
  %v4896 = vpack.c.b16 %v3781, %v3776
  %v4897 = vpack.c.b16 %v3782, %v3777
  %v4898 = vpack.c.b16 %v3783, %v3778
  %v4899 = vpack.c.b16 %v3789, %v3784
  %v4900 = vpack.c.b16 %v3790, %v3785
  %v4901 = vpack.c.b16 %v3791, %v3786
  %v4902 = vpack.c.b16 %v3792, %v3787
  %v4903 = vpack.c.b16 %v3793, %v3788
  %v4904 = vpack.c.b16 %v3799, %v3794
  %v4905 = vpack.c.b16 %v3800, %v3795
  %v4906 = vpack.c.b16 %v3801, %v3796
  %v4907 = vpack.c.b16 %v3802, %v3797
  %v4908 = vpack.c.b16 %v3803, %v3798
  %v4909 = vpack.c.b16 %v3809, %v3804
  %v4910 = vpack.c.b16 %v3810, %v3805
  %v4911 = vpack.c.b16 %v3811, %v3806
  %v4912 = vpack.c.b16 %v3812, %v3807
  %v4913 = vpack.c.b16 %v3813, %v3808
  %v4914 = vpack.c.b16 %v3819, %v3814
  %v4915 = vpack.c.b16 %v3820, %v3815
  %v4916 = vpack.c.b16 %v3821, %v3816
  %v4917 = vpack.c.b16 %v3822, %v3817
  %v4918 = vpack.c.b16 %v3823, %v3818
  %v4919 = vpack.c.b16 %v3829, %v3824
  %v4920 = vpack.c.b16 %v3830, %v3825
  %v4921 = vpack.c.b16 %v3831, %v3826
  %v4922 = vpack.c.b16 %v3832, %v3827
  %v4923 = vpack.c.b16 %v3833, %v3828
  %v4924 = vpack.c.b16 %v3839, %v3834
  %v4925 = vpack.c.b16 %v3840, %v3835
  %v4926 = vpack.c.b16 %v3841, %v3836
  %v4927 = vpack.c.b16 %v3842, %v3837
  %v4928 = vpack.c.b16 %v3843, %v3838
  %v4929 = vpack.c.b16 %v3849, %v3844
  %v4930 = vpack.c.b16 %v3850, %v3845
  %v4931 = vpack.c.b16 %v3851, %v3846
  %v4932 = vpack.c.b16 %v3852, %v3847
  %v4933 = vpack.c.b16 %v3853, %v3848
  %v4934 = vpack.c.b16 %v3859, %v3854
  %v4935 = vpack.c.b16 %v3860, %v3855
  %v4936 = vpack.c.b16 %v3861, %v3856
  %v4937 = vpack.c.b16 %v3862, %v3857
  %v4938 = vpack.c.b16 %v3863, %v3858
  %v4939 = vpack.c.b16 %v3869, %v3864
  %v4940 = vpack.c.b16 %v3870, %v3865
  %v4941 = vpack.c.b16 %v3871, %v3866
  %v4942 = vpack.c.b16 %v3872, %v3867
  %v4943 = vpack.c.b16 %v3873, %v3868
  %v4944 = vpack.c.b16 %v3879, %v3874
  %v4945 = vpack.c.b16 %v3880, %v3875
  %v4946 = vpack.c.b16 %v3881, %v3876
  %v4947 = vpack.c.b16 %v3882, %v3877
  %v4948 = vpack.c.b16 %v3883, %v3878
  %v4949 = vpack.c.b16 %v3889, %v3884
  %v4950 = vpack.c.b16 %v3890, %v3885
  %v4951 = vpack.c.b16 %v3891, %v3886
  %v4952 = vpack.c.b16 %v3892, %v3887
  %v4953 = vpack.c.b16 %v3893, %v3888
  %v4954 = vpack.c.b16 %v3899, %v3894
  %v4955 = vpack.c.b16 %v3900, %v3895
  %v4956 = vpack.c.b16 %v3901, %v3896
  %v4957 = vpack.c.b16 %v3902, %v3897
  %v4958 = vpack.c.b16 %v3903, %v3898
  %v4959 = vpack.c.b16 %v3909, %v3904
  %v4960 = vpack.c.b16 %v3910, %v3905
  %v4961 = vpack.c.b16 %v3911, %v3906
  %v4962 = vpack.c.b16 %v3912, %v3907
  %v4963 = vpack.c.b16 %v3913, %v3908
  %v4964 = vpack.c.b16 %v3919, %v3914
  %v4965 = vpack.c.b16 %v3920, %v3915
  %v4966 = vpack.c.b16 %v3921, %v3916
  %v4967 = vpack.c.b16 %v3922, %v3917
  %v4968 = vpack.c.b16 %v3923, %v3918
  %v4969 = vpack.c.b16 %v3929, %v3924
  %v4970 = vpack.c.b16 %v3930, %v3925
  %v4971 = vpack.c.b16 %v3931, %v3926
  %v4972 = vpack.c.b16 %v3932, %v3927
  %v4973 = vpack.c.b16 %v3933, %v3928
  %v4974 = vpack.c.b16 %v3939, %v3934
  %v4975 = vpack.c.b16 %v3940, %v3935
  %v4976 = vpack.c.b16 %v3941, %v3936
  %v4977 = vpack.c.b16 %v3942, %v3937
  %v4978 = vpack.c.b16 %v3943, %v3938
  %v4979 = vpack.c.b16 %v3949, %v3944
  %v4980 = vpack.c.b16 %v3950, %v3945
  %v4981 = vpack.c.b16 %v3951, %v3946
  %v4982 = vpack.c.b16 %v3952, %v3947
  %v4983 = vpack.c.b16 %v3953, %v3948
  %v4984 = vpack.c.b16 %v3959, %v3954
  %v4985 = vpack.c.b16 %v3960, %v3955
  %v4986 = vpack.c.b16 %v3961, %v3956
  %v4987 = vpack.c.b16 %v3962, %v3957
  %v4988 = vpack.c.b16 %v3963, %v3958
  %v4989 = vpack.c.b16 %v3969, %v3964
  %v4990 = vpack.c.b16 %v3970, %v3965
  %v4991 = vpack.c.b16 %v3971, %v3966
  %v4992 = vpack.c.b16 %v3972, %v3967
  %v4993 = vpack.c.b16 %v3973, %v3968
  %v4994 = vpack.c.b16 %v3979, %v3974
  %v4995 = vpack.c.b16 %v3980, %v3975
  %v4996 = vpack.c.b16 %v3981, %v3976
  %v4997 = vpack.c.b16 %v3982, %v3977
  %v4998 = vpack.c.b16 %v3983, %v3978
  %v4999 = vpack.c.b16 %v3989, %v3984
  %v5000 = vpack.c.b16 %v3990, %v3985
  %v5001 = vpack.c.b16 %v3991, %v3986
  %v5002 = vpack.c.b16 %v3992, %v3987
  %v5003 = vpack.c.b16 %v3993, %v3988
  %v5004 = vpack.c.b16 %v3999, %v3994
  %v5005 = vpack.c.b16 %v4000, %v3995
  %v5006 = vpack.c.b16 %v4001, %v3996
  %v5007 = vpack.c.b16 %v4002, %v3997
  %v5008 = vpack.c.b16 %v4003, %v3998
  %v5009 = vpack.c.b16 %v4009, %v4004
  %v5010 = vpack.c.b16 %v4010, %v4005
  %v5011 = vpack.c.b16 %v4011, %v4006
  %v5012 = vpack.c.b16 %v4012, %v4007
  %v5013 = vpack.c.b16 %v4013, %v4008
  %v5014 = vpack.c.b16 %v4019, %v4014
  %v5015 = vpack.c.b16 %v4020, %v4015
  %v5016 = vpack.c.b16 %v4021, %v4016
  %v5017 = vpack.c.b16 %v4022, %v4017
  %v5018 = vpack.c.b16 %v4023, %v4018
  %v5019 = vpack.c.b16 %v4029, %v4024
  %v5020 = vpack.c.b16 %v4030, %v4025
  %v5021 = vpack.c.b16 %v4031, %v4026
  %v5022 = vpack.c.b16 %v4032, %v4027
  %v5023 = vpack.c.b16 %v4033, %v4028
  %v5024 = vpack.c.b16 %v4039, %v4034
  %v5025 = vpack.c.b16 %v4040, %v4035
  %v5026 = vpack.c.b16 %v4041, %v4036
  %v5027 = vpack.c.b16 %v4042, %v4037
  %v5028 = vpack.c.b16 %v4043, %v4038
  %v5029 = vpack.c.b16 %v4049, %v4044
  %v5030 = vpack.c.b16 %v4050, %v4045
  %v5031 = vpack.c.b16 %v4051, %v4046
  %v5032 = vpack.c.b16 %v4052, %v4047
  %v5033 = vpack.c.b16 %v4053, %v4048
  %v5034 = vpack.c.b16 %v4059, %v4054
  %v5035 = vpack.c.b16 %v4060, %v4055
  %v5036 = vpack.c.b16 %v4061, %v4056
  %v5037 = vpack.c.b16 %v4062, %v4057
  %v5038 = vpack.c.b16 %v4063, %v4058
  %v5039 = vpack.c.b16 %v4069, %v4064
  %v5040 = vpack.c.b16 %v4070, %v4065
  %v5041 = vpack.c.b16 %v4071, %v4066
  %v5042 = vpack.c.b16 %v4072, %v4067
  %v5043 = vpack.c.b16 %v4073, %v4068
  %v5044 = vpack.c.b16 %v4079, %v4074
  %v5045 = vpack.c.b16 %v4080, %v4075
  %v5046 = vpack.c.b16 %v4081, %v4076
  %v5047 = vpack.c.b16 %v4082, %v4077
  %v5048 = vpack.c.b16 %v4083, %v4078
  %v5049 = vpack.c.b16 %v4089, %v4084
  %v5050 = vpack.c.b16 %v4090, %v4085
  %v5051 = vpack.c.b16 %v4091, %v4086
  %v5052 = vpack.c.b16 %v4092, %v4087
  %v5053 = vpack.c.b16 %v4093, %v4088
  %v5054 = vpack.c.b16 %v4099, %v4094
  %v5055 = vpack.c.b16 %v4100, %v4095
  %v5056 = vpack.c.b16 %v4101, %v4096
  %v5057 = vpack.c.b16 %v4102, %v4097
  %v5058 = vpack.c.b16 %v4103, %v4098
  %v5059 = vpack.c.b16 %v4109, %v4104
  %v5060 = vpack.c.b16 %v4110, %v4105
  %v5061 = vpack.c.b16 %v4111, %v4106
  %v5062 = vpack.c.b16 %v4112, %v4107
  %v5063 = vpack.c.b16 %v4113, %v4108
  %v5064 = vpack.c.b16 %v4119, %v4114
  %v5065 = vpack.c.b16 %v4120, %v4115
  %v5066 = vpack.c.b16 %v4121, %v4116
  %v5067 = vpack.c.b16 %v4122, %v4117
  %v5068 = vpack.c.b16 %v4123, %v4118
  %v5069 = vpack.c.b16 %v4129, %v4124
  %v5070 = vpack.c.b16 %v4130, %v4125
  %v5071 = vpack.c.b16 %v4131, %v4126
  %v5072 = vpack.c.b16 %v4132, %v4127
  %v5073 = vpack.c.b16 %v4133, %v4128
  %v5074 = vpack.c.b16 %v4139, %v4134
  %v5075 = vpack.c.b16 %v4140, %v4135
  %v5076 = vpack.c.b16 %v4141, %v4136
  %v5077 = vpack.c.b16 %v4142, %v4137
  %v5078 = vpack.c.b16 %v4143, %v4138
  %v5079 = vpack.c.b16 %v4149, %v4144
  %v5080 = vpack.c.b16 %v4150, %v4145
  %v5081 = vpack.c.b16 %v4151, %v4146
  %v5082 = vpack.c.b16 %v4152, %v4147
  %v5083 = vpack.c.b16 %v4153, %v4148
  %v5084 = vpack.c.b16 %v4159, %v4154
  %v5085 = vpack.c.b16 %v4160, %v4155
  %v5086 = vpack.c.b16 %v4161, %v4156
  %v5087 = vpack.c.b16 %v4162, %v4157
  %v5088 = vpack.c.b16 %v4163, %v4158
  %v5089 = vpack.c.b16 %v4169, %v4164
  %v5090 = vpack.c.b16 %v4170, %v4165
  %v5091 = vpack.c.b16 %v4171, %v4166
  %v5092 = vpack.c.b16 %v4172, %v4167
  %v5093 = vpack.c.b16 %v4173, %v4168
  %v5094 = vpack.c.b16 %v4179, %v4174
  %v5095 = vpack.c.b16 %v4180, %v4175
  %v5096 = vpack.c.b16 %v4181, %v4176
  %v5097 = vpack.c.b16 %v4182, %v4177
  %v5098 = vpack.c.b16 %v4183, %v4178
  %v5099 = vpack.c.b16 %v4189, %v4184
  %v5100 = vpack.c.b16 %v4190, %v4185
  %v5101 = vpack.c.b16 %v4191, %v4186
  %v5102 = vpack.c.b16 %v4192, %v4187
  %v5103 = vpack.c.b16 %v4193, %v4188
  %v5104 = vpack.c.b16 %v4199, %v4194
  %v5105 = vpack.c.b16 %v4200, %v4195
  %v5106 = vpack.c.b16 %v4201, %v4196
  %v5107 = vpack.c.b16 %v4202, %v4197
  %v5108 = vpack.c.b16 %v4203, %v4198
  %v5109 = vpack.c.b16 %v4209, %v4204
  %v5110 = vpack.c.b16 %v4210, %v4205
  %v5111 = vpack.c.b16 %v4211, %v4206
  %v5112 = vpack.c.b16 %v4212, %v4207
  %v5113 = vpack.c.b16 %v4213, %v4208
  %v5114 = vpack.c.b16 %v4219, %v4214
  %v5115 = vpack.c.b16 %v4220, %v4215
  %v5116 = vpack.c.b16 %v4221, %v4216
  %v5117 = vpack.c.b16 %v4222, %v4217
  %v5118 = vpack.c.b16 %v4223, %v4218
  %v5119 = vpack.c.b16 %v4229, %v4224
  %v5120 = vpack.c.b16 %v4230, %v4225
  %v5121 = vpack.c.b16 %v4231, %v4226
  %v5122 = vpack.c.b16 %v4232, %v4227
  %v5123 = vpack.c.b16 %v4233, %v4228
  %v5124 = vpack.c.b16 %v4239, %v4234
  %v5125 = vpack.c.b16 %v4240, %v4235
  %v5126 = vpack.c.b16 %v4241, %v4236
  %v5127 = vpack.c.b16 %v4242, %v4237
  %v5128 = vpack.c.b16 %v4243, %v4238
  %v5129 = vpack.c.b16 %v4249, %v4244
  %v5130 = vpack.c.b16 %v4250, %v4245
  %v5131 = vpack.c.b16 %v4251, %v4246
  %v5132 = vpack.c.b16 %v4252, %v4247
  %v5133 = vpack.c.b16 %v4253, %v4248
  %v5134 = vpack.c.b16 %v4259, %v4254
  %v5135 = vpack.c.b16 %v4260, %v4255
  %v5136 = vpack.c.b16 %v4261, %v4256
  %v5137 = vpack.c.b16 %v4262, %v4257
  %v5138 = vpack.c.b16 %v4263, %v4258
  %v5139 = vpack.c.b16 %v4269, %v4264
  %v5140 = vpack.c.b16 %v4270, %v4265
  %v5141 = vpack.c.b16 %v4271, %v4266
  %v5142 = vpack.c.b16 %v4272, %v4267
  %v5143 = vpack.c.b16 %v4273, %v4268
  %v5144 = vpack.c.b16 %v4279, %v4274
  %v5145 = vpack.c.b16 %v4280, %v4275
  %v5146 = vpack.c.b16 %v4281, %v4276
  %v5147 = vpack.c.b16 %v4282, %v4277
  %v5148 = vpack.c.b16 %v4283, %v4278
  %v5149 = vpack.c.b16 %v4289, %v4284
  %v5150 = vpack.c.b16 %v4290, %v4285
  %v5151 = vpack.c.b16 %v4291, %v4286
  %v5152 = vpack.c.b16 %v4292, %v4287
  %v5153 = vpack.c.b16 %v4293, %v4288
  %v5154 = vpack.c.b16 %v4299, %v4294
  %v5155 = vpack.c.b16 %v4300, %v4295
  %v5156 = vpack.c.b16 %v4301, %v4296
  %v5157 = vpack.c.b16 %v4302, %v4297
  %v5158 = vpack.c.b16 %v4303, %v4298
  %v5159 = vpack.c.b16 %v4309, %v4304
  %v5160 = vpack.c.b16 %v4310, %v4305
  %v5161 = vpack.c.b16 %v4311, %v4306
  %v5162 = vpack.c.b16 %v4312, %v4307
  %v5163 = vpack.c.b16 %v4313, %v4308
  %v5164 = vpack.c.b16 %v4319, %v4314
  %v5165 = vpack.c.b16 %v4320, %v4315
  %v5166 = vpack.c.b16 %v4321, %v4316
  %v5167 = vpack.c.b16 %v4322, %v4317
  %v5168 = vpack.c.b16 %v4323, %v4318
  %v5169 = vpack.c.b16 %v4329, %v4324
  %v5170 = vpack.c.b16 %v4330, %v4325
  %v5171 = vpack.c.b16 %v4331, %v4326
  %v5172 = vpack.c.b16 %v4332, %v4327
  %v5173 = vpack.c.b16 %v4333, %v4328
  %v5174 = vpack.c.b16 %v4339, %v4334
  %v5175 = vpack.c.b16 %v4340, %v4335
  %v5176 = vpack.c.b16 %v4341, %v4336
  %v5177 = vpack.c.b16 %v4342, %v4337
  %v5178 = vpack.c.b16 %v4343, %v4338
  %v5179 = vpack.c.b16 %v4349, %v4344
  %v5180 = vpack.c.b16 %v4350, %v4345
  %v5181 = vpack.c.b16 %v4351, %v4346
  %v5182 = vpack.c.b16 %v4352, %v4347
  %v5183 = vpack.c.b16 %v4353, %v4348
  %vm6009 = vcmask 777216
  %v6011 = vsel %vm6009, %v689, 0
  %vm6013 = vcmask 1046528
  %vm6014 = vcmask 1047552
  %v6015 = vsel %vm6013, 4294967295, 65535
  %v6016 = vsel %vm6014, %v6015, 0
  %v6018 = vand.u32 %v5179, %v6016
  %v6021 = vand.u32 %v5180, %v6016
  %v6024 = vand.u32 %v5181, %v6016
  %v6027 = vand.u32 %v5182, %v6016
  %v6030 = vand.u32 %v5183, %v6016
  %6032 = vmatpush.bf16.msra.mxu0 %v4389
  %6033 = vmatpush.bf16.msra.mxu0 %v4384
  %6034 = vmatpush.bf16.msra.mxu0 %v4379
  %6035 = vmatpush.bf16.msra.mxu0 %v4374
  %6036 = vmatpush.bf16.msra.mxu0 %v4369
  %6037 = vmatpush.bf16.msra.mxu0 %v4364
  %6038 = vmatpush.bf16.msra.mxu0 %v4359
  %6039 = vmatpush.bf16.msra.mxu0 %v4354
  %6040 = vmatmul.bf16.gmra.mxu0 %v669
  %v6041 = vpop.f32.mrf.mxu0
  %v6042 = vadd.f32 %v1688, %v6041
  %v6043 = vpop.f32.mrf.mxu0
  %6044 = vdwg.mxu0
  %6045 = vmatpush.bf16.msra.mxu0 %v4429
  %6046 = vmatpush.bf16.msra.mxu0 %v4424
  %6047 = vmatpush.bf16.msra.mxu0 %v4419
  %6048 = vmatpush.bf16.msra.mxu0 %v4414
  %6049 = vmatpush.bf16.msra.mxu0 %v4409
  %6050 = vmatpush.bf16.msra.mxu0 %v4404
  %6051 = vmatpush.bf16.msra.mxu0 %v4399
  %6052 = vmatpush.bf16.msra.mxu0 %v4394
  %6053 = vmatmul.bf16.gmra.mxu0 %v670
  %v6054 = vpop.f32.mrf.mxu0
  %v6055 = vadd.f32 %v6042, %v6054
  %v6056 = vpop.f32.mrf.mxu0
  %6057 = vdwg.mxu0
  %6058 = vmatpush.bf16.msra.mxu0 %v4469
  %6059 = vmatpush.bf16.msra.mxu0 %v4464
  %6060 = vmatpush.bf16.msra.mxu0 %v4459
  %6061 = vmatpush.bf16.msra.mxu0 %v4454
  %6062 = vmatpush.bf16.msra.mxu0 %v4449
  %6063 = vmatpush.bf16.msra.mxu0 %v4444
  %6064 = vmatpush.bf16.msra.mxu0 %v4439
  %6065 = vmatpush.bf16.msra.mxu0 %v4434
  %6066 = vmatmul.bf16.gmra.mxu0 %v671
  %v6067 = vpop.f32.mrf.mxu0
  %v6068 = vadd.f32 %v6055, %v6067
  %v6069 = vpop.f32.mrf.mxu0
  %6070 = vdwg.mxu0
  %6071 = vmatpush.bf16.msra.mxu0 %v4509
  %6072 = vmatpush.bf16.msra.mxu0 %v4504
  %6073 = vmatpush.bf16.msra.mxu0 %v4499
  %6074 = vmatpush.bf16.msra.mxu0 %v4494
  %6075 = vmatpush.bf16.msra.mxu0 %v4489
  %6076 = vmatpush.bf16.msra.mxu0 %v4484
  %6077 = vmatpush.bf16.msra.mxu0 %v4479
  %6078 = vmatpush.bf16.msra.mxu0 %v4474
  %6079 = vmatmul.bf16.gmra.mxu0 %v672
  %v6080 = vpop.f32.mrf.mxu0
  %v6081 = vadd.f32 %v6068, %v6080
  %v6082 = vpop.f32.mrf.mxu0
  %6083 = vdwg.mxu0
  %6084 = vmatpush.bf16.msra.mxu0 %v4549
  %6085 = vmatpush.bf16.msra.mxu0 %v4544
  %6086 = vmatpush.bf16.msra.mxu0 %v4539
  %6087 = vmatpush.bf16.msra.mxu0 %v4534
  %6088 = vmatpush.bf16.msra.mxu0 %v4529
  %6089 = vmatpush.bf16.msra.mxu0 %v4524
  %6090 = vmatpush.bf16.msra.mxu0 %v4519
  %6091 = vmatpush.bf16.msra.mxu0 %v4514
  %6092 = vmatmul.bf16.gmra.mxu0 %v673
  %v6093 = vpop.f32.mrf.mxu0
  %v6094 = vadd.f32 %v6081, %v6093
  %v6095 = vpop.f32.mrf.mxu0
  %6096 = vdwg.mxu0
  %6097 = vmatpush.bf16.msra.mxu0 %v4589
  %6098 = vmatpush.bf16.msra.mxu0 %v4584
  %6099 = vmatpush.bf16.msra.mxu0 %v4579
  %6100 = vmatpush.bf16.msra.mxu0 %v4574
  %6101 = vmatpush.bf16.msra.mxu0 %v4569
  %6102 = vmatpush.bf16.msra.mxu0 %v4564
  %6103 = vmatpush.bf16.msra.mxu0 %v4559
  %6104 = vmatpush.bf16.msra.mxu0 %v4554
  %6105 = vmatmul.bf16.gmra.mxu0 %v674
  %v6106 = vpop.f32.mrf.mxu0
  %v6107 = vadd.f32 %v6094, %v6106
  %v6108 = vpop.f32.mrf.mxu0
  %6109 = vdwg.mxu0
  %6110 = vmatpush.bf16.msra.mxu0 %v4629
  %6111 = vmatpush.bf16.msra.mxu0 %v4624
  %6112 = vmatpush.bf16.msra.mxu0 %v4619
  %6113 = vmatpush.bf16.msra.mxu0 %v4614
  %6114 = vmatpush.bf16.msra.mxu0 %v4609
  %6115 = vmatpush.bf16.msra.mxu0 %v4604
  %6116 = vmatpush.bf16.msra.mxu0 %v4599
  %6117 = vmatpush.bf16.msra.mxu0 %v4594
  %6118 = vmatmul.bf16.gmra.mxu0 %v675
  %v6119 = vpop.f32.mrf.mxu0
  %v6120 = vadd.f32 %v6107, %v6119
  %v6121 = vpop.f32.mrf.mxu0
  %6122 = vdwg.mxu0
  %6123 = vmatpush.bf16.msra.mxu0 %v4669
  %6124 = vmatpush.bf16.msra.mxu0 %v4664
  %6125 = vmatpush.bf16.msra.mxu0 %v4659
  %6126 = vmatpush.bf16.msra.mxu0 %v4654
  %6127 = vmatpush.bf16.msra.mxu0 %v4649
  %6128 = vmatpush.bf16.msra.mxu0 %v4644
  %6129 = vmatpush.bf16.msra.mxu0 %v4639
  %6130 = vmatpush.bf16.msra.mxu0 %v4634
  %6131 = vmatmul.bf16.gmra.mxu0 %v676
  %v6132 = vpop.f32.mrf.mxu0
  %v6133 = vadd.f32 %v6120, %v6132
  %v6134 = vpop.f32.mrf.mxu0
  %6135 = vdwg.mxu0
  %6136 = vmatpush.bf16.msra.mxu0 %v4709
  %6137 = vmatpush.bf16.msra.mxu0 %v4704
  %6138 = vmatpush.bf16.msra.mxu0 %v4699
  %6139 = vmatpush.bf16.msra.mxu0 %v4694
  %6140 = vmatpush.bf16.msra.mxu0 %v4689
  %6141 = vmatpush.bf16.msra.mxu0 %v4684
  %6142 = vmatpush.bf16.msra.mxu0 %v4679
  %6143 = vmatpush.bf16.msra.mxu0 %v4674
  %6144 = vmatmul.bf16.gmra.mxu0 %v677
  %v6145 = vpop.f32.mrf.mxu0
  %v6146 = vadd.f32 %v6133, %v6145
  %v6147 = vpop.f32.mrf.mxu0
  %6148 = vdwg.mxu0
  %6149 = vmatpush.bf16.msra.mxu0 %v4749
  %6150 = vmatpush.bf16.msra.mxu0 %v4744
  %6151 = vmatpush.bf16.msra.mxu0 %v4739
  %6152 = vmatpush.bf16.msra.mxu0 %v4734
  %6153 = vmatpush.bf16.msra.mxu0 %v4729
  %6154 = vmatpush.bf16.msra.mxu0 %v4724
  %6155 = vmatpush.bf16.msra.mxu0 %v4719
  %6156 = vmatpush.bf16.msra.mxu0 %v4714
  %6157 = vmatmul.bf16.gmra.mxu0 %v678
  %v6158 = vpop.f32.mrf.mxu0
  %v6159 = vadd.f32 %v6146, %v6158
  %v6160 = vpop.f32.mrf.mxu0
  %6161 = vdwg.mxu0
  %6162 = vmatpush.bf16.msra.mxu0 %v4789
  %6163 = vmatpush.bf16.msra.mxu0 %v4784
  %6164 = vmatpush.bf16.msra.mxu0 %v4779
  %6165 = vmatpush.bf16.msra.mxu0 %v4774
  %6166 = vmatpush.bf16.msra.mxu0 %v4769
  %6167 = vmatpush.bf16.msra.mxu0 %v4764
  %6168 = vmatpush.bf16.msra.mxu0 %v4759
  %6169 = vmatpush.bf16.msra.mxu0 %v4754
  %6170 = vmatmul.bf16.gmra.mxu0 %v679
  %v6171 = vpop.f32.mrf.mxu0
  %v6172 = vadd.f32 %v6159, %v6171
  %v6173 = vpop.f32.mrf.mxu0
  %6174 = vdwg.mxu0
  %6175 = vmatpush.bf16.msra.mxu0 %v4829
  %6176 = vmatpush.bf16.msra.mxu0 %v4824
  %6177 = vmatpush.bf16.msra.mxu0 %v4819
  %6178 = vmatpush.bf16.msra.mxu0 %v4814
  %6179 = vmatpush.bf16.msra.mxu0 %v4809
  %6180 = vmatpush.bf16.msra.mxu0 %v4804
  %6181 = vmatpush.bf16.msra.mxu0 %v4799
  %6182 = vmatpush.bf16.msra.mxu0 %v4794
  %6183 = vmatmul.bf16.gmra.mxu0 %v680
  %v6184 = vpop.f32.mrf.mxu0
  %v6185 = vadd.f32 %v6172, %v6184
  %v6186 = vpop.f32.mrf.mxu0
  %6187 = vdwg.mxu0
  %6188 = vmatpush.bf16.msra.mxu0 %v4869
  %6189 = vmatpush.bf16.msra.mxu0 %v4864
  %6190 = vmatpush.bf16.msra.mxu0 %v4859
  %6191 = vmatpush.bf16.msra.mxu0 %v4854
  %6192 = vmatpush.bf16.msra.mxu0 %v4849
  %6193 = vmatpush.bf16.msra.mxu0 %v4844
  %6194 = vmatpush.bf16.msra.mxu0 %v4839
  %6195 = vmatpush.bf16.msra.mxu0 %v4834
  %6196 = vmatmul.bf16.gmra.mxu0 %v681
  %v6197 = vpop.f32.mrf.mxu0
  %v6198 = vadd.f32 %v6185, %v6197
  %v6199 = vpop.f32.mrf.mxu0
  %6200 = vdwg.mxu0
  %6201 = vmatpush.bf16.msra.mxu0 %v4909
  %6202 = vmatpush.bf16.msra.mxu0 %v4904
  %6203 = vmatpush.bf16.msra.mxu0 %v4899
  %6204 = vmatpush.bf16.msra.mxu0 %v4894
  %6205 = vmatpush.bf16.msra.mxu0 %v4889
  %6206 = vmatpush.bf16.msra.mxu0 %v4884
  %6207 = vmatpush.bf16.msra.mxu0 %v4879
  %6208 = vmatpush.bf16.msra.mxu0 %v4874
  %6209 = vmatmul.bf16.gmra.mxu0 %v682
  %v6210 = vpop.f32.mrf.mxu0
  %v6211 = vadd.f32 %v6198, %v6210
  %v6212 = vpop.f32.mrf.mxu0
  %6213 = vdwg.mxu0
  %6214 = vmatpush.bf16.msra.mxu0 %v4949
  %6215 = vmatpush.bf16.msra.mxu0 %v4944
  %6216 = vmatpush.bf16.msra.mxu0 %v4939
  %6217 = vmatpush.bf16.msra.mxu0 %v4934
  %6218 = vmatpush.bf16.msra.mxu0 %v4929
  %6219 = vmatpush.bf16.msra.mxu0 %v4924
  %6220 = vmatpush.bf16.msra.mxu0 %v4919
  %6221 = vmatpush.bf16.msra.mxu0 %v4914
  %6222 = vmatmul.bf16.gmra.mxu0 %v683
  %v6223 = vpop.f32.mrf.mxu0
  %v6224 = vadd.f32 %v6211, %v6223
  %v6225 = vpop.f32.mrf.mxu0
  %6226 = vdwg.mxu0
  %6227 = vmatpush.bf16.msra.mxu0 %v4989
  %6228 = vmatpush.bf16.msra.mxu0 %v4984
  %6229 = vmatpush.bf16.msra.mxu0 %v4979
  %6230 = vmatpush.bf16.msra.mxu0 %v4974
  %6231 = vmatpush.bf16.msra.mxu0 %v4969
  %6232 = vmatpush.bf16.msra.mxu0 %v4964
  %6233 = vmatpush.bf16.msra.mxu0 %v4959
  %6234 = vmatpush.bf16.msra.mxu0 %v4954
  %6235 = vmatmul.bf16.gmra.mxu0 %v684
  %v6236 = vpop.f32.mrf.mxu0
  %v6237 = vadd.f32 %v6224, %v6236
  %v6238 = vpop.f32.mrf.mxu0
  %6239 = vdwg.mxu0
  %6240 = vmatpush.bf16.msra.mxu0 %v5029
  %6241 = vmatpush.bf16.msra.mxu0 %v5024
  %6242 = vmatpush.bf16.msra.mxu0 %v5019
  %6243 = vmatpush.bf16.msra.mxu0 %v5014
  %6244 = vmatpush.bf16.msra.mxu0 %v5009
  %6245 = vmatpush.bf16.msra.mxu0 %v5004
  %6246 = vmatpush.bf16.msra.mxu0 %v4999
  %6247 = vmatpush.bf16.msra.mxu0 %v4994
  %6248 = vmatmul.bf16.gmra.mxu0 %v685
  %v6249 = vpop.f32.mrf.mxu0
  %v6250 = vadd.f32 %v6237, %v6249
  %v6251 = vpop.f32.mrf.mxu0
  %6252 = vdwg.mxu0
  %6253 = vmatpush.bf16.msra.mxu0 %v5069
  %6254 = vmatpush.bf16.msra.mxu0 %v5064
  %6255 = vmatpush.bf16.msra.mxu0 %v5059
  %6256 = vmatpush.bf16.msra.mxu0 %v5054
  %6257 = vmatpush.bf16.msra.mxu0 %v5049
  %6258 = vmatpush.bf16.msra.mxu0 %v5044
  %6259 = vmatpush.bf16.msra.mxu0 %v5039
  %6260 = vmatpush.bf16.msra.mxu0 %v5034
  %6261 = vmatmul.bf16.gmra.mxu0 %v686
  %v6262 = vpop.f32.mrf.mxu0
  %v6263 = vadd.f32 %v6250, %v6262
  %v6264 = vpop.f32.mrf.mxu0
  %6265 = vdwg.mxu0
  %6266 = vmatpush.bf16.msra.mxu0 %v5109
  %6267 = vmatpush.bf16.msra.mxu0 %v5104
  %6268 = vmatpush.bf16.msra.mxu0 %v5099
  %6269 = vmatpush.bf16.msra.mxu0 %v5094
  %6270 = vmatpush.bf16.msra.mxu0 %v5089
  %6271 = vmatpush.bf16.msra.mxu0 %v5084
  %6272 = vmatpush.bf16.msra.mxu0 %v5079
  %6273 = vmatpush.bf16.msra.mxu0 %v5074
  %6274 = vmatmul.bf16.gmra.mxu0 %v687
  %v6275 = vpop.f32.mrf.mxu0
  %v6276 = vadd.f32 %v6263, %v6275
  %v6277 = vpop.f32.mrf.mxu0
  %6278 = vdwg.mxu0
  %6279 = vmatpush.bf16.msra.mxu0 %v5149
  %6280 = vmatpush.bf16.msra.mxu0 %v5144
  %6281 = vmatpush.bf16.msra.mxu0 %v5139
  %6282 = vmatpush.bf16.msra.mxu0 %v5134
  %6283 = vmatpush.bf16.msra.mxu0 %v5129
  %6284 = vmatpush.bf16.msra.mxu0 %v5124
  %6285 = vmatpush.bf16.msra.mxu0 %v5119
  %6286 = vmatpush.bf16.msra.mxu0 %v5114
  %6287 = vmatmul.bf16.gmra.mxu0 %v688
  %v6288 = vpop.f32.mrf.mxu0
  %v6289 = vadd.f32 %v6276, %v6288
  %v6290 = vpop.f32.mrf.mxu0
  %6291 = vdwg.mxu0
  %6292 = vmatpush.bf16.msra.mxu0 0
  %6293 = vmatpush.bf16.msra.mxu0 0
  %6294 = vmatpush.bf16.msra.mxu0 %v6018
  %6295 = vmatpush.bf16.msra.mxu0 %v5174
  %6296 = vmatpush.bf16.msra.mxu0 %v5169
  %6297 = vmatpush.bf16.msra.mxu0 %v5164
  %6298 = vmatpush.bf16.msra.mxu0 %v5159
  %6299 = vmatpush.bf16.msra.mxu0 %v5154
  %6300 = vmatmul.bf16.gmra.mxu0 %v6011
  %v6301 = vpop.f32.mrf.mxu0
  %v6302 = vadd.f32 %v6289, %v6301
  %v6303 = vpop.f32.mrf.mxu0
  %6304 = vdwg.mxu0
  %6305 = vmatpush.bf16.msra.mxu0 %v4390
  %6306 = vmatpush.bf16.msra.mxu0 %v4385
  %6307 = vmatpush.bf16.msra.mxu0 %v4380
  %6308 = vmatpush.bf16.msra.mxu0 %v4375
  %6309 = vmatpush.bf16.msra.mxu0 %v4370
  %6310 = vmatpush.bf16.msra.mxu0 %v4365
  %6311 = vmatpush.bf16.msra.mxu0 %v4360
  %6312 = vmatpush.bf16.msra.mxu0 %v4355
  %6313 = vmatmul.bf16.gmra.mxu0 %v669
  %v6314 = vpop.f32.mrf.mxu0
  %v6315 = vadd.f32 %v1689, %v6314
  %v6316 = vpop.f32.mrf.mxu0
  %6317 = vdwg.mxu0
  %6318 = vmatpush.bf16.msra.mxu0 %v4430
  %6319 = vmatpush.bf16.msra.mxu0 %v4425
  %6320 = vmatpush.bf16.msra.mxu0 %v4420
  %6321 = vmatpush.bf16.msra.mxu0 %v4415
  %6322 = vmatpush.bf16.msra.mxu0 %v4410
  %6323 = vmatpush.bf16.msra.mxu0 %v4405
  %6324 = vmatpush.bf16.msra.mxu0 %v4400
  %6325 = vmatpush.bf16.msra.mxu0 %v4395
  %6326 = vmatmul.bf16.gmra.mxu0 %v670
  %v6327 = vpop.f32.mrf.mxu0
  %v6328 = vadd.f32 %v6315, %v6327
  %v6329 = vpop.f32.mrf.mxu0
  %6330 = vdwg.mxu0
  %6331 = vmatpush.bf16.msra.mxu0 %v4470
  %6332 = vmatpush.bf16.msra.mxu0 %v4465
  %6333 = vmatpush.bf16.msra.mxu0 %v4460
  %6334 = vmatpush.bf16.msra.mxu0 %v4455
  %6335 = vmatpush.bf16.msra.mxu0 %v4450
  %6336 = vmatpush.bf16.msra.mxu0 %v4445
  %6337 = vmatpush.bf16.msra.mxu0 %v4440
  %6338 = vmatpush.bf16.msra.mxu0 %v4435
  %6339 = vmatmul.bf16.gmra.mxu0 %v671
  %v6340 = vpop.f32.mrf.mxu0
  %v6341 = vadd.f32 %v6328, %v6340
  %v6342 = vpop.f32.mrf.mxu0
  %6343 = vdwg.mxu0
  %6344 = vmatpush.bf16.msra.mxu0 %v4510
  %6345 = vmatpush.bf16.msra.mxu0 %v4505
  %6346 = vmatpush.bf16.msra.mxu0 %v4500
  %6347 = vmatpush.bf16.msra.mxu0 %v4495
  %6348 = vmatpush.bf16.msra.mxu0 %v4490
  %6349 = vmatpush.bf16.msra.mxu0 %v4485
  %6350 = vmatpush.bf16.msra.mxu0 %v4480
  %6351 = vmatpush.bf16.msra.mxu0 %v4475
  %6352 = vmatmul.bf16.gmra.mxu0 %v672
  %v6353 = vpop.f32.mrf.mxu0
  %v6354 = vadd.f32 %v6341, %v6353
  %v6355 = vpop.f32.mrf.mxu0
  %6356 = vdwg.mxu0
  %6357 = vmatpush.bf16.msra.mxu0 %v4550
  %6358 = vmatpush.bf16.msra.mxu0 %v4545
  %6359 = vmatpush.bf16.msra.mxu0 %v4540
  %6360 = vmatpush.bf16.msra.mxu0 %v4535
  %6361 = vmatpush.bf16.msra.mxu0 %v4530
  %6362 = vmatpush.bf16.msra.mxu0 %v4525
  %6363 = vmatpush.bf16.msra.mxu0 %v4520
  %6364 = vmatpush.bf16.msra.mxu0 %v4515
  %6365 = vmatmul.bf16.gmra.mxu0 %v673
  %v6366 = vpop.f32.mrf.mxu0
  %v6367 = vadd.f32 %v6354, %v6366
  %v6368 = vpop.f32.mrf.mxu0
  %6369 = vdwg.mxu0
  %6370 = vmatpush.bf16.msra.mxu0 %v4590
  %6371 = vmatpush.bf16.msra.mxu0 %v4585
  %6372 = vmatpush.bf16.msra.mxu0 %v4580
  %6373 = vmatpush.bf16.msra.mxu0 %v4575
  %6374 = vmatpush.bf16.msra.mxu0 %v4570
  %6375 = vmatpush.bf16.msra.mxu0 %v4565
  %6376 = vmatpush.bf16.msra.mxu0 %v4560
  %6377 = vmatpush.bf16.msra.mxu0 %v4555
  %6378 = vmatmul.bf16.gmra.mxu0 %v674
  %v6379 = vpop.f32.mrf.mxu0
  %v6380 = vadd.f32 %v6367, %v6379
  %v6381 = vpop.f32.mrf.mxu0
  %6382 = vdwg.mxu0
  %6383 = vmatpush.bf16.msra.mxu0 %v4630
  %6384 = vmatpush.bf16.msra.mxu0 %v4625
  %6385 = vmatpush.bf16.msra.mxu0 %v4620
  %6386 = vmatpush.bf16.msra.mxu0 %v4615
  %6387 = vmatpush.bf16.msra.mxu0 %v4610
  %6388 = vmatpush.bf16.msra.mxu0 %v4605
  %6389 = vmatpush.bf16.msra.mxu0 %v4600
  %6390 = vmatpush.bf16.msra.mxu0 %v4595
  %6391 = vmatmul.bf16.gmra.mxu0 %v675
  %v6392 = vpop.f32.mrf.mxu0
  %v6393 = vadd.f32 %v6380, %v6392
  %v6394 = vpop.f32.mrf.mxu0
  %6395 = vdwg.mxu0
  %6396 = vmatpush.bf16.msra.mxu0 %v4670
  %6397 = vmatpush.bf16.msra.mxu0 %v4665
  %6398 = vmatpush.bf16.msra.mxu0 %v4660
  %6399 = vmatpush.bf16.msra.mxu0 %v4655
  %6400 = vmatpush.bf16.msra.mxu0 %v4650
  %6401 = vmatpush.bf16.msra.mxu0 %v4645
  %6402 = vmatpush.bf16.msra.mxu0 %v4640
  %6403 = vmatpush.bf16.msra.mxu0 %v4635
  %6404 = vmatmul.bf16.gmra.mxu0 %v676
  %v6405 = vpop.f32.mrf.mxu0
  %v6406 = vadd.f32 %v6393, %v6405
  %v6407 = vpop.f32.mrf.mxu0
  %6408 = vdwg.mxu0
  %6409 = vmatpush.bf16.msra.mxu0 %v4710
  %6410 = vmatpush.bf16.msra.mxu0 %v4705
  %6411 = vmatpush.bf16.msra.mxu0 %v4700
  %6412 = vmatpush.bf16.msra.mxu0 %v4695
  %6413 = vmatpush.bf16.msra.mxu0 %v4690
  %6414 = vmatpush.bf16.msra.mxu0 %v4685
  %6415 = vmatpush.bf16.msra.mxu0 %v4680
  %6416 = vmatpush.bf16.msra.mxu0 %v4675
  %6417 = vmatmul.bf16.gmra.mxu0 %v677
  %v6418 = vpop.f32.mrf.mxu0
  %v6419 = vadd.f32 %v6406, %v6418
  %v6420 = vpop.f32.mrf.mxu0
  %6421 = vdwg.mxu0
  %6422 = vmatpush.bf16.msra.mxu0 %v4750
  %6423 = vmatpush.bf16.msra.mxu0 %v4745
  %6424 = vmatpush.bf16.msra.mxu0 %v4740
  %6425 = vmatpush.bf16.msra.mxu0 %v4735
  %6426 = vmatpush.bf16.msra.mxu0 %v4730
  %6427 = vmatpush.bf16.msra.mxu0 %v4725
  %6428 = vmatpush.bf16.msra.mxu0 %v4720
  %6429 = vmatpush.bf16.msra.mxu0 %v4715
  %6430 = vmatmul.bf16.gmra.mxu0 %v678
  %v6431 = vpop.f32.mrf.mxu0
  %v6432 = vadd.f32 %v6419, %v6431
  %v6433 = vpop.f32.mrf.mxu0
  %6434 = vdwg.mxu0
  %6435 = vmatpush.bf16.msra.mxu0 %v4790
  %6436 = vmatpush.bf16.msra.mxu0 %v4785
  %6437 = vmatpush.bf16.msra.mxu0 %v4780
  %6438 = vmatpush.bf16.msra.mxu0 %v4775
  %6439 = vmatpush.bf16.msra.mxu0 %v4770
  %6440 = vmatpush.bf16.msra.mxu0 %v4765
  %6441 = vmatpush.bf16.msra.mxu0 %v4760
  %6442 = vmatpush.bf16.msra.mxu0 %v4755
  %6443 = vmatmul.bf16.gmra.mxu0 %v679
  %v6444 = vpop.f32.mrf.mxu0
  %v6445 = vadd.f32 %v6432, %v6444
  %v6446 = vpop.f32.mrf.mxu0
  %6447 = vdwg.mxu0
  %6448 = vmatpush.bf16.msra.mxu0 %v4830
  %6449 = vmatpush.bf16.msra.mxu0 %v4825
  %6450 = vmatpush.bf16.msra.mxu0 %v4820
  %6451 = vmatpush.bf16.msra.mxu0 %v4815
  %6452 = vmatpush.bf16.msra.mxu0 %v4810
  %6453 = vmatpush.bf16.msra.mxu0 %v4805
  %6454 = vmatpush.bf16.msra.mxu0 %v4800
  %6455 = vmatpush.bf16.msra.mxu0 %v4795
  %6456 = vmatmul.bf16.gmra.mxu0 %v680
  %v6457 = vpop.f32.mrf.mxu0
  %v6458 = vadd.f32 %v6445, %v6457
  %v6459 = vpop.f32.mrf.mxu0
  %6460 = vdwg.mxu0
  %6461 = vmatpush.bf16.msra.mxu0 %v4870
  %6462 = vmatpush.bf16.msra.mxu0 %v4865
  %6463 = vmatpush.bf16.msra.mxu0 %v4860
  %6464 = vmatpush.bf16.msra.mxu0 %v4855
  %6465 = vmatpush.bf16.msra.mxu0 %v4850
  %6466 = vmatpush.bf16.msra.mxu0 %v4845
  %6467 = vmatpush.bf16.msra.mxu0 %v4840
  %6468 = vmatpush.bf16.msra.mxu0 %v4835
  %6469 = vmatmul.bf16.gmra.mxu0 %v681
  %v6470 = vpop.f32.mrf.mxu0
  %v6471 = vadd.f32 %v6458, %v6470
  %v6472 = vpop.f32.mrf.mxu0
  %6473 = vdwg.mxu0
  %6474 = vmatpush.bf16.msra.mxu0 %v4910
  %6475 = vmatpush.bf16.msra.mxu0 %v4905
  %6476 = vmatpush.bf16.msra.mxu0 %v4900
  %6477 = vmatpush.bf16.msra.mxu0 %v4895
  %6478 = vmatpush.bf16.msra.mxu0 %v4890
  %6479 = vmatpush.bf16.msra.mxu0 %v4885
  %6480 = vmatpush.bf16.msra.mxu0 %v4880
  %6481 = vmatpush.bf16.msra.mxu0 %v4875
  %6482 = vmatmul.bf16.gmra.mxu0 %v682
  %v6483 = vpop.f32.mrf.mxu0
  %v6484 = vadd.f32 %v6471, %v6483
  %v6485 = vpop.f32.mrf.mxu0
  %6486 = vdwg.mxu0
  %6487 = vmatpush.bf16.msra.mxu0 %v4950
  %6488 = vmatpush.bf16.msra.mxu0 %v4945
  %6489 = vmatpush.bf16.msra.mxu0 %v4940
  %6490 = vmatpush.bf16.msra.mxu0 %v4935
  %6491 = vmatpush.bf16.msra.mxu0 %v4930
  %6492 = vmatpush.bf16.msra.mxu0 %v4925
  %6493 = vmatpush.bf16.msra.mxu0 %v4920
  %6494 = vmatpush.bf16.msra.mxu0 %v4915
  %6495 = vmatmul.bf16.gmra.mxu0 %v683
  %v6496 = vpop.f32.mrf.mxu0
  %v6497 = vadd.f32 %v6484, %v6496
  %v6498 = vpop.f32.mrf.mxu0
  %6499 = vdwg.mxu0
  %6500 = vmatpush.bf16.msra.mxu0 %v4990
  %6501 = vmatpush.bf16.msra.mxu0 %v4985
  %6502 = vmatpush.bf16.msra.mxu0 %v4980
  %6503 = vmatpush.bf16.msra.mxu0 %v4975
  %6504 = vmatpush.bf16.msra.mxu0 %v4970
  %6505 = vmatpush.bf16.msra.mxu0 %v4965
  %6506 = vmatpush.bf16.msra.mxu0 %v4960
  %6507 = vmatpush.bf16.msra.mxu0 %v4955
  %6508 = vmatmul.bf16.gmra.mxu0 %v684
  %v6509 = vpop.f32.mrf.mxu0
  %v6510 = vadd.f32 %v6497, %v6509
  %v6511 = vpop.f32.mrf.mxu0
  %6512 = vdwg.mxu0
  %6513 = vmatpush.bf16.msra.mxu0 %v5030
  %6514 = vmatpush.bf16.msra.mxu0 %v5025
  %6515 = vmatpush.bf16.msra.mxu0 %v5020
  %6516 = vmatpush.bf16.msra.mxu0 %v5015
  %6517 = vmatpush.bf16.msra.mxu0 %v5010
  %6518 = vmatpush.bf16.msra.mxu0 %v5005
  %6519 = vmatpush.bf16.msra.mxu0 %v5000
  %6520 = vmatpush.bf16.msra.mxu0 %v4995
  %6521 = vmatmul.bf16.gmra.mxu0 %v685
  %v6522 = vpop.f32.mrf.mxu0
  %v6523 = vadd.f32 %v6510, %v6522
  %v6524 = vpop.f32.mrf.mxu0
  %6525 = vdwg.mxu0
  %6526 = vmatpush.bf16.msra.mxu0 %v5070
  %6527 = vmatpush.bf16.msra.mxu0 %v5065
  %6528 = vmatpush.bf16.msra.mxu0 %v5060
  %6529 = vmatpush.bf16.msra.mxu0 %v5055
  %6530 = vmatpush.bf16.msra.mxu0 %v5050
  %6531 = vmatpush.bf16.msra.mxu0 %v5045
  %6532 = vmatpush.bf16.msra.mxu0 %v5040
  %6533 = vmatpush.bf16.msra.mxu0 %v5035
  %6534 = vmatmul.bf16.gmra.mxu0 %v686
  %v6535 = vpop.f32.mrf.mxu0
  %v6536 = vadd.f32 %v6523, %v6535
  %v6537 = vpop.f32.mrf.mxu0
  %6538 = vdwg.mxu0
  %6539 = vmatpush.bf16.msra.mxu0 %v5110
  %6540 = vmatpush.bf16.msra.mxu0 %v5105
  %6541 = vmatpush.bf16.msra.mxu0 %v5100
  %6542 = vmatpush.bf16.msra.mxu0 %v5095
  %6543 = vmatpush.bf16.msra.mxu0 %v5090
  %6544 = vmatpush.bf16.msra.mxu0 %v5085
  %6545 = vmatpush.bf16.msra.mxu0 %v5080
  %6546 = vmatpush.bf16.msra.mxu0 %v5075
  %6547 = vmatmul.bf16.gmra.mxu0 %v687
  %v6548 = vpop.f32.mrf.mxu0
  %v6549 = vadd.f32 %v6536, %v6548
  %v6550 = vpop.f32.mrf.mxu0
  %6551 = vdwg.mxu0
  %6552 = vmatpush.bf16.msra.mxu0 %v5150
  %6553 = vmatpush.bf16.msra.mxu0 %v5145
  %6554 = vmatpush.bf16.msra.mxu0 %v5140
  %6555 = vmatpush.bf16.msra.mxu0 %v5135
  %6556 = vmatpush.bf16.msra.mxu0 %v5130
  %6557 = vmatpush.bf16.msra.mxu0 %v5125
  %6558 = vmatpush.bf16.msra.mxu0 %v5120
  %6559 = vmatpush.bf16.msra.mxu0 %v5115
  %6560 = vmatmul.bf16.gmra.mxu0 %v688
  %v6561 = vpop.f32.mrf.mxu0
  %v6562 = vadd.f32 %v6549, %v6561
  %v6563 = vpop.f32.mrf.mxu0
  %6564 = vdwg.mxu0
  %6565 = vmatpush.bf16.msra.mxu0 0
  %6566 = vmatpush.bf16.msra.mxu0 0
  %6567 = vmatpush.bf16.msra.mxu0 %v6021
  %6568 = vmatpush.bf16.msra.mxu0 %v5175
  %6569 = vmatpush.bf16.msra.mxu0 %v5170
  %6570 = vmatpush.bf16.msra.mxu0 %v5165
  %6571 = vmatpush.bf16.msra.mxu0 %v5160
  %6572 = vmatpush.bf16.msra.mxu0 %v5155
  %6573 = vmatmul.bf16.gmra.mxu0 %v6011
  %v6574 = vpop.f32.mrf.mxu0
  %v6575 = vadd.f32 %v6562, %v6574
  %v6576 = vpop.f32.mrf.mxu0
  %6577 = vdwg.mxu0
  %6578 = vmatpush.bf16.msra.mxu0 %v4391
  %6579 = vmatpush.bf16.msra.mxu0 %v4386
  %6580 = vmatpush.bf16.msra.mxu0 %v4381
  %6581 = vmatpush.bf16.msra.mxu0 %v4376
  %6582 = vmatpush.bf16.msra.mxu0 %v4371
  %6583 = vmatpush.bf16.msra.mxu0 %v4366
  %6584 = vmatpush.bf16.msra.mxu0 %v4361
  %6585 = vmatpush.bf16.msra.mxu0 %v4356
  %6586 = vmatmul.bf16.gmra.mxu0 %v669
  %v6587 = vpop.f32.mrf.mxu0
  %v6588 = vadd.f32 %v1690, %v6587
  %v6589 = vpop.f32.mrf.mxu0
  %6590 = vdwg.mxu0
  %6591 = vmatpush.bf16.msra.mxu0 %v4431
  %6592 = vmatpush.bf16.msra.mxu0 %v4426
  %6593 = vmatpush.bf16.msra.mxu0 %v4421
  %6594 = vmatpush.bf16.msra.mxu0 %v4416
  %6595 = vmatpush.bf16.msra.mxu0 %v4411
  %6596 = vmatpush.bf16.msra.mxu0 %v4406
  %6597 = vmatpush.bf16.msra.mxu0 %v4401
  %6598 = vmatpush.bf16.msra.mxu0 %v4396
  %6599 = vmatmul.bf16.gmra.mxu0 %v670
  %v6600 = vpop.f32.mrf.mxu0
  %v6601 = vadd.f32 %v6588, %v6600
  %v6602 = vpop.f32.mrf.mxu0
  %6603 = vdwg.mxu0
  %6604 = vmatpush.bf16.msra.mxu0 %v4471
  %6605 = vmatpush.bf16.msra.mxu0 %v4466
  %6606 = vmatpush.bf16.msra.mxu0 %v4461
  %6607 = vmatpush.bf16.msra.mxu0 %v4456
  %6608 = vmatpush.bf16.msra.mxu0 %v4451
  %6609 = vmatpush.bf16.msra.mxu0 %v4446
  %6610 = vmatpush.bf16.msra.mxu0 %v4441
  %6611 = vmatpush.bf16.msra.mxu0 %v4436
  %6612 = vmatmul.bf16.gmra.mxu0 %v671
  %v6613 = vpop.f32.mrf.mxu0
  %v6614 = vadd.f32 %v6601, %v6613
  %v6615 = vpop.f32.mrf.mxu0
  %6616 = vdwg.mxu0
  %6617 = vmatpush.bf16.msra.mxu0 %v4511
  %6618 = vmatpush.bf16.msra.mxu0 %v4506
  %6619 = vmatpush.bf16.msra.mxu0 %v4501
  %6620 = vmatpush.bf16.msra.mxu0 %v4496
  %6621 = vmatpush.bf16.msra.mxu0 %v4491
  %6622 = vmatpush.bf16.msra.mxu0 %v4486
  %6623 = vmatpush.bf16.msra.mxu0 %v4481
  %6624 = vmatpush.bf16.msra.mxu0 %v4476
  %6625 = vmatmul.bf16.gmra.mxu0 %v672
  %v6626 = vpop.f32.mrf.mxu0
  %v6627 = vadd.f32 %v6614, %v6626
  %v6628 = vpop.f32.mrf.mxu0
  %6629 = vdwg.mxu0
  %6630 = vmatpush.bf16.msra.mxu0 %v4551
  %6631 = vmatpush.bf16.msra.mxu0 %v4546
  %6632 = vmatpush.bf16.msra.mxu0 %v4541
  %6633 = vmatpush.bf16.msra.mxu0 %v4536
  %6634 = vmatpush.bf16.msra.mxu0 %v4531
  %6635 = vmatpush.bf16.msra.mxu0 %v4526
  %6636 = vmatpush.bf16.msra.mxu0 %v4521
  %6637 = vmatpush.bf16.msra.mxu0 %v4516
  %6638 = vmatmul.bf16.gmra.mxu0 %v673
  %v6639 = vpop.f32.mrf.mxu0
  %v6640 = vadd.f32 %v6627, %v6639
  %v6641 = vpop.f32.mrf.mxu0
  %6642 = vdwg.mxu0
  %6643 = vmatpush.bf16.msra.mxu0 %v4591
  %6644 = vmatpush.bf16.msra.mxu0 %v4586
  %6645 = vmatpush.bf16.msra.mxu0 %v4581
  %6646 = vmatpush.bf16.msra.mxu0 %v4576
  %6647 = vmatpush.bf16.msra.mxu0 %v4571
  %6648 = vmatpush.bf16.msra.mxu0 %v4566
  %6649 = vmatpush.bf16.msra.mxu0 %v4561
  %6650 = vmatpush.bf16.msra.mxu0 %v4556
  %6651 = vmatmul.bf16.gmra.mxu0 %v674
  %v6652 = vpop.f32.mrf.mxu0
  %v6653 = vadd.f32 %v6640, %v6652
  %v6654 = vpop.f32.mrf.mxu0
  %6655 = vdwg.mxu0
  %6656 = vmatpush.bf16.msra.mxu0 %v4631
  %6657 = vmatpush.bf16.msra.mxu0 %v4626
  %6658 = vmatpush.bf16.msra.mxu0 %v4621
  %6659 = vmatpush.bf16.msra.mxu0 %v4616
  %6660 = vmatpush.bf16.msra.mxu0 %v4611
  %6661 = vmatpush.bf16.msra.mxu0 %v4606
  %6662 = vmatpush.bf16.msra.mxu0 %v4601
  %6663 = vmatpush.bf16.msra.mxu0 %v4596
  %6664 = vmatmul.bf16.gmra.mxu0 %v675
  %v6665 = vpop.f32.mrf.mxu0
  %v6666 = vadd.f32 %v6653, %v6665
  %v6667 = vpop.f32.mrf.mxu0
  %6668 = vdwg.mxu0
  %6669 = vmatpush.bf16.msra.mxu0 %v4671
  %6670 = vmatpush.bf16.msra.mxu0 %v4666
  %6671 = vmatpush.bf16.msra.mxu0 %v4661
  %6672 = vmatpush.bf16.msra.mxu0 %v4656
  %6673 = vmatpush.bf16.msra.mxu0 %v4651
  %6674 = vmatpush.bf16.msra.mxu0 %v4646
  %6675 = vmatpush.bf16.msra.mxu0 %v4641
  %6676 = vmatpush.bf16.msra.mxu0 %v4636
  %6677 = vmatmul.bf16.gmra.mxu0 %v676
  %v6678 = vpop.f32.mrf.mxu0
  %v6679 = vadd.f32 %v6666, %v6678
  %v6680 = vpop.f32.mrf.mxu0
  %6681 = vdwg.mxu0
  %6682 = vmatpush.bf16.msra.mxu0 %v4711
  %6683 = vmatpush.bf16.msra.mxu0 %v4706
  %6684 = vmatpush.bf16.msra.mxu0 %v4701
  %6685 = vmatpush.bf16.msra.mxu0 %v4696
  %6686 = vmatpush.bf16.msra.mxu0 %v4691
  %6687 = vmatpush.bf16.msra.mxu0 %v4686
  %6688 = vmatpush.bf16.msra.mxu0 %v4681
  %6689 = vmatpush.bf16.msra.mxu0 %v4676
  %6690 = vmatmul.bf16.gmra.mxu0 %v677
  %v6691 = vpop.f32.mrf.mxu0
  %v6692 = vadd.f32 %v6679, %v6691
  %v6693 = vpop.f32.mrf.mxu0
  %6694 = vdwg.mxu0
  %6695 = vmatpush.bf16.msra.mxu0 %v4751
  %6696 = vmatpush.bf16.msra.mxu0 %v4746
  %6697 = vmatpush.bf16.msra.mxu0 %v4741
  %6698 = vmatpush.bf16.msra.mxu0 %v4736
  %6699 = vmatpush.bf16.msra.mxu0 %v4731
  %6700 = vmatpush.bf16.msra.mxu0 %v4726
  %6701 = vmatpush.bf16.msra.mxu0 %v4721
  %6702 = vmatpush.bf16.msra.mxu0 %v4716
  %6703 = vmatmul.bf16.gmra.mxu0 %v678
  %v6704 = vpop.f32.mrf.mxu0
  %v6705 = vadd.f32 %v6692, %v6704
  %v6706 = vpop.f32.mrf.mxu0
  %6707 = vdwg.mxu0
  %6708 = vmatpush.bf16.msra.mxu0 %v4791
  %6709 = vmatpush.bf16.msra.mxu0 %v4786
  %6710 = vmatpush.bf16.msra.mxu0 %v4781
  %6711 = vmatpush.bf16.msra.mxu0 %v4776
  %6712 = vmatpush.bf16.msra.mxu0 %v4771
  %6713 = vmatpush.bf16.msra.mxu0 %v4766
  %6714 = vmatpush.bf16.msra.mxu0 %v4761
  %6715 = vmatpush.bf16.msra.mxu0 %v4756
  %6716 = vmatmul.bf16.gmra.mxu0 %v679
  %v6717 = vpop.f32.mrf.mxu0
  %v6718 = vadd.f32 %v6705, %v6717
  %v6719 = vpop.f32.mrf.mxu0
  %6720 = vdwg.mxu0
  %6721 = vmatpush.bf16.msra.mxu0 %v4831
  %6722 = vmatpush.bf16.msra.mxu0 %v4826
  %6723 = vmatpush.bf16.msra.mxu0 %v4821
  %6724 = vmatpush.bf16.msra.mxu0 %v4816
  %6725 = vmatpush.bf16.msra.mxu0 %v4811
  %6726 = vmatpush.bf16.msra.mxu0 %v4806
  %6727 = vmatpush.bf16.msra.mxu0 %v4801
  %6728 = vmatpush.bf16.msra.mxu0 %v4796
  %6729 = vmatmul.bf16.gmra.mxu0 %v680
  %v6730 = vpop.f32.mrf.mxu0
  %v6731 = vadd.f32 %v6718, %v6730
  %v6732 = vpop.f32.mrf.mxu0
  %6733 = vdwg.mxu0
  %6734 = vmatpush.bf16.msra.mxu0 %v4871
  %6735 = vmatpush.bf16.msra.mxu0 %v4866
  %6736 = vmatpush.bf16.msra.mxu0 %v4861
  %6737 = vmatpush.bf16.msra.mxu0 %v4856
  %6738 = vmatpush.bf16.msra.mxu0 %v4851
  %6739 = vmatpush.bf16.msra.mxu0 %v4846
  %6740 = vmatpush.bf16.msra.mxu0 %v4841
  %6741 = vmatpush.bf16.msra.mxu0 %v4836
  %6742 = vmatmul.bf16.gmra.mxu0 %v681
  %v6743 = vpop.f32.mrf.mxu0
  %v6744 = vadd.f32 %v6731, %v6743
  %v6745 = vpop.f32.mrf.mxu0
  %6746 = vdwg.mxu0
  %6747 = vmatpush.bf16.msra.mxu0 %v4911
  %6748 = vmatpush.bf16.msra.mxu0 %v4906
  %6749 = vmatpush.bf16.msra.mxu0 %v4901
  %6750 = vmatpush.bf16.msra.mxu0 %v4896
  %6751 = vmatpush.bf16.msra.mxu0 %v4891
  %6752 = vmatpush.bf16.msra.mxu0 %v4886
  %6753 = vmatpush.bf16.msra.mxu0 %v4881
  %6754 = vmatpush.bf16.msra.mxu0 %v4876
  %6755 = vmatmul.bf16.gmra.mxu0 %v682
  %v6756 = vpop.f32.mrf.mxu0
  %v6757 = vadd.f32 %v6744, %v6756
  %v6758 = vpop.f32.mrf.mxu0
  %6759 = vdwg.mxu0
  %6760 = vmatpush.bf16.msra.mxu0 %v4951
  %6761 = vmatpush.bf16.msra.mxu0 %v4946
  %6762 = vmatpush.bf16.msra.mxu0 %v4941
  %6763 = vmatpush.bf16.msra.mxu0 %v4936
  %6764 = vmatpush.bf16.msra.mxu0 %v4931
  %6765 = vmatpush.bf16.msra.mxu0 %v4926
  %6766 = vmatpush.bf16.msra.mxu0 %v4921
  %6767 = vmatpush.bf16.msra.mxu0 %v4916
  %6768 = vmatmul.bf16.gmra.mxu0 %v683
  %v6769 = vpop.f32.mrf.mxu0
  %v6770 = vadd.f32 %v6757, %v6769
  %v6771 = vpop.f32.mrf.mxu0
  %6772 = vdwg.mxu0
  %6773 = vmatpush.bf16.msra.mxu0 %v4991
  %6774 = vmatpush.bf16.msra.mxu0 %v4986
  %6775 = vmatpush.bf16.msra.mxu0 %v4981
  %6776 = vmatpush.bf16.msra.mxu0 %v4976
  %6777 = vmatpush.bf16.msra.mxu0 %v4971
  %6778 = vmatpush.bf16.msra.mxu0 %v4966
  %6779 = vmatpush.bf16.msra.mxu0 %v4961
  %6780 = vmatpush.bf16.msra.mxu0 %v4956
  %6781 = vmatmul.bf16.gmra.mxu0 %v684
  %v6782 = vpop.f32.mrf.mxu0
  %v6783 = vadd.f32 %v6770, %v6782
  %v6784 = vpop.f32.mrf.mxu0
  %6785 = vdwg.mxu0
  %6786 = vmatpush.bf16.msra.mxu0 %v5031
  %6787 = vmatpush.bf16.msra.mxu0 %v5026
  %6788 = vmatpush.bf16.msra.mxu0 %v5021
  %6789 = vmatpush.bf16.msra.mxu0 %v5016
  %6790 = vmatpush.bf16.msra.mxu0 %v5011
  %6791 = vmatpush.bf16.msra.mxu0 %v5006
  %6792 = vmatpush.bf16.msra.mxu0 %v5001
  %6793 = vmatpush.bf16.msra.mxu0 %v4996
  %6794 = vmatmul.bf16.gmra.mxu0 %v685
  %v6795 = vpop.f32.mrf.mxu0
  %v6796 = vadd.f32 %v6783, %v6795
  %v6797 = vpop.f32.mrf.mxu0
  %6798 = vdwg.mxu0
  %6799 = vmatpush.bf16.msra.mxu0 %v5071
  %6800 = vmatpush.bf16.msra.mxu0 %v5066
  %6801 = vmatpush.bf16.msra.mxu0 %v5061
  %6802 = vmatpush.bf16.msra.mxu0 %v5056
  %6803 = vmatpush.bf16.msra.mxu0 %v5051
  %6804 = vmatpush.bf16.msra.mxu0 %v5046
  %6805 = vmatpush.bf16.msra.mxu0 %v5041
  %6806 = vmatpush.bf16.msra.mxu0 %v5036
  %6807 = vmatmul.bf16.gmra.mxu0 %v686
  %v6808 = vpop.f32.mrf.mxu0
  %v6809 = vadd.f32 %v6796, %v6808
  %v6810 = vpop.f32.mrf.mxu0
  %6811 = vdwg.mxu0
  %6812 = vmatpush.bf16.msra.mxu0 %v5111
  %6813 = vmatpush.bf16.msra.mxu0 %v5106
  %6814 = vmatpush.bf16.msra.mxu0 %v5101
  %6815 = vmatpush.bf16.msra.mxu0 %v5096
  %6816 = vmatpush.bf16.msra.mxu0 %v5091
  %6817 = vmatpush.bf16.msra.mxu0 %v5086
  %6818 = vmatpush.bf16.msra.mxu0 %v5081
  %6819 = vmatpush.bf16.msra.mxu0 %v5076
  %6820 = vmatmul.bf16.gmra.mxu0 %v687
  %v6821 = vpop.f32.mrf.mxu0
  %v6822 = vadd.f32 %v6809, %v6821
  %v6823 = vpop.f32.mrf.mxu0
  %6824 = vdwg.mxu0
  %6825 = vmatpush.bf16.msra.mxu0 %v5151
  %6826 = vmatpush.bf16.msra.mxu0 %v5146
  %6827 = vmatpush.bf16.msra.mxu0 %v5141
  %6828 = vmatpush.bf16.msra.mxu0 %v5136
  %6829 = vmatpush.bf16.msra.mxu0 %v5131
  %6830 = vmatpush.bf16.msra.mxu0 %v5126
  %6831 = vmatpush.bf16.msra.mxu0 %v5121
  %6832 = vmatpush.bf16.msra.mxu0 %v5116
  %6833 = vmatmul.bf16.gmra.mxu0 %v688
  %v6834 = vpop.f32.mrf.mxu0
  %v6835 = vadd.f32 %v6822, %v6834
  %v6836 = vpop.f32.mrf.mxu0
  %6837 = vdwg.mxu0
  %6838 = vmatpush.bf16.msra.mxu0 0
  %6839 = vmatpush.bf16.msra.mxu0 0
  %6840 = vmatpush.bf16.msra.mxu0 %v6024
  %6841 = vmatpush.bf16.msra.mxu0 %v5176
  %6842 = vmatpush.bf16.msra.mxu0 %v5171
  %6843 = vmatpush.bf16.msra.mxu0 %v5166
  %6844 = vmatpush.bf16.msra.mxu0 %v5161
  %6845 = vmatpush.bf16.msra.mxu0 %v5156
  %6846 = vmatmul.bf16.gmra.mxu0 %v6011
  %v6847 = vpop.f32.mrf.mxu0
  %v6848 = vadd.f32 %v6835, %v6847
  %v6849 = vpop.f32.mrf.mxu0
  %6850 = vdwg.mxu0
  %6851 = vmatpush.bf16.msra.mxu0 %v4392
  %6852 = vmatpush.bf16.msra.mxu0 %v4387
  %6853 = vmatpush.bf16.msra.mxu0 %v4382
  %6854 = vmatpush.bf16.msra.mxu0 %v4377
  %6855 = vmatpush.bf16.msra.mxu0 %v4372
  %6856 = vmatpush.bf16.msra.mxu0 %v4367
  %6857 = vmatpush.bf16.msra.mxu0 %v4362
  %6858 = vmatpush.bf16.msra.mxu0 %v4357
  %6859 = vmatmul.bf16.gmra.mxu0 %v669
  %v6860 = vpop.f32.mrf.mxu0
  %v6861 = vadd.f32 %v1691, %v6860
  %v6862 = vpop.f32.mrf.mxu0
  %6863 = vdwg.mxu0
  %6864 = vmatpush.bf16.msra.mxu0 %v4432
  %6865 = vmatpush.bf16.msra.mxu0 %v4427
  %6866 = vmatpush.bf16.msra.mxu0 %v4422
  %6867 = vmatpush.bf16.msra.mxu0 %v4417
  %6868 = vmatpush.bf16.msra.mxu0 %v4412
  %6869 = vmatpush.bf16.msra.mxu0 %v4407
  %6870 = vmatpush.bf16.msra.mxu0 %v4402
  %6871 = vmatpush.bf16.msra.mxu0 %v4397
  %6872 = vmatmul.bf16.gmra.mxu0 %v670
  %v6873 = vpop.f32.mrf.mxu0
  %v6874 = vadd.f32 %v6861, %v6873
  %v6875 = vpop.f32.mrf.mxu0
  %6876 = vdwg.mxu0
  %6877 = vmatpush.bf16.msra.mxu0 %v4472
  %6878 = vmatpush.bf16.msra.mxu0 %v4467
  %6879 = vmatpush.bf16.msra.mxu0 %v4462
  %6880 = vmatpush.bf16.msra.mxu0 %v4457
  %6881 = vmatpush.bf16.msra.mxu0 %v4452
  %6882 = vmatpush.bf16.msra.mxu0 %v4447
  %6883 = vmatpush.bf16.msra.mxu0 %v4442
  %6884 = vmatpush.bf16.msra.mxu0 %v4437
  %6885 = vmatmul.bf16.gmra.mxu0 %v671
  %v6886 = vpop.f32.mrf.mxu0
  %v6887 = vadd.f32 %v6874, %v6886
  %v6888 = vpop.f32.mrf.mxu0
  %6889 = vdwg.mxu0
  %6890 = vmatpush.bf16.msra.mxu0 %v4512
  %6891 = vmatpush.bf16.msra.mxu0 %v4507
  %6892 = vmatpush.bf16.msra.mxu0 %v4502
  %6893 = vmatpush.bf16.msra.mxu0 %v4497
  %6894 = vmatpush.bf16.msra.mxu0 %v4492
  %6895 = vmatpush.bf16.msra.mxu0 %v4487
  %6896 = vmatpush.bf16.msra.mxu0 %v4482
  %6897 = vmatpush.bf16.msra.mxu0 %v4477
  %6898 = vmatmul.bf16.gmra.mxu0 %v672
  %v6899 = vpop.f32.mrf.mxu0
  %v6900 = vadd.f32 %v6887, %v6899
  %v6901 = vpop.f32.mrf.mxu0
  %6902 = vdwg.mxu0
  %6903 = vmatpush.bf16.msra.mxu0 %v4552
  %6904 = vmatpush.bf16.msra.mxu0 %v4547
  %6905 = vmatpush.bf16.msra.mxu0 %v4542
  %6906 = vmatpush.bf16.msra.mxu0 %v4537
  %6907 = vmatpush.bf16.msra.mxu0 %v4532
  %6908 = vmatpush.bf16.msra.mxu0 %v4527
  %6909 = vmatpush.bf16.msra.mxu0 %v4522
  %6910 = vmatpush.bf16.msra.mxu0 %v4517
  %6911 = vmatmul.bf16.gmra.mxu0 %v673
  %v6912 = vpop.f32.mrf.mxu0
  %v6913 = vadd.f32 %v6900, %v6912
  %v6914 = vpop.f32.mrf.mxu0
  %6915 = vdwg.mxu0
  %6916 = vmatpush.bf16.msra.mxu0 %v4592
  %6917 = vmatpush.bf16.msra.mxu0 %v4587
  %6918 = vmatpush.bf16.msra.mxu0 %v4582
  %6919 = vmatpush.bf16.msra.mxu0 %v4577
  %6920 = vmatpush.bf16.msra.mxu0 %v4572
  %6921 = vmatpush.bf16.msra.mxu0 %v4567
  %6922 = vmatpush.bf16.msra.mxu0 %v4562
  %6923 = vmatpush.bf16.msra.mxu0 %v4557
  %6924 = vmatmul.bf16.gmra.mxu0 %v674
  %v6925 = vpop.f32.mrf.mxu0
  %v6926 = vadd.f32 %v6913, %v6925
  %v6927 = vpop.f32.mrf.mxu0
  %6928 = vdwg.mxu0
  %6929 = vmatpush.bf16.msra.mxu0 %v4632
  %6930 = vmatpush.bf16.msra.mxu0 %v4627
  %6931 = vmatpush.bf16.msra.mxu0 %v4622
  %6932 = vmatpush.bf16.msra.mxu0 %v4617
  %6933 = vmatpush.bf16.msra.mxu0 %v4612
  %6934 = vmatpush.bf16.msra.mxu0 %v4607
  %6935 = vmatpush.bf16.msra.mxu0 %v4602
  %6936 = vmatpush.bf16.msra.mxu0 %v4597
  %6937 = vmatmul.bf16.gmra.mxu0 %v675
  %v6938 = vpop.f32.mrf.mxu0
  %v6939 = vadd.f32 %v6926, %v6938
  %v6940 = vpop.f32.mrf.mxu0
  %6941 = vdwg.mxu0
  %6942 = vmatpush.bf16.msra.mxu0 %v4672
  %6943 = vmatpush.bf16.msra.mxu0 %v4667
  %6944 = vmatpush.bf16.msra.mxu0 %v4662
  %6945 = vmatpush.bf16.msra.mxu0 %v4657
  %6946 = vmatpush.bf16.msra.mxu0 %v4652
  %6947 = vmatpush.bf16.msra.mxu0 %v4647
  %6948 = vmatpush.bf16.msra.mxu0 %v4642
  %6949 = vmatpush.bf16.msra.mxu0 %v4637
  %6950 = vmatmul.bf16.gmra.mxu0 %v676
  %v6951 = vpop.f32.mrf.mxu0
  %v6952 = vadd.f32 %v6939, %v6951
  %v6953 = vpop.f32.mrf.mxu0
  %6954 = vdwg.mxu0
  %6955 = vmatpush.bf16.msra.mxu0 %v4712
  %6956 = vmatpush.bf16.msra.mxu0 %v4707
  %6957 = vmatpush.bf16.msra.mxu0 %v4702
  %6958 = vmatpush.bf16.msra.mxu0 %v4697
  %6959 = vmatpush.bf16.msra.mxu0 %v4692
  %6960 = vmatpush.bf16.msra.mxu0 %v4687
  %6961 = vmatpush.bf16.msra.mxu0 %v4682
  %6962 = vmatpush.bf16.msra.mxu0 %v4677
  %6963 = vmatmul.bf16.gmra.mxu0 %v677
  %v6964 = vpop.f32.mrf.mxu0
  %v6965 = vadd.f32 %v6952, %v6964
  %v6966 = vpop.f32.mrf.mxu0
  %6967 = vdwg.mxu0
  %6968 = vmatpush.bf16.msra.mxu0 %v4752
  %6969 = vmatpush.bf16.msra.mxu0 %v4747
  %6970 = vmatpush.bf16.msra.mxu0 %v4742
  %6971 = vmatpush.bf16.msra.mxu0 %v4737
  %6972 = vmatpush.bf16.msra.mxu0 %v4732
  %6973 = vmatpush.bf16.msra.mxu0 %v4727
  %6974 = vmatpush.bf16.msra.mxu0 %v4722
  %6975 = vmatpush.bf16.msra.mxu0 %v4717
  %6976 = vmatmul.bf16.gmra.mxu0 %v678
  %v6977 = vpop.f32.mrf.mxu0
  %v6978 = vadd.f32 %v6965, %v6977
  %v6979 = vpop.f32.mrf.mxu0
  %6980 = vdwg.mxu0
  %6981 = vmatpush.bf16.msra.mxu0 %v4792
  %6982 = vmatpush.bf16.msra.mxu0 %v4787
  %6983 = vmatpush.bf16.msra.mxu0 %v4782
  %6984 = vmatpush.bf16.msra.mxu0 %v4777
  %6985 = vmatpush.bf16.msra.mxu0 %v4772
  %6986 = vmatpush.bf16.msra.mxu0 %v4767
  %6987 = vmatpush.bf16.msra.mxu0 %v4762
  %6988 = vmatpush.bf16.msra.mxu0 %v4757
  %6989 = vmatmul.bf16.gmra.mxu0 %v679
  %v6990 = vpop.f32.mrf.mxu0
  %v6991 = vadd.f32 %v6978, %v6990
  %v6992 = vpop.f32.mrf.mxu0
  %6993 = vdwg.mxu0
  %6994 = vmatpush.bf16.msra.mxu0 %v4832
  %6995 = vmatpush.bf16.msra.mxu0 %v4827
  %6996 = vmatpush.bf16.msra.mxu0 %v4822
  %6997 = vmatpush.bf16.msra.mxu0 %v4817
  %6998 = vmatpush.bf16.msra.mxu0 %v4812
  %6999 = vmatpush.bf16.msra.mxu0 %v4807
  %7000 = vmatpush.bf16.msra.mxu0 %v4802
  %7001 = vmatpush.bf16.msra.mxu0 %v4797
  %7002 = vmatmul.bf16.gmra.mxu0 %v680
  %v7003 = vpop.f32.mrf.mxu0
  %v7004 = vadd.f32 %v6991, %v7003
  %v7005 = vpop.f32.mrf.mxu0
  %7006 = vdwg.mxu0
  %7007 = vmatpush.bf16.msra.mxu0 %v4872
  %7008 = vmatpush.bf16.msra.mxu0 %v4867
  %7009 = vmatpush.bf16.msra.mxu0 %v4862
  %7010 = vmatpush.bf16.msra.mxu0 %v4857
  %7011 = vmatpush.bf16.msra.mxu0 %v4852
  %7012 = vmatpush.bf16.msra.mxu0 %v4847
  %7013 = vmatpush.bf16.msra.mxu0 %v4842
  %7014 = vmatpush.bf16.msra.mxu0 %v4837
  %7015 = vmatmul.bf16.gmra.mxu0 %v681
  %v7016 = vpop.f32.mrf.mxu0
  %v7017 = vadd.f32 %v7004, %v7016
  %v7018 = vpop.f32.mrf.mxu0
  %7019 = vdwg.mxu0
  %7020 = vmatpush.bf16.msra.mxu0 %v4912
  %7021 = vmatpush.bf16.msra.mxu0 %v4907
  %7022 = vmatpush.bf16.msra.mxu0 %v4902
  %7023 = vmatpush.bf16.msra.mxu0 %v4897
  %7024 = vmatpush.bf16.msra.mxu0 %v4892
  %7025 = vmatpush.bf16.msra.mxu0 %v4887
  %7026 = vmatpush.bf16.msra.mxu0 %v4882
  %7027 = vmatpush.bf16.msra.mxu0 %v4877
  %7028 = vmatmul.bf16.gmra.mxu0 %v682
  %v7029 = vpop.f32.mrf.mxu0
  %v7030 = vadd.f32 %v7017, %v7029
  %v7031 = vpop.f32.mrf.mxu0
  %7032 = vdwg.mxu0
  %7033 = vmatpush.bf16.msra.mxu0 %v4952
  %7034 = vmatpush.bf16.msra.mxu0 %v4947
  %7035 = vmatpush.bf16.msra.mxu0 %v4942
  %7036 = vmatpush.bf16.msra.mxu0 %v4937
  %7037 = vmatpush.bf16.msra.mxu0 %v4932
  %7038 = vmatpush.bf16.msra.mxu0 %v4927
  %7039 = vmatpush.bf16.msra.mxu0 %v4922
  %7040 = vmatpush.bf16.msra.mxu0 %v4917
  %7041 = vmatmul.bf16.gmra.mxu0 %v683
  %v7042 = vpop.f32.mrf.mxu0
  %v7043 = vadd.f32 %v7030, %v7042
  %v7044 = vpop.f32.mrf.mxu0
  %7045 = vdwg.mxu0
  %7046 = vmatpush.bf16.msra.mxu0 %v4992
  %7047 = vmatpush.bf16.msra.mxu0 %v4987
  %7048 = vmatpush.bf16.msra.mxu0 %v4982
  %7049 = vmatpush.bf16.msra.mxu0 %v4977
  %7050 = vmatpush.bf16.msra.mxu0 %v4972
  %7051 = vmatpush.bf16.msra.mxu0 %v4967
  %7052 = vmatpush.bf16.msra.mxu0 %v4962
  %7053 = vmatpush.bf16.msra.mxu0 %v4957
  %7054 = vmatmul.bf16.gmra.mxu0 %v684
  %v7055 = vpop.f32.mrf.mxu0
  %v7056 = vadd.f32 %v7043, %v7055
  %v7057 = vpop.f32.mrf.mxu0
  %7058 = vdwg.mxu0
  %7059 = vmatpush.bf16.msra.mxu0 %v5032
  %7060 = vmatpush.bf16.msra.mxu0 %v5027
  %7061 = vmatpush.bf16.msra.mxu0 %v5022
  %7062 = vmatpush.bf16.msra.mxu0 %v5017
  %7063 = vmatpush.bf16.msra.mxu0 %v5012
  %7064 = vmatpush.bf16.msra.mxu0 %v5007
  %7065 = vmatpush.bf16.msra.mxu0 %v5002
  %7066 = vmatpush.bf16.msra.mxu0 %v4997
  %7067 = vmatmul.bf16.gmra.mxu0 %v685
  %v7068 = vpop.f32.mrf.mxu0
  %v7069 = vadd.f32 %v7056, %v7068
  %v7070 = vpop.f32.mrf.mxu0
  %7071 = vdwg.mxu0
  %7072 = vmatpush.bf16.msra.mxu0 %v5072
  %7073 = vmatpush.bf16.msra.mxu0 %v5067
  %7074 = vmatpush.bf16.msra.mxu0 %v5062
  %7075 = vmatpush.bf16.msra.mxu0 %v5057
  %7076 = vmatpush.bf16.msra.mxu0 %v5052
  %7077 = vmatpush.bf16.msra.mxu0 %v5047
  %7078 = vmatpush.bf16.msra.mxu0 %v5042
  %7079 = vmatpush.bf16.msra.mxu0 %v5037
  %7080 = vmatmul.bf16.gmra.mxu0 %v686
  %v7081 = vpop.f32.mrf.mxu0
  %v7082 = vadd.f32 %v7069, %v7081
  %v7083 = vpop.f32.mrf.mxu0
  %7084 = vdwg.mxu0
  %7085 = vmatpush.bf16.msra.mxu0 %v5112
  %7086 = vmatpush.bf16.msra.mxu0 %v5107
  %7087 = vmatpush.bf16.msra.mxu0 %v5102
  %7088 = vmatpush.bf16.msra.mxu0 %v5097
  %7089 = vmatpush.bf16.msra.mxu0 %v5092
  %7090 = vmatpush.bf16.msra.mxu0 %v5087
  %7091 = vmatpush.bf16.msra.mxu0 %v5082
  %7092 = vmatpush.bf16.msra.mxu0 %v5077
  %7093 = vmatmul.bf16.gmra.mxu0 %v687
  %v7094 = vpop.f32.mrf.mxu0
  %v7095 = vadd.f32 %v7082, %v7094
  %v7096 = vpop.f32.mrf.mxu0
  %7097 = vdwg.mxu0
  %7098 = vmatpush.bf16.msra.mxu0 %v5152
  %7099 = vmatpush.bf16.msra.mxu0 %v5147
  %7100 = vmatpush.bf16.msra.mxu0 %v5142
  %7101 = vmatpush.bf16.msra.mxu0 %v5137
  %7102 = vmatpush.bf16.msra.mxu0 %v5132
  %7103 = vmatpush.bf16.msra.mxu0 %v5127
  %7104 = vmatpush.bf16.msra.mxu0 %v5122
  %7105 = vmatpush.bf16.msra.mxu0 %v5117
  %7106 = vmatmul.bf16.gmra.mxu0 %v688
  %v7107 = vpop.f32.mrf.mxu0
  %v7108 = vadd.f32 %v7095, %v7107
  %v7109 = vpop.f32.mrf.mxu0
  %7110 = vdwg.mxu0
  %7111 = vmatpush.bf16.msra.mxu0 0
  %7112 = vmatpush.bf16.msra.mxu0 0
  %7113 = vmatpush.bf16.msra.mxu0 %v6027
  %7114 = vmatpush.bf16.msra.mxu0 %v5177
  %7115 = vmatpush.bf16.msra.mxu0 %v5172
  %7116 = vmatpush.bf16.msra.mxu0 %v5167
  %7117 = vmatpush.bf16.msra.mxu0 %v5162
  %7118 = vmatpush.bf16.msra.mxu0 %v5157
  %7119 = vmatmul.bf16.gmra.mxu0 %v6011
  %v7120 = vpop.f32.mrf.mxu0
  %v7121 = vadd.f32 %v7108, %v7120
  %v7122 = vpop.f32.mrf.mxu0
  %7123 = vdwg.mxu0
  %7124 = vmatpush.bf16.msra.mxu0 %v4393
  %7125 = vmatpush.bf16.msra.mxu0 %v4388
  %7126 = vmatpush.bf16.msra.mxu0 %v4383
  %7127 = vmatpush.bf16.msra.mxu0 %v4378
  %7128 = vmatpush.bf16.msra.mxu0 %v4373
  %7129 = vmatpush.bf16.msra.mxu0 %v4368
  %7130 = vmatpush.bf16.msra.mxu0 %v4363
  %7131 = vmatpush.bf16.msra.mxu0 %v4358
  %7132 = vmatmul.bf16.gmra.mxu0 %v669
  %v7133 = vpop.f32.mrf.mxu0
  %v7134 = vadd.f32 %v1692, %v7133
  %v7135 = vpop.f32.mrf.mxu0
  %7136 = vdwg.mxu0
  %7137 = vmatpush.bf16.msra.mxu0 %v4433
  %7138 = vmatpush.bf16.msra.mxu0 %v4428
  %7139 = vmatpush.bf16.msra.mxu0 %v4423
  %7140 = vmatpush.bf16.msra.mxu0 %v4418
  %7141 = vmatpush.bf16.msra.mxu0 %v4413
  %7142 = vmatpush.bf16.msra.mxu0 %v4408
  %7143 = vmatpush.bf16.msra.mxu0 %v4403
  %7144 = vmatpush.bf16.msra.mxu0 %v4398
  %7145 = vmatmul.bf16.gmra.mxu0 %v670
  %v7146 = vpop.f32.mrf.mxu0
  %v7147 = vadd.f32 %v7134, %v7146
  %v7148 = vpop.f32.mrf.mxu0
  %7149 = vdwg.mxu0
  %7150 = vmatpush.bf16.msra.mxu0 %v4473
  %7151 = vmatpush.bf16.msra.mxu0 %v4468
  %7152 = vmatpush.bf16.msra.mxu0 %v4463
  %7153 = vmatpush.bf16.msra.mxu0 %v4458
  %7154 = vmatpush.bf16.msra.mxu0 %v4453
  %7155 = vmatpush.bf16.msra.mxu0 %v4448
  %7156 = vmatpush.bf16.msra.mxu0 %v4443
  %7157 = vmatpush.bf16.msra.mxu0 %v4438
  %7158 = vmatmul.bf16.gmra.mxu0 %v671
  %v7159 = vpop.f32.mrf.mxu0
  %v7160 = vadd.f32 %v7147, %v7159
  %v7161 = vpop.f32.mrf.mxu0
  %7162 = vdwg.mxu0
  %7163 = vmatpush.bf16.msra.mxu0 %v4513
  %7164 = vmatpush.bf16.msra.mxu0 %v4508
  %7165 = vmatpush.bf16.msra.mxu0 %v4503
  %7166 = vmatpush.bf16.msra.mxu0 %v4498
  %7167 = vmatpush.bf16.msra.mxu0 %v4493
  %7168 = vmatpush.bf16.msra.mxu0 %v4488
  %7169 = vmatpush.bf16.msra.mxu0 %v4483
  %7170 = vmatpush.bf16.msra.mxu0 %v4478
  %7171 = vmatmul.bf16.gmra.mxu0 %v672
  %v7172 = vpop.f32.mrf.mxu0
  %v7173 = vadd.f32 %v7160, %v7172
  %v7174 = vpop.f32.mrf.mxu0
  %7175 = vdwg.mxu0
  %7176 = vmatpush.bf16.msra.mxu0 %v4553
  %7177 = vmatpush.bf16.msra.mxu0 %v4548
  %7178 = vmatpush.bf16.msra.mxu0 %v4543
  %7179 = vmatpush.bf16.msra.mxu0 %v4538
  %7180 = vmatpush.bf16.msra.mxu0 %v4533
  %7181 = vmatpush.bf16.msra.mxu0 %v4528
  %7182 = vmatpush.bf16.msra.mxu0 %v4523
  %7183 = vmatpush.bf16.msra.mxu0 %v4518
  %7184 = vmatmul.bf16.gmra.mxu0 %v673
  %v7185 = vpop.f32.mrf.mxu0
  %v7186 = vadd.f32 %v7173, %v7185
  %v7187 = vpop.f32.mrf.mxu0
  %7188 = vdwg.mxu0
  %7189 = vmatpush.bf16.msra.mxu0 %v4593
  %7190 = vmatpush.bf16.msra.mxu0 %v4588
  %7191 = vmatpush.bf16.msra.mxu0 %v4583
  %7192 = vmatpush.bf16.msra.mxu0 %v4578
  %7193 = vmatpush.bf16.msra.mxu0 %v4573
  %7194 = vmatpush.bf16.msra.mxu0 %v4568
  %7195 = vmatpush.bf16.msra.mxu0 %v4563
  %7196 = vmatpush.bf16.msra.mxu0 %v4558
  %7197 = vmatmul.bf16.gmra.mxu0 %v674
  %v7198 = vpop.f32.mrf.mxu0
  %v7199 = vadd.f32 %v7186, %v7198
  %v7200 = vpop.f32.mrf.mxu0
  %7201 = vdwg.mxu0
  %7202 = vmatpush.bf16.msra.mxu0 %v4633
  %7203 = vmatpush.bf16.msra.mxu0 %v4628
  %7204 = vmatpush.bf16.msra.mxu0 %v4623
  %7205 = vmatpush.bf16.msra.mxu0 %v4618
  %7206 = vmatpush.bf16.msra.mxu0 %v4613
  %7207 = vmatpush.bf16.msra.mxu0 %v4608
  %7208 = vmatpush.bf16.msra.mxu0 %v4603
  %7209 = vmatpush.bf16.msra.mxu0 %v4598
  %7210 = vmatmul.bf16.gmra.mxu0 %v675
  %v7211 = vpop.f32.mrf.mxu0
  %v7212 = vadd.f32 %v7199, %v7211
  %v7213 = vpop.f32.mrf.mxu0
  %7214 = vdwg.mxu0
  %7215 = vmatpush.bf16.msra.mxu0 %v4673
  %7216 = vmatpush.bf16.msra.mxu0 %v4668
  %7217 = vmatpush.bf16.msra.mxu0 %v4663
  %7218 = vmatpush.bf16.msra.mxu0 %v4658
  %7219 = vmatpush.bf16.msra.mxu0 %v4653
  %7220 = vmatpush.bf16.msra.mxu0 %v4648
  %7221 = vmatpush.bf16.msra.mxu0 %v4643
  %7222 = vmatpush.bf16.msra.mxu0 %v4638
  %7223 = vmatmul.bf16.gmra.mxu0 %v676
  %v7224 = vpop.f32.mrf.mxu0
  %v7225 = vadd.f32 %v7212, %v7224
  %v7226 = vpop.f32.mrf.mxu0
  %7227 = vdwg.mxu0
  %7228 = vmatpush.bf16.msra.mxu0 %v4713
  %7229 = vmatpush.bf16.msra.mxu0 %v4708
  %7230 = vmatpush.bf16.msra.mxu0 %v4703
  %7231 = vmatpush.bf16.msra.mxu0 %v4698
  %7232 = vmatpush.bf16.msra.mxu0 %v4693
  %7233 = vmatpush.bf16.msra.mxu0 %v4688
  %7234 = vmatpush.bf16.msra.mxu0 %v4683
  %7235 = vmatpush.bf16.msra.mxu0 %v4678
  %7236 = vmatmul.bf16.gmra.mxu0 %v677
  %v7237 = vpop.f32.mrf.mxu0
  %v7238 = vadd.f32 %v7225, %v7237
  %v7239 = vpop.f32.mrf.mxu0
  %7240 = vdwg.mxu0
  %7241 = vmatpush.bf16.msra.mxu0 %v4753
  %7242 = vmatpush.bf16.msra.mxu0 %v4748
  %7243 = vmatpush.bf16.msra.mxu0 %v4743
  %7244 = vmatpush.bf16.msra.mxu0 %v4738
  %7245 = vmatpush.bf16.msra.mxu0 %v4733
  %7246 = vmatpush.bf16.msra.mxu0 %v4728
  %7247 = vmatpush.bf16.msra.mxu0 %v4723
  %7248 = vmatpush.bf16.msra.mxu0 %v4718
  %7249 = vmatmul.bf16.gmra.mxu0 %v678
  %v7250 = vpop.f32.mrf.mxu0
  %v7251 = vadd.f32 %v7238, %v7250
  %v7252 = vpop.f32.mrf.mxu0
  %7253 = vdwg.mxu0
  %7254 = vmatpush.bf16.msra.mxu0 %v4793
  %7255 = vmatpush.bf16.msra.mxu0 %v4788
  %7256 = vmatpush.bf16.msra.mxu0 %v4783
  %7257 = vmatpush.bf16.msra.mxu0 %v4778
  %7258 = vmatpush.bf16.msra.mxu0 %v4773
  %7259 = vmatpush.bf16.msra.mxu0 %v4768
  %7260 = vmatpush.bf16.msra.mxu0 %v4763
  %7261 = vmatpush.bf16.msra.mxu0 %v4758
  %7262 = vmatmul.bf16.gmra.mxu0 %v679
  %v7263 = vpop.f32.mrf.mxu0
  %v7264 = vadd.f32 %v7251, %v7263
  %v7265 = vpop.f32.mrf.mxu0
  %7266 = vdwg.mxu0
  %7267 = vmatpush.bf16.msra.mxu0 %v4833
  %7268 = vmatpush.bf16.msra.mxu0 %v4828
  %7269 = vmatpush.bf16.msra.mxu0 %v4823
  %7270 = vmatpush.bf16.msra.mxu0 %v4818
  %7271 = vmatpush.bf16.msra.mxu0 %v4813
  %7272 = vmatpush.bf16.msra.mxu0 %v4808
  %7273 = vmatpush.bf16.msra.mxu0 %v4803
  %7274 = vmatpush.bf16.msra.mxu0 %v4798
  %7275 = vmatmul.bf16.gmra.mxu0 %v680
  %v7276 = vpop.f32.mrf.mxu0
  %v7277 = vadd.f32 %v7264, %v7276
  %v7278 = vpop.f32.mrf.mxu0
  %7279 = vdwg.mxu0
  %7280 = vmatpush.bf16.msra.mxu0 %v4873
  %7281 = vmatpush.bf16.msra.mxu0 %v4868
  %7282 = vmatpush.bf16.msra.mxu0 %v4863
  %7283 = vmatpush.bf16.msra.mxu0 %v4858
  %7284 = vmatpush.bf16.msra.mxu0 %v4853
  %7285 = vmatpush.bf16.msra.mxu0 %v4848
  %7286 = vmatpush.bf16.msra.mxu0 %v4843
  %7287 = vmatpush.bf16.msra.mxu0 %v4838
  %7288 = vmatmul.bf16.gmra.mxu0 %v681
  %v7289 = vpop.f32.mrf.mxu0
  %v7290 = vadd.f32 %v7277, %v7289
  %v7291 = vpop.f32.mrf.mxu0
  %7292 = vdwg.mxu0
  %7293 = vmatpush.bf16.msra.mxu0 %v4913
  %7294 = vmatpush.bf16.msra.mxu0 %v4908
  %7295 = vmatpush.bf16.msra.mxu0 %v4903
  %7296 = vmatpush.bf16.msra.mxu0 %v4898
  %7297 = vmatpush.bf16.msra.mxu0 %v4893
  %7298 = vmatpush.bf16.msra.mxu0 %v4888
  %7299 = vmatpush.bf16.msra.mxu0 %v4883
  %7300 = vmatpush.bf16.msra.mxu0 %v4878
  %7301 = vmatmul.bf16.gmra.mxu0 %v682
  %v7302 = vpop.f32.mrf.mxu0
  %v7303 = vadd.f32 %v7290, %v7302
  %v7304 = vpop.f32.mrf.mxu0
  %7305 = vdwg.mxu0
  %7306 = vmatpush.bf16.msra.mxu0 %v4953
  %7307 = vmatpush.bf16.msra.mxu0 %v4948
  %7308 = vmatpush.bf16.msra.mxu0 %v4943
  %7309 = vmatpush.bf16.msra.mxu0 %v4938
  %7310 = vmatpush.bf16.msra.mxu0 %v4933
  %7311 = vmatpush.bf16.msra.mxu0 %v4928
  %7312 = vmatpush.bf16.msra.mxu0 %v4923
  %7313 = vmatpush.bf16.msra.mxu0 %v4918
  %7314 = vmatmul.bf16.gmra.mxu0 %v683
  %v7315 = vpop.f32.mrf.mxu0
  %v7316 = vadd.f32 %v7303, %v7315
  %v7317 = vpop.f32.mrf.mxu0
  %7318 = vdwg.mxu0
  %7319 = vmatpush.bf16.msra.mxu0 %v4993
  %7320 = vmatpush.bf16.msra.mxu0 %v4988
  %7321 = vmatpush.bf16.msra.mxu0 %v4983
  %7322 = vmatpush.bf16.msra.mxu0 %v4978
  %7323 = vmatpush.bf16.msra.mxu0 %v4973
  %7324 = vmatpush.bf16.msra.mxu0 %v4968
  %7325 = vmatpush.bf16.msra.mxu0 %v4963
  %7326 = vmatpush.bf16.msra.mxu0 %v4958
  %7327 = vmatmul.bf16.gmra.mxu0 %v684
  %v7328 = vpop.f32.mrf.mxu0
  %v7329 = vadd.f32 %v7316, %v7328
  %v7330 = vpop.f32.mrf.mxu0
  %7331 = vdwg.mxu0
  %7332 = vmatpush.bf16.msra.mxu0 %v5033
  %7333 = vmatpush.bf16.msra.mxu0 %v5028
  %7334 = vmatpush.bf16.msra.mxu0 %v5023
  %7335 = vmatpush.bf16.msra.mxu0 %v5018
  %7336 = vmatpush.bf16.msra.mxu0 %v5013
  %7337 = vmatpush.bf16.msra.mxu0 %v5008
  %7338 = vmatpush.bf16.msra.mxu0 %v5003
  %7339 = vmatpush.bf16.msra.mxu0 %v4998
  %7340 = vmatmul.bf16.gmra.mxu0 %v685
  %v7341 = vpop.f32.mrf.mxu0
  %v7342 = vadd.f32 %v7329, %v7341
  %v7343 = vpop.f32.mrf.mxu0
  %7344 = vdwg.mxu0
  %7345 = vmatpush.bf16.msra.mxu0 %v5073
  %7346 = vmatpush.bf16.msra.mxu0 %v5068
  %7347 = vmatpush.bf16.msra.mxu0 %v5063
  %7348 = vmatpush.bf16.msra.mxu0 %v5058
  %7349 = vmatpush.bf16.msra.mxu0 %v5053
  %7350 = vmatpush.bf16.msra.mxu0 %v5048
  %7351 = vmatpush.bf16.msra.mxu0 %v5043
  %7352 = vmatpush.bf16.msra.mxu0 %v5038
  %7353 = vmatmul.bf16.gmra.mxu0 %v686
  %v7354 = vpop.f32.mrf.mxu0
  %v7355 = vadd.f32 %v7342, %v7354
  %v7356 = vpop.f32.mrf.mxu0
  %7357 = vdwg.mxu0
  %7358 = vmatpush.bf16.msra.mxu0 %v5113
  %7359 = vmatpush.bf16.msra.mxu0 %v5108
  %7360 = vmatpush.bf16.msra.mxu0 %v5103
  %7361 = vmatpush.bf16.msra.mxu0 %v5098
  %7362 = vmatpush.bf16.msra.mxu0 %v5093
  %7363 = vmatpush.bf16.msra.mxu0 %v5088
  %7364 = vmatpush.bf16.msra.mxu0 %v5083
  %7365 = vmatpush.bf16.msra.mxu0 %v5078
  %7366 = vmatmul.bf16.gmra.mxu0 %v687
  %v7367 = vpop.f32.mrf.mxu0
  %v7368 = vadd.f32 %v7355, %v7367
  %v7369 = vpop.f32.mrf.mxu0
  %7370 = vdwg.mxu0
  %7371 = vmatpush.bf16.msra.mxu0 %v5153
  %7372 = vmatpush.bf16.msra.mxu0 %v5148
  %7373 = vmatpush.bf16.msra.mxu0 %v5143
  %7374 = vmatpush.bf16.msra.mxu0 %v5138
  %7375 = vmatpush.bf16.msra.mxu0 %v5133
  %7376 = vmatpush.bf16.msra.mxu0 %v5128
  %7377 = vmatpush.bf16.msra.mxu0 %v5123
  %7378 = vmatpush.bf16.msra.mxu0 %v5118
  %7379 = vmatmul.bf16.gmra.mxu0 %v688
  %v7380 = vpop.f32.mrf.mxu0
  %v7381 = vadd.f32 %v7368, %v7380
  %v7382 = vpop.f32.mrf.mxu0
  %7383 = vdwg.mxu0
  %7384 = vmatpush.bf16.msra.mxu0 0
  %7385 = vmatpush.bf16.msra.mxu0 0
  %7386 = vmatpush.bf16.msra.mxu0 %v6030
  %7387 = vmatpush.bf16.msra.mxu0 %v5178
  %7388 = vmatpush.bf16.msra.mxu0 %v5173
  %7389 = vmatpush.bf16.msra.mxu0 %v5168
  %7390 = vmatpush.bf16.msra.mxu0 %v5163
  %7391 = vmatpush.bf16.msra.mxu0 %v5158
  %7392 = vmatmul.bf16.gmra.mxu0 %v6011
  %v7393 = vpop.f32.mrf.mxu0
  %v7394 = vadd.f32 %v7381, %v7393
  %v7395 = vpop.f32.mrf.mxu0
  %7396 = vdwg.mxu0
  %v7397 = vmax.f32 %v6302, 0.0
  %v7398 = vmax.f32 %v6575, 0.0
  %v7399 = vmax.f32 %v6848, 0.0
  %v7400 = vmax.f32 %v7121, 0.0
  %v7401 = vmax.f32 %v7394, 0.0
  %vm7402 = vcmask 1043456
  %v7403 = vsel %vm7402, %v7397, 0.0
  %v7404 = vrot.slane %v7403, 4
  %v7405 = vadd.f32 %v7403, %v7404
  %v7406 = vrot.slane %v7405, 2
  %v7407 = vadd.f32 %v7405, %v7406
  %v7408 = vrot.slane %v7407, 1
  %v7409 = vadd.f32 %v7407, %v7408
  %v7410 = vsel %vm7402, %v7398, 0.0
  %v7411 = vrot.slane %v7410, 4
  %v7412 = vadd.f32 %v7410, %v7411
  %v7413 = vrot.slane %v7412, 2
  %v7414 = vadd.f32 %v7412, %v7413
  %v7415 = vrot.slane %v7414, 1
  %v7416 = vadd.f32 %v7414, %v7415
  %v7417 = vsel %vm7402, %v7399, 0.0
  %v7418 = vrot.slane %v7417, 4
  %v7419 = vadd.f32 %v7417, %v7418
  %v7420 = vrot.slane %v7419, 2
  %v7421 = vadd.f32 %v7419, %v7420
  %v7422 = vrot.slane %v7421, 1
  %v7423 = vadd.f32 %v7421, %v7422
  %v7424 = vsel %vm7402, %v7400, 0.0
  %v7425 = vrot.slane %v7424, 4
  %v7426 = vadd.f32 %v7424, %v7425
  %v7427 = vrot.slane %v7426, 2
  %v7428 = vadd.f32 %v7426, %v7427
  %v7429 = vrot.slane %v7428, 1
  %v7430 = vadd.f32 %v7428, %v7429
  %vm7431 = vcmask 150528
  %v7432 = vsel %vm7431, %v7401, 0.0
  %v7433 = vrot.slane %v7432, 4
  %v7434 = vadd.f32 %v7432, %v7433
  %v7435 = vrot.slane %v7434, 2
  %v7436 = vadd.f32 %v7434, %v7435
  %v7437 = vrot.slane %v7436, 1
  %v7438 = vadd.f32 %v7436, %v7437
  %v7439 = vrcp.pop 4.0
  %v7440 = vmul.f32 4.0, %v7439
  %v7441 = vsub.f32 1.0, %v7440
  %v7442 = vmul.f32 %v7439, %v7441
  %v7443 = vadd.f32 %v7439, %v7442
  %vm7444 = vweird.f32 %v7439
  %v7445 = vsel %vm7444, %v7439, %v7443
  %v7446 = vmul.f32 %v7409, %v7445
  %v7447 = vmul.f32 %v7416, %v7445
  %v7448 = vmul.f32 %v7423, %v7445
  %v7449 = vmul.f32 %v7430, %v7445
  %v7450 = vmul.f32 %v7438, %v7445
  %v7451 = vsub.f32 %v7397, %v7446
  %v7452 = vsub.f32 %v7398, %v7447
  %v7453 = vsub.f32 %v7399, %v7448
  %v7454 = vsub.f32 %v7400, %v7449
  %v7455 = vsub.f32 %v7401, %v7450
  %v7456 = vmul.f32 %v7451, %v7451
  %v7457 = vmul.f32 %v7452, %v7452
  %v7458 = vmul.f32 %v7453, %v7453
  %v7459 = vmul.f32 %v7454, %v7454
  %v7460 = vmul.f32 %v7455, %v7455
  %v7461 = vsel %vm7402, %v7456, 0.0
  %v7462 = vrot.slane %v7461, 4
  %v7463 = vadd.f32 %v7461, %v7462
  %v7464 = vrot.slane %v7463, 2
  %v7465 = vadd.f32 %v7463, %v7464
  %v7466 = vrot.slane %v7465, 1
  %v7467 = vadd.f32 %v7465, %v7466
  %v7468 = vsel %vm7402, %v7457, 0.0
  %v7469 = vrot.slane %v7468, 4
  %v7470 = vadd.f32 %v7468, %v7469
  %v7471 = vrot.slane %v7470, 2
  %v7472 = vadd.f32 %v7470, %v7471
  %v7473 = vrot.slane %v7472, 1
  %v7474 = vadd.f32 %v7472, %v7473
  %v7475 = vsel %vm7402, %v7458, 0.0
  %v7476 = vrot.slane %v7475, 4
  %v7477 = vadd.f32 %v7475, %v7476
  %v7478 = vrot.slane %v7477, 2
  %v7479 = vadd.f32 %v7477, %v7478
  %v7480 = vrot.slane %v7479, 1
  %v7481 = vadd.f32 %v7479, %v7480
  %v7482 = vsel %vm7402, %v7459, 0.0
  %v7483 = vrot.slane %v7482, 4
  %v7484 = vadd.f32 %v7482, %v7483
  %v7485 = vrot.slane %v7484, 2
  %v7486 = vadd.f32 %v7484, %v7485
  %v7487 = vrot.slane %v7486, 1
  %v7488 = vadd.f32 %v7486, %v7487
  %v7489 = vsel %vm7431, %v7460, 0.0
  %v7490 = vrot.slane %v7489, 4
  %v7491 = vadd.f32 %v7489, %v7490
  %v7492 = vrot.slane %v7491, 2
  %v7493 = vadd.f32 %v7491, %v7492
  %v7494 = vrot.slane %v7493, 1
  %v7495 = vadd.f32 %v7493, %v7494
  %v7496 = vmul.f32 %v7467, %v7445
  %v7497 = vmul.f32 %v7474, %v7445
  %v7498 = vmul.f32 %v7481, %v7445
  %v7499 = vmul.f32 %v7488, %v7445
  %v7500 = vmul.f32 %v7495, %v7445
  %v7501 = vld [vmem:[%s25] sm:$0x1f]
  %v7503 = vperm.slane %v7501, 0
  %v7504 = vperm.slane %v7501, 1
  %v7505 = vperm.slane %v7501, 2
  %v7506 = vperm.slane %v7501, 3
  %v7507 = vperm.slane %v7501, 4
  %v7513 = vmul.f32 %v7503, %v7451
  %v7514 = vmul.f32 %v7504, %v7452
  %v7515 = vmul.f32 %v7505, %v7453
  %v7516 = vmul.f32 %v7506, %v7454
  %v7517 = vmul.f32 %v7507, %v7455
  %v7518 = vadd.f32 %v7496, 1e-05
  %v7519 = vadd.f32 %v7497, 1e-05
  %v7520 = vadd.f32 %v7498, 1e-05
  %v7521 = vadd.f32 %v7499, 1e-05
  %v7522 = vadd.f32 %v7500, 1e-05
  %v7523 = vrsqrt.pop %v7518
  %v7524 = vmul.f32 %v7523, %v7518
  %v7525 = vmul.f32 %v7524, %v7523
  %v7526 = vmul.f32 0.5, %v7525
  %v7527 = vsub.f32 1.5, %v7526
  %v7528 = vmul.f32 %v7523, %v7527
  %vm7529 = vweird.f32 %v7518
  %vm7530 = vweird.f32 %v7523
  %vm7531 = vmor %vm7529, %vm7530
  %v7532 = vsel %vm7531, %v7523, %v7528
  %v7533 = vrsqrt.pop %v7519
  %v7534 = vmul.f32 %v7533, %v7519
  %v7535 = vmul.f32 %v7534, %v7533
  %v7536 = vmul.f32 0.5, %v7535
  %v7537 = vsub.f32 1.5, %v7536
  %v7538 = vmul.f32 %v7533, %v7537
  %vm7539 = vweird.f32 %v7519
  %vm7540 = vweird.f32 %v7533
  %vm7541 = vmor %vm7539, %vm7540
  %v7542 = vsel %vm7541, %v7533, %v7538
  %v7543 = vrsqrt.pop %v7520
  %v7544 = vmul.f32 %v7543, %v7520
  %v7545 = vmul.f32 %v7544, %v7543
  %v7546 = vmul.f32 0.5, %v7545
  %v7547 = vsub.f32 1.5, %v7546
  %v7548 = vmul.f32 %v7543, %v7547
  %vm7549 = vweird.f32 %v7520
  %vm7550 = vweird.f32 %v7543
  %vm7551 = vmor %vm7549, %vm7550
  %v7552 = vsel %vm7551, %v7543, %v7548
  %v7553 = vrsqrt.pop %v7521
  %v7554 = vmul.f32 %v7553, %v7521
  %v7555 = vmul.f32 %v7554, %v7553
  %v7556 = vmul.f32 0.5, %v7555
  %v7557 = vsub.f32 1.5, %v7556
  %v7558 = vmul.f32 %v7553, %v7557
  %vm7559 = vweird.f32 %v7521
  %vm7560 = vweird.f32 %v7553
  %vm7561 = vmor %vm7559, %vm7560
  %v7562 = vsel %vm7561, %v7553, %v7558
  %v7563 = vrsqrt.pop %v7522
  %v7564 = vmul.f32 %v7563, %v7522
  %v7565 = vmul.f32 %v7564, %v7563
  %v7566 = vmul.f32 0.5, %v7565
  %v7567 = vsub.f32 1.5, %v7566
  %v7568 = vmul.f32 %v7563, %v7567
  %vm7569 = vweird.f32 %v7522
  %vm7570 = vweird.f32 %v7563
  %vm7571 = vmor %vm7569, %vm7570
  %v7572 = vsel %vm7571, %v7563, %v7568
  %v7573 = vmul.f32 %v7513, %v7532
  %v7574 = vmul.f32 %v7514, %v7542
  %v7575 = vmul.f32 %v7515, %v7552
  %v7576 = vmul.f32 %v7516, %v7562
  %v7577 = vmul.f32 %v7517, %v7572
  %v7578 = vld [vmem:[%s27] sm:$0x1f]
  %v7580 = vperm.slane %v7578, 0
  %v7581 = vperm.slane %v7578, 1
  %v7582 = vperm.slane %v7578, 2
  %v7583 = vperm.slane %v7578, 3
  %v7584 = vperm.slane %v7578, 4
  %v7590 = vadd.f32 %v7573, %v7580
  %v7591 = vadd.f32 %v7574, %v7581
  %v7592 = vadd.f32 %v7575, %v7582
  %v7593 = vadd.f32 %v7576, %v7583
  %v7594 = vadd.f32 %v7577, %v7584
  %v7595 = vpack.c.bf16 %v7590, %v7590
  %v7596 = vpack.c.bf16 %v7591, %v7591
  %v7597 = vpack.c.bf16 %v7592, %v7592
  %v7598 = vpack.c.bf16 %v7593, %v7593
  %v7599 = vpack.c.bf16 %v7594, %v7594
  %v7600 = vld [vmem:[%s29] sm:$0xff]
  %v7601 = vld [vmem:[%s29 + $0x8] sm:$0xff]
  %v7602 = vld [vmem:[%s29 + $0x10] sm:$0xff]
  %v7603 = vld [vmem:[%s29 + $0x18] sm:$0xff]
  %v7604 = vld [vmem:[%s29 + $0x20] sm:$0xff]
  %v7605 = vld [vmem:[%s29 + $0x28] sm:$0xff]
  %v7606 = vld [vmem:[%s29 + $0x30] sm:$0xff]
  %v7607 = vld [vmem:[%s29 + $0x38] sm:$0xff]
  %v7608 = vld [vmem:[%s29 + $0x40] sm:$0xff]
  %v7609 = vld [vmem:[%s29 + $0x48] sm:$0xff]
  %v7610 = vld [vmem:[%s29 + $0x50] sm:$0xff]
  %v7611 = vld [vmem:[%s29 + $0x58] sm:$0xff]
  %v7612 = vld [vmem:[%s29 + $0x60] sm:$0xff]
  %v7613 = vld [vmem:[%s29 + $0x68] sm:$0xff]
  %v7614 = vld [vmem:[%s29 + $0x70] sm:$0xff]
  %v7615 = vld [vmem:[%s29 + $0x78] sm:$0xff]
  %v7616 = vld [vmem:[%s29 + $0x80] sm:$0xff]
  %v7617 = vld [vmem:[%s29 + $0x88] sm:$0xff]
  %v7618 = vld [vmem:[%s29 + $0x90] sm:$0xff]
  %v7619 = vld [vmem:[%s29 + $0x98] sm:$0xff]
  %v7620 = vld [vmem:[%s29 + $0xa0] sm:$0xff]
  %v7621 = vld [vmem:[%s29 + $0xa8] sm:$0xff]
  %v7622 = vld [vmem:[%s29 + $0xb0] sm:$0xff]
  %v7623 = vld [vmem:[%s29 + $0xb8] sm:$0xff]
  %v7624 = vld [vmem:[%s29 + $0xc0] sm:$0xff]
  %v7625 = vld [vmem:[%s29 + $0xc8] sm:$0xff]
  %v7626 = vld [vmem:[%s29 + $0xd0] sm:$0xff]
  %v7627 = vld [vmem:[%s29 + $0xd8] sm:$0xff]
  %v7628 = vld [vmem:[%s29 + $0xe0] sm:$0xff]
  %v7629 = vld [vmem:[%s29 + $0xe8] sm:$0xff]
  %v7630 = vld [vmem:[%s29 + $0xf0] sm:$0xff]
  %v7631 = vld [vmem:[%s29 + $0xf8] sm:$0xff]
  %v7632 = vld [vmem:[%s29 + $0x100] sm:$0xff]
  %v7633 = vld [vmem:[%s29 + $0x108] sm:$0xff]
  %v7634 = vld [vmem:[%s29 + $0x110] sm:$0xff]
  %v7635 = vld [vmem:[%s29 + $0x118] sm:$0xff]
  %v7636 = vld [vmem:[%s29 + $0x120] sm:$0xff]
  %v7637 = vld [vmem:[%s29 + $0x128] sm:$0xff]
  %v7638 = vld [vmem:[%s29 + $0x130] sm:$0xff]
  %v7639 = vld [vmem:[%s29 + $0x138] sm:$0xff]
  %v7640 = vld [vmem:[%s29 + $0x140] sm:$0xff]
  %v7641 = vld [vmem:[%s29 + $0x148] sm:$0xff]
  %v7642 = vld [vmem:[%s29 + $0x150] sm:$0xff]
  %v7643 = vld [vmem:[%s29 + $0x158] sm:$0xff]
  %v7644 = vld [vmem:[%s29 + $0x160] sm:$0xff]
  %v7645 = vld [vmem:[%s29 + $0x168] sm:$0xff]
  %v7646 = vld [vmem:[%s29 + $0x170] sm:$0xff]
  %v7647 = vld [vmem:[%s29 + $0x178] sm:$0xff]
  %v7648 = vld [vmem:[%s29 + $0x180] sm:$0xff]
  %v7649 = vld [vmem:[%s29 + $0x188] sm:$0xff]
  %v7650 = vld [vmem:[%s29 + $0x190] sm:$0xff]
  %v7651 = vld [vmem:[%s29 + $0x198] sm:$0xff]
  %v7652 = vld [vmem:[%s29 + $0x1a0] sm:$0xff]
  %v7653 = vld [vmem:[%s29 + $0x1a8] sm:$0xff]
  %v7654 = vld [vmem:[%s29 + $0x1b0] sm:$0xff]
  %v7655 = vld [vmem:[%s29 + $0x1b8] sm:$0xff]
  %v7656 = vld [vmem:[%s29 + $0x1c0] sm:$0xff]
  %v7657 = vld [vmem:[%s29 + $0x1c8] sm:$0xff]
  %v7658 = vld [vmem:[%s29 + $0x1d0] sm:$0xff]
  %v7659 = vld [vmem:[%s29 + $0x1d8] sm:$0xff]
  %v7660 = vld [vmem:[%s29 + $0x1e0] sm:$0xff]
  %v7661 = vld [vmem:[%s29 + $0x1e8] sm:$0xff]
  %v7662 = vld [vmem:[%s29 + $0x1f0] sm:$0xff]
  %v7663 = vld [vmem:[%s29 + $0x1f8] sm:$0xff]
  %v7664 = vld [vmem:[%s29 + $0x200] sm:$0xff]
  %v7665 = vld [vmem:[%s29 + $0x208] sm:$0xff]
  %v7666 = vld [vmem:[%s29 + $0x210] sm:$0x33]
  %v7667 = vld [vmem:[%s31] sm:$0x3]
  %v7669 = vperm.slane %v7667, 0
  %v7670 = vperm.slane %v7667, 1
  %v7740 = vunpack.c.l.b16 %v7600
  %v7741 = vunpack.c.h.b16 %v7600
  %v7742 = vunpack.c.l.b16 %v7601
  %v7743 = vunpack.c.h.b16 %v7601
  %v7744 = vunpack.c.l.b16 %v7602
  %v7745 = vunpack.c.h.b16 %v7602
  %v7746 = vunpack.c.l.b16 %v7603
  %v7747 = vunpack.c.h.b16 %v7603
  %v7748 = vunpack.c.l.b16 %v7604
  %v7749 = vunpack.c.h.b16 %v7604
  %v7750 = vunpack.c.l.b16 %v7605
  %v7751 = vunpack.c.h.b16 %v7605
  %v7752 = vunpack.c.l.b16 %v7606
  %v7753 = vunpack.c.h.b16 %v7606
  %v7754 = vunpack.c.l.b16 %v7607
  %v7755 = vunpack.c.h.b16 %v7607
  %v7756 = vunpack.c.l.b16 %v7608
  %v7757 = vunpack.c.h.b16 %v7608
  %v7758 = vunpack.c.l.b16 %v7609
  %v7759 = vunpack.c.h.b16 %v7609
  %v7760 = vunpack.c.l.b16 %v7610
  %v7761 = vunpack.c.h.b16 %v7610
  %v7762 = vunpack.c.l.b16 %v7611
  %v7763 = vunpack.c.h.b16 %v7611
  %v7764 = vunpack.c.l.b16 %v7612
  %v7765 = vunpack.c.h.b16 %v7612
  %v7766 = vunpack.c.l.b16 %v7613
  %v7767 = vunpack.c.h.b16 %v7613
  %v7768 = vunpack.c.l.b16 %v7614
  %v7769 = vunpack.c.h.b16 %v7614
  %v7770 = vunpack.c.l.b16 %v7615
  %v7771 = vunpack.c.h.b16 %v7615
  %v7772 = vunpack.c.l.b16 %v7616
  %v7773 = vunpack.c.h.b16 %v7616
  %v7774 = vunpack.c.l.b16 %v7617
  %v7775 = vunpack.c.h.b16 %v7617
  %v7776 = vunpack.c.l.b16 %v7618
  %v7777 = vunpack.c.h.b16 %v7618
  %v7778 = vunpack.c.l.b16 %v7619
  %v7779 = vunpack.c.h.b16 %v7619
  %v7780 = vunpack.c.l.b16 %v7620
  %v7781 = vunpack.c.h.b16 %v7620
  %v7782 = vunpack.c.l.b16 %v7621
  %v7783 = vunpack.c.h.b16 %v7621
  %v7784 = vunpack.c.l.b16 %v7622
  %v7785 = vunpack.c.h.b16 %v7622
  %v7786 = vunpack.c.l.b16 %v7623
  %v7787 = vunpack.c.h.b16 %v7623
  %v7788 = vunpack.c.l.b16 %v7624
  %v7789 = vunpack.c.h.b16 %v7624
  %v7790 = vunpack.c.l.b16 %v7625
  %v7791 = vunpack.c.h.b16 %v7625
  %v7792 = vunpack.c.l.b16 %v7626
  %v7793 = vunpack.c.h.b16 %v7626
  %v7794 = vunpack.c.l.b16 %v7627
  %v7795 = vunpack.c.h.b16 %v7627
  %v7796 = vunpack.c.l.b16 %v7628
  %v7797 = vunpack.c.h.b16 %v7628
  %v7798 = vunpack.c.l.b16 %v7629
  %v7799 = vunpack.c.h.b16 %v7629
  %v7800 = vunpack.c.l.b16 %v7630
  %v7801 = vunpack.c.h.b16 %v7630
  %v7802 = vunpack.c.l.b16 %v7631
  %v7803 = vunpack.c.h.b16 %v7631
  %v7804 = vunpack.c.l.b16 %v7632
  %v7805 = vunpack.c.h.b16 %v7632
  %v7806 = vunpack.c.l.b16 %v7633
  %v7807 = vunpack.c.h.b16 %v7633
  %v7808 = vunpack.c.l.b16 %v7634
  %v7809 = vunpack.c.h.b16 %v7634
  %v7810 = vunpack.c.l.b16 %v7635
  %v7811 = vunpack.c.h.b16 %v7635
  %v7812 = vunpack.c.l.b16 %v7636
  %v7813 = vunpack.c.h.b16 %v7636
  %v7814 = vunpack.c.l.b16 %v7637
  %v7815 = vunpack.c.h.b16 %v7637
  %v7816 = vunpack.c.l.b16 %v7638
  %v7817 = vunpack.c.h.b16 %v7638
  %v7818 = vunpack.c.l.b16 %v7639
  %v7819 = vunpack.c.h.b16 %v7639
  %v7820 = vunpack.c.l.b16 %v7640
  %v7821 = vunpack.c.h.b16 %v7640
  %v7822 = vunpack.c.l.b16 %v7641
  %v7823 = vunpack.c.h.b16 %v7641
  %v7824 = vunpack.c.l.b16 %v7642
  %v7825 = vunpack.c.h.b16 %v7642
  %v7826 = vunpack.c.l.b16 %v7643
  %v7827 = vunpack.c.h.b16 %v7643
  %v7828 = vunpack.c.l.b16 %v7644
  %v7829 = vunpack.c.h.b16 %v7644
  %v7830 = vunpack.c.l.b16 %v7645
  %v7831 = vunpack.c.h.b16 %v7645
  %v7832 = vunpack.c.l.b16 %v7646
  %v7833 = vunpack.c.h.b16 %v7646
  %v7834 = vunpack.c.l.b16 %v7647
  %v7835 = vunpack.c.h.b16 %v7647
  %v7836 = vunpack.c.l.b16 %v7648
  %v7837 = vunpack.c.h.b16 %v7648
  %v7838 = vunpack.c.l.b16 %v7649
  %v7839 = vunpack.c.h.b16 %v7649
  %v7840 = vunpack.c.l.b16 %v7650
  %v7841 = vunpack.c.h.b16 %v7650
  %v7842 = vunpack.c.l.b16 %v7651
  %v7843 = vunpack.c.h.b16 %v7651
  %v7844 = vunpack.c.l.b16 %v7652
  %v7845 = vunpack.c.h.b16 %v7652
  %v7846 = vunpack.c.l.b16 %v7653
  %v7847 = vunpack.c.h.b16 %v7653
  %v7848 = vunpack.c.l.b16 %v7654
  %v7849 = vunpack.c.h.b16 %v7654
  %v7850 = vunpack.c.l.b16 %v7655
  %v7851 = vunpack.c.h.b16 %v7655
  %v7852 = vunpack.c.l.b16 %v7656
  %v7853 = vunpack.c.h.b16 %v7656
  %v7854 = vunpack.c.l.b16 %v7657
  %v7855 = vunpack.c.h.b16 %v7657
  %v7856 = vunpack.c.l.b16 %v7658
  %v7857 = vunpack.c.h.b16 %v7658
  %v7858 = vunpack.c.l.b16 %v7659
  %v7859 = vunpack.c.h.b16 %v7659
  %v7860 = vunpack.c.l.b16 %v7660
  %v7861 = vunpack.c.h.b16 %v7660
  %v7862 = vunpack.c.l.b16 %v7661
  %v7863 = vunpack.c.h.b16 %v7661
  %v7864 = vunpack.c.l.b16 %v7662
  %v7865 = vunpack.c.h.b16 %v7662
  %v7866 = vunpack.c.l.b16 %v7663
  %v7867 = vunpack.c.h.b16 %v7663
  %v7868 = vunpack.c.l.b16 %v7664
  %v7869 = vunpack.c.h.b16 %v7664
  %v7870 = vunpack.c.l.b16 %v7665
  %v7871 = vunpack.c.h.b16 %v7665
  %v7872 = vunpack.c.l.b16 %v7666
  %v7873 = vunpack.c.h.b16 %v7666
  %v7874 = vpack.c.b16 %v7742, %v7740
  %v7875 = vpack.c.b16 %v7743, %v7741
  %v7876 = vpack.c.b16 %v7746, %v7744
  %v7877 = vpack.c.b16 %v7747, %v7745
  %v7878 = vpack.c.b16 %v7750, %v7748
  %v7879 = vpack.c.b16 %v7751, %v7749
  %v7880 = vpack.c.b16 %v7754, %v7752
  %v7881 = vpack.c.b16 %v7755, %v7753
  %v7882 = vpack.c.b16 %v7758, %v7756
  %v7883 = vpack.c.b16 %v7759, %v7757
  %v7884 = vpack.c.b16 %v7762, %v7760
  %v7885 = vpack.c.b16 %v7763, %v7761
  %v7886 = vpack.c.b16 %v7766, %v7764
  %v7887 = vpack.c.b16 %v7767, %v7765
  %v7888 = vpack.c.b16 %v7770, %v7768
  %v7889 = vpack.c.b16 %v7771, %v7769
  %v7890 = vpack.c.b16 %v7774, %v7772
  %v7891 = vpack.c.b16 %v7775, %v7773
  %v7892 = vpack.c.b16 %v7778, %v7776
  %v7893 = vpack.c.b16 %v7779, %v7777
  %v7894 = vpack.c.b16 %v7782, %v7780
  %v7895 = vpack.c.b16 %v7783, %v7781
  %v7896 = vpack.c.b16 %v7786, %v7784
  %v7897 = vpack.c.b16 %v7787, %v7785
  %v7898 = vpack.c.b16 %v7790, %v7788
  %v7899 = vpack.c.b16 %v7791, %v7789
  %v7900 = vpack.c.b16 %v7794, %v7792
  %v7901 = vpack.c.b16 %v7795, %v7793
  %v7902 = vpack.c.b16 %v7798, %v7796
  %v7903 = vpack.c.b16 %v7799, %v7797
  %v7904 = vpack.c.b16 %v7802, %v7800
  %v7905 = vpack.c.b16 %v7803, %v7801
  %v7906 = vpack.c.b16 %v7806, %v7804
  %v7907 = vpack.c.b16 %v7807, %v7805
  %v7908 = vpack.c.b16 %v7810, %v7808
  %v7909 = vpack.c.b16 %v7811, %v7809
  %v7910 = vpack.c.b16 %v7814, %v7812
  %v7911 = vpack.c.b16 %v7815, %v7813
  %v7912 = vpack.c.b16 %v7818, %v7816
  %v7913 = vpack.c.b16 %v7819, %v7817
  %v7914 = vpack.c.b16 %v7822, %v7820
  %v7915 = vpack.c.b16 %v7823, %v7821
  %v7916 = vpack.c.b16 %v7826, %v7824
  %v7917 = vpack.c.b16 %v7827, %v7825
  %v7918 = vpack.c.b16 %v7830, %v7828
  %v7919 = vpack.c.b16 %v7831, %v7829
  %v7920 = vpack.c.b16 %v7834, %v7832
  %v7921 = vpack.c.b16 %v7835, %v7833
  %v7922 = vpack.c.b16 %v7838, %v7836
  %v7923 = vpack.c.b16 %v7839, %v7837
  %v7924 = vpack.c.b16 %v7842, %v7840
  %v7925 = vpack.c.b16 %v7843, %v7841
  %v7926 = vpack.c.b16 %v7846, %v7844
  %v7927 = vpack.c.b16 %v7847, %v7845
  %v7928 = vpack.c.b16 %v7850, %v7848
  %v7929 = vpack.c.b16 %v7851, %v7849
  %v7930 = vpack.c.b16 %v7854, %v7852
  %v7931 = vpack.c.b16 %v7855, %v7853
  %v7932 = vpack.c.b16 %v7858, %v7856
  %v7933 = vpack.c.b16 %v7859, %v7857
  %v7934 = vpack.c.b16 %v7862, %v7860
  %v7935 = vpack.c.b16 %v7863, %v7861
  %v7936 = vpack.c.b16 %v7866, %v7864
  %v7937 = vpack.c.b16 %v7867, %v7865
  %v7938 = vpack.c.b16 %v7870, %v7868
  %v7939 = vpack.c.b16 %v7871, %v7869
  %v7940 = vpack.c.b16 %v7872, %v7872
  %v7941 = vpack.c.b16 %v7873, %v7873
  %vm8008 = vcmask 154624
  %v8010 = vsel %vm8008, %v7599, 0
  %vm8012 = vcmask 1040384
  %v8013 = vsel %vm8012, 4294967295, 65535
  %v8014 = vsel %vm155, %v8013, 0
  %v8016 = vand.u32 %v7940, %v8014
  %v8019 = vand.u32 %v7941, %v8014
  %8021 = vmatpush.bf16.msra.mxu0 %v7888
  %8022 = vmatpush.bf16.msra.mxu0 %v7886
  %8023 = vmatpush.bf16.msra.mxu0 %v7884
  %8024 = vmatpush.bf16.msra.mxu0 %v7882
  %8025 = vmatpush.bf16.msra.mxu0 %v7880
  %8026 = vmatpush.bf16.msra.mxu0 %v7878
  %8027 = vmatpush.bf16.msra.mxu0 %v7876
  %8028 = vmatpush.bf16.msra.mxu0 %v7874
  %8029 = vmatmul.bf16.gmra.mxu0 %v7595
  %v8030 = vpop.f32.mrf.mxu0
  %v8031 = vadd.f32 %v7669, %v8030
  %v8032 = vpop.f32.mrf.mxu0
  %8033 = vdwg.mxu0
  %8034 = vmatpush.bf16.msra.mxu0 %v7904
  %8035 = vmatpush.bf16.msra.mxu0 %v7902
  %8036 = vmatpush.bf16.msra.mxu0 %v7900
  %8037 = vmatpush.bf16.msra.mxu0 %v7898
  %8038 = vmatpush.bf16.msra.mxu0 %v7896
  %8039 = vmatpush.bf16.msra.mxu0 %v7894
  %8040 = vmatpush.bf16.msra.mxu0 %v7892
  %8041 = vmatpush.bf16.msra.mxu0 %v7890
  %8042 = vmatmul.bf16.gmra.mxu0 %v7596
  %v8043 = vpop.f32.mrf.mxu0
  %v8044 = vadd.f32 %v8031, %v8043
  %v8045 = vpop.f32.mrf.mxu0
  %8046 = vdwg.mxu0
  %8047 = vmatpush.bf16.msra.mxu0 %v7920
  %8048 = vmatpush.bf16.msra.mxu0 %v7918
  %8049 = vmatpush.bf16.msra.mxu0 %v7916
  %8050 = vmatpush.bf16.msra.mxu0 %v7914
  %8051 = vmatpush.bf16.msra.mxu0 %v7912
  %8052 = vmatpush.bf16.msra.mxu0 %v7910
  %8053 = vmatpush.bf16.msra.mxu0 %v7908
  %8054 = vmatpush.bf16.msra.mxu0 %v7906
  %8055 = vmatmul.bf16.gmra.mxu0 %v7597
  %v8056 = vpop.f32.mrf.mxu0
  %v8057 = vadd.f32 %v8044, %v8056
  %v8058 = vpop.f32.mrf.mxu0
  %8059 = vdwg.mxu0
  %8060 = vmatpush.bf16.msra.mxu0 %v7936
  %8061 = vmatpush.bf16.msra.mxu0 %v7934
  %8062 = vmatpush.bf16.msra.mxu0 %v7932
  %8063 = vmatpush.bf16.msra.mxu0 %v7930
  %8064 = vmatpush.bf16.msra.mxu0 %v7928
  %8065 = vmatpush.bf16.msra.mxu0 %v7926
  %8066 = vmatpush.bf16.msra.mxu0 %v7924
  %8067 = vmatpush.bf16.msra.mxu0 %v7922
  %8068 = vmatmul.bf16.gmra.mxu0 %v7598
  %v8069 = vpop.f32.mrf.mxu0
  %v8070 = vadd.f32 %v8057, %v8069
  %v8071 = vpop.f32.mrf.mxu0
  %8072 = vdwg.mxu0
  %8073 = vmatpush.bf16.msra.mxu0 0
  %8074 = vmatpush.bf16.msra.mxu0 0
  %8075 = vmatpush.bf16.msra.mxu0 0
  %8076 = vmatpush.bf16.msra.mxu0 0
  %8077 = vmatpush.bf16.msra.mxu0 0
  %8078 = vmatpush.bf16.msra.mxu0 0
  %8079 = vmatpush.bf16.msra.mxu0 %v8016
  %8080 = vmatpush.bf16.msra.mxu0 %v7938
  %8081 = vmatmul.bf16.gmra.mxu0 %v8010
  %v8082 = vpop.f32.mrf.mxu0
  %v8083 = vadd.f32 %v8070, %v8082
  %v8084 = vpop.f32.mrf.mxu0
  %8085 = vdwg.mxu0
  %8086 = vmatpush.bf16.msra.mxu0 %v7889
  %8087 = vmatpush.bf16.msra.mxu0 %v7887
  %8088 = vmatpush.bf16.msra.mxu0 %v7885
  %8089 = vmatpush.bf16.msra.mxu0 %v7883
  %8090 = vmatpush.bf16.msra.mxu0 %v7881
  %8091 = vmatpush.bf16.msra.mxu0 %v7879
  %8092 = vmatpush.bf16.msra.mxu0 %v7877
  %8093 = vmatpush.bf16.msra.mxu0 %v7875
  %8094 = vmatmul.bf16.gmra.mxu0 %v7595
  %v8095 = vpop.f32.mrf.mxu0
  %v8096 = vadd.f32 %v7670, %v8095
  %v8097 = vpop.f32.mrf.mxu0
  %8098 = vdwg.mxu0
  %8099 = vmatpush.bf16.msra.mxu0 %v7905
  %8100 = vmatpush.bf16.msra.mxu0 %v7903
  %8101 = vmatpush.bf16.msra.mxu0 %v7901
  %8102 = vmatpush.bf16.msra.mxu0 %v7899
  %8103 = vmatpush.bf16.msra.mxu0 %v7897
  %8104 = vmatpush.bf16.msra.mxu0 %v7895
  %8105 = vmatpush.bf16.msra.mxu0 %v7893
  %8106 = vmatpush.bf16.msra.mxu0 %v7891
  %8107 = vmatmul.bf16.gmra.mxu0 %v7596
  %v8108 = vpop.f32.mrf.mxu0
  %v8109 = vadd.f32 %v8096, %v8108
  %v8110 = vpop.f32.mrf.mxu0
  %8111 = vdwg.mxu0
  %8112 = vmatpush.bf16.msra.mxu0 %v7921
  %8113 = vmatpush.bf16.msra.mxu0 %v7919
  %8114 = vmatpush.bf16.msra.mxu0 %v7917
  %8115 = vmatpush.bf16.msra.mxu0 %v7915
  %8116 = vmatpush.bf16.msra.mxu0 %v7913
  %8117 = vmatpush.bf16.msra.mxu0 %v7911
  %8118 = vmatpush.bf16.msra.mxu0 %v7909
  %8119 = vmatpush.bf16.msra.mxu0 %v7907
  %8120 = vmatmul.bf16.gmra.mxu0 %v7597
  %v8121 = vpop.f32.mrf.mxu0
  %v8122 = vadd.f32 %v8109, %v8121
  %v8123 = vpop.f32.mrf.mxu0
  %8124 = vdwg.mxu0
  %8125 = vmatpush.bf16.msra.mxu0 %v7937
  %8126 = vmatpush.bf16.msra.mxu0 %v7935
  %8127 = vmatpush.bf16.msra.mxu0 %v7933
  %8128 = vmatpush.bf16.msra.mxu0 %v7931
  %8129 = vmatpush.bf16.msra.mxu0 %v7929
  %8130 = vmatpush.bf16.msra.mxu0 %v7927
  %8131 = vmatpush.bf16.msra.mxu0 %v7925
  %8132 = vmatpush.bf16.msra.mxu0 %v7923
  %8133 = vmatmul.bf16.gmra.mxu0 %v7598
  %v8134 = vpop.f32.mrf.mxu0
  %v8135 = vadd.f32 %v8122, %v8134
  %v8136 = vpop.f32.mrf.mxu0
  %8137 = vdwg.mxu0
  %8138 = vmatpush.bf16.msra.mxu0 0
  %8139 = vmatpush.bf16.msra.mxu0 0
  %8140 = vmatpush.bf16.msra.mxu0 0
  %8141 = vmatpush.bf16.msra.mxu0 0
  %8142 = vmatpush.bf16.msra.mxu0 0
  %8143 = vmatpush.bf16.msra.mxu0 0
  %8144 = vmatpush.bf16.msra.mxu0 %v8019
  %8145 = vmatpush.bf16.msra.mxu0 %v7939
  %8146 = vmatmul.bf16.gmra.mxu0 %v8010
  %v8147 = vpop.f32.mrf.mxu0
  %v8148 = vadd.f32 %v8135, %v8147
  %v8149 = vpop.f32.mrf.mxu0
  %8150 = vdwg.mxu0
  %v8151 = vmax.f32 %v8083, 0.0
  %v8152 = vmax.f32 %v8148, 0.0
  %v8153 = vsel %vm7402, %v8151, 0.0
  %v8154 = vrot.slane %v8153, 4
  %v8155 = vadd.f32 %v8153, %v8154
  %v8156 = vrot.slane %v8155, 2
  %v8157 = vadd.f32 %v8155, %v8156
  %v8158 = vrot.slane %v8157, 1
  %v8159 = vadd.f32 %v8157, %v8158
  %v8160 = vsel %vm7402, %v8152, 0.0
  %v8161 = vrot.slane %v8160, 4
  %v8162 = vadd.f32 %v8160, %v8161
  %v8163 = vrot.slane %v8162, 2
  %v8164 = vadd.f32 %v8162, %v8163
  %v8165 = vrot.slane %v8164, 1
  %v8166 = vadd.f32 %v8164, %v8165
  %v8167 = vmul.f32 %v8159, %v7445
  %v8168 = vmul.f32 %v8166, %v7445
  %v8169 = vsub.f32 %v8151, %v8167
  %v8170 = vsub.f32 %v8152, %v8168
  %v8171 = vmul.f32 %v8169, %v8169
  %v8172 = vmul.f32 %v8170, %v8170
  %v8173 = vsel %vm7402, %v8171, 0.0
  %v8174 = vrot.slane %v8173, 4
  %v8175 = vadd.f32 %v8173, %v8174
  %v8176 = vrot.slane %v8175, 2
  %v8177 = vadd.f32 %v8175, %v8176
  %v8178 = vrot.slane %v8177, 1
  %v8179 = vadd.f32 %v8177, %v8178
  %v8180 = vsel %vm7402, %v8172, 0.0
  %v8181 = vrot.slane %v8180, 4
  %v8182 = vadd.f32 %v8180, %v8181
  %v8183 = vrot.slane %v8182, 2
  %v8184 = vadd.f32 %v8182, %v8183
  %v8185 = vrot.slane %v8184, 1
  %v8186 = vadd.f32 %v8184, %v8185
  %v8187 = vmul.f32 %v8179, %v7445
  %v8188 = vmul.f32 %v8186, %v7445
  %v8189 = vld [vmem:[%s33] sm:$0x3]
  %v8191 = vperm.slane %v8189, 0
  %v8192 = vperm.slane %v8189, 1
  %v8195 = vmul.f32 %v8191, %v8169
  %v8196 = vmul.f32 %v8192, %v8170
  %v8197 = vadd.f32 %v8187, 1e-05
  %v8198 = vadd.f32 %v8188, 1e-05
  %v8199 = vrsqrt.pop %v8197
  %v8200 = vmul.f32 %v8199, %v8197
  %v8201 = vmul.f32 %v8200, %v8199
  %v8202 = vmul.f32 0.5, %v8201
  %v8203 = vsub.f32 1.5, %v8202
  %v8204 = vmul.f32 %v8199, %v8203
  %vm8205 = vweird.f32 %v8197
  %vm8206 = vweird.f32 %v8199
  %vm8207 = vmor %vm8205, %vm8206
  %v8208 = vsel %vm8207, %v8199, %v8204
  %v8209 = vrsqrt.pop %v8198
  %v8210 = vmul.f32 %v8209, %v8198
  %v8211 = vmul.f32 %v8210, %v8209
  %v8212 = vmul.f32 0.5, %v8211
  %v8213 = vsub.f32 1.5, %v8212
  %v8214 = vmul.f32 %v8209, %v8213
  %vm8215 = vweird.f32 %v8198
  %vm8216 = vweird.f32 %v8209
  %vm8217 = vmor %vm8215, %vm8216
  %v8218 = vsel %vm8217, %v8209, %v8214
  %v8219 = vmul.f32 %v8195, %v8208
  %v8220 = vmul.f32 %v8196, %v8218
  %v8221 = vld [vmem:[%s35] sm:$0x3]
  %v8223 = vperm.slane %v8221, 0
  %v8224 = vperm.slane %v8221, 1
  %v8227 = vadd.f32 %v8219, %v8223
  %v8228 = vadd.f32 %v8220, %v8224
  %v8229 = vpack.c.bf16 %v8227, %v8227
  %v8230 = vpack.c.bf16 %v8228, %v8228
  %v8231 = vld [vmem:[%s37] sm:$0xf]
  %v8232 = vld [vmem:[%s37 + $0x4] sm:$0xf]
  %v8233 = vld [vmem:[%s37 + $0x8] sm:$0xf]
  %v8234 = vld [vmem:[%s37 + $0xc] sm:$0xf]
  %v8235 = vld [vmem:[%s37 + $0x10] sm:$0xf]
  %v8236 = vld [vmem:[%s37 + $0x14] sm:$0xf]
  %v8237 = vld [vmem:[%s37 + $0x18] sm:$0xf]
  %v8238 = vld [vmem:[%s37 + $0x1c] sm:$0xf]
  %v8239 = vld [vmem:[%s37 + $0x20] sm:$0xf]
  %v8240 = vld [vmem:[%s37 + $0x24] sm:$0xf]
  %v8241 = vld [vmem:[%s37 + $0x28] sm:$0xf]
  %v8242 = vld [vmem:[%s37 + $0x2c] sm:$0xf]
  %v8243 = vld [vmem:[%s37 + $0x30] sm:$0xf]
  %v8244 = vld [vmem:[%s37 + $0x34] sm:$0xf]
  %v8245 = vld [vmem:[%s37 + $0x38] sm:$0xf]
  %v8246 = vld [vmem:[%s37 + $0x3c] sm:$0xf]
  %v8247 = vld [vmem:[%s37 + $0x40] sm:$0xf]
  %v8248 = vld [vmem:[%s37 + $0x44] sm:$0xf]
  %v8249 = vld [vmem:[%s37 + $0x48] sm:$0xf]
  %v8250 = vld [vmem:[%s37 + $0x4c] sm:$0xf]
  %v8251 = vld [vmem:[%s37 + $0x50] sm:$0xf]
  %v8252 = vld [vmem:[%s37 + $0x54] sm:$0xf]
  %v8253 = vld [vmem:[%s37 + $0x58] sm:$0xf]
  %v8254 = vld [vmem:[%s37 + $0x5c] sm:$0xf]
  %v8255 = vld [vmem:[%s37 + $0x60] sm:$0xf]
  %v8256 = vld [vmem:[%s37 + $0x64] sm:$0xf]
  %v8257 = vld [vmem:[%s37 + $0x68] sm:$0xf]
  %v8258 = vld [vmem:[%s37 + $0x6c] sm:$0xf]
  %v8259 = vld [vmem:[%s37 + $0x70] sm:$0xf]
  %v8260 = vld [vmem:[%s37 + $0x74] sm:$0xf]
  %v8261 = vld [vmem:[%s37 + $0x78] sm:$0xf]
  %v8262 = vld [vmem:[%s37 + $0x7c] sm:$0xf]
  %v8263 = vld [vmem:[%s39] sm:$0x1]
  %v8265 = vperm.slane %v8263, 0
  %v8299 = vunpack.c.l.b16 %v8231
  %v8300 = vunpack.c.l.b16 %v8232
  %v8301 = vunpack.c.l.b16 %v8233
  %v8302 = vunpack.c.l.b16 %v8234
  %v8303 = vunpack.c.l.b16 %v8235
  %v8304 = vunpack.c.l.b16 %v8236
  %v8305 = vunpack.c.l.b16 %v8237
  %v8306 = vunpack.c.l.b16 %v8238
  %v8307 = vunpack.c.l.b16 %v8239
  %v8308 = vunpack.c.l.b16 %v8240
  %v8309 = vunpack.c.l.b16 %v8241
  %v8310 = vunpack.c.l.b16 %v8242
  %v8311 = vunpack.c.l.b16 %v8243
  %v8312 = vunpack.c.l.b16 %v8244
  %v8313 = vunpack.c.l.b16 %v8245
  %v8314 = vunpack.c.l.b16 %v8246
  %v8315 = vunpack.c.l.b16 %v8247
  %v8316 = vunpack.c.l.b16 %v8248
  %v8317 = vunpack.c.l.b16 %v8249
  %v8318 = vunpack.c.l.b16 %v8250
  %v8319 = vunpack.c.l.b16 %v8251
  %v8320 = vunpack.c.l.b16 %v8252
  %v8321 = vunpack.c.l.b16 %v8253
  %v8322 = vunpack.c.l.b16 %v8254
  %v8323 = vunpack.c.l.b16 %v8255
  %v8324 = vunpack.c.l.b16 %v8256
  %v8325 = vunpack.c.l.b16 %v8257
  %v8326 = vunpack.c.l.b16 %v8258
  %v8327 = vunpack.c.l.b16 %v8259
  %v8328 = vunpack.c.l.b16 %v8260
  %v8329 = vunpack.c.l.b16 %v8261
  %v8330 = vunpack.c.l.b16 %v8262
  %v8331 = vpack.c.b16 %v8300, %v8299
  %v8332 = vpack.c.b16 %v8302, %v8301
  %v8333 = vpack.c.b16 %v8304, %v8303
  %v8334 = vpack.c.b16 %v8306, %v8305
  %v8335 = vpack.c.b16 %v8308, %v8307
  %v8336 = vpack.c.b16 %v8310, %v8309
  %v8337 = vpack.c.b16 %v8312, %v8311
  %v8338 = vpack.c.b16 %v8314, %v8313
  %v8339 = vpack.c.b16 %v8316, %v8315
  %v8340 = vpack.c.b16 %v8318, %v8317
  %v8341 = vpack.c.b16 %v8320, %v8319
  %v8342 = vpack.c.b16 %v8322, %v8321
  %v8343 = vpack.c.b16 %v8324, %v8323
  %v8344 = vpack.c.b16 %v8326, %v8325
  %v8345 = vpack.c.b16 %v8328, %v8327
  %v8346 = vpack.c.b16 %v8330, %v8329
  %8363 = vmatpush.bf16.msra.mxu0 %v8338
  %8364 = vmatpush.bf16.msra.mxu0 %v8337
  %8365 = vmatpush.bf16.msra.mxu0 %v8336
  %8366 = vmatpush.bf16.msra.mxu0 %v8335
  %8367 = vmatpush.bf16.msra.mxu0 %v8334
  %8368 = vmatpush.bf16.msra.mxu0 %v8333
  %8369 = vmatpush.bf16.msra.mxu0 %v8332
  %8370 = vmatpush.bf16.msra.mxu0 %v8331
  %8371 = vmatmul.bf16.gmra.mxu0 %v8229
  %v8372 = vpop.f32.mrf.mxu0
  %v8373 = vadd.f32 %v8265, %v8372
  %v8374 = vpop.f32.mrf.mxu0
  %8375 = vdwg.mxu0
  %8376 = vmatpush.bf16.msra.mxu0 %v8346
  %8377 = vmatpush.bf16.msra.mxu0 %v8345
  %8378 = vmatpush.bf16.msra.mxu0 %v8344
  %8379 = vmatpush.bf16.msra.mxu0 %v8343
  %8380 = vmatpush.bf16.msra.mxu0 %v8342
  %8381 = vmatpush.bf16.msra.mxu0 %v8341
  %8382 = vmatpush.bf16.msra.mxu0 %v8340
  %8383 = vmatpush.bf16.msra.mxu0 %v8339
  %8384 = vmatmul.bf16.gmra.mxu0 %v8230
  %v8385 = vpop.f32.mrf.mxu0
  %v8386 = vadd.f32 %v8373, %v8385
  %v8387 = vpop.f32.mrf.mxu0
  %8388 = vdwg.mxu0
  %v8389 = vmax.f32 %v8386, 0.0
  %v8390 = vsel %vm7402, %v8389, 0.0
  %v8391 = vrot.slane %v8390, 4
  %v8392 = vadd.f32 %v8390, %v8391
  %v8393 = vrot.slane %v8392, 2
  %v8394 = vadd.f32 %v8392, %v8393
  %v8395 = vrot.slane %v8394, 1
  %v8396 = vadd.f32 %v8394, %v8395
  %v8397 = vmul.f32 %v8396, %v7445
  %v8398 = vsub.f32 %v8389, %v8397
  %v8399 = vmul.f32 %v8398, %v8398
  %v8400 = vsel %vm7402, %v8399, 0.0
  %v8401 = vrot.slane %v8400, 4
  %v8402 = vadd.f32 %v8400, %v8401
  %v8403 = vrot.slane %v8402, 2
  %v8404 = vadd.f32 %v8402, %v8403
  %v8405 = vrot.slane %v8404, 1
  %v8406 = vadd.f32 %v8404, %v8405
  %v8407 = vmul.f32 %v8406, %v7445
  %v8408 = vld [vmem:[%s41] sm:$0x1]
  %v8410 = vperm.slane %v8408, 0
  %v8412 = vmul.f32 %v8410, %v8398
  %v8413 = vadd.f32 %v8407, 1e-05
  %v8414 = vrsqrt.pop %v8413
  %v8415 = vmul.f32 %v8414, %v8413
  %v8416 = vmul.f32 %v8415, %v8414
  %v8417 = vmul.f32 0.5, %v8416
  %v8418 = vsub.f32 1.5, %v8417
  %v8419 = vmul.f32 %v8414, %v8418
  %vm8420 = vweird.f32 %v8413
  %vm8421 = vweird.f32 %v8414
  %vm8422 = vmor %vm8420, %vm8421
  %v8423 = vsel %vm8422, %v8414, %v8419
  %v8424 = vmul.f32 %v8412, %v8423
  %v8425 = vld [vmem:[%s43] sm:$0x1]
  %v8427 = vperm.slane %v8425, 0
  %v8429 = vadd.f32 %v8424, %v8427
  %v8430 = vpack.c.bf16 %v8429, %v8429
  %v8431 = vld [vmem:[%s45] sm:$0xf]
  %v8432 = vld [vmem:[%s45 + $0x4] sm:$0xf]
  %v8433 = vld [vmem:[%s45 + $0x8] sm:$0xf]
  %v8434 = vld [vmem:[%s45 + $0xc] sm:$0xf]
  %v8435 = vld [vmem:[%s45 + $0x10] sm:$0xf]
  %v8436 = vld [vmem:[%s45 + $0x14] sm:$0xf]
  %v8437 = vld [vmem:[%s45 + $0x18] sm:$0xf]
  %v8438 = vld [vmem:[%s45 + $0x1c] sm:$0xf]
  %v8439 = vld [vmem:[%s45 + $0x20] sm:$0xf]
  %v8440 = vld [vmem:[%s45 + $0x24] sm:$0xf]
  %v8441 = vld [vmem:[%s45 + $0x28] sm:$0xf]
  %v8442 = vld [vmem:[%s45 + $0x2c] sm:$0xf]
  %v8443 = vld [vmem:[%s45 + $0x30] sm:$0xf]
  %v8444 = vld [vmem:[%s45 + $0x34] sm:$0xf]
  %v8445 = vld [vmem:[%s45 + $0x38] sm:$0xf]
  %v8446 = vld [vmem:[%s45 + $0x3c] sm:$0xf]
  %v8447 = vld [vmem:[%s47] sm:$0x1]
  %v8449 = vperm.slane %v8447, 0
  %v8467 = vunpack.c.l.b16 %v8431
  %v8468 = vunpack.c.l.b16 %v8432
  %v8469 = vunpack.c.l.b16 %v8433
  %v8470 = vunpack.c.l.b16 %v8434
  %v8471 = vunpack.c.l.b16 %v8435
  %v8472 = vunpack.c.l.b16 %v8436
  %v8473 = vunpack.c.l.b16 %v8437
  %v8474 = vunpack.c.l.b16 %v8438
  %v8475 = vunpack.c.l.b16 %v8439
  %v8476 = vunpack.c.l.b16 %v8440
  %v8477 = vunpack.c.l.b16 %v8441
  %v8478 = vunpack.c.l.b16 %v8442
  %v8479 = vunpack.c.l.b16 %v8443
  %v8480 = vunpack.c.l.b16 %v8444
  %v8481 = vunpack.c.l.b16 %v8445
  %v8482 = vunpack.c.l.b16 %v8446
  %v8483 = vpack.c.b16 %v8468, %v8467
  %v8484 = vpack.c.b16 %v8470, %v8469
  %v8485 = vpack.c.b16 %v8472, %v8471
  %v8486 = vpack.c.b16 %v8474, %v8473
  %v8487 = vpack.c.b16 %v8476, %v8475
  %v8488 = vpack.c.b16 %v8478, %v8477
  %v8489 = vpack.c.b16 %v8480, %v8479
  %v8490 = vpack.c.b16 %v8482, %v8481
  %8499 = vmatpush.bf16.msra.mxu0 %v8490
  %8500 = vmatpush.bf16.msra.mxu0 %v8489
  %8501 = vmatpush.bf16.msra.mxu0 %v8488
  %8502 = vmatpush.bf16.msra.mxu0 %v8487
  %8503 = vmatpush.bf16.msra.mxu0 %v8486
  %8504 = vmatpush.bf16.msra.mxu0 %v8485
  %8505 = vmatpush.bf16.msra.mxu0 %v8484
  %8506 = vmatpush.bf16.msra.mxu0 %v8483
  %8507 = vmatmul.bf16.gmra.mxu0 %v8430
  %v8508 = vpop.f32.mrf.mxu0
  %v8509 = vadd.f32 %v8449, %v8508
  %v8510 = vpop.f32.mrf.mxu0
  %8511 = vdwg.mxu0
  %v8512 = vmax.f32 %v8509, 0.0
  %vm8513 = vcmask 257024
  %8514 = vst.msk [vmem:[#allocation4] sm:$0xf] %vm8513, %v590
  %8516 = vrot.lane.b32.xlu0 %v8512, 32
  %v8517 = vpop.permute.xlu0 %8516
  %8519 = vst.msk [vmem:[#allocation4] sm:$0xf] %vm242, %v8517
  %v8520 = vld [vmem:[#allocation4] sm:$0xf]
  %v8521 = vpack.c.bf16 %v8520, %v8520
  %v8522 = vld [vmem:[%s49] sm:$0xf]
  %v8523 = vld [vmem:[%s49 + $0x4] sm:$0xf]
  %v8524 = vld [vmem:[%s49 + $0x8] sm:$0xf]
  %v8525 = vld [vmem:[%s49 + $0xc] sm:$0xf]
  %v8526 = vld [vmem:[%s49 + $0x10] sm:$0xf]
  %v8527 = vld [vmem:[%s49 + $0x14] sm:$0xf]
  %v8528 = vld [vmem:[%s49 + $0x18] sm:$0xf]
  %v8529 = vld [vmem:[%s49 + $0x1c] sm:$0xf]
  %v8530 = vld [vmem:[%s51] sm:$0x1]
  %v8532 = vperm.slane %v8530, 0
  %v8542 = vunpack.c.l.b16 %v8522
  %v8543 = vunpack.c.l.b16 %v8523
  %v8544 = vunpack.c.l.b16 %v8524
  %v8545 = vunpack.c.l.b16 %v8525
  %v8546 = vunpack.c.l.b16 %v8526
  %v8547 = vunpack.c.l.b16 %v8527
  %v8548 = vunpack.c.l.b16 %v8528
  %v8549 = vunpack.c.l.b16 %v8529
  %v8550 = vpack.c.b16 %v8543, %v8542
  %v8551 = vpack.c.b16 %v8545, %v8544
  %v8552 = vpack.c.b16 %v8547, %v8546
  %v8553 = vpack.c.b16 %v8549, %v8548
  %v8559 = vsel %vm547, %v8521, 0
  %8561 = vmatpush.bf16.msra.mxu0 0
  %8562 = vmatpush.bf16.msra.mxu0 0
  %8563 = vmatpush.bf16.msra.mxu0 0
  %8564 = vmatpush.bf16.msra.mxu0 0
  %8565 = vmatpush.bf16.msra.mxu0 %v8553
  %8566 = vmatpush.bf16.msra.mxu0 %v8552
  %8567 = vmatpush.bf16.msra.mxu0 %v8551
  %8568 = vmatpush.bf16.msra.mxu0 %v8550
  %8569 = vmatmul.bf16.gmra.mxu0 %v8559
  %v8570 = vpop.f32.mrf.mxu0
  %v8571 = vadd.f32 %v8532, %v8570
  %v8572 = vpop.f32.mrf.mxu0
  %8573 = vdwg.mxu0
  %v8574 = vpack.c.bf16 %v8571, %v8571
  %v8575 = vld [vmem:[%s53] sm:$0xf]
  %v8576 = vld [vmem:[%s53 + $0x4] sm:$0xf]
  %v8577 = vld [vmem:[%s53 + $0x8] sm:$0xf]
  %v8578 = vld [vmem:[%s53 + $0xc] sm:$0xf]
  %v8579 = vld [vmem:[%s55] sm:$0x1]
  %v8581 = vperm.slane %v8579, 0
  %v8587 = vunpack.c.l.b16 %v8575
  %v8588 = vunpack.c.l.b16 %v8576
  %v8589 = vunpack.c.l.b16 %v8577
  %v8590 = vunpack.c.l.b16 %v8578
  %v8591 = vpack.c.b16 %v8588, %v8587
  %v8592 = vpack.c.b16 %v8590, %v8589
  %v8596 = vsel %vm244, %v8574, 0
  %8598 = vmatpush.bf16.msra.mxu0 0
  %8599 = vmatpush.bf16.msra.mxu0 0
  %8600 = vmatpush.bf16.msra.mxu0 0
  %8601 = vmatpush.bf16.msra.mxu0 0
  %8602 = vmatpush.bf16.msra.mxu0 0
  %8603 = vmatpush.bf16.msra.mxu0 0
  %8604 = vmatpush.bf16.msra.mxu0 %v8592
  %8605 = vmatpush.bf16.msra.mxu0 %v8591
  %8606 = vmatmul.bf16.gmra.mxu0 %v8596
  %v8607 = vpop.f32.mrf.mxu0
  %v8608 = vadd.f32 %v8581, %v8607
  %v8609 = vpop.f32.mrf.mxu0
  %8610 = vdwg.mxu0
  %v8611 = vpack.c.bf16 %v8608, %v8608
  %v8612 = vld [vmem:[%s57] sm:$0xf]
  %v8613 = vld [vmem:[%s57 + $0x4] sm:$0xf]
  %v8614 = vld [vmem:[%s59] sm:$0x1]
  %v8616 = vperm.slane %v8614, 0
  %v8620 = vunpack.c.l.b16 %v8612
  %v8621 = vunpack.c.l.b16 %v8613
  %v8622 = vpack.c.b16 %v8621, %v8620
  %v8625 = vsel %vm194, %v8611, 0
  %8627 = vmatpush.bf16.msra.mxu0 0
  %8628 = vmatpush.bf16.msra.mxu0 0
  %8629 = vmatpush.bf16.msra.mxu0 0
  %8630 = vmatpush.bf16.msra.mxu0 0
  %8631 = vmatpush.bf16.msra.mxu0 0
  %8632 = vmatpush.bf16.msra.mxu0 0
  %8633 = vmatpush.bf16.msra.mxu0 0
  %8634 = vmatpush.bf16.msra.mxu0 %v8622
  %8635 = vmatmul.bf16.gmra.mxu0 %v8625
  %v8636 = vpop.f32.mrf.mxu0
  %v8637 = vadd.f32 %v8616, %v8636
  %v8638 = vpop.f32.mrf.mxu0
  %8639 = vdwg.mxu0
  %vm8640 = vcmask 11264
  %v8641 = vsel %vm8640, %v8637, -inf
  %8642 = vmax.xlane.f32.xlu0 %v8641
  %v8643 = vpop.xlane.xlu0 %8642
  %v8644 = vsub.f32 %v8637, %v8643
  %v8645 = vmul.f32 %v8644, 1.442695
  %v8646 = vpow.pop %v8645
  %v8647 = vsel %vm8640, %v8646, 0.0
  %8648 = vadd.xlane.f32.xlu0 %v8647
  %v8649 = vpop.xlane.xlu0 %8648
  %v8650 = vrcp.pop %v8649
  %v8651 = vmul.f32 %v8649, %v8650
  %v8652 = vsub.f32 1.0, %v8651
  %v8653 = vmul.f32 %v8650, %v8652
  %v8654 = vadd.f32 %v8650, %v8653
  %vm8655 = vweird.f32 %v8649
  %vm8656 = vweird.f32 %v8650
  %vm8657 = vmor %vm8655, %vm8656
  %v8658 = vsel %vm8657, %v8650, %v8654
  %v8659 = vand.u32 2147483647, %v8649
  %vm8660 = vcmp.eq.f32.partialorder %v8659, 8.507059e+37
  %v8661 = vand.u32 %v8649, 2147483648
  %v8662 = vor.u32 1.1754944e-38, %v8661
  %v8663 = vsel %vm8660, %v8662, %v8658
  %v8664 = vmul.f32 %v8646, %v8663
  %8665 = vst.msk [vmem:[%s61] sm:$0xf] %vm8640, %v8664
  // Predicated region
  $region122: #{el_forward.1} parent=0 // pred_check
    _
  $region123: #{el_forward.1} parent=0 // pred_check_branch
    %8667 = sbr.rel (0) target = $region125
  $region124: #{el_forward.1} parent=0 // pred_region
    _
  $region125: #{el_forward.1} parent=0 // pred_fallthru
    _
  // Predicated region
  $region126: #{el_forward.1} parent=0 // pred_check
    _
  $region127: #{el_forward.1} parent=0 // pred_check_branch
    %8669 = sbr.rel (0) target = $region129
  $region128: #{el_forward.1} parent=0 // pred_region
    _
  $region129: #{el_forward.1} parent=0 // pred_fallthru
    _

</llo_original>
